<compile_context>
chip_gen: v5e
topology: v5e:2x2
jax: 0.10.0
libtpu: 0.0.40
codegen_flags: <defaults>
</compile_context>

<pallas_src>
import functools

import jax
import jax.numpy as jnp
from jax.experimental import pallas as pl
from jax.experimental.pallas import tpu as pltpu

TCF = 256   # Cf tile width: multiple of 128 (v5e MXU), 256-friendly on v6e/v7x
NCP = 128   # classifier logits padded to one full lane tile


def _silu_k(x):
    # x * sigmoid(x), explicit reciprocal form (flip approx=True if the epilogue ever shows
    # up in a bundle profile; kept exact here so the numerical self-check stays tight).
    return x * pl.reciprocal(1.0 + jnp.exp(-x), approx=False)


def _silu_ref(x):
    return x / (1.0 + jnp.exp(-x))


def _fused_kernel(x_ref, ws_ref, bs_ref, w1_ref, b1_ref, w2_ref, b2_ref,
                  o_ref, hacc_ref, *, H, W):
    """Grid = (B, Cf // TCF).  Per step: one Cf tile of conv stem + SiLU + global-avg-pool,
    partial hidden-layer matmul accumulated into VMEM scratch; head finalized on last tile."""
    wp = W + 2                 # padded row width
    rows = H * wp              # slab height (includes 2 'wrap' columns per row, masked below)
    tcf = ws_ref.shape[2]
    j = pl.program_id(1)

    @pl.when(j == 0)
    def _():
        hacc_ref[...] = jnp.zeros_like(hacc_ref)

    # ---- conv stem: 9 shifted matmul-accumulates (bf16 x bf16 -> f32 on the MXU) --------
    x_full = x_ref[0].astype(jnp.float32)            # [(H+3)*(W+2), Cin]
    acc = jnp.zeros((rows, tcf), jnp.float32)
    for di in range(3):
        for dj in range(3):
            start = di * wp + dj
            slab = x_full[start:start + rows, :].astype(jnp.bfloat16)   # [rows, Cin]
            acc = acc + jnp.dot(slab, ws_ref[3 * di + dj],
                                preferred_element_type=jnp.float32)
    act = _silu_k(acc + bs_ref[...])                 # [rows, tcf]  f32

    # ---- fused global average pool for this Cf tile (mask out the wrap columns) ----------
    col = jax.lax.broadcasted_iota(jnp.int32, (rows, 1), 0) % wp
    valid = (col < W).astype(jnp.float32)
    pooled = jnp.sum(act * valid, axis=0, keepdims=True) * (1.0 / (H * W))   # [1, tcf]

    # ---- partial hidden layer: accumulate pooled_tile @ w1_tile into VMEM scratch --------
    hacc_ref[...] += jnp.dot(pooled.astype(jnp.bfloat16), w1_ref[...],
                             preferred_element_type=jnp.float32)

    # ---- classifier head, finalized on the last Cf tile ----------------------------------
    @pl.when(j == pl.num_programs(1) - 1)
    def _():
        h = _silu_k(hacc_ref[...] + b1_ref[...])                     # [1, HID]
        logits = jnp.dot(h.astype(jnp.bfloat16), w2_ref[...],
                         preferred_element_type=jnp.float32) + b2_ref[...]
        o_ref[0] = logits.astype(o_ref.dtype)


@jax.jit
def cnn_classifier_forward(x_nchw, params):
    B, Cin, H, W = x_nchw.shape
    Cf = params["w_stem"].shape[2]
    HID = params["w1"].shape[1]
    NC = params["w2"].shape[1]
    assert Cf % TCF == 0 and NC <= NCP

    # NHWC; zero-pad 1px for the 'same' 3x3 conv (+1 extra bottom row so every shifted slab
    # of H*(W+2) rows stays in bounds), flatten spatial -> [B, (H+3)*(W+2), Cin], bf16.
    x_nhwc = jnp.transpose(x_nchw, (0, 2, 3, 1))
    xp = jnp.pad(x_nhwc, ((0, 0), (1, 2), (1, 1), (0, 0)))
    spad = (H + 3) * (W + 2)
    x_flat = xp.reshape(B, spad, Cin).astype(jnp.bfloat16)

    ws = params["w_stem"].astype(jnp.bfloat16)                       # [9, Cin, Cf]
    bs = params["b_stem"]                                            # [1, Cf]   f32
    w1 = params["w1"].astype(jnp.bfloat16)                           # [Cf, HID]
    b1 = params["b1"]                                                # [1, HID]  f32
    w2 = jnp.pad(params["w2"], ((0, 0), (0, NCP - NC))).astype(jnp.bfloat16)   # [HID, NCP]
    b2 = jnp.pad(params["b2"], ((0, 0), (0, NCP - NC)))              # [1, NCP]  f32

    kernel = functools.partial(_fused_kernel, H=H, W=W)
    out = pl.pallas_call(
        kernel,
        out_shape=jax.ShapeDtypeStruct((B, 1, NCP), jnp.float32),
        grid_spec=pltpu.PrefetchScalarGridSpec(
            num_scalar_prefetch=0,
            grid=(B, Cf // TCF),
            in_specs=[
                pl.BlockSpec((1, spad, Cin), lambda b, j: (b, 0, 0)),   # image (resident per b)
                pl.BlockSpec((9, Cin, TCF), lambda b, j: (0, 0, j)),    # stem weight Cf tile
                pl.BlockSpec((1, TCF),      lambda b, j: (0, j)),       # stem bias  Cf tile
                pl.BlockSpec((TCF, HID),    lambda b, j: (j, 0)),       # w1 streamed over Cf
                pl.BlockSpec((1, HID),      lambda b, j: (0, 0)),
                pl.BlockSpec((HID, NCP),    lambda b, j: (0, 0)),
                pl.BlockSpec((1, NCP),      lambda b, j: (0, 0)),
            ],
            out_specs=pl.BlockSpec((1, 1, NCP), lambda b, j: (b, 0, 0)),
            scratch_shapes=[pltpu.VMEM((1, HID), jnp.float32)],         # hidden-layer accumulator
        ),
        compiler_params=pltpu.CompilerParams(
            # batch axis can shard across TensorCores; the Cf axis owns the accumulator
            # scratch so it must stay 'arbitrary'.
            dimension_semantics=("parallel", "arbitrary"),
            vmem_limit_bytes=32 * 1024 * 1024,   # comfortably within v5e/v6e/v7x budgets
        ),
    )(x_flat, ws, bs, w1, b1, w2, b2)
    return out[:, 0, :NC]


def reference_forward(x_nchw, params):
    """Pure-JAX reference mirroring the Pallas path (bf16 matmul operands, f32 accumulation)."""
    B, Cin, H, W = x_nchw.shape
    x_nhwc = jnp.transpose(x_nchw, (0, 2, 3, 1))
    xp = jnp.pad(x_nhwc, ((0, 0), (1, 1), (1, 1), (0, 0))).astype(jnp.bfloat16)
    ws = params["w_stem"].astype(jnp.bfloat16)
    Cf = ws.shape[2]
    acc = jnp.zeros((B, H, W, Cf), jnp.float32)
    for di in range(3):
        for dj in range(3):
            acc = acc + jnp.einsum(
                "bhwc,cf->bhwf", xp[:, di:di + H, dj:dj + W, :], ws[3 * di + dj],
                preferred_element_type=jnp.float32)
    act = _silu_ref(acc + params["b_stem"])
    pooled = jnp.mean(act, axis=(1, 2))                               # [B, Cf]
    h = _silu_ref(
        jnp.dot(pooled.astype(jnp.bfloat16), params["w1"].astype(jnp.bfloat16),
                preferred_element_type=jnp.float32) + params["b1"])
    return jnp.dot(h.astype(jnp.bfloat16), params["w2"].astype(jnp.bfloat16),
                   preferred_element_type=jnp.float32) + params["b2"]


def init_params(key, cin=4, cf=1280, hidden=512, n_classes=7):
    ks = jax.random.split(key, 5)
    return {
        # 3x3 conv stem weights, tap-major: w_stem[3*dy+dx, cin, cf]
        "w_stem": 0.05 * jax.random.normal(ks[0], (9, cin, cf), jnp.float32),
        "b_stem": 0.05 * jax.random.normal(ks[1], (1, cf), jnp.float32),
        "w1": 0.05 * jax.random.normal(ks[2], (cf, hidden), jnp.float32),
        "b1": 0.05 * jax.random.normal(ks[3], (1, hidden), jnp.float32),
        "w2": 0.05 * jax.random.normal(ks[4], (hidden, n_classes), jnp.float32),
        "b2": jnp.zeros((1, n_classes), jnp.float32),
    }


if __name__ == "__main__":
    key = jax.random.PRNGKey(0)
    kx, kp = jax.random.split(key)
    B, Cin, H, W = 2, 4, 16, 16          # small synthetic image batch (NCHW)
    x = jax.random.normal(kx, (B, Cin, H, W), jnp.float32)
    params = init_params(kp, cin=Cin)

    logits = jax.block_until_ready(cnn_classifier_forward(x, params))
    ref = reference_forward(x, params)

    assert logits.shape == (B, 7), logits.shape
    err = float(jnp.max(jnp.abs(logits - ref)))
    assert err < 2e-3, err
    print("KERNEL_OK")
</pallas_src>

<mosaic_0001>
module attributes {stable_mosaic.version = 11 : i64} {
  func.func @_fused_kernel(%arg0: i32, %arg1: i32, %arg2: memref<1x342x4xbf16, #tpu.memory_space<vmem>>, %arg3: memref<9x4x256xbf16, #tpu.memory_space<vmem>>, %arg4: memref<1x256xf32, #tpu.memory_space<vmem>>, %arg5: memref<256x512xbf16, #tpu.memory_space<vmem>>, %arg6: memref<1x512xf32, #tpu.memory_space<vmem>>, %arg7: memref<512x128xbf16, #tpu.memory_space<vmem>>, %arg8: memref<1x128xf32, #tpu.memory_space<vmem>>, %arg9: memref<1x1x128xf32, #tpu.memory_space<vmem>>, %arg10: memref<1x512xf32, #tpu.memory_space<vmem>>) attributes {dimension_semantics = [#tpu.dimension_semantics<parallel>, #tpu.dimension_semantics<arbitrary>], iteration_bounds = array<i64: 2, 5>, scalar_prefetch = 0 : i64, scratch_operands = 1 : i64, tpu.core_type = #tpu.core_type<tc>, window_params = [{transform_indices = @transform_0, window_bounds = array<i64: 1, 342, 4>}, {transform_indices = @transform_1, window_bounds = array<i64: 9, 4, 256>}, {transform_indices = @transform_2, window_bounds = array<i64: 1, 256>}, {transform_indices = @transform_3, window_bounds = array<i64: 256, 512>}, {pipeline_mode = #tpu.pipeline_mode<synchronous>, transform_indices = @transform_4, window_bounds = array<i64: 1, 512>}, {pipeline_mode = #tpu.pipeline_mode<synchronous>, transform_indices = @transform_5, window_bounds = array<i64: 512, 128>}, {pipeline_mode = #tpu.pipeline_mode<synchronous>, transform_indices = @transform_6, window_bounds = array<i64: 1, 128>}, {transform_indices = @transform_7, window_bounds = array<i64: 1, 1, 128>}]} {
    %c0_i32 = arith.constant 0 : i32
    %0 = arith.cmpi eq, %arg1, %c0_i32 : i32
    %1 = arith.extui %0 : i1 to i32
    %c0_i32_0 = arith.constant 0 : i32
    %2 = arith.cmpi ne, %1, %c0_i32_0 : i32
    scf.if %2 {
      %cst_49 = arith.constant 0.000000e+00 : f32
      %107 = vector.broadcast %cst_49 : f32 to vector<1x512xf32>
      %c0_50 = arith.constant 0 : index
      %c0_51 = arith.constant 0 : index
      %108 = vector.load %arg10[%c0_50, %c0_51] : memref<1x512xf32, #tpu.memory_space<vmem>>, vector<1x512xf32>
      tpu.vector_store %arg10[%c0_50, %c0_51], %107 {strides = array<i32>} : memref<1x512xf32, #tpu.memory_space<vmem>>, vector<1x512xf32>,
    } else {
    }
    %c0 = arith.constant 0 : index
    %c0_1 = arith.constant 0 : index
    %c0_2 = arith.constant 0 : index
    %3 = vector.load %arg2[%c0, %c0_1, %c0_2] : memref<1x342x4xbf16, #tpu.memory_space<vmem>>, vector<1x342x4xbf16>
    %4 = vector.shape_cast %3 : vector<1x342x4xbf16> to vector<342x4xbf16>
    %5 = arith.extf %4 : vector<342x4xbf16> to vector<342x4xf32>
    %cst = arith.constant 0.000000e+00 : f32
    %6 = vector.broadcast %cst : f32 to vector<288x256xf32>
    %7 = vector.extract_strided_slice %5 {offsets = [0, 0], sizes = [288, 4], strides = [1, 1]} : vector<342x4xf32> to vector<288x4xf32>
    %8 = arith.truncf %7 : vector<288x4xf32> to vector<288x4xbf16>
    %c0_3 = arith.constant 0 : index
    %c0_4 = arith.constant 0 : index
    %c0_5 = arith.constant 0 : index
    %9 = vector.load %arg3[%c0_3, %c0_4, %c0_5] : memref<9x4x256xbf16, #tpu.memory_space<vmem>>, vector<1x4x256xbf16>
    %10 = vector.shape_cast %9 : vector<1x4x256xbf16> to vector<4x256xbf16>
    %cst_6 = arith.constant dense<0.000000e+00> : vector<288x256xf32>
    %11 = tpu.matmul %8, %10, %cst_6 {dimension_numbers = #tpu.dot_dimension_numbers<[1], [0], [0], [1], [0, 0, 1, 1], [], []>} : vector<288x4xbf16>, vector<4x256xbf16>, vector<288x256xf32> -> vector<288x256xf32>
    %12 = arith.addf %6, %11 : vector<288x256xf32>
    %13 = vector.extract_strided_slice %5 {offsets = [1, 0], sizes = [288, 4], strides = [1, 1]} : vector<342x4xf32> to vector<288x4xf32>
    %14 = arith.truncf %13 : vector<288x4xf32> to vector<288x4xbf16>
    %c1 = arith.constant 1 : index
    %c0_7 = arith.constant 0 : index
    %c0_8 = arith.constant 0 : index
    %15 = vector.load %arg3[%c1, %c0_7, %c0_8] : memref<9x4x256xbf16, #tpu.memory_space<vmem>>, vector<1x4x256xbf16>
    %16 = vector.shape_cast %15 : vector<1x4x256xbf16> to vector<4x256xbf16>
    %cst_9 = arith.constant dense<0.000000e+00> : vector<288x256xf32>
    %17 = tpu.matmul %14, %16, %cst_9 {dimension_numbers = #tpu.dot_dimension_numbers<[1], [0], [0], [1], [0, 0, 1, 1], [], []>} : vector<288x4xbf16>, vector<4x256xbf16>, vector<288x256xf32> -> vector<288x256xf32>
    %18 = arith.addf %12, %17 : vector<288x256xf32>
    %19 = vector.extract_strided_slice %5 {offsets = [2, 0], sizes = [288, 4], strides = [1, 1]} : vector<342x4xf32> to vector<288x4xf32>
    %20 = arith.truncf %19 : vector<288x4xf32> to vector<288x4xbf16>
    %c2 = arith.constant 2 : index
    %c0_10 = arith.constant 0 : index
    %c0_11 = arith.constant 0 : index
    %21 = vector.load %arg3[%c2, %c0_10, %c0_11] : memref<9x4x256xbf16, #tpu.memory_space<vmem>>, vector<1x4x256xbf16>
    %22 = vector.shape_cast %21 : vector<1x4x256xbf16> to vector<4x256xbf16>
    %cst_12 = arith.constant dense<0.000000e+00> : vector<288x256xf32>
    %23 = tpu.matmul %20, %22, %cst_12 {dimension_numbers = #tpu.dot_dimension_numbers<[1], [0], [0], [1], [0, 0, 1, 1], [], []>} : vector<288x4xbf16>, vector<4x256xbf16>, vector<288x256xf32> -> vector<288x256xf32>
    %24 = arith.addf %18, %23 : vector<288x256xf32>
    %25 = vector.extract_strided_slice %5 {offsets = [18, 0], sizes = [288, 4], strides = [1, 1]} : vector<342x4xf32> to vector<288x4xf32>
    %26 = arith.truncf %25 : vector<288x4xf32> to vector<288x4xbf16>
    %c3 = arith.constant 3 : index
    %c0_13 = arith.constant 0 : index
    %c0_14 = arith.constant 0 : index
    %27 = vector.load %arg3[%c3, %c0_13, %c0_14] : memref<9x4x256xbf16, #tpu.memory_space<vmem>>, vector<1x4x256xbf16>
    %28 = vector.shape_cast %27 : vector<1x4x256xbf16> to vector<4x256xbf16>
    %cst_15 = arith.constant dense<0.000000e+00> : vector<288x256xf32>
    %29 = tpu.matmul %26, %28, %cst_15 {dimension_numbers = #tpu.dot_dimension_numbers<[1], [0], [0], [1], [0, 0, 1, 1], [], []>} : vector<288x4xbf16>, vector<4x256xbf16>, vector<288x256xf32> -> vector<288x256xf32>
    %30 = arith.addf %24, %29 : vector<288x256xf32>
    %31 = vector.extract_strided_slice %5 {offsets = [19, 0], sizes = [288, 4], strides = [1, 1]} : vector<342x4xf32> to vector<288x4xf32>
    %32 = arith.truncf %31 : vector<288x4xf32> to vector<288x4xbf16>
    %c4 = arith.constant 4 : index
    %c0_16 = arith.constant 0 : index
    %c0_17 = arith.constant 0 : index
    %33 = vector.load %arg3[%c4, %c0_16, %c0_17] : memref<9x4x256xbf16, #tpu.memory_space<vmem>>, vector<1x4x256xbf16>
    %34 = vector.shape_cast %33 : vector<1x4x256xbf16> to vector<4x256xbf16>
    %cst_18 = arith.constant dense<0.000000e+00> : vector<288x256xf32>
    %35 = tpu.matmul %32, %34, %cst_18 {dimension_numbers = #tpu.dot_dimension_numbers<[1], [0], [0], [1], [0, 0, 1, 1], [], []>} : vector<288x4xbf16>, vector<4x256xbf16>, vector<288x256xf32> -> vector<288x256xf32>
    %36 = arith.addf %30, %35 : vector<288x256xf32>
    %37 = vector.extract_strided_slice %5 {offsets = [20, 0], sizes = [288, 4], strides = [1, 1]} : vector<342x4xf32> to vector<288x4xf32>
    %38 = arith.truncf %37 : vector<288x4xf32> to vector<288x4xbf16>
    %c5 = arith.constant 5 : index
    %c0_19 = arith.constant 0 : index
    %c0_20 = arith.constant 0 : index
    %39 = vector.load %arg3[%c5, %c0_19, %c0_20] : memref<9x4x256xbf16, #tpu.memory_space<vmem>>, vector<1x4x256xbf16>
    %40 = vector.shape_cast %39 : vector<1x4x256xbf16> to vector<4x256xbf16>
    %cst_21 = arith.constant dense<0.000000e+00> : vector<288x256xf32>
    %41 = tpu.matmul %38, %40, %cst_21 {dimension_numbers = #tpu.dot_dimension_numbers<[1], [0], [0], [1], [0, 0, 1, 1], [], []>} : vector<288x4xbf16>, vector<4x256xbf16>, vector<288x256xf32> -> vector<288x256xf32>
    %42 = arith.addf %36, %41 : vector<288x256xf32>
    %43 = vector.extract_strided_slice %5 {offsets = [36, 0], sizes = [288, 4], strides = [1, 1]} : vector<342x4xf32> to vector<288x4xf32>
    %44 = arith.truncf %43 : vector<288x4xf32> to vector<288x4xbf16>
    %c6 = arith.constant 6 : index
    %c0_22 = arith.constant 0 : index
    %c0_23 = arith.constant 0 : index
    %45 = vector.load %arg3[%c6, %c0_22, %c0_23] : memref<9x4x256xbf16, #tpu.memory_space<vmem>>, vector<1x4x256xbf16>
    %46 = vector.shape_cast %45 : vector<1x4x256xbf16> to vector<4x256xbf16>
    %cst_24 = arith.constant dense<0.000000e+00> : vector<288x256xf32>
    %47 = tpu.matmul %44, %46, %cst_24 {dimension_numbers = #tpu.dot_dimension_numbers<[1], [0], [0], [1], [0, 0, 1, 1], [], []>} : vector<288x4xbf16>, vector<4x256xbf16>, vector<288x256xf32> -> vector<288x256xf32>
    %48 = arith.addf %42, %47 : vector<288x256xf32>
    %49 = vector.extract_strided_slice %5 {offsets = [37, 0], sizes = [288, 4], strides = [1, 1]} : vector<342x4xf32> to vector<288x4xf32>
    %50 = arith.truncf %49 : vector<288x4xf32> to vector<288x4xbf16>
    %c7 = arith.constant 7 : index
    %c0_25 = arith.constant 0 : index
    %c0_26 = arith.constant 0 : index
    %51 = vector.load %arg3[%c7, %c0_25, %c0_26] : memref<9x4x256xbf16, #tpu.memory_space<vmem>>, vector<1x4x256xbf16>
    %52 = vector.shape_cast %51 : vector<1x4x256xbf16> to vector<4x256xbf16>
    %cst_27 = arith.constant dense<0.000000e+00> : vector<288x256xf32>
    %53 = tpu.matmul %50, %52, %cst_27 {dimension_numbers = #tpu.dot_dimension_numbers<[1], [0], [0], [1], [0, 0, 1, 1], [], []>} : vector<288x4xbf16>, vector<4x256xbf16>, vector<288x256xf32> -> vector<288x256xf32>
    %54 = arith.addf %48, %53 : vector<288x256xf32>
    %55 = vector.extract_strided_slice %5 {offsets = [38, 0], sizes = [288, 4], strides = [1, 1]} : vector<342x4xf32> to vector<288x4xf32>
    %56 = arith.truncf %55 : vector<288x4xf32> to vector<288x4xbf16>
    %c8 = arith.constant 8 : index
    %c0_28 = arith.constant 0 : index
    %c0_29 = arith.constant 0 : index
    %57 = vector.load %arg3[%c8, %c0_28, %c0_29] : memref<9x4x256xbf16, #tpu.memory_space<vmem>>, vector<1x4x256xbf16>
    %58 = vector.shape_cast %57 : vector<1x4x256xbf16> to vector<4x256xbf16>
    %cst_30 = arith.constant dense<0.000000e+00> : vector<288x256xf32>
    %59 = tpu.matmul %56, %58, %cst_30 {dimension_numbers = #tpu.dot_dimension_numbers<[1], [0], [0], [1], [0, 0, 1, 1], [], []>} : vector<288x4xbf16>, vector<4x256xbf16>, vector<288x256xf32> -> vector<288x256xf32>
    %60 = arith.addf %54, %59 : vector<288x256xf32>
    %c0_31 = arith.constant 0 : index
    %c0_32 = arith.constant 0 : index
    %61 = vector.load %arg4[%c0_31, %c0_32] : memref<1x256xf32, #tpu.memory_space<vmem>>, vector<1x256xf32>
    %62 = vector.broadcast %61 : vector<1x256xf32> to vector<288x256xf32>
    %63 = arith.addf %60, %62 : vector<288x256xf32>
    %cst_33 = arith.constant 0.000000e+00 : f32
    %64 = vector.broadcast %cst_33 : f32 to vector<288x256xf32>
    %65 = arith.subf %64, %63 : vector<288x256xf32>
    %66 = math.exp %65 : vector<288x256xf32>
    %cst_34 = arith.constant 1.000000e+00 : f32
    %67 = vector.broadcast %cst_34 : f32 to vector<288x256xf32>
    %68 = arith.addf %67, %66 : vector<288x256xf32>
    %69 = tpu.reciprocal %68 : vector<288x256xf32> -> vector<288x256xf32>
    %70 = arith.mulf %63, %69 : vector<288x256xf32>
    %71 = tpu.iota {dimensions = array<i32: 0>} : vector<288x1xi32>
    %c18_i32 = arith.constant 18 : i32
    %c0_i32_35 = arith.constant 0 : i32
    %72 = arith.cmpi eq, %c18_i32, %c0_i32_35 : i32
    %c1_i32 = arith.constant 1 : i32
    %73 = arith.select %72, %c1_i32, %c18_i32 : i32
    %74 = vector.broadcast %73 : i32 to vector<288x1xi32>
    %75 = arith.remsi %71, %74 : vector<288x1xi32>
    %c0_i32_36 = arith.constant 0 : i32
    %76 = vector.broadcast %c0_i32_36 : i32 to vector<288x1xi32>
    %77 = arith.cmpi ne, %75, %76 : vector<288x1xi32>
    %c0_i32_37 = arith.constant 0 : i32
    %78 = vector.broadcast %c0_i32_37 : i32 to vector<288x1xi32>
    %79 = arith.cmpi slt, %75, %78 : vector<288x1xi32>
    %c0_i32_38 = arith.constant 0 : i32
    %80 = arith.cmpi slt, %73, %c0_i32_38 : i32
    %81 = vector.broadcast %80 : i1 to vector<288x1xi1>
    %82 = vector.broadcast %81 : vector<288x1xi1> to vector<288x1xi1>
    %83 = arith.xori %79, %82 : vector<288x1xi1>
    %84 = arith.andi %83, %77 : vector<288x1xi1>
    %85 = vector.broadcast %73 : i32 to vector<288x1xi32>
    %86 = arith.addi %75, %85 : vector<288x1xi32>
    %87 = arith.select %84, %86, %75 : vector<288x1xi1>, vector<288x1xi32>
    %c16_i32 = arith.constant 16 : i32
    %88 = vector.broadcast %c16_i32 : i32 to vector<288x1xi32>
    %89 = arith.cmpi slt, %87, %88 : vector<288x1xi32>
    %90 = arith.extui %89 : vector<288x1xi1> to vector<288x1xi32>
    %91 = arith.sitofp %90 : vector<288x1xi32> to vector<288x1xf32>
    %92 = vector.broadcast %91 : vector<288x1xf32> to vector<288x256xf32>
    %93 = arith.mulf %70, %92 : vector<288x256xf32>
    %cst_39 = arith.constant dense<0.000000e+00> : vector<256xf32>
    %94 = vector.multi_reduction <add>, %93, %cst_39 [0] : vector<288x256xf32> to vector<256xf32>
    %95 = vector.shape_cast %94 : vector<256xf32> to vector<1x256xf32>
    %cst_40 = arith.constant 3.906250e-03 : f32
    %96 = vector.broadcast %cst_40 : f32 to vector<1x256xf32>
    %97 = arith.mulf %95, %96 : vector<1x256xf32>
    %c0_41 = arith.constant 0 : index
    %c0_42 = arith.constant 0 : index
    %98 = vector.load %arg10[%c0_41, %c0_42] : memref<1x512xf32, #tpu.memory_space<vmem>>, vector<1x512xf32>
    %99 = arith.truncf %97 : vector<1x256xf32> to vector<1x256xbf16>
    %c0_43 = arith.constant 0 : index
    %c0_44 = arith.constant 0 : index
    %100 = vector.load %arg5[%c0_43, %c0_44] : memref<256x512xbf16, #tpu.memory_space<vmem>>, vector<256x512xbf16>
    %cst_45 = arith.constant dense<0.000000e+00> : vector<1x512xf32>
    %101 = tpu.matmul %99, %100, %cst_45 {dimension_numbers = #tpu.dot_dimension_numbers<[1], [0], [0], [1], [0, 0, 1, 1], [], []>} : vector<1x256xbf16>, vector<256x512xbf16>, vector<1x512xf32> -> vector<1x512xf32>
    %102 = arith.addf %98, %101 : vector<1x512xf32>
    %c0_46 = arith.constant 0 : index
    %c0_47 = arith.constant 0 : index
    %103 = vector.load %arg10[%c0_46, %c0_47] : memref<1x512xf32, #tpu.memory_space<vmem>>, vector<1x512xf32>
    tpu.vector_store %arg10[%c0_46, %c0_47], %102 {strides = array<i32>} : memref<1x512xf32, #tpu.memory_space<vmem>>, vector<1x512xf32>,
    %c4_i32 = arith.constant 4 : i32
    %104 = arith.cmpi eq, %arg1, %c4_i32 : i32
    %105 = arith.extui %104 : i1 to i32
    %c0_i32_48 = arith.constant 0 : i32
    %106 = arith.cmpi ne, %105, %c0_i32_48 : i32
    scf.if %106 {
      %c0_49 = arith.constant 0 : index
      %c0_50 = arith.constant 0 : index
      %107 = vector.load %arg10[%c0_49, %c0_50] : memref<1x512xf32, #tpu.memory_space<vmem>>, vector<1x512xf32>
      %c0_51 = arith.constant 0 : index
      %c0_52 = arith.constant 0 : index
      %108 = vector.load %arg6[%c0_51, %c0_52] : memref<1x512xf32, #tpu.memory_space<vmem>>, vector<1x512xf32>
      %109 = arith.addf %107, %108 : vector<1x512xf32>
      %cst_53 = arith.constant 0.000000e+00 : f32
      %110 = vector.broadcast %cst_53 : f32 to vector<1x512xf32>
      %111 = arith.subf %110, %109 : vector<1x512xf32>
      %112 = math.exp %111 : vector<1x512xf32>
      %cst_54 = arith.constant 1.000000e+00 : f32
      %113 = vector.broadcast %cst_54 : f32 to vector<1x512xf32>
      %114 = arith.addf %113, %112 : vector<1x512xf32>
      %115 = tpu.reciprocal %114 : vector<1x512xf32> -> vector<1x512xf32>
      %116 = arith.mulf %109, %115 : vector<1x512xf32>
      %117 = arith.truncf %116 : vector<1x512xf32> to vector<1x512xbf16>
      %c0_55 = arith.constant 0 : index
      %c0_56 = arith.constant 0 : index
      %118 = vector.load %arg7[%c0_55, %c0_56] : memref<512x128xbf16, #tpu.memory_space<vmem>>, vector<512x128xbf16>
      %cst_57 = arith.constant dense<0.000000e+00> : vector<1x128xf32>
      %119 = tpu.matmul %117, %118, %cst_57 {dimension_numbers = #tpu.dot_dimension_numbers<[1], [0], [0], [1], [0, 0, 1, 1], [], []>} : vector<1x512xbf16>, vector<512x128xbf16>, vector<1x128xf32> -> vector<1x128xf32>
      %c0_58 = arith.constant 0 : index
      %c0_59 = arith.constant 0 : index
      %120 = vector.load %arg8[%c0_58, %c0_59] : memref<1x128xf32, #tpu.memory_space<vmem>>, vector<1x128xf32>
      %121 = arith.addf %119, %120 : vector<1x128xf32>
      %c0_60 = arith.constant 0 : index
      %c0_61 = arith.constant 0 : index
      %c0_62 = arith.constant 0 : index
      %122 = vector.load %arg9[%c0_60, %c0_61, %c0_62] : memref<1x1x128xf32, #tpu.memory_space<vmem>>, vector<1x1x128xf32>
      %123 = vector.shape_cast %122 : vector<1x1x128xf32> to vector<1x128xf32>
      %124 = vector.shape_cast %121 : vector<1x128xf32> to vector<1x1x128xf32>
      tpu.vector_store %arg9[%c0_60, %c0_61, %c0_62], %124 {strides = array<i32>} : memref<1x1x128xf32, #tpu.memory_space<vmem>>, vector<1x1x128xf32>,
    } else {
    }
    return
  }
  func.func @transform_0(%arg0: i32, %arg1: i32) -> (i32, i32, i32) {
    %c0_i32 = arith.constant 0 : i32
    %c0_i32_0 = arith.constant 0 : i32
    %c0_i32_1 = arith.constant 0 : i32
    return %arg0, %c0_i32, %c0_i32_0 : i32, i32, i32
  }
  func.func @transform_1(%arg0: i32, %arg1: i32) -> (i32, i32, i32) {
    %c0_i32 = arith.constant 0 : i32
    %c0_i32_0 = arith.constant 0 : i32
    %c0_i32_1 = arith.constant 0 : i32
    return %c0_i32, %c0_i32_0, %arg1 : i32, i32, i32
  }
  func.func @transform_2(%arg0: i32, %arg1: i32) -> (i32, i32) {
    %c0_i32 = arith.constant 0 : i32
    %c0_i32_0 = arith.constant 0 : i32
    return %c0_i32, %arg1 : i32, i32
  }
  func.func @transform_3(%arg0: i32, %arg1: i32) -> (i32, i32) {
    %c0_i32 = arith.constant 0 : i32
    %c0_i32_0 = arith.constant 0 : i32
    return %arg1, %c0_i32 : i32, i32
  }
  func.func @transform_4(%arg0: i32, %arg1: i32) -> (i32, i32) {
    %c0_i32 = arith.constant 0 : i32
    %c0_i32_0 = arith.constant 0 : i32
    %c0_i32_1 = arith.constant 0 : i32
    return %c0_i32, %c0_i32_0 : i32, i32
  }
  func.func @transform_5(%arg0: i32, %arg1: i32) -> (i32, i32) {
    %c0_i32 = arith.constant 0 : i32
    %c0_i32_0 = arith.constant 0 : i32
    %c0_i32_1 = arith.constant 0 : i32
    return %c0_i32, %c0_i32_0 : i32, i32
  }
  func.func @transform_6(%arg0: i32, %arg1: i32) -> (i32, i32) {
    %c0_i32 = arith.constant 0 : i32
    %c0_i32_0 = arith.constant 0 : i32
    %c0_i32_1 = arith.constant 0 : i32
    return %c0_i32, %c0_i32_0 : i32, i32
  }
  func.func @transform_7(%arg0: i32, %arg1: i32) -> (i32, i32, i32) {
    %c0_i32 = arith.constant 0 : i32
    %c0_i32_0 = arith.constant 0 : i32
    %c0_i32_1 = arith.constant 0 : i32
    return %arg0, %c0_i32, %c0_i32_0 : i32, i32, i32
  }
}

</mosaic_0001>

<llo_original>
// kernel: cnn_classifier_forward.1
$region0: #{cnn_classifier_forward.1}
  #allocation0 [shape = 'u32[]', space=smem, size = 0x4, offset = 0x4, fixed_abs, tag = 'smem constant byte address 0x4 - core index']
  #allocation1 [shape = 'u32[72,128]{1,0:T(1,128)}', space=vmem, size = 0x9000, scoped, tag = 'internal scratch']
  #allocation2 [shape = 'f32[1,512]{1,0:T(1,128)}', space=vmem, size = 0x800, scoped, tag = 'scratch operand']
  %s0 = inlined_call_operand.vmem [shape: bf16[2,342,4], index: 0, kind: input, shape index: {}]
  %s1 = inlined_call_operand.vmem [shape: bf16[9,4,1280], index: 1, kind: input, shape index: {}]
  %s2 = inlined_call_operand.vmem [shape: f32[1,1280], index: 2, kind: input, shape index: {}]
  %s3 = inlined_call_operand.vmem [shape: bf16[1280,512], index: 3, kind: input, shape index: {}]
  %s4 = inlined_call_operand.vmem [shape: f32[1,512], index: 4, kind: input, shape index: {}]
  %s5 = inlined_call_operand.vmem [shape: bf16[512,128], index: 5, kind: input, shape index: {}]
  %s6 = inlined_call_operand.vmem [shape: f32[1,128], index: 6, kind: input, shape index: {}]
  %s7 = inlined_call_operand.hbm [shape: f32[2,1,128], index: 7, kind: output, shape index: {}]
  %s8 = sld [smem:[#allocation0]]
  $region110: #{cnn_classifier_forward.1} parent=0
    _
  %s10 = ssub.s32 1, %s8
  %s11 = scalar_select 0, %s10, %s8
  $region1: #{cnn_classifier_forward.1} parent=0
    #allocation3 [shape = 'u8[36864]{0}', space=vmem, size = 0x9000, scoped, tag = 'input window, operand 1']
    #allocation4 [shape = 'u8[1024]{0}', space=vmem, size = 0x400, scoped, tag = 'output window, operand 0']
    #allocation5 [shape = 's32[2]{0}', space=sflag, size = 0x8, scoped, tag = 'scoped memory for cnn_classifier_forward.1']
    %12 = vsyncpa [#allocation5], 0
    %s13 = scalar_lea.sflag [#allocation5], 1
    %14 = vsyncpa %s13, 0
    loop: start=0, step=1, limit=12
    $region2: #{cnn_classifier_forward.1} parent=1 // loop_pre_header
      _
    $region3: #{cnn_classifier_forward.1} parent=1 // loop_header
      %s16 = sphi 0, %s20
      %p17 = scmp.ge.s32.totalorder %s16, 12
      %s23 = sphi 0, %s35
      %s24 = sphi 0, %s31
      %s25 = sphi 0, %s23
      %s26 = sphi 0, %s24
      %s27 = sphi 0, %s25
      %s28 = sphi 0, %s26
      %s38 = sphi 0, %s40
      %s41 = sphi 0, %s38
      %s42 = sphi 0, %s41
      %s58 = sphi 0, %s42
      %s64 = sphi 0, %s66
      %s67 = sphi 0, %s64
      %s68 = sphi 0, %s67
      %s84 = sphi 0, %s68
      %s90 = sphi 0, %s92
      %s93 = sphi 0, %s90
      %s94 = sphi 0, %s93
      %s110 = sphi 0, %s94
      %s116 = sphi 0, %s118
      %s119 = sphi 0, %s116
      %s120 = sphi 0, %s119
      %s136 = sphi 0, %s120
      %s140 = sphi 0, %s140
      %s142 = sphi 0, %s140
      %s143 = sphi 0, %s142
      %s157 = sphi 0, %s143
      %s161 = sphi 0, %s161
      %s163 = sphi 0, %s161
      %s164 = sphi 0, %s163
      %s178 = sphi 0, %s164
      %s182 = sphi 0, %s182
      %s184 = sphi 0, %s182
      %s185 = sphi 0, %s184
      %s199 = sphi 0, %s185
      %s205 = sphi 0, %s207
      %s208 = sphi 0, %s205
      %s209 = sphi 0, %s208
      %s225 = sphi 0, %s209
    $region4: #{cnn_classifier_forward.1} parent=1 // loop_header_branch
      %19 = sbr.rel (%p17) target = $region8
    $region5: #{cnn_classifier_forward.1} parent=1 // loop_body
      %s21 = ssub.s32 %s16, 1
      %s22 = ssub.s32 %s16, 2
      %s29 = sadd.s32 1, %s24
      %p30 = scmp.ge.s32.totalorder %s29, 5
      %s31 = scalar_select %p30, 0, %s29
      %s32 = sadd.s32 1, %s23
      %s33 = scalar_select %p30, %s32, %s23
      %p34 = scmp.ge.s32.totalorder %s33, 2
      %s35 = scalar_select %p34, 0, %s33
      %s36 = ssub.s32 %s23, %s35
      %p37 = scmp.eq.s32.totalorder %s36, 0
      %s39 = sadd.s32 %s38, 1
      %s40 = scalar_select %p37, %s38, %s39
      %p43 = pneg %p37
      %p44 = scmp.eq.s32.totalorder %s16, 9
      %p45 = por %p43, %p44
      %p46 = scmp.ne.s32.totalorder %s38, %s41
      %p47 = scmp.eq.s32.totalorder %s16, 0
      %p48 = por %p46, %p47
      %p49 = scmp.ne.s32.totalorder %s38, %s41
      %p50 = scmp.eq.s32.totalorder %s21, 9
      %p51 = por %p49, %p50
      %p52 = scmp.ne.s32.totalorder %s41, %s42
      %p53 = scmp.eq.s32.totalorder %s21, 0
      %p54 = por %p52, %p53
      %p55 = scmp.ne.s32.totalorder %s41, %s42
      %p56 = scmp.eq.s32.totalorder %s22, 9
      %p57 = por %p55, %p56
      %p59 = scmp.ne.s32.totalorder %s42, %s58
      %p60 = scmp.eq.s32.totalorder %s22, 0
      %p61 = por %p59, %p60
      %s62 = ssub.s32 %s24, %s31
      %p63 = scmp.eq.s32.totalorder %s62, 0
      %s65 = sadd.s32 %s64, 1
      %s66 = scalar_select %p63, %s64, %s65
      %p69 = pneg %p63
      %p70 = scmp.eq.s32.totalorder %s16, 9
      %p71 = por %p69, %p70
      %p72 = scmp.ne.s32.totalorder %s64, %s67
      %p73 = scmp.eq.s32.totalorder %s16, 0
      %p74 = por %p72, %p73
      %p75 = scmp.ne.s32.totalorder %s64, %s67
      %p76 = scmp.eq.s32.totalorder %s21, 9
      %p77 = por %p75, %p76
      %p78 = scmp.ne.s32.totalorder %s67, %s68
      %p79 = scmp.eq.s32.totalorder %s21, 0
      %p80 = por %p78, %p79
      %p81 = scmp.ne.s32.totalorder %s67, %s68
      %p82 = scmp.eq.s32.totalorder %s22, 9
      %p83 = por %p81, %p82
      %p85 = scmp.ne.s32.totalorder %s68, %s84
      %p86 = scmp.eq.s32.totalorder %s22, 0
      %p87 = por %p85, %p86
      %s88 = ssub.s32 %s24, %s31
      %p89 = scmp.eq.s32.totalorder %s88, 0
      %s91 = sadd.s32 %s90, 1
      %s92 = scalar_select %p89, %s90, %s91
      %p95 = pneg %p89
      %p96 = scmp.eq.s32.totalorder %s16, 9
      %p97 = por %p95, %p96
      %p98 = scmp.ne.s32.totalorder %s90, %s93
      %p99 = scmp.eq.s32.totalorder %s16, 0
      %p100 = por %p98, %p99
      %p101 = scmp.ne.s32.totalorder %s90, %s93
      %p102 = scmp.eq.s32.totalorder %s21, 9
      %p103 = por %p101, %p102
      %p104 = scmp.ne.s32.totalorder %s93, %s94
      %p105 = scmp.eq.s32.totalorder %s21, 0
      %p106 = por %p104, %p105
      %p107 = scmp.ne.s32.totalorder %s93, %s94
      %p108 = scmp.eq.s32.totalorder %s22, 9
      %p109 = por %p107, %p108
      %p111 = scmp.ne.s32.totalorder %s94, %s110
      %p112 = scmp.eq.s32.totalorder %s22, 0
      %p113 = por %p111, %p112
      %s114 = ssub.s32 %s24, %s31
      %p115 = scmp.eq.s32.totalorder %s114, 0
      %s117 = sadd.s32 %s116, 1
      %s118 = scalar_select %p115, %s116, %s117
      %p121 = pneg %p115
      %p122 = scmp.eq.s32.totalorder %s16, 9
      %p123 = por %p121, %p122
      %p124 = scmp.ne.s32.totalorder %s116, %s119
      %p125 = scmp.eq.s32.totalorder %s16, 0
      %p126 = por %p124, %p125
      %p127 = scmp.ne.s32.totalorder %s116, %s119
      %p128 = scmp.eq.s32.totalorder %s21, 9
      %p129 = por %p127, %p128
      %p130 = scmp.ne.s32.totalorder %s119, %s120
      %p131 = scmp.eq.s32.totalorder %s21, 0
      %p132 = por %p130, %p131
      %p133 = scmp.ne.s32.totalorder %s119, %s120
      %p134 = scmp.eq.s32.totalorder %s22, 9
      %p135 = por %p133, %p134
      %p137 = scmp.ne.s32.totalorder %s120, %s136
      %p138 = scmp.eq.s32.totalorder %s22, 0
      %p139 = por %p137, %p138
      %s141 = sadd.s32 %s140, 1
      %p144 = scmp.eq.s32.totalorder %s16, 9
      %p145 = scmp.ne.s32.totalorder %s140, %s142
      %p146 = scmp.eq.s32.totalorder %s16, 0
      %p147 = por %p145, %p146
      %p148 = scmp.ne.s32.totalorder %s140, %s142
      %p149 = scmp.eq.s32.totalorder %s21, 9
      %p150 = por %p148, %p149
      %p151 = scmp.ne.s32.totalorder %s142, %s143
      %p152 = scmp.eq.s32.totalorder %s21, 0
      %p153 = por %p151, %p152
      %p154 = scmp.ne.s32.totalorder %s142, %s143
      %p155 = scmp.eq.s32.totalorder %s22, 9
      %p156 = por %p154, %p155
      %p158 = scmp.ne.s32.totalorder %s143, %s157
      %p159 = scmp.eq.s32.totalorder %s22, 0
      %p160 = por %p158, %p159
      %s162 = sadd.s32 %s161, 1
      %p165 = scmp.eq.s32.totalorder %s16, 9
      %p166 = scmp.ne.s32.totalorder %s161, %s163
      %p167 = scmp.eq.s32.totalorder %s16, 0
      %p168 = por %p166, %p167
      %p169 = scmp.ne.s32.totalorder %s161, %s163
      %p170 = scmp.eq.s32.totalorder %s21, 9
      %p171 = por %p169, %p170
      %p172 = scmp.ne.s32.totalorder %s163, %s164
      %p173 = scmp.eq.s32.totalorder %s21, 0
      %p174 = por %p172, %p173
      %p175 = scmp.ne.s32.totalorder %s163, %s164
      %p176 = scmp.eq.s32.totalorder %s22, 9
      %p177 = por %p175, %p176
      %p179 = scmp.ne.s32.totalorder %s164, %s178
      %p180 = scmp.eq.s32.totalorder %s22, 0
      %p181 = por %p179, %p180
      %s183 = sadd.s32 %s182, 1
      %p186 = scmp.eq.s32.totalorder %s16, 9
      %p187 = scmp.ne.s32.totalorder %s182, %s184
      %p188 = scmp.eq.s32.totalorder %s16, 0
      %p189 = por %p187, %p188
      %p190 = scmp.ne.s32.totalorder %s182, %s184
      %p191 = scmp.eq.s32.totalorder %s21, 9
      %p192 = por %p190, %p191
      %p193 = scmp.ne.s32.totalorder %s184, %s185
      %p194 = scmp.eq.s32.totalorder %s21, 0
      %p195 = por %p193, %p194
      %p196 = scmp.ne.s32.totalorder %s184, %s185
      %p197 = scmp.eq.s32.totalorder %s22, 9
      %p198 = por %p196, %p197
      %p200 = scmp.ne.s32.totalorder %s185, %s199
      %p201 = scmp.eq.s32.totalorder %s22, 0
      %p202 = por %p200, %p201
      %s203 = ssub.s32 %s23, %s35
      %p204 = scmp.eq.s32.totalorder %s203, 0
      %s206 = sadd.s32 %s205, 1
      %s207 = scalar_select %p204, %s205, %s206
      %p210 = pneg %p204
      %p211 = scmp.eq.s32.totalorder %s16, 9
      %p212 = por %p210, %p211
      %p213 = scmp.ne.s32.totalorder %s205, %s208
      %p214 = scmp.eq.s32.totalorder %s16, 0
      %p215 = por %p213, %p214
      %p216 = scmp.ne.s32.totalorder %s205, %s208
      %p217 = scmp.eq.s32.totalorder %s21, 9
      %p218 = por %p216, %p217
      %p219 = scmp.ne.s32.totalorder %s208, %s209
      %p220 = scmp.eq.s32.totalorder %s21, 0
      %p221 = por %p219, %p220
      %p222 = scmp.ne.s32.totalorder %s208, %s209
      %p223 = scmp.eq.s32.totalorder %s22, 9
      %p224 = por %p222, %p223
      %p226 = scmp.ne.s32.totalorder %s209, %s225
      %p227 = scmp.eq.s32.totalorder %s22, 0
      %p228 = por %p226, %p227
      %p229 = scmp.le.s32.totalorder 1, %s16
      %p230 = scmp.lt.s32.totalorder %s16, 11
      %p231 = pnand %p229, %p230
      %p232 = pneg %p231
      // Predicated region
      $region9: #{cnn_classifier_forward.1} parent=5 // pred_check
        _
      $region10: #{cnn_classifier_forward.1} parent=5 // pred_check_branch
        %234 = sbr.rel (%p231) target = $region12
      $region11: #{cnn_classifier_forward.1} parent=5 // pred_region
        %s235 = ssub.s32 %s16, 1
        // Predicated region
        $region13: #{cnn_classifier_forward.1} parent=11 // pred_check
          %p236 = pneg %p153
        $region14: #{cnn_classifier_forward.1} parent=11 // pred_check_branch
          %238 = sbr.rel (%p236) target = $region16
        $region15: #{cnn_classifier_forward.1} parent=11 // pred_region
          _
        $region16: #{cnn_classifier_forward.1} parent=11 // pred_fallthru
          _
        // Predicated region
        $region17: #{cnn_classifier_forward.1} parent=11 // pred_check
          %p239 = pneg %p174
        $region18: #{cnn_classifier_forward.1} parent=11 // pred_check_branch
          %241 = sbr.rel (%p239) target = $region20
        $region19: #{cnn_classifier_forward.1} parent=11 // pred_region
          _
        $region20: #{cnn_classifier_forward.1} parent=11 // pred_fallthru
          _
        // Predicated region
        $region21: #{cnn_classifier_forward.1} parent=11 // pred_check
          %p242 = pneg %p195
        $region22: #{cnn_classifier_forward.1} parent=11 // pred_check_branch
          %244 = sbr.rel (%p242) target = $region24
        $region23: #{cnn_classifier_forward.1} parent=11 // pred_region
          _
        $region24: #{cnn_classifier_forward.1} parent=11 // pred_fallthru
          _
      $region12: #{cnn_classifier_forward.1} parent=5 // pred_fallthru
        _
      %p245 = scmp.lt.s32.totalorder %s16, 10
      // Predicated region
      $region25: #{cnn_classifier_forward.1} parent=5 // pred_check
        %p246 = pneg %p245
      $region26: #{cnn_classifier_forward.1} parent=5 // pred_check_branch
        %248 = sbr.rel (%p246) target = $region28
      $region27: #{cnn_classifier_forward.1} parent=5 // pred_region
        // Predicated region
        $region29: #{cnn_classifier_forward.1} parent=27 // pred_check
          %p249 = pneg %p48
        $region30: #{cnn_classifier_forward.1} parent=27 // pred_check_branch
          %251 = sbr.rel (%p249) target = $region32
        $region31: #{cnn_classifier_forward.1} parent=27 // pred_region
          %p252 = scmp.lt.s32.totalorder %s23, 1
          %s253 = scalar_select %p252, %s23, 1
          %s254 = smul.addr %s253, 43
          %s255 = smul.addr %s254, 4
          %s256 = scalar_lea.vmem %s0, %s255
        $region32: #{cnn_classifier_forward.1} parent=27 // pred_fallthru
          _
        // Predicated region
        $region33: #{cnn_classifier_forward.1} parent=27 // pred_check
          %p257 = pneg %p74
        $region34: #{cnn_classifier_forward.1} parent=27 // pred_check_branch
          %259 = sbr.rel (%p257) target = $region36
        $region35: #{cnn_classifier_forward.1} parent=27 // pred_region
          %s260 = sand.u32 %s64, 1
          %s261 = sand.u32 %s64, 1
          %s262 = smul.addr %s261, 36
          %s263 = scalar_lea.vmem [#allocation3], %s262
          %s264 = smul.u32 2, %s24
          %s265 = smul.addr %s264, 2
          %s266 = scalar_lea.vmem %s1, %s265
          // Predicated region
          $region37: #{cnn_classifier_forward.1} parent=35 // pred_check
            _
          $region38: #{cnn_classifier_forward.1} parent=35 // pred_check_branch
            %268 = sbr.rel (0) target = $region40
          $region39: #{cnn_classifier_forward.1} parent=35 // pred_region
            // Predicated region
            $region41: #{cnn_classifier_forward.1} parent=39 // pred_check
              _
            $region42: #{cnn_classifier_forward.1} parent=39 // pred_check_branch
              %270 = sbr.rel target = $region44
            $region43: #{cnn_classifier_forward.1} parent=39 // pred_region
              // Predicated region
              $region56: #{cnn_classifier_forward.1} parent=43 // pred_check
                _
              $region57: #{cnn_classifier_forward.1} parent=43 // pred_check_branch
                %302 = sbr.rel (0) target = $region59
              $region58: #{cnn_classifier_forward.1} parent=43 // pred_region
                loop: start=0, step=1, limit=1
                $region60: #{cnn_classifier_forward.1} parent=58 // loop_pre_header
                  _
                $region61: #{cnn_classifier_forward.1} parent=58 // loop_header
                  %s304 = sphi 0, %s308
                  %p305 = scmp.ge.s32.totalorder %s304, 1
                  %s309 = sphi %s266, %s266
                  %s310 = sphi %s263, %s263
                $region62: #{cnn_classifier_forward.1} parent=58 // loop_header_branch
                  %307 = sbr.rel (%p305) target = $region66
                $region63: #{cnn_classifier_forward.1} parent=58 // loop_body
                  _
                $region64: #{cnn_classifier_forward.1} parent=58 // loop_footer
                  %s308 = sadd.s32 1, %s304
                $region65: #{cnn_classifier_forward.1} parent=58 // loop_footer_branch
                  %303 = sbr.rel target = $region61
                $region66: #{cnn_classifier_forward.1} parent=58 // loop_exit
                  _
                %s312 = ssub.s32 16, 1
                loop: start=0, step=1, limit=1
                $region67: #{cnn_classifier_forward.1} parent=58 // loop_pre_header
                  _
                $region68: #{cnn_classifier_forward.1} parent=58 // loop_header
                  %s314 = sphi 0, %s318
                  %p315 = scmp.ge.s32.totalorder %s314, 1
                  %s319 = sphi %s266, %s266
                  %s320 = sphi %s263, %s263
                $region69: #{cnn_classifier_forward.1} parent=58 // loop_header_branch
                  %317 = sbr.rel (%p315) target = $region73
                $region70: #{cnn_classifier_forward.1} parent=58 // loop_body
                  %v321 = vld [vmem:[%s319] sm:%s312]
                  %322 = vst [vmem:[%s320] sm:%s312] %v321
                  %v323 = vld [vmem:[%s319 + $0x14] sm:%s312]
                  %324 = vst [vmem:[%s320 + $0x4] sm:%s312] %v323
                  %v325 = vld [vmem:[%s319 + $0x28] sm:%s312]
                  %326 = vst [vmem:[%s320 + $0x8] sm:%s312] %v325
                  %v327 = vld [vmem:[%s319 + $0x3c] sm:%s312]
                  %328 = vst [vmem:[%s320 + $0xc] sm:%s312] %v327
                  %v329 = vld [vmem:[%s319 + $0x50] sm:%s312]
                  %330 = vst [vmem:[%s320 + $0x10] sm:%s312] %v329
                  %v331 = vld [vmem:[%s319 + $0x64] sm:%s312]
                  %332 = vst [vmem:[%s320 + $0x14] sm:%s312] %v331
                  %v333 = vld [vmem:[%s319 + $0x78] sm:%s312]
                  %334 = vst [vmem:[%s320 + $0x18] sm:%s312] %v333
                  %v335 = vld [vmem:[%s319 + $0x8c] sm:%s312]
                  %336 = vst [vmem:[%s320 + $0x1c] sm:%s312] %v335
                  %v337 = vld [vmem:[%s319 + $0xa0] sm:%s312]
                  %338 = vst [vmem:[%s320 + $0x20] sm:%s312] %v337
                $region71: #{cnn_classifier_forward.1} parent=58 // loop_footer
                  %s318 = sadd.s32 1, %s314
                $region72: #{cnn_classifier_forward.1} parent=58 // loop_footer_branch
                  %313 = sbr.rel target = $region68
                $region73: #{cnn_classifier_forward.1} parent=58 // loop_exit
                  _
              $region59: #{cnn_classifier_forward.1} parent=43 // pred_fallthru
                _
            $region44: #{cnn_classifier_forward.1} parent=39 // pred_fallthru
              _
            // Predicated region
            $region45: #{cnn_classifier_forward.1} parent=39 // pred_check
              _
            $region46: #{cnn_classifier_forward.1} parent=39 // pred_check_branch
              %272 = sbr.rel (0) target = $region48
            $region47: #{cnn_classifier_forward.1} parent=39 // pred_region
              %s274 = ssub.s32 16, 1
              loop: start=0, step=1, limit=1
              $region49: #{cnn_classifier_forward.1} parent=47 // loop_pre_header
                _
              $region50: #{cnn_classifier_forward.1} parent=47 // loop_header
                %s276 = sphi 0, %s280
                %p277 = scmp.ge.s32.totalorder %s276, 1
                %s281 = sphi %s266, %s266
                %s282 = sphi %s263, %s263
              $region51: #{cnn_classifier_forward.1} parent=47 // loop_header_branch
                %279 = sbr.rel (%p277) target = $region55
              $region52: #{cnn_classifier_forward.1} parent=47 // loop_body
                %v283 = vld [vmem:[%s281] sm:%s274]
                %284 = vst [vmem:[%s282] sm:%s274] %v283
                %v285 = vld [vmem:[%s281 + $0x14] sm:%s274]
                %286 = vst [vmem:[%s282 + $0x4] sm:%s274] %v285
                %v287 = vld [vmem:[%s281 + $0x28] sm:%s274]
                %288 = vst [vmem:[%s282 + $0x8] sm:%s274] %v287
                %v289 = vld [vmem:[%s281 + $0x3c] sm:%s274]
                %290 = vst [vmem:[%s282 + $0xc] sm:%s274] %v289
                %v291 = vld [vmem:[%s281 + $0x50] sm:%s274]
                %292 = vst [vmem:[%s282 + $0x10] sm:%s274] %v291
                %v293 = vld [vmem:[%s281 + $0x64] sm:%s274]
                %294 = vst [vmem:[%s282 + $0x14] sm:%s274] %v293
                %v295 = vld [vmem:[%s281 + $0x78] sm:%s274]
                %296 = vst [vmem:[%s282 + $0x18] sm:%s274] %v295
                %v297 = vld [vmem:[%s281 + $0x8c] sm:%s274]
                %298 = vst [vmem:[%s282 + $0x1c] sm:%s274] %v297
                %v299 = vld [vmem:[%s281 + $0xa0] sm:%s274]
                %300 = vst [vmem:[%s282 + $0x20] sm:%s274] %v299
              $region53: #{cnn_classifier_forward.1} parent=47 // loop_footer
                %s280 = sadd.s32 1, %s276
              $region54: #{cnn_classifier_forward.1} parent=47 // loop_footer_branch
                %275 = sbr.rel target = $region50
              $region55: #{cnn_classifier_forward.1} parent=47 // loop_exit
                _
            $region48: #{cnn_classifier_forward.1} parent=39 // pred_fallthru
              _
          $region40: #{cnn_classifier_forward.1} parent=35 // pred_fallthru
            _
          %339 = vnop
        $region36: #{cnn_classifier_forward.1} parent=27 // pred_fallthru
          _
        // Predicated region
        $region74: #{cnn_classifier_forward.1} parent=27 // pred_check
          %p340 = pneg %p100
        $region75: #{cnn_classifier_forward.1} parent=27 // pred_check_branch
          %342 = sbr.rel (%p340) target = $region77
        $region76: #{cnn_classifier_forward.1} parent=27 // pred_region
          %s343 = smul.u32 2, %s24
          %p344 = scmp.lt.s32.totalorder %s343, 9
          %s345 = scalar_select %p344, %s343, 9
          %s346 = scalar_lea.vmem %s2, %s345
          %s347 = smul.u32 2, %s24
        $region77: #{cnn_classifier_forward.1} parent=27 // pred_fallthru
          _
        // Predicated region
        $region78: #{cnn_classifier_forward.1} parent=27 // pred_check
          %p348 = pneg %p126
        $region79: #{cnn_classifier_forward.1} parent=27 // pred_check_branch
          %350 = sbr.rel (%p348) target = $region81
        $region80: #{cnn_classifier_forward.1} parent=27 // pred_region
          %s351 = smul.u32 32, %s24
          %p352 = scmp.lt.s32.totalorder %s351, 159
          %s353 = scalar_select %p352, %s351, 159
          %s354 = smul.addr %s353, 4
          %s355 = smul.addr %s354, 4
          %s356 = scalar_lea.vmem %s3, %s355
          %s357 = smul.u32 32, %s24
        $region81: #{cnn_classifier_forward.1} parent=27 // pred_fallthru
          _
      $region28: #{cnn_classifier_forward.1} parent=5 // pred_fallthru
        _
      %p358 = scmp.le.s32.totalorder 1, %s16
      %p359 = scmp.lt.s32.totalorder %s16, 11
      %p360 = pnand %p358, %p359
      %p361 = pneg %p360
      // Predicated region
      $region82: #{cnn_classifier_forward.1} parent=5 // pred_check
        _
      $region83: #{cnn_classifier_forward.1} parent=5 // pred_check_branch
        %363 = sbr.rel (%p360) target = $region85
      $region84: #{cnn_classifier_forward.1} parent=5 // pred_region
        %s364 = ssub.s32 %s16, 1
        %s365 = sand.u32 %s67, 1
        %s366 = sand.u32 %s67, 1
        %s367 = smul.addr %s366, 36
        %s368 = scalar_lea.vmem [#allocation3], %s367
        // Predicated region
        $region86: #{cnn_classifier_forward.1} parent=84 // pred_check
          %p369 = pneg %p80
        $region87: #{cnn_classifier_forward.1} parent=84 // pred_check_branch
          %371 = sbr.rel (%p369) target = $region89
        $region88: #{cnn_classifier_forward.1} parent=84 // pred_region
          _
        $region89: #{cnn_classifier_forward.1} parent=84 // pred_fallthru
          _
        %p372 = scmp.lt.s32.totalorder %s25, 1
        %s373 = scalar_select %p372, %s25, 1
        %s374 = smul.addr %s373, 43
        %s375 = smul.addr %s374, 4
        %s376 = scalar_lea.vmem %s0, %s375
        %p377 = pneg %p54
        %p378 = pneg %p51
        %s379 = sand.u32 %s67, 1
        %s380 = sand.u32 %s67, 1
        %s381 = smul.addr %s380, 36
        %s382 = scalar_lea.vmem [#allocation3], %s381
        %p383 = pneg %p80
        %p384 = pneg %p77
        %s385 = smul.u32 2, %s26
        %p386 = scmp.lt.s32.totalorder %s385, 9
        %s387 = scalar_select %p386, %s385, 9
        %s388 = scalar_lea.vmem %s2, %s387
        %p389 = pneg %p106
        %p390 = pneg %p103
        %s391 = smul.u32 32, %s26
        %p392 = scmp.lt.s32.totalorder %s391, 159
        %s393 = scalar_select %p392, %s391, 159
        %s394 = smul.addr %s393, 4
        %s395 = smul.addr %s394, 4
        %s396 = scalar_lea.vmem %s3, %s395
        %p397 = pneg %p132
        %p398 = pneg %p129
        %p399 = pneg %p153
        %p400 = pneg %p150
        %p401 = pneg %p174
        %p402 = pneg %p171
        %p403 = pneg %p195
        %p404 = pneg %p192
        %p405 = pneg %p221
        %p406 = pneg %p218
        %s407 = sand.u32 %s208, 1
        %s408 = scalar_lea.sflag [#allocation5], %s407
        %s409 = sand.u32 %s208, 1
        %s410 = scalar_lea.vmem [#allocation4], %s409
        %p411 = scmp.lt.s32.totalorder %s25, 1
        %s412 = scalar_select %p411, %s25, 1
        %s413 = smul.addr %s412, 43
        %s414 = smul.addr %s413, 4
        %s415 = scalar_lea.vmem %s0, %s414
        %s416 = smul.u32 2, %s26
        %s417 = smul.u32 2, %s26
        %p418 = scmp.lt.s32.totalorder %s417, 9
        %s419 = scalar_select %p418, %s417, 9
        %s420 = scalar_lea.vmem %s2, %s419
        %s421 = smul.u32 2, %s26
        %s422 = smul.u32 32, %s26
        %p423 = scmp.lt.s32.totalorder %s422, 159
        %s424 = scalar_select %p423, %s422, 159
        %s425 = smul.addr %s424, 4
        %s426 = smul.addr %s425, 4
        %s427 = scalar_lea.vmem %s3, %s426
        %s428 = smul.u32 32, %s26
        %p430 = scmp.eq.s32.totalorder %s26, 0
        // Predicated region
        $region90: #{cnn_classifier_forward.1} parent=84 // pred_check
          %p431 = pneg %p430
        $region91: #{cnn_classifier_forward.1} parent=84 // pred_check_branch
          %433 = sbr.rel (%p431) target = $region93
        $region92: #{cnn_classifier_forward.1} parent=84 // pred_region
          %v434 = vlaneseq
          %vm435 = vcmp.ge.s32.totalorder %v434, 0
          %vm436 = vcmp.lt.s32.totalorder %v434, 512
          %vm437 = vmand %vm435, %vm436
          %438 = vst.msk [vmem:[#allocation2] sm:$0xf] %vm437, 0.0
        $region93: #{cnn_classifier_forward.1} parent=84 // pred_fallthru
          _
        %v439 = vld [vmem:[%s415] sm:$0xf]
        %v440 = vld [vmem:[%s415 + $0x4] sm:$0xf]
        %v441 = vld [vmem:[%s415 + $0x8] sm:$0xf]
        %v442 = vld [vmem:[%s415 + $0xc] sm:$0xf]
        %v443 = vld [vmem:[%s415 + $0x10] sm:$0xf]
        %v444 = vld [vmem:[%s415 + $0x14] sm:$0xf]
        %v445 = vld [vmem:[%s415 + $0x18] sm:$0xf]
        %v446 = vld [vmem:[%s415 + $0x1c] sm:$0xf]
        %v447 = vld [vmem:[%s415 + $0x20] sm:$0xf]
        %v448 = vld [vmem:[%s415 + $0x24] sm:$0xf]
        %v449 = vld [vmem:[%s415 + $0x28] sm:$0xf]
        %v450 = vld [vmem:[%s415 + $0x2c] sm:$0xf]
        %v451 = vld [vmem:[%s415 + $0x30] sm:$0xf]
        %v452 = vld [vmem:[%s415 + $0x34] sm:$0xf]
        %v453 = vld [vmem:[%s415 + $0x38] sm:$0xf]
        %v454 = vld [vmem:[%s415 + $0x3c] sm:$0xf]
        %v455 = vld [vmem:[%s415 + $0x40] sm:$0xf]
        %v456 = vld [vmem:[%s415 + $0x44] sm:$0xf]
        %v457 = vld [vmem:[%s415 + $0x48] sm:$0xf]
        %v458 = vld [vmem:[%s415 + $0x4c] sm:$0xf]
        %v459 = vld [vmem:[%s415 + $0x50] sm:$0xf]
        %v460 = vld [vmem:[%s415 + $0x54] sm:$0xf]
        %v461 = vld [vmem:[%s415 + $0x58] sm:$0xf]
        %v462 = vld [vmem:[%s415 + $0x5c] sm:$0xf]
        %v463 = vld [vmem:[%s415 + $0x60] sm:$0xf]
        %v464 = vld [vmem:[%s415 + $0x64] sm:$0xf]
        %v465 = vld [vmem:[%s415 + $0x68] sm:$0xf]
        %v466 = vld [vmem:[%s415 + $0x6c] sm:$0xf]
        %v467 = vld [vmem:[%s415 + $0x70] sm:$0xf]
        %v468 = vld [vmem:[%s415 + $0x74] sm:$0xf]
        %v469 = vld [vmem:[%s415 + $0x78] sm:$0xf]
        %v470 = vld [vmem:[%s415 + $0x7c] sm:$0xf]
        %v471 = vld [vmem:[%s415 + $0x80] sm:$0xf]
        %v472 = vld [vmem:[%s415 + $0x84] sm:$0xf]
        %v473 = vld [vmem:[%s415 + $0x88] sm:$0xf]
        %v474 = vld [vmem:[%s415 + $0x8c] sm:$0xf]
        %v475 = vld [vmem:[%s415 + $0x90] sm:$0xf]
        %v476 = vld [vmem:[%s415 + $0x94] sm:$0xf]
        %v477 = vld [vmem:[%s415 + $0x98] sm:$0xf]
        %v478 = vld [vmem:[%s415 + $0x9c] sm:$0xf]
        %v479 = vld [vmem:[%s415 + $0xa0] sm:$0xf]
        %v480 = vunpack.c.l.bf16 %v439
        %v481 = vunpack.c.l.bf16 %v440
        %v482 = vunpack.c.l.bf16 %v441
        %v483 = vunpack.c.l.bf16 %v442
        %v484 = vunpack.c.l.bf16 %v443
        %v485 = vunpack.c.l.bf16 %v444
        %v486 = vunpack.c.l.bf16 %v445
        %v487 = vunpack.c.l.bf16 %v446
        %v488 = vunpack.c.l.bf16 %v447
        %v489 = vunpack.c.l.bf16 %v448
        %v490 = vunpack.c.l.bf16 %v449
        %v491 = vunpack.c.l.bf16 %v450
        %v492 = vunpack.c.l.bf16 %v451
        %v493 = vunpack.c.l.bf16 %v452
        %v494 = vunpack.c.l.bf16 %v453
        %v495 = vunpack.c.l.bf16 %v454
        %v496 = vunpack.c.l.bf16 %v455
        %v497 = vunpack.c.l.bf16 %v456
        %v498 = vunpack.c.l.bf16 %v457
        %v499 = vunpack.c.l.bf16 %v458
        %v500 = vunpack.c.l.bf16 %v459
        %v501 = vunpack.c.l.bf16 %v460
        %v502 = vunpack.c.l.bf16 %v461
        %v503 = vunpack.c.l.bf16 %v462
        %v504 = vunpack.c.l.bf16 %v463
        %v505 = vunpack.c.l.bf16 %v464
        %v506 = vunpack.c.l.bf16 %v465
        %v507 = vunpack.c.l.bf16 %v466
        %v508 = vunpack.c.l.bf16 %v467
        %v509 = vunpack.c.l.bf16 %v468
        %v510 = vunpack.c.l.bf16 %v469
        %v511 = vunpack.c.l.bf16 %v470
        %v512 = vunpack.c.l.bf16 %v471
        %v513 = vunpack.c.l.bf16 %v472
        %v514 = vunpack.c.l.bf16 %v473
        %v515 = vunpack.c.l.bf16 %v474
        %v516 = vunpack.c.l.bf16 %v475
        %v517 = vunpack.c.l.bf16 %v476
        %v518 = vunpack.c.l.bf16 %v477
        %v519 = vunpack.c.l.bf16 %v478
        %v520 = vunpack.c.l.bf16 %v479
        %v521 = vpack.c.bf16 %v481, %v480
        %v522 = vpack.c.bf16 %v483, %v482
        %v523 = vpack.c.bf16 %v485, %v484
        %v524 = vpack.c.bf16 %v487, %v486
        %v525 = vpack.c.bf16 %v489, %v488
        %v526 = vpack.c.bf16 %v491, %v490
        %v527 = vpack.c.bf16 %v493, %v492
        %v528 = vpack.c.bf16 %v495, %v494
        %v529 = vpack.c.bf16 %v497, %v496
        %v530 = vpack.c.bf16 %v499, %v498
        %v531 = vpack.c.bf16 %v501, %v500
        %v532 = vpack.c.bf16 %v503, %v502
        %v533 = vpack.c.bf16 %v505, %v504
        %v534 = vpack.c.bf16 %v507, %v506
        %v535 = vpack.c.bf16 %v509, %v508
        %v536 = vpack.c.bf16 %v511, %v510
        %v537 = vpack.c.bf16 %v513, %v512
        %v538 = vpack.c.bf16 %v515, %v514
        %v539 = vld [vmem:[%s368] sm:$0xf]
        %v540 = vpack.c.bf16 %v516, %v516
        %s541 = scalar_lea.vmem %s368, 4 [#allocation3]
        %v542 = vld [vmem:[%s541] sm:$0xf]
        %vm543 = vsmask.f32 7424
        %v545 = vshrl.u32 %v521, 16
        %v547 = vshll.u32 %v521, 16
        %v549 = vrot.slane %v547, 1
        %v550 = vor.u32 %v545, %v549
        %v552 = vshll.u32 %v522, 16
        %v554 = vrot.slane %v552, 1
        %v555 = vsel %vm543, %v550, %v554
        %v556 = vshrl.u32 %v522, 16
        %v558 = vor.u32 %v556, %v554
        %v560 = vshll.u32 %v523, 16
        %v562 = vrot.slane %v560, 1
        %v563 = vsel %vm543, %v558, %v562
        %v564 = vshrl.u32 %v523, 16
        %v566 = vor.u32 %v564, %v562
        %v568 = vshll.u32 %v524, 16
        %v570 = vrot.slane %v568, 1
        %v571 = vsel %vm543, %v566, %v570
        %v572 = vshrl.u32 %v524, 16
        %v574 = vor.u32 %v572, %v570
        %v576 = vshll.u32 %v525, 16
        %v578 = vrot.slane %v576, 1
        %v579 = vsel %vm543, %v574, %v578
        %v580 = vshrl.u32 %v525, 16
        %v582 = vor.u32 %v580, %v578
        %v584 = vshll.u32 %v526, 16
        %v586 = vrot.slane %v584, 1
        %v587 = vsel %vm543, %v582, %v586
        %v588 = vshrl.u32 %v526, 16
        %v590 = vor.u32 %v588, %v586
        %v592 = vshll.u32 %v527, 16
        %v594 = vrot.slane %v592, 1
        %v595 = vsel %vm543, %v590, %v594
        %v596 = vshrl.u32 %v527, 16
        %v598 = vor.u32 %v596, %v594
        %v600 = vshll.u32 %v528, 16
        %v602 = vrot.slane %v600, 1
        %v603 = vsel %vm543, %v598, %v602
        %v604 = vshrl.u32 %v528, 16
        %v606 = vor.u32 %v604, %v602
        %v608 = vshll.u32 %v529, 16
        %v610 = vrot.slane %v608, 1
        %v611 = vsel %vm543, %v606, %v610
        %v612 = vshrl.u32 %v529, 16
        %v614 = vor.u32 %v612, %v610
        %v616 = vshll.u32 %v530, 16
        %v618 = vrot.slane %v616, 1
        %v619 = vsel %vm543, %v614, %v618
        %v620 = vshrl.u32 %v530, 16
        %v622 = vor.u32 %v620, %v618
        %v624 = vshll.u32 %v531, 16
        %v626 = vrot.slane %v624, 1
        %v627 = vsel %vm543, %v622, %v626
        %v628 = vshrl.u32 %v531, 16
        %v630 = vor.u32 %v628, %v626
        %v632 = vshll.u32 %v532, 16
        %v634 = vrot.slane %v632, 1
        %v635 = vsel %vm543, %v630, %v634
        %v636 = vshrl.u32 %v532, 16
        %v638 = vor.u32 %v636, %v634
        %v640 = vshll.u32 %v533, 16
        %v642 = vrot.slane %v640, 1
        %v643 = vsel %vm543, %v638, %v642
        %v644 = vshrl.u32 %v533, 16
        %v646 = vor.u32 %v644, %v642
        %v648 = vshll.u32 %v534, 16
        %v650 = vrot.slane %v648, 1
        %v651 = vsel %vm543, %v646, %v650
        %v652 = vshrl.u32 %v534, 16
        %v654 = vor.u32 %v652, %v650
        %v656 = vshll.u32 %v535, 16
        %v658 = vrot.slane %v656, 1
        %v659 = vsel %vm543, %v654, %v658
        %v660 = vshrl.u32 %v535, 16
        %v662 = vor.u32 %v660, %v658
        %v664 = vshll.u32 %v536, 16
        %v666 = vrot.slane %v664, 1
        %v667 = vsel %vm543, %v662, %v666
        %v668 = vshrl.u32 %v536, 16
        %v670 = vor.u32 %v668, %v666
        %v672 = vshll.u32 %v537, 16
        %v674 = vrot.slane %v672, 1
        %v675 = vsel %vm543, %v670, %v674
        %v676 = vshrl.u32 %v537, 16
        %v678 = vor.u32 %v676, %v674
        %v680 = vshll.u32 %v538, 16
        %v682 = vrot.slane %v680, 1
        %v683 = vsel %vm543, %v678, %v682
        %v684 = vshrl.u32 %v538, 16
        %v686 = vor.u32 %v684, %v682
        %v688 = vshll.u32 %v540, 16
        %v690 = vrot.slane %v688, 1
        %v691 = vsel %vm543, %v686, %v690
        %693 = vst [vmem:[#allocation1] ss:$4 sm:$0xff] %v542
        %v694 = vld.sshfl [vmem:[#allocation1] sm:$0xff pattern:$0x73625140]
        %v695 = vld.sshfl [vmem:[#allocation1 + $0x8] sm:$0xff pattern:$0x73625140]
        %vm696 = vcmask 31744
        %v698 = vsel %vm696, %v555, 0
        %v701 = vsel %vm696, %v563, 0
        %v704 = vsel %vm696, %v571, 0
        %v707 = vsel %vm696, %v579, 0
        %v710 = vsel %vm696, %v587, 0
        %v713 = vsel %vm696, %v595, 0
        %v716 = vsel %vm696, %v603, 0
        %v719 = vsel %vm696, %v611, 0
        %v722 = vsel %vm696, %v619, 0
        %v725 = vsel %vm696, %v627, 0
        %v728 = vsel %vm696, %v635, 0
        %v731 = vsel %vm696, %v643, 0
        %v734 = vsel %vm696, %v651, 0
        %v737 = vsel %vm696, %v659, 0
        %v740 = vsel %vm696, %v667, 0
        %v743 = vsel %vm696, %v675, 0
        %v746 = vsel %vm696, %v683, 0
        %v749 = vsel %vm696, %v691, 0
        %vm751 = vcmask 1041408
        %v752 = vsel %vm751, %v694, 0
        %v754 = vsel %vm751, %v695, 0
        %756 = vmatpush.bf16.msra.mxu0 0
        %757 = vmatpush.bf16.msra.mxu0 0
        %758 = vmatpush.bf16.msra.mxu0 0
        %759 = vmatpush.bf16.msra.mxu0 0
        %760 = vmatpush.bf16.msra.mxu0 0
        %761 = vmatpush.bf16.msra.mxu0 0
        %762 = vmatpush.bf16.msra.mxu0 0
        %763 = vmatpush.bf16.msra.mxu0 %v752
        %764 = vmatmul.bf16.gmra.mxu0 %v698
        %v765 = vpop.f32.mrf.mxu0
        %v766 = vadd.f32 0.0, %v765
        %v767 = vpop.f32.mrf.mxu0
        %v768 = vadd.f32 0.0, %v767
        %769 = vmatmul.bf16.gmra.mxu0 %v701
        %v770 = vpop.f32.mrf.mxu0
        %v771 = vadd.f32 0.0, %v770
        %v772 = vpop.f32.mrf.mxu0
        %v773 = vadd.f32 0.0, %v772
        %774 = vmatmul.bf16.gmra.mxu0 %v704
        %v775 = vpop.f32.mrf.mxu0
        %v776 = vadd.f32 0.0, %v775
        %v777 = vpop.f32.mrf.mxu0
        %v778 = vadd.f32 0.0, %v777
        %779 = vmatmul.bf16.gmra.mxu0 %v707
        %v780 = vpop.f32.mrf.mxu0
        %v781 = vadd.f32 0.0, %v780
        %v782 = vpop.f32.mrf.mxu0
        %v783 = vadd.f32 0.0, %v782
        %784 = vmatmul.bf16.gmra.mxu0 %v710
        %v785 = vpop.f32.mrf.mxu0
        %v786 = vadd.f32 0.0, %v785
        %v787 = vpop.f32.mrf.mxu0
        %v788 = vadd.f32 0.0, %v787
        %789 = vmatmul.bf16.gmra.mxu0 %v713
        %v790 = vpop.f32.mrf.mxu0
        %v791 = vadd.f32 0.0, %v790
        %v792 = vpop.f32.mrf.mxu0
        %v793 = vadd.f32 0.0, %v792
        %794 = vmatmul.bf16.gmra.mxu0 %v716
        %v795 = vpop.f32.mrf.mxu0
        %v796 = vadd.f32 0.0, %v795
        %v797 = vpop.f32.mrf.mxu0
        %v798 = vadd.f32 0.0, %v797
        %799 = vmatmul.bf16.gmra.mxu0 %v719
        %v800 = vpop.f32.mrf.mxu0
        %v801 = vadd.f32 0.0, %v800
        %v802 = vpop.f32.mrf.mxu0
        %v803 = vadd.f32 0.0, %v802
        %804 = vmatmul.bf16.gmra.mxu0 %v722
        %v805 = vpop.f32.mrf.mxu0
        %v806 = vadd.f32 0.0, %v805
        %v807 = vpop.f32.mrf.mxu0
        %v808 = vadd.f32 0.0, %v807
        %809 = vmatmul.bf16.gmra.mxu0 %v725
        %v810 = vpop.f32.mrf.mxu0
        %v811 = vadd.f32 0.0, %v810
        %v812 = vpop.f32.mrf.mxu0
        %v813 = vadd.f32 0.0, %v812
        %814 = vmatmul.bf16.gmra.mxu0 %v728
        %v815 = vpop.f32.mrf.mxu0
        %v816 = vadd.f32 0.0, %v815
        %v817 = vpop.f32.mrf.mxu0
        %v818 = vadd.f32 0.0, %v817
        %819 = vmatmul.bf16.gmra.mxu0 %v731
        %v820 = vpop.f32.mrf.mxu0
        %v821 = vadd.f32 0.0, %v820
        %v822 = vpop.f32.mrf.mxu0
        %v823 = vadd.f32 0.0, %v822
        %824 = vmatmul.bf16.gmra.mxu0 %v734
        %v825 = vpop.f32.mrf.mxu0
        %v826 = vadd.f32 0.0, %v825
        %v827 = vpop.f32.mrf.mxu0
        %v828 = vadd.f32 0.0, %v827
        %829 = vmatmul.bf16.gmra.mxu0 %v737
        %v830 = vpop.f32.mrf.mxu0
        %v831 = vadd.f32 0.0, %v830
        %v832 = vpop.f32.mrf.mxu0
        %v833 = vadd.f32 0.0, %v832
        %834 = vmatmul.bf16.gmra.mxu0 %v740
        %v835 = vpop.f32.mrf.mxu0
        %v836 = vadd.f32 0.0, %v835
        %v837 = vpop.f32.mrf.mxu0
        %v838 = vadd.f32 0.0, %v837
        %839 = vmatmul.bf16.gmra.mxu0 %v743
        %v840 = vpop.f32.mrf.mxu0
        %v841 = vadd.f32 0.0, %v840
        %v842 = vpop.f32.mrf.mxu0
        %v843 = vadd.f32 0.0, %v842
        %844 = vmatmul.bf16.gmra.mxu0 %v746
        %v845 = vpop.f32.mrf.mxu0
        %v846 = vadd.f32 0.0, %v845
        %v847 = vpop.f32.mrf.mxu0
        %v848 = vadd.f32 0.0, %v847
        %849 = vmatmul.bf16.gmra.mxu0 %v749
        %v850 = vpop.f32.mrf.mxu0
        %v851 = vadd.f32 0.0, %v850
        %v852 = vpop.f32.mrf.mxu0
        %v853 = vadd.f32 0.0, %v852
        %854 = vdwg.mxu0
        %855 = vmatpush.bf16.msra.mxu0 0
        %856 = vmatpush.bf16.msra.mxu0 0
        %857 = vmatpush.bf16.msra.mxu0 0
        %858 = vmatpush.bf16.msra.mxu0 0
        %859 = vmatpush.bf16.msra.mxu0 0
        %860 = vmatpush.bf16.msra.mxu0 0
        %861 = vmatpush.bf16.msra.mxu0 0
        %862 = vmatpush.bf16.msra.mxu0 %v754
        %863 = vmatmul.bf16.gmra.mxu0 %v698
        %v864 = vpop.f32.mrf.mxu0
        %v865 = vadd.f32 0.0, %v864
        %v866 = vpop.f32.mrf.mxu0
        %v867 = vadd.f32 0.0, %v866
        %868 = vmatmul.bf16.gmra.mxu0 %v701
        %v869 = vpop.f32.mrf.mxu0
        %v870 = vadd.f32 0.0, %v869
        %v871 = vpop.f32.mrf.mxu0
        %v872 = vadd.f32 0.0, %v871
        %873 = vmatmul.bf16.gmra.mxu0 %v704
        %v874 = vpop.f32.mrf.mxu0
        %v875 = vadd.f32 0.0, %v874
        %v876 = vpop.f32.mrf.mxu0
        %v877 = vadd.f32 0.0, %v876
        %878 = vmatmul.bf16.gmra.mxu0 %v707
        %v879 = vpop.f32.mrf.mxu0
        %v880 = vadd.f32 0.0, %v879
        %v881 = vpop.f32.mrf.mxu0
        %v882 = vadd.f32 0.0, %v881
        %883 = vmatmul.bf16.gmra.mxu0 %v710
        %v884 = vpop.f32.mrf.mxu0
        %v885 = vadd.f32 0.0, %v884
        %v886 = vpop.f32.mrf.mxu0
        %v887 = vadd.f32 0.0, %v886
        %888 = vmatmul.bf16.gmra.mxu0 %v713
        %v889 = vpop.f32.mrf.mxu0
        %v890 = vadd.f32 0.0, %v889
        %v891 = vpop.f32.mrf.mxu0
        %v892 = vadd.f32 0.0, %v891
        %893 = vmatmul.bf16.gmra.mxu0 %v716
        %v894 = vpop.f32.mrf.mxu0
        %v895 = vadd.f32 0.0, %v894
        %v896 = vpop.f32.mrf.mxu0
        %v897 = vadd.f32 0.0, %v896
        %898 = vmatmul.bf16.gmra.mxu0 %v719
        %v899 = vpop.f32.mrf.mxu0
        %v900 = vadd.f32 0.0, %v899
        %v901 = vpop.f32.mrf.mxu0
        %v902 = vadd.f32 0.0, %v901
        %903 = vmatmul.bf16.gmra.mxu0 %v722
        %v904 = vpop.f32.mrf.mxu0
        %v905 = vadd.f32 0.0, %v904
        %v906 = vpop.f32.mrf.mxu0
        %v907 = vadd.f32 0.0, %v906
        %908 = vmatmul.bf16.gmra.mxu0 %v725
        %v909 = vpop.f32.mrf.mxu0
        %v910 = vadd.f32 0.0, %v909
        %v911 = vpop.f32.mrf.mxu0
        %v912 = vadd.f32 0.0, %v911
        %913 = vmatmul.bf16.gmra.mxu0 %v728
        %v914 = vpop.f32.mrf.mxu0
        %v915 = vadd.f32 0.0, %v914
        %v916 = vpop.f32.mrf.mxu0
        %v917 = vadd.f32 0.0, %v916
        %918 = vmatmul.bf16.gmra.mxu0 %v731
        %v919 = vpop.f32.mrf.mxu0
        %v920 = vadd.f32 0.0, %v919
        %v921 = vpop.f32.mrf.mxu0
        %v922 = vadd.f32 0.0, %v921
        %923 = vmatmul.bf16.gmra.mxu0 %v734
        %v924 = vpop.f32.mrf.mxu0
        %v925 = vadd.f32 0.0, %v924
        %v926 = vpop.f32.mrf.mxu0
        %v927 = vadd.f32 0.0, %v926
        %928 = vmatmul.bf16.gmra.mxu0 %v737
        %v929 = vpop.f32.mrf.mxu0
        %v930 = vadd.f32 0.0, %v929
        %v931 = vpop.f32.mrf.mxu0
        %v932 = vadd.f32 0.0, %v931
        %933 = vmatmul.bf16.gmra.mxu0 %v740
        %v934 = vpop.f32.mrf.mxu0
        %v935 = vadd.f32 0.0, %v934
        %v936 = vpop.f32.mrf.mxu0
        %v937 = vadd.f32 0.0, %v936
        %938 = vmatmul.bf16.gmra.mxu0 %v743
        %v939 = vpop.f32.mrf.mxu0
        %v940 = vadd.f32 0.0, %v939
        %v941 = vpop.f32.mrf.mxu0
        %v942 = vadd.f32 0.0, %v941
        %943 = vmatmul.bf16.gmra.mxu0 %v746
        %v944 = vpop.f32.mrf.mxu0
        %v945 = vadd.f32 0.0, %v944
        %v946 = vpop.f32.mrf.mxu0
        %v947 = vadd.f32 0.0, %v946
        %948 = vmatmul.bf16.gmra.mxu0 %v749
        %v949 = vpop.f32.mrf.mxu0
        %v950 = vadd.f32 0.0, %v949
        %v951 = vpop.f32.mrf.mxu0
        %v952 = vadd.f32 0.0, %v951
        %953 = vdwg.mxu0
        %955 = vst [vmem:[#allocation1] ss:$4 sm:$0xff] %v539
        %v956 = vld.sshfl [vmem:[#allocation1] sm:$0xff pattern:$0x73625140]
        %v957 = vld.sshfl [vmem:[#allocation1 + $0x8] sm:$0xff pattern:$0x73625140]
        %v958 = vsel %vm696, %v521, 0
        %v960 = vsel %vm696, %v522, 0
        %v962 = vsel %vm696, %v523, 0
        %v964 = vsel %vm696, %v524, 0
        %v966 = vsel %vm696, %v525, 0
        %v968 = vsel %vm696, %v526, 0
        %v970 = vsel %vm696, %v527, 0
        %v972 = vsel %vm696, %v528, 0
        %v974 = vsel %vm696, %v529, 0
        %v976 = vsel %vm696, %v530, 0
        %v978 = vsel %vm696, %v531, 0
        %v980 = vsel %vm696, %v532, 0
        %v982 = vsel %vm696, %v533, 0
        %v984 = vsel %vm696, %v534, 0
        %v986 = vsel %vm696, %v535, 0
        %v988 = vsel %vm696, %v536, 0
        %v990 = vsel %vm696, %v537, 0
        %v992 = vsel %vm696, %v538, 0
        %v994 = vsel %vm751, %v956, 0
        %v996 = vsel %vm751, %v957, 0
        %998 = vmatpush.bf16.msra.mxu0 0
        %999 = vmatpush.bf16.msra.mxu0 0
        %1000 = vmatpush.bf16.msra.mxu0 0
        %1001 = vmatpush.bf16.msra.mxu0 0
        %1002 = vmatpush.bf16.msra.mxu0 0
        %1003 = vmatpush.bf16.msra.mxu0 0
        %1004 = vmatpush.bf16.msra.mxu0 0
        %1005 = vmatpush.bf16.msra.mxu0 %v994
        %1006 = vmatmul.bf16.gmra.mxu0 %v958
        %v1007 = vpop.f32.mrf.mxu0
        %v1008 = vadd.f32 %v766, %v1007
        %v1009 = vpop.f32.mrf.mxu0
        %v1010 = vadd.f32 %v768, %v1009
        %1011 = vmatmul.bf16.gmra.mxu0 %v960
        %v1012 = vpop.f32.mrf.mxu0
        %v1013 = vadd.f32 %v771, %v1012
        %v1014 = vpop.f32.mrf.mxu0
        %v1015 = vadd.f32 %v773, %v1014
        %1016 = vmatmul.bf16.gmra.mxu0 %v962
        %v1017 = vpop.f32.mrf.mxu0
        %v1018 = vadd.f32 %v776, %v1017
        %v1019 = vpop.f32.mrf.mxu0
        %v1020 = vadd.f32 %v778, %v1019
        %1021 = vmatmul.bf16.gmra.mxu0 %v964
        %v1022 = vpop.f32.mrf.mxu0
        %v1023 = vadd.f32 %v781, %v1022
        %v1024 = vpop.f32.mrf.mxu0
        %v1025 = vadd.f32 %v783, %v1024
        %1026 = vmatmul.bf16.gmra.mxu0 %v966
        %v1027 = vpop.f32.mrf.mxu0
        %v1028 = vadd.f32 %v786, %v1027
        %v1029 = vpop.f32.mrf.mxu0
        %v1030 = vadd.f32 %v788, %v1029
        %1031 = vmatmul.bf16.gmra.mxu0 %v968
        %v1032 = vpop.f32.mrf.mxu0
        %v1033 = vadd.f32 %v791, %v1032
        %v1034 = vpop.f32.mrf.mxu0
        %v1035 = vadd.f32 %v793, %v1034
        %1036 = vmatmul.bf16.gmra.mxu0 %v970
        %v1037 = vpop.f32.mrf.mxu0
        %v1038 = vadd.f32 %v796, %v1037
        %v1039 = vpop.f32.mrf.mxu0
        %v1040 = vadd.f32 %v798, %v1039
        %1041 = vmatmul.bf16.gmra.mxu0 %v972
        %v1042 = vpop.f32.mrf.mxu0
        %v1043 = vadd.f32 %v801, %v1042
        %v1044 = vpop.f32.mrf.mxu0
        %v1045 = vadd.f32 %v803, %v1044
        %1046 = vmatmul.bf16.gmra.mxu0 %v974
        %v1047 = vpop.f32.mrf.mxu0
        %v1048 = vadd.f32 %v806, %v1047
        %v1049 = vpop.f32.mrf.mxu0
        %v1050 = vadd.f32 %v808, %v1049
        %1051 = vmatmul.bf16.gmra.mxu0 %v976
        %v1052 = vpop.f32.mrf.mxu0
        %v1053 = vadd.f32 %v811, %v1052
        %v1054 = vpop.f32.mrf.mxu0
        %v1055 = vadd.f32 %v813, %v1054
        %1056 = vmatmul.bf16.gmra.mxu0 %v978
        %v1057 = vpop.f32.mrf.mxu0
        %v1058 = vadd.f32 %v816, %v1057
        %v1059 = vpop.f32.mrf.mxu0
        %v1060 = vadd.f32 %v818, %v1059
        %1061 = vmatmul.bf16.gmra.mxu0 %v980
        %v1062 = vpop.f32.mrf.mxu0
        %v1063 = vadd.f32 %v821, %v1062
        %v1064 = vpop.f32.mrf.mxu0
        %v1065 = vadd.f32 %v823, %v1064
        %1066 = vmatmul.bf16.gmra.mxu0 %v982
        %v1067 = vpop.f32.mrf.mxu0
        %v1068 = vadd.f32 %v826, %v1067
        %v1069 = vpop.f32.mrf.mxu0
        %v1070 = vadd.f32 %v828, %v1069
        %1071 = vmatmul.bf16.gmra.mxu0 %v984
        %v1072 = vpop.f32.mrf.mxu0
        %v1073 = vadd.f32 %v831, %v1072
        %v1074 = vpop.f32.mrf.mxu0
        %v1075 = vadd.f32 %v833, %v1074
        %1076 = vmatmul.bf16.gmra.mxu0 %v986
        %v1077 = vpop.f32.mrf.mxu0
        %v1078 = vadd.f32 %v836, %v1077
        %v1079 = vpop.f32.mrf.mxu0
        %v1080 = vadd.f32 %v838, %v1079
        %1081 = vmatmul.bf16.gmra.mxu0 %v988
        %v1082 = vpop.f32.mrf.mxu0
        %v1083 = vadd.f32 %v841, %v1082
        %v1084 = vpop.f32.mrf.mxu0
        %v1085 = vadd.f32 %v843, %v1084
        %1086 = vmatmul.bf16.gmra.mxu0 %v990
        %v1087 = vpop.f32.mrf.mxu0
        %v1088 = vadd.f32 %v846, %v1087
        %v1089 = vpop.f32.mrf.mxu0
        %v1090 = vadd.f32 %v848, %v1089
        %1091 = vmatmul.bf16.gmra.mxu0 %v992
        %v1092 = vpop.f32.mrf.mxu0
        %v1093 = vadd.f32 %v851, %v1092
        %v1094 = vpop.f32.mrf.mxu0
        %v1095 = vadd.f32 %v853, %v1094
        %1096 = vdwg.mxu0
        %1097 = vmatpush.bf16.msra.mxu0 0
        %1098 = vmatpush.bf16.msra.mxu0 0
        %1099 = vmatpush.bf16.msra.mxu0 0
        %1100 = vmatpush.bf16.msra.mxu0 0
        %1101 = vmatpush.bf16.msra.mxu0 0
        %1102 = vmatpush.bf16.msra.mxu0 0
        %1103 = vmatpush.bf16.msra.mxu0 0
        %1104 = vmatpush.bf16.msra.mxu0 %v996
        %1105 = vmatmul.bf16.gmra.mxu0 %v958
        %v1106 = vpop.f32.mrf.mxu0
        %v1107 = vadd.f32 %v865, %v1106
        %v1108 = vpop.f32.mrf.mxu0
        %v1109 = vadd.f32 %v867, %v1108
        %1110 = vmatmul.bf16.gmra.mxu0 %v960
        %v1111 = vpop.f32.mrf.mxu0
        %v1112 = vadd.f32 %v870, %v1111
        %v1113 = vpop.f32.mrf.mxu0
        %v1114 = vadd.f32 %v872, %v1113
        %1115 = vmatmul.bf16.gmra.mxu0 %v962
        %v1116 = vpop.f32.mrf.mxu0
        %v1117 = vadd.f32 %v875, %v1116
        %v1118 = vpop.f32.mrf.mxu0
        %v1119 = vadd.f32 %v877, %v1118
        %1120 = vmatmul.bf16.gmra.mxu0 %v964
        %v1121 = vpop.f32.mrf.mxu0
        %v1122 = vadd.f32 %v880, %v1121
        %v1123 = vpop.f32.mrf.mxu0
        %v1124 = vadd.f32 %v882, %v1123
        %1125 = vmatmul.bf16.gmra.mxu0 %v966
        %v1126 = vpop.f32.mrf.mxu0
        %v1127 = vadd.f32 %v885, %v1126
        %v1128 = vpop.f32.mrf.mxu0
        %v1129 = vadd.f32 %v887, %v1128
        %1130 = vmatmul.bf16.gmra.mxu0 %v968
        %v1131 = vpop.f32.mrf.mxu0
        %v1132 = vadd.f32 %v890, %v1131
        %v1133 = vpop.f32.mrf.mxu0
        %v1134 = vadd.f32 %v892, %v1133
        %1135 = vmatmul.bf16.gmra.mxu0 %v970
        %v1136 = vpop.f32.mrf.mxu0
        %v1137 = vadd.f32 %v895, %v1136
        %v1138 = vpop.f32.mrf.mxu0
        %v1139 = vadd.f32 %v897, %v1138
        %1140 = vmatmul.bf16.gmra.mxu0 %v972
        %v1141 = vpop.f32.mrf.mxu0
        %v1142 = vadd.f32 %v900, %v1141
        %v1143 = vpop.f32.mrf.mxu0
        %v1144 = vadd.f32 %v902, %v1143
        %1145 = vmatmul.bf16.gmra.mxu0 %v974
        %v1146 = vpop.f32.mrf.mxu0
        %v1147 = vadd.f32 %v905, %v1146
        %v1148 = vpop.f32.mrf.mxu0
        %v1149 = vadd.f32 %v907, %v1148
        %1150 = vmatmul.bf16.gmra.mxu0 %v976
        %v1151 = vpop.f32.mrf.mxu0
        %v1152 = vadd.f32 %v910, %v1151
        %v1153 = vpop.f32.mrf.mxu0
        %v1154 = vadd.f32 %v912, %v1153
        %1155 = vmatmul.bf16.gmra.mxu0 %v978
        %v1156 = vpop.f32.mrf.mxu0
        %v1157 = vadd.f32 %v915, %v1156
        %v1158 = vpop.f32.mrf.mxu0
        %v1159 = vadd.f32 %v917, %v1158
        %1160 = vmatmul.bf16.gmra.mxu0 %v980
        %v1161 = vpop.f32.mrf.mxu0
        %v1162 = vadd.f32 %v920, %v1161
        %v1163 = vpop.f32.mrf.mxu0
        %v1164 = vadd.f32 %v922, %v1163
        %1165 = vmatmul.bf16.gmra.mxu0 %v982
        %v1166 = vpop.f32.mrf.mxu0
        %v1167 = vadd.f32 %v925, %v1166
        %v1168 = vpop.f32.mrf.mxu0
        %v1169 = vadd.f32 %v927, %v1168
        %1170 = vmatmul.bf16.gmra.mxu0 %v984
        %v1171 = vpop.f32.mrf.mxu0
        %v1172 = vadd.f32 %v930, %v1171
        %v1173 = vpop.f32.mrf.mxu0
        %v1174 = vadd.f32 %v932, %v1173
        %1175 = vmatmul.bf16.gmra.mxu0 %v986
        %v1176 = vpop.f32.mrf.mxu0
        %v1177 = vadd.f32 %v935, %v1176
        %v1178 = vpop.f32.mrf.mxu0
        %v1179 = vadd.f32 %v937, %v1178
        %1180 = vmatmul.bf16.gmra.mxu0 %v988
        %v1181 = vpop.f32.mrf.mxu0
        %v1182 = vadd.f32 %v940, %v1181
        %v1183 = vpop.f32.mrf.mxu0
        %v1184 = vadd.f32 %v942, %v1183
        %1185 = vmatmul.bf16.gmra.mxu0 %v990
        %v1186 = vpop.f32.mrf.mxu0
        %v1187 = vadd.f32 %v945, %v1186
        %v1188 = vpop.f32.mrf.mxu0
        %v1189 = vadd.f32 %v947, %v1188
        %1190 = vmatmul.bf16.gmra.mxu0 %v992
        %v1191 = vpop.f32.mrf.mxu0
        %v1192 = vadd.f32 %v950, %v1191
        %v1193 = vpop.f32.mrf.mxu0
        %v1194 = vadd.f32 %v952, %v1193
        %1195 = vdwg.mxu0
        %s1196 = scalar_lea.vmem %s368, 8 [#allocation3]
        %v1197 = vld [vmem:[%s1196] sm:$0xf]
        %vm1217 = vcmask 1046528
        %v1218 = vrot.slane %v521, 1
        %v1219 = vrot.slane %v522, 1
        %v1220 = vsel %vm1217, %v1218, %v1219
        %v1221 = vrot.slane %v523, 1
        %v1222 = vsel %vm1217, %v1219, %v1221
        %v1223 = vrot.slane %v524, 1
        %v1224 = vsel %vm1217, %v1221, %v1223
        %v1225 = vrot.slane %v525, 1
        %v1226 = vsel %vm1217, %v1223, %v1225
        %v1227 = vrot.slane %v526, 1
        %v1228 = vsel %vm1217, %v1225, %v1227
        %v1229 = vrot.slane %v527, 1
        %v1230 = vsel %vm1217, %v1227, %v1229
        %v1231 = vrot.slane %v528, 1
        %v1232 = vsel %vm1217, %v1229, %v1231
        %v1233 = vrot.slane %v529, 1
        %v1234 = vsel %vm1217, %v1231, %v1233
        %v1235 = vrot.slane %v530, 1
        %v1236 = vsel %vm1217, %v1233, %v1235
        %v1237 = vrot.slane %v531, 1
        %v1238 = vsel %vm1217, %v1235, %v1237
        %v1239 = vrot.slane %v532, 1
        %v1240 = vsel %vm1217, %v1237, %v1239
        %v1241 = vrot.slane %v533, 1
        %v1242 = vsel %vm1217, %v1239, %v1241
        %v1243 = vrot.slane %v534, 1
        %v1244 = vsel %vm1217, %v1241, %v1243
        %v1245 = vrot.slane %v535, 1
        %v1246 = vsel %vm1217, %v1243, %v1245
        %v1247 = vrot.slane %v536, 1
        %v1248 = vsel %vm1217, %v1245, %v1247
        %v1249 = vrot.slane %v537, 1
        %v1250 = vsel %vm1217, %v1247, %v1249
        %v1251 = vrot.slane %v538, 1
        %v1252 = vsel %vm1217, %v1249, %v1251
        %v1253 = vrot.slane %v540, 1
        %v1254 = vsel %vm1217, %v1251, %v1253
        %1256 = vst [vmem:[#allocation1] ss:$4 sm:$0xff] %v1197
        %v1257 = vld.sshfl [vmem:[#allocation1] sm:$0xff pattern:$0x73625140]
        %v1258 = vld.sshfl [vmem:[#allocation1 + $0x8] sm:$0xff pattern:$0x73625140]
        %v1260 = vsel %vm696, %v1220, 0
        %v1263 = vsel %vm696, %v1222, 0
        %v1266 = vsel %vm696, %v1224, 0
        %v1269 = vsel %vm696, %v1226, 0
        %v1272 = vsel %vm696, %v1228, 0
        %v1275 = vsel %vm696, %v1230, 0
        %v1278 = vsel %vm696, %v1232, 0
        %v1281 = vsel %vm696, %v1234, 0
        %v1284 = vsel %vm696, %v1236, 0
        %v1287 = vsel %vm696, %v1238, 0
        %v1290 = vsel %vm696, %v1240, 0
        %v1293 = vsel %vm696, %v1242, 0
        %v1296 = vsel %vm696, %v1244, 0
        %v1299 = vsel %vm696, %v1246, 0
        %v1302 = vsel %vm696, %v1248, 0
        %v1305 = vsel %vm696, %v1250, 0
        %v1308 = vsel %vm696, %v1252, 0
        %v1311 = vsel %vm696, %v1254, 0
        %v1313 = vsel %vm751, %v1257, 0
        %v1315 = vsel %vm751, %v1258, 0
        %1317 = vmatpush.bf16.msra.mxu0 0
        %1318 = vmatpush.bf16.msra.mxu0 0
        %1319 = vmatpush.bf16.msra.mxu0 0
        %1320 = vmatpush.bf16.msra.mxu0 0
        %1321 = vmatpush.bf16.msra.mxu0 0
        %1322 = vmatpush.bf16.msra.mxu0 0
        %1323 = vmatpush.bf16.msra.mxu0 0
        %1324 = vmatpush.bf16.msra.mxu0 %v1313
        %1325 = vmatmul.bf16.gmra.mxu0 %v1260
        %v1326 = vpop.f32.mrf.mxu0
        %v1327 = vadd.f32 0.0, %v1326
        %v1328 = vpop.f32.mrf.mxu0
        %v1329 = vadd.f32 0.0, %v1328
        %1330 = vmatmul.bf16.gmra.mxu0 %v1263
        %v1331 = vpop.f32.mrf.mxu0
        %v1332 = vadd.f32 0.0, %v1331
        %v1333 = vpop.f32.mrf.mxu0
        %v1334 = vadd.f32 0.0, %v1333
        %1335 = vmatmul.bf16.gmra.mxu0 %v1266
        %v1336 = vpop.f32.mrf.mxu0
        %v1337 = vadd.f32 0.0, %v1336
        %v1338 = vpop.f32.mrf.mxu0
        %v1339 = vadd.f32 0.0, %v1338
        %1340 = vmatmul.bf16.gmra.mxu0 %v1269
        %v1341 = vpop.f32.mrf.mxu0
        %v1342 = vadd.f32 0.0, %v1341
        %v1343 = vpop.f32.mrf.mxu0
        %v1344 = vadd.f32 0.0, %v1343
        %1345 = vmatmul.bf16.gmra.mxu0 %v1272
        %v1346 = vpop.f32.mrf.mxu0
        %v1347 = vadd.f32 0.0, %v1346
        %v1348 = vpop.f32.mrf.mxu0
        %v1349 = vadd.f32 0.0, %v1348
        %1350 = vmatmul.bf16.gmra.mxu0 %v1275
        %v1351 = vpop.f32.mrf.mxu0
        %v1352 = vadd.f32 0.0, %v1351
        %v1353 = vpop.f32.mrf.mxu0
        %v1354 = vadd.f32 0.0, %v1353
        %1355 = vmatmul.bf16.gmra.mxu0 %v1278
        %v1356 = vpop.f32.mrf.mxu0
        %v1357 = vadd.f32 0.0, %v1356
        %v1358 = vpop.f32.mrf.mxu0
        %v1359 = vadd.f32 0.0, %v1358
        %1360 = vmatmul.bf16.gmra.mxu0 %v1281
        %v1361 = vpop.f32.mrf.mxu0
        %v1362 = vadd.f32 0.0, %v1361
        %v1363 = vpop.f32.mrf.mxu0
        %v1364 = vadd.f32 0.0, %v1363
        %1365 = vmatmul.bf16.gmra.mxu0 %v1284
        %v1366 = vpop.f32.mrf.mxu0
        %v1367 = vadd.f32 0.0, %v1366
        %v1368 = vpop.f32.mrf.mxu0
        %v1369 = vadd.f32 0.0, %v1368
        %1370 = vmatmul.bf16.gmra.mxu0 %v1287
        %v1371 = vpop.f32.mrf.mxu0
        %v1372 = vadd.f32 0.0, %v1371
        %v1373 = vpop.f32.mrf.mxu0
        %v1374 = vadd.f32 0.0, %v1373
        %1375 = vmatmul.bf16.gmra.mxu0 %v1290
        %v1376 = vpop.f32.mrf.mxu0
        %v1377 = vadd.f32 0.0, %v1376
        %v1378 = vpop.f32.mrf.mxu0
        %v1379 = vadd.f32 0.0, %v1378
        %1380 = vmatmul.bf16.gmra.mxu0 %v1293
        %v1381 = vpop.f32.mrf.mxu0
        %v1382 = vadd.f32 0.0, %v1381
        %v1383 = vpop.f32.mrf.mxu0
        %v1384 = vadd.f32 0.0, %v1383
        %1385 = vmatmul.bf16.gmra.mxu0 %v1296
        %v1386 = vpop.f32.mrf.mxu0
        %v1387 = vadd.f32 0.0, %v1386
        %v1388 = vpop.f32.mrf.mxu0
        %v1389 = vadd.f32 0.0, %v1388
        %1390 = vmatmul.bf16.gmra.mxu0 %v1299
        %v1391 = vpop.f32.mrf.mxu0
        %v1392 = vadd.f32 0.0, %v1391
        %v1393 = vpop.f32.mrf.mxu0
        %v1394 = vadd.f32 0.0, %v1393
        %1395 = vmatmul.bf16.gmra.mxu0 %v1302
        %v1396 = vpop.f32.mrf.mxu0
        %v1397 = vadd.f32 0.0, %v1396
        %v1398 = vpop.f32.mrf.mxu0
        %v1399 = vadd.f32 0.0, %v1398
        %1400 = vmatmul.bf16.gmra.mxu0 %v1305
        %v1401 = vpop.f32.mrf.mxu0
        %v1402 = vadd.f32 0.0, %v1401
        %v1403 = vpop.f32.mrf.mxu0
        %v1404 = vadd.f32 0.0, %v1403
        %1405 = vmatmul.bf16.gmra.mxu0 %v1308
        %v1406 = vpop.f32.mrf.mxu0
        %v1407 = vadd.f32 0.0, %v1406
        %v1408 = vpop.f32.mrf.mxu0
        %v1409 = vadd.f32 0.0, %v1408
        %1410 = vmatmul.bf16.gmra.mxu0 %v1311
        %v1411 = vpop.f32.mrf.mxu0
        %v1412 = vadd.f32 0.0, %v1411
        %v1413 = vpop.f32.mrf.mxu0
        %v1414 = vadd.f32 0.0, %v1413
        %1415 = vdwg.mxu0
        %1416 = vmatpush.bf16.msra.mxu0 0
        %1417 = vmatpush.bf16.msra.mxu0 0
        %1418 = vmatpush.bf16.msra.mxu0 0
        %1419 = vmatpush.bf16.msra.mxu0 0
        %1420 = vmatpush.bf16.msra.mxu0 0
        %1421 = vmatpush.bf16.msra.mxu0 0
        %1422 = vmatpush.bf16.msra.mxu0 0
        %1423 = vmatpush.bf16.msra.mxu0 %v1315
        %1424 = vmatmul.bf16.gmra.mxu0 %v1260
        %v1425 = vpop.f32.mrf.mxu0
        %v1426 = vadd.f32 0.0, %v1425
        %v1427 = vpop.f32.mrf.mxu0
        %v1428 = vadd.f32 0.0, %v1427
        %1429 = vmatmul.bf16.gmra.mxu0 %v1263
        %v1430 = vpop.f32.mrf.mxu0
        %v1431 = vadd.f32 0.0, %v1430
        %v1432 = vpop.f32.mrf.mxu0
        %v1433 = vadd.f32 0.0, %v1432
        %1434 = vmatmul.bf16.gmra.mxu0 %v1266
        %v1435 = vpop.f32.mrf.mxu0
        %v1436 = vadd.f32 0.0, %v1435
        %v1437 = vpop.f32.mrf.mxu0
        %v1438 = vadd.f32 0.0, %v1437
        %1439 = vmatmul.bf16.gmra.mxu0 %v1269
        %v1440 = vpop.f32.mrf.mxu0
        %v1441 = vadd.f32 0.0, %v1440
        %v1442 = vpop.f32.mrf.mxu0
        %v1443 = vadd.f32 0.0, %v1442
        %1444 = vmatmul.bf16.gmra.mxu0 %v1272
        %v1445 = vpop.f32.mrf.mxu0
        %v1446 = vadd.f32 0.0, %v1445
        %v1447 = vpop.f32.mrf.mxu0
        %v1448 = vadd.f32 0.0, %v1447
        %1449 = vmatmul.bf16.gmra.mxu0 %v1275
        %v1450 = vpop.f32.mrf.mxu0
        %v1451 = vadd.f32 0.0, %v1450
        %v1452 = vpop.f32.mrf.mxu0
        %v1453 = vadd.f32 0.0, %v1452
        %1454 = vmatmul.bf16.gmra.mxu0 %v1278
        %v1455 = vpop.f32.mrf.mxu0
        %v1456 = vadd.f32 0.0, %v1455
        %v1457 = vpop.f32.mrf.mxu0
        %v1458 = vadd.f32 0.0, %v1457
        %1459 = vmatmul.bf16.gmra.mxu0 %v1281
        %v1460 = vpop.f32.mrf.mxu0
        %v1461 = vadd.f32 0.0, %v1460
        %v1462 = vpop.f32.mrf.mxu0
        %v1463 = vadd.f32 0.0, %v1462
        %1464 = vmatmul.bf16.gmra.mxu0 %v1284
        %v1465 = vpop.f32.mrf.mxu0
        %v1466 = vadd.f32 0.0, %v1465
        %v1467 = vpop.f32.mrf.mxu0
        %v1468 = vadd.f32 0.0, %v1467
        %1469 = vmatmul.bf16.gmra.mxu0 %v1287
        %v1470 = vpop.f32.mrf.mxu0
        %v1471 = vadd.f32 0.0, %v1470
        %v1472 = vpop.f32.mrf.mxu0
        %v1473 = vadd.f32 0.0, %v1472
        %1474 = vmatmul.bf16.gmra.mxu0 %v1290
        %v1475 = vpop.f32.mrf.mxu0
        %v1476 = vadd.f32 0.0, %v1475
        %v1477 = vpop.f32.mrf.mxu0
        %v1478 = vadd.f32 0.0, %v1477
        %1479 = vmatmul.bf16.gmra.mxu0 %v1293
        %v1480 = vpop.f32.mrf.mxu0
        %v1481 = vadd.f32 0.0, %v1480
        %v1482 = vpop.f32.mrf.mxu0
        %v1483 = vadd.f32 0.0, %v1482
        %1484 = vmatmul.bf16.gmra.mxu0 %v1296
        %v1485 = vpop.f32.mrf.mxu0
        %v1486 = vadd.f32 0.0, %v1485
        %v1487 = vpop.f32.mrf.mxu0
        %v1488 = vadd.f32 0.0, %v1487
        %1489 = vmatmul.bf16.gmra.mxu0 %v1299
        %v1490 = vpop.f32.mrf.mxu0
        %v1491 = vadd.f32 0.0, %v1490
        %v1492 = vpop.f32.mrf.mxu0
        %v1493 = vadd.f32 0.0, %v1492
        %1494 = vmatmul.bf16.gmra.mxu0 %v1302
        %v1495 = vpop.f32.mrf.mxu0
        %v1496 = vadd.f32 0.0, %v1495
        %v1497 = vpop.f32.mrf.mxu0
        %v1498 = vadd.f32 0.0, %v1497
        %1499 = vmatmul.bf16.gmra.mxu0 %v1305
        %v1500 = vpop.f32.mrf.mxu0
        %v1501 = vadd.f32 0.0, %v1500
        %v1502 = vpop.f32.mrf.mxu0
        %v1503 = vadd.f32 0.0, %v1502
        %1504 = vmatmul.bf16.gmra.mxu0 %v1308
        %v1505 = vpop.f32.mrf.mxu0
        %v1506 = vadd.f32 0.0, %v1505
        %v1507 = vpop.f32.mrf.mxu0
        %v1508 = vadd.f32 0.0, %v1507
        %1509 = vmatmul.bf16.gmra.mxu0 %v1311
        %v1510 = vpop.f32.mrf.mxu0
        %v1511 = vadd.f32 0.0, %v1510
        %v1512 = vpop.f32.mrf.mxu0
        %v1513 = vadd.f32 0.0, %v1512
        %1514 = vdwg.mxu0
        %v1515 = vadd.f32 %v1008, %v1327
        %v1516 = vadd.f32 %v1107, %v1426
        %v1517 = vadd.f32 %v1010, %v1329
        %v1518 = vadd.f32 %v1109, %v1428
        %v1519 = vadd.f32 %v1013, %v1332
        %v1520 = vadd.f32 %v1112, %v1431
        %v1521 = vadd.f32 %v1015, %v1334
        %v1522 = vadd.f32 %v1114, %v1433
        %v1523 = vadd.f32 %v1018, %v1337
        %v1524 = vadd.f32 %v1117, %v1436
        %v1525 = vadd.f32 %v1020, %v1339
        %v1526 = vadd.f32 %v1119, %v1438
        %v1527 = vadd.f32 %v1023, %v1342
        %v1528 = vadd.f32 %v1122, %v1441
        %v1529 = vadd.f32 %v1025, %v1344
        %v1530 = vadd.f32 %v1124, %v1443
        %v1531 = vadd.f32 %v1028, %v1347
        %v1532 = vadd.f32 %v1127, %v1446
        %v1533 = vadd.f32 %v1030, %v1349
        %v1534 = vadd.f32 %v1129, %v1448
        %v1535 = vadd.f32 %v1033, %v1352
        %v1536 = vadd.f32 %v1132, %v1451
        %v1537 = vadd.f32 %v1035, %v1354
        %v1538 = vadd.f32 %v1134, %v1453
        %v1539 = vadd.f32 %v1038, %v1357
        %v1540 = vadd.f32 %v1137, %v1456
        %v1541 = vadd.f32 %v1040, %v1359
        %v1542 = vadd.f32 %v1139, %v1458
        %v1543 = vadd.f32 %v1043, %v1362
        %v1544 = vadd.f32 %v1142, %v1461
        %v1545 = vadd.f32 %v1045, %v1364
        %v1546 = vadd.f32 %v1144, %v1463
        %v1547 = vadd.f32 %v1048, %v1367
        %v1548 = vadd.f32 %v1147, %v1466
        %v1549 = vadd.f32 %v1050, %v1369
        %v1550 = vadd.f32 %v1149, %v1468
        %v1551 = vadd.f32 %v1053, %v1372
        %v1552 = vadd.f32 %v1152, %v1471
        %v1553 = vadd.f32 %v1055, %v1374
        %v1554 = vadd.f32 %v1154, %v1473
        %v1555 = vadd.f32 %v1058, %v1377
        %v1556 = vadd.f32 %v1157, %v1476
        %v1557 = vadd.f32 %v1060, %v1379
        %v1558 = vadd.f32 %v1159, %v1478
        %v1559 = vadd.f32 %v1063, %v1382
        %v1560 = vadd.f32 %v1162, %v1481
        %v1561 = vadd.f32 %v1065, %v1384
        %v1562 = vadd.f32 %v1164, %v1483
        %v1563 = vadd.f32 %v1068, %v1387
        %v1564 = vadd.f32 %v1167, %v1486
        %v1565 = vadd.f32 %v1070, %v1389
        %v1566 = vadd.f32 %v1169, %v1488
        %v1567 = vadd.f32 %v1073, %v1392
        %v1568 = vadd.f32 %v1172, %v1491
        %v1569 = vadd.f32 %v1075, %v1394
        %v1570 = vadd.f32 %v1174, %v1493
        %v1571 = vadd.f32 %v1078, %v1397
        %v1572 = vadd.f32 %v1177, %v1496
        %v1573 = vadd.f32 %v1080, %v1399
        %v1574 = vadd.f32 %v1179, %v1498
        %v1575 = vadd.f32 %v1083, %v1402
        %v1576 = vadd.f32 %v1182, %v1501
        %v1577 = vadd.f32 %v1085, %v1404
        %v1578 = vadd.f32 %v1184, %v1503
        %v1579 = vadd.f32 %v1088, %v1407
        %v1580 = vadd.f32 %v1187, %v1506
        %v1581 = vadd.f32 %v1090, %v1409
        %v1582 = vadd.f32 %v1189, %v1508
        %v1583 = vadd.f32 %v1093, %v1412
        %v1584 = vadd.f32 %v1192, %v1511
        %v1585 = vadd.f32 %v1095, %v1414
        %v1586 = vadd.f32 %v1194, %v1513
        %v1587 = vpack.c.bf16 %v517, %v516
        %v1588 = vpack.c.bf16 %v518, %v518
        %s1589 = scalar_lea.vmem %s368, 12 [#allocation3]
        %v1590 = vld [vmem:[%s1589] sm:$0xf]
        %v1593 = vrot.slane %v1587, 1
        %v1594 = vsel %vm1217, %v1251, %v1593
        %v1595 = vrot.slane %v1588, 1
        %v1596 = vsel %vm1217, %v1593, %v1595
        %1598 = vst [vmem:[#allocation1] ss:$4 sm:$0xff] %v1590
        %v1599 = vld.sshfl [vmem:[#allocation1] sm:$0xff pattern:$0x73625140]
        %v1600 = vld.sshfl [vmem:[#allocation1 + $0x8] sm:$0xff pattern:$0x73625140]
        %v1602 = vsel %vm696, %v1594, 0
        %v1605 = vsel %vm696, %v1596, 0
        %v1607 = vsel %vm751, %v1599, 0
        %v1609 = vsel %vm751, %v1600, 0
        %1611 = vmatpush.bf16.msra.mxu0 0
        %1612 = vmatpush.bf16.msra.mxu0 0
        %1613 = vmatpush.bf16.msra.mxu0 0
        %1614 = vmatpush.bf16.msra.mxu0 0
        %1615 = vmatpush.bf16.msra.mxu0 0
        %1616 = vmatpush.bf16.msra.mxu0 0
        %1617 = vmatpush.bf16.msra.mxu0 0
        %1618 = vmatpush.bf16.msra.mxu0 %v1607
        %1619 = vmatmul.bf16.gmra.mxu0 %v1263
        %v1620 = vpop.f32.mrf.mxu0
        %v1621 = vadd.f32 0.0, %v1620
        %v1622 = vpop.f32.mrf.mxu0
        %v1623 = vadd.f32 0.0, %v1622
        %1624 = vmatmul.bf16.gmra.mxu0 %v1266
        %v1625 = vpop.f32.mrf.mxu0
        %v1626 = vadd.f32 0.0, %v1625
        %v1627 = vpop.f32.mrf.mxu0
        %v1628 = vadd.f32 0.0, %v1627
        %1629 = vmatmul.bf16.gmra.mxu0 %v1269
        %v1630 = vpop.f32.mrf.mxu0
        %v1631 = vadd.f32 0.0, %v1630
        %v1632 = vpop.f32.mrf.mxu0
        %v1633 = vadd.f32 0.0, %v1632
        %1634 = vmatmul.bf16.gmra.mxu0 %v1272
        %v1635 = vpop.f32.mrf.mxu0
        %v1636 = vadd.f32 0.0, %v1635
        %v1637 = vpop.f32.mrf.mxu0
        %v1638 = vadd.f32 0.0, %v1637
        %1639 = vmatmul.bf16.gmra.mxu0 %v1275
        %v1640 = vpop.f32.mrf.mxu0
        %v1641 = vadd.f32 0.0, %v1640
        %v1642 = vpop.f32.mrf.mxu0
        %v1643 = vadd.f32 0.0, %v1642
        %1644 = vmatmul.bf16.gmra.mxu0 %v1278
        %v1645 = vpop.f32.mrf.mxu0
        %v1646 = vadd.f32 0.0, %v1645
        %v1647 = vpop.f32.mrf.mxu0
        %v1648 = vadd.f32 0.0, %v1647
        %1649 = vmatmul.bf16.gmra.mxu0 %v1281
        %v1650 = vpop.f32.mrf.mxu0
        %v1651 = vadd.f32 0.0, %v1650
        %v1652 = vpop.f32.mrf.mxu0
        %v1653 = vadd.f32 0.0, %v1652
        %1654 = vmatmul.bf16.gmra.mxu0 %v1284
        %v1655 = vpop.f32.mrf.mxu0
        %v1656 = vadd.f32 0.0, %v1655
        %v1657 = vpop.f32.mrf.mxu0
        %v1658 = vadd.f32 0.0, %v1657
        %1659 = vmatmul.bf16.gmra.mxu0 %v1287
        %v1660 = vpop.f32.mrf.mxu0
        %v1661 = vadd.f32 0.0, %v1660
        %v1662 = vpop.f32.mrf.mxu0
        %v1663 = vadd.f32 0.0, %v1662
        %1664 = vmatmul.bf16.gmra.mxu0 %v1290
        %v1665 = vpop.f32.mrf.mxu0
        %v1666 = vadd.f32 0.0, %v1665
        %v1667 = vpop.f32.mrf.mxu0
        %v1668 = vadd.f32 0.0, %v1667
        %1669 = vmatmul.bf16.gmra.mxu0 %v1293
        %v1670 = vpop.f32.mrf.mxu0
        %v1671 = vadd.f32 0.0, %v1670
        %v1672 = vpop.f32.mrf.mxu0
        %v1673 = vadd.f32 0.0, %v1672
        %1674 = vmatmul.bf16.gmra.mxu0 %v1296
        %v1675 = vpop.f32.mrf.mxu0
        %v1676 = vadd.f32 0.0, %v1675
        %v1677 = vpop.f32.mrf.mxu0
        %v1678 = vadd.f32 0.0, %v1677
        %1679 = vmatmul.bf16.gmra.mxu0 %v1299
        %v1680 = vpop.f32.mrf.mxu0
        %v1681 = vadd.f32 0.0, %v1680
        %v1682 = vpop.f32.mrf.mxu0
        %v1683 = vadd.f32 0.0, %v1682
        %1684 = vmatmul.bf16.gmra.mxu0 %v1302
        %v1685 = vpop.f32.mrf.mxu0
        %v1686 = vadd.f32 0.0, %v1685
        %v1687 = vpop.f32.mrf.mxu0
        %v1688 = vadd.f32 0.0, %v1687
        %1689 = vmatmul.bf16.gmra.mxu0 %v1305
        %v1690 = vpop.f32.mrf.mxu0
        %v1691 = vadd.f32 0.0, %v1690
        %v1692 = vpop.f32.mrf.mxu0
        %v1693 = vadd.f32 0.0, %v1692
        %1694 = vmatmul.bf16.gmra.mxu0 %v1308
        %v1695 = vpop.f32.mrf.mxu0
        %v1696 = vadd.f32 0.0, %v1695
        %v1697 = vpop.f32.mrf.mxu0
        %v1698 = vadd.f32 0.0, %v1697
        %1699 = vmatmul.bf16.gmra.mxu0 %v1602
        %v1700 = vpop.f32.mrf.mxu0
        %v1701 = vadd.f32 0.0, %v1700
        %v1702 = vpop.f32.mrf.mxu0
        %v1703 = vadd.f32 0.0, %v1702
        %1704 = vmatmul.bf16.gmra.mxu0 %v1605
        %v1705 = vpop.f32.mrf.mxu0
        %v1706 = vadd.f32 0.0, %v1705
        %v1707 = vpop.f32.mrf.mxu0
        %v1708 = vadd.f32 0.0, %v1707
        %1709 = vdwg.mxu0
        %1710 = vmatpush.bf16.msra.mxu0 0
        %1711 = vmatpush.bf16.msra.mxu0 0
        %1712 = vmatpush.bf16.msra.mxu0 0
        %1713 = vmatpush.bf16.msra.mxu0 0
        %1714 = vmatpush.bf16.msra.mxu0 0
        %1715 = vmatpush.bf16.msra.mxu0 0
        %1716 = vmatpush.bf16.msra.mxu0 0
        %1717 = vmatpush.bf16.msra.mxu0 %v1609
        %1718 = vmatmul.bf16.gmra.mxu0 %v1263
        %v1719 = vpop.f32.mrf.mxu0
        %v1720 = vadd.f32 0.0, %v1719
        %v1721 = vpop.f32.mrf.mxu0
        %v1722 = vadd.f32 0.0, %v1721
        %1723 = vmatmul.bf16.gmra.mxu0 %v1266
        %v1724 = vpop.f32.mrf.mxu0
        %v1725 = vadd.f32 0.0, %v1724
        %v1726 = vpop.f32.mrf.mxu0
        %v1727 = vadd.f32 0.0, %v1726
        %1728 = vmatmul.bf16.gmra.mxu0 %v1269
        %v1729 = vpop.f32.mrf.mxu0
        %v1730 = vadd.f32 0.0, %v1729
        %v1731 = vpop.f32.mrf.mxu0
        %v1732 = vadd.f32 0.0, %v1731
        %1733 = vmatmul.bf16.gmra.mxu0 %v1272
        %v1734 = vpop.f32.mrf.mxu0
        %v1735 = vadd.f32 0.0, %v1734
        %v1736 = vpop.f32.mrf.mxu0
        %v1737 = vadd.f32 0.0, %v1736
        %1738 = vmatmul.bf16.gmra.mxu0 %v1275
        %v1739 = vpop.f32.mrf.mxu0
        %v1740 = vadd.f32 0.0, %v1739
        %v1741 = vpop.f32.mrf.mxu0
        %v1742 = vadd.f32 0.0, %v1741
        %1743 = vmatmul.bf16.gmra.mxu0 %v1278
        %v1744 = vpop.f32.mrf.mxu0
        %v1745 = vadd.f32 0.0, %v1744
        %v1746 = vpop.f32.mrf.mxu0
        %v1747 = vadd.f32 0.0, %v1746
        %1748 = vmatmul.bf16.gmra.mxu0 %v1281
        %v1749 = vpop.f32.mrf.mxu0
        %v1750 = vadd.f32 0.0, %v1749
        %v1751 = vpop.f32.mrf.mxu0
        %v1752 = vadd.f32 0.0, %v1751
        %1753 = vmatmul.bf16.gmra.mxu0 %v1284
        %v1754 = vpop.f32.mrf.mxu0
        %v1755 = vadd.f32 0.0, %v1754
        %v1756 = vpop.f32.mrf.mxu0
        %v1757 = vadd.f32 0.0, %v1756
        %1758 = vmatmul.bf16.gmra.mxu0 %v1287
        %v1759 = vpop.f32.mrf.mxu0
        %v1760 = vadd.f32 0.0, %v1759
        %v1761 = vpop.f32.mrf.mxu0
        %v1762 = vadd.f32 0.0, %v1761
        %1763 = vmatmul.bf16.gmra.mxu0 %v1290
        %v1764 = vpop.f32.mrf.mxu0
        %v1765 = vadd.f32 0.0, %v1764
        %v1766 = vpop.f32.mrf.mxu0
        %v1767 = vadd.f32 0.0, %v1766
        %1768 = vmatmul.bf16.gmra.mxu0 %v1293
        %v1769 = vpop.f32.mrf.mxu0
        %v1770 = vadd.f32 0.0, %v1769
        %v1771 = vpop.f32.mrf.mxu0
        %v1772 = vadd.f32 0.0, %v1771
        %1773 = vmatmul.bf16.gmra.mxu0 %v1296
        %v1774 = vpop.f32.mrf.mxu0
        %v1775 = vadd.f32 0.0, %v1774
        %v1776 = vpop.f32.mrf.mxu0
        %v1777 = vadd.f32 0.0, %v1776
        %1778 = vmatmul.bf16.gmra.mxu0 %v1299
        %v1779 = vpop.f32.mrf.mxu0
        %v1780 = vadd.f32 0.0, %v1779
        %v1781 = vpop.f32.mrf.mxu0
        %v1782 = vadd.f32 0.0, %v1781
        %1783 = vmatmul.bf16.gmra.mxu0 %v1302
        %v1784 = vpop.f32.mrf.mxu0
        %v1785 = vadd.f32 0.0, %v1784
        %v1786 = vpop.f32.mrf.mxu0
        %v1787 = vadd.f32 0.0, %v1786
        %1788 = vmatmul.bf16.gmra.mxu0 %v1305
        %v1789 = vpop.f32.mrf.mxu0
        %v1790 = vadd.f32 0.0, %v1789
        %v1791 = vpop.f32.mrf.mxu0
        %v1792 = vadd.f32 0.0, %v1791
        %1793 = vmatmul.bf16.gmra.mxu0 %v1308
        %v1794 = vpop.f32.mrf.mxu0
        %v1795 = vadd.f32 0.0, %v1794
        %v1796 = vpop.f32.mrf.mxu0
        %v1797 = vadd.f32 0.0, %v1796
        %1798 = vmatmul.bf16.gmra.mxu0 %v1602
        %v1799 = vpop.f32.mrf.mxu0
        %v1800 = vadd.f32 0.0, %v1799
        %v1801 = vpop.f32.mrf.mxu0
        %v1802 = vadd.f32 0.0, %v1801
        %1803 = vmatmul.bf16.gmra.mxu0 %v1605
        %v1804 = vpop.f32.mrf.mxu0
        %v1805 = vadd.f32 0.0, %v1804
        %v1806 = vpop.f32.mrf.mxu0
        %v1807 = vadd.f32 0.0, %v1806
        %1808 = vdwg.mxu0
        %v1809 = vadd.f32 %v1515, %v1621
        %v1810 = vadd.f32 %v1516, %v1720
        %v1811 = vadd.f32 %v1517, %v1623
        %v1812 = vadd.f32 %v1518, %v1722
        %v1813 = vadd.f32 %v1519, %v1626
        %v1814 = vadd.f32 %v1520, %v1725
        %v1815 = vadd.f32 %v1521, %v1628
        %v1816 = vadd.f32 %v1522, %v1727
        %v1817 = vadd.f32 %v1523, %v1631
        %v1818 = vadd.f32 %v1524, %v1730
        %v1819 = vadd.f32 %v1525, %v1633
        %v1820 = vadd.f32 %v1526, %v1732
        %v1821 = vadd.f32 %v1527, %v1636
        %v1822 = vadd.f32 %v1528, %v1735
        %v1823 = vadd.f32 %v1529, %v1638
        %v1824 = vadd.f32 %v1530, %v1737
        %v1825 = vadd.f32 %v1531, %v1641
        %v1826 = vadd.f32 %v1532, %v1740
        %v1827 = vadd.f32 %v1533, %v1643
        %v1828 = vadd.f32 %v1534, %v1742
        %v1829 = vadd.f32 %v1535, %v1646
        %v1830 = vadd.f32 %v1536, %v1745
        %v1831 = vadd.f32 %v1537, %v1648
        %v1832 = vadd.f32 %v1538, %v1747
        %v1833 = vadd.f32 %v1539, %v1651
        %v1834 = vadd.f32 %v1540, %v1750
        %v1835 = vadd.f32 %v1541, %v1653
        %v1836 = vadd.f32 %v1542, %v1752
        %v1837 = vadd.f32 %v1543, %v1656
        %v1838 = vadd.f32 %v1544, %v1755
        %v1839 = vadd.f32 %v1545, %v1658
        %v1840 = vadd.f32 %v1546, %v1757
        %v1841 = vadd.f32 %v1547, %v1661
        %v1842 = vadd.f32 %v1548, %v1760
        %v1843 = vadd.f32 %v1549, %v1663
        %v1844 = vadd.f32 %v1550, %v1762
        %v1845 = vadd.f32 %v1551, %v1666
        %v1846 = vadd.f32 %v1552, %v1765
        %v1847 = vadd.f32 %v1553, %v1668
        %v1848 = vadd.f32 %v1554, %v1767
        %v1849 = vadd.f32 %v1555, %v1671
        %v1850 = vadd.f32 %v1556, %v1770
        %v1851 = vadd.f32 %v1557, %v1673
        %v1852 = vadd.f32 %v1558, %v1772
        %v1853 = vadd.f32 %v1559, %v1676
        %v1854 = vadd.f32 %v1560, %v1775
        %v1855 = vadd.f32 %v1561, %v1678
        %v1856 = vadd.f32 %v1562, %v1777
        %v1857 = vadd.f32 %v1563, %v1681
        %v1858 = vadd.f32 %v1564, %v1780
        %v1859 = vadd.f32 %v1565, %v1683
        %v1860 = vadd.f32 %v1566, %v1782
        %v1861 = vadd.f32 %v1567, %v1686
        %v1862 = vadd.f32 %v1568, %v1785
        %v1863 = vadd.f32 %v1569, %v1688
        %v1864 = vadd.f32 %v1570, %v1787
        %v1865 = vadd.f32 %v1571, %v1691
        %v1866 = vadd.f32 %v1572, %v1790
        %v1867 = vadd.f32 %v1573, %v1693
        %v1868 = vadd.f32 %v1574, %v1792
        %v1869 = vadd.f32 %v1575, %v1696
        %v1870 = vadd.f32 %v1576, %v1795
        %v1871 = vadd.f32 %v1577, %v1698
        %v1872 = vadd.f32 %v1578, %v1797
        %v1873 = vadd.f32 %v1579, %v1701
        %v1874 = vadd.f32 %v1580, %v1800
        %v1875 = vadd.f32 %v1581, %v1703
        %v1876 = vadd.f32 %v1582, %v1802
        %v1877 = vadd.f32 %v1583, %v1706
        %v1878 = vadd.f32 %v1584, %v1805
        %v1879 = vadd.f32 %v1585, %v1708
        %v1880 = vadd.f32 %v1586, %v1807
        %s1881 = scalar_lea.vmem %s368, 16 [#allocation3]
        %v1882 = vld [vmem:[%s1881] sm:$0xf]
        %vm1883 = vsmask.f32 6400
        %v1884 = vrot.slane %v556, 1
        %v1885 = vrot.slane %v552, 2
        %v1886 = vor.u32 %v1884, %v1885
        %v1887 = vrot.slane %v564, 1
        %v1888 = vrot.slane %v560, 2
        %v1889 = vor.u32 %v1887, %v1888
        %v1890 = vsel %vm1883, %v1886, %v1889
        %v1891 = vrot.slane %v572, 1
        %v1892 = vrot.slane %v568, 2
        %v1893 = vor.u32 %v1891, %v1892
        %v1894 = vsel %vm1883, %v1889, %v1893
        %v1895 = vrot.slane %v580, 1
        %v1896 = vrot.slane %v576, 2
        %v1897 = vor.u32 %v1895, %v1896
        %v1898 = vsel %vm1883, %v1893, %v1897
        %v1899 = vrot.slane %v588, 1
        %v1900 = vrot.slane %v584, 2
        %v1901 = vor.u32 %v1899, %v1900
        %v1902 = vsel %vm1883, %v1897, %v1901
        %v1903 = vrot.slane %v596, 1
        %v1904 = vrot.slane %v592, 2
        %v1905 = vor.u32 %v1903, %v1904
        %v1906 = vsel %vm1883, %v1901, %v1905
        %v1907 = vrot.slane %v604, 1
        %v1908 = vrot.slane %v600, 2
        %v1909 = vor.u32 %v1907, %v1908
        %v1910 = vsel %vm1883, %v1905, %v1909
        %v1911 = vrot.slane %v612, 1
        %v1912 = vrot.slane %v608, 2
        %v1913 = vor.u32 %v1911, %v1912
        %v1914 = vsel %vm1883, %v1909, %v1913
        %v1915 = vrot.slane %v620, 1
        %v1916 = vrot.slane %v616, 2
        %v1917 = vor.u32 %v1915, %v1916
        %v1918 = vsel %vm1883, %v1913, %v1917
        %v1919 = vrot.slane %v628, 1
        %v1920 = vrot.slane %v624, 2
        %v1921 = vor.u32 %v1919, %v1920
        %v1922 = vsel %vm1883, %v1917, %v1921
        %v1923 = vrot.slane %v636, 1
        %v1924 = vrot.slane %v632, 2
        %v1925 = vor.u32 %v1923, %v1924
        %v1926 = vsel %vm1883, %v1921, %v1925
        %v1927 = vrot.slane %v644, 1
        %v1928 = vrot.slane %v640, 2
        %v1929 = vor.u32 %v1927, %v1928
        %v1930 = vsel %vm1883, %v1925, %v1929
        %v1931 = vrot.slane %v652, 1
        %v1932 = vrot.slane %v648, 2
        %v1933 = vor.u32 %v1931, %v1932
        %v1934 = vsel %vm1883, %v1929, %v1933
        %v1935 = vrot.slane %v660, 1
        %v1936 = vrot.slane %v656, 2
        %v1937 = vor.u32 %v1935, %v1936
        %v1938 = vsel %vm1883, %v1933, %v1937
        %v1939 = vrot.slane %v668, 1
        %v1940 = vrot.slane %v664, 2
        %v1941 = vor.u32 %v1939, %v1940
        %v1942 = vsel %vm1883, %v1937, %v1941
        %v1943 = vrot.slane %v676, 1
        %v1944 = vrot.slane %v672, 2
        %v1945 = vor.u32 %v1943, %v1944
        %v1946 = vsel %vm1883, %v1941, %v1945
        %v1947 = vrot.slane %v684, 1
        %v1948 = vrot.slane %v680, 2
        %v1949 = vor.u32 %v1947, %v1948
        %v1950 = vsel %vm1883, %v1945, %v1949
        %v1952 = vshrl.u32 %v1587, 16
        %v1954 = vrot.slane %v1952, 1
        %v1955 = vshll.u32 %v1587, 16
        %v1957 = vrot.slane %v1955, 2
        %v1958 = vor.u32 %v1954, %v1957
        %v1959 = vsel %vm1883, %v1949, %v1958
        %v1961 = vshrl.u32 %v1588, 16
        %v1963 = vrot.slane %v1961, 1
        %v1964 = vshll.u32 %v1588, 16
        %v1966 = vrot.slane %v1964, 2
        %v1967 = vor.u32 %v1963, %v1966
        %v1968 = vsel %vm1883, %v1958, %v1967
        %1970 = vst [vmem:[#allocation1] ss:$4 sm:$0xff] %v1882
        %v1971 = vld.sshfl [vmem:[#allocation1] sm:$0xff pattern:$0x73625140]
        %v1972 = vld.sshfl [vmem:[#allocation1 + $0x8] sm:$0xff pattern:$0x73625140]
        %v1974 = vsel %vm696, %v1890, 0
        %v1977 = vsel %vm696, %v1894, 0
        %v1980 = vsel %vm696, %v1898, 0
        %v1983 = vsel %vm696, %v1902, 0
        %v1986 = vsel %vm696, %v1906, 0
        %v1989 = vsel %vm696, %v1910, 0
        %v1992 = vsel %vm696, %v1914, 0
        %v1995 = vsel %vm696, %v1918, 0
        %v1998 = vsel %vm696, %v1922, 0
        %v2001 = vsel %vm696, %v1926, 0
        %v2004 = vsel %vm696, %v1930, 0
        %v2007 = vsel %vm696, %v1934, 0
        %v2010 = vsel %vm696, %v1938, 0
        %v2013 = vsel %vm696, %v1942, 0
        %v2016 = vsel %vm696, %v1946, 0
        %v2019 = vsel %vm696, %v1950, 0
        %v2022 = vsel %vm696, %v1959, 0
        %v2025 = vsel %vm696, %v1968, 0
        %v2027 = vsel %vm751, %v1971, 0
        %v2029 = vsel %vm751, %v1972, 0
        %2031 = vmatpush.bf16.msra.mxu0 0
        %2032 = vmatpush.bf16.msra.mxu0 0
        %2033 = vmatpush.bf16.msra.mxu0 0
        %2034 = vmatpush.bf16.msra.mxu0 0
        %2035 = vmatpush.bf16.msra.mxu0 0
        %2036 = vmatpush.bf16.msra.mxu0 0
        %2037 = vmatpush.bf16.msra.mxu0 0
        %2038 = vmatpush.bf16.msra.mxu0 %v2027
        %2039 = vmatmul.bf16.gmra.mxu0 %v1974
        %v2040 = vpop.f32.mrf.mxu0
        %v2041 = vadd.f32 0.0, %v2040
        %v2042 = vpop.f32.mrf.mxu0
        %v2043 = vadd.f32 0.0, %v2042
        %2044 = vmatmul.bf16.gmra.mxu0 %v1977
        %v2045 = vpop.f32.mrf.mxu0
        %v2046 = vadd.f32 0.0, %v2045
        %v2047 = vpop.f32.mrf.mxu0
        %v2048 = vadd.f32 0.0, %v2047
        %2049 = vmatmul.bf16.gmra.mxu0 %v1980
        %v2050 = vpop.f32.mrf.mxu0
        %v2051 = vadd.f32 0.0, %v2050
        %v2052 = vpop.f32.mrf.mxu0
        %v2053 = vadd.f32 0.0, %v2052
        %2054 = vmatmul.bf16.gmra.mxu0 %v1983
        %v2055 = vpop.f32.mrf.mxu0
        %v2056 = vadd.f32 0.0, %v2055
        %v2057 = vpop.f32.mrf.mxu0
        %v2058 = vadd.f32 0.0, %v2057
        %2059 = vmatmul.bf16.gmra.mxu0 %v1986
        %v2060 = vpop.f32.mrf.mxu0
        %v2061 = vadd.f32 0.0, %v2060
        %v2062 = vpop.f32.mrf.mxu0
        %v2063 = vadd.f32 0.0, %v2062
        %2064 = vmatmul.bf16.gmra.mxu0 %v1989
        %v2065 = vpop.f32.mrf.mxu0
        %v2066 = vadd.f32 0.0, %v2065
        %v2067 = vpop.f32.mrf.mxu0
        %v2068 = vadd.f32 0.0, %v2067
        %2069 = vmatmul.bf16.gmra.mxu0 %v1992
        %v2070 = vpop.f32.mrf.mxu0
        %v2071 = vadd.f32 0.0, %v2070
        %v2072 = vpop.f32.mrf.mxu0
        %v2073 = vadd.f32 0.0, %v2072
        %2074 = vmatmul.bf16.gmra.mxu0 %v1995
        %v2075 = vpop.f32.mrf.mxu0
        %v2076 = vadd.f32 0.0, %v2075
        %v2077 = vpop.f32.mrf.mxu0
        %v2078 = vadd.f32 0.0, %v2077
        %2079 = vmatmul.bf16.gmra.mxu0 %v1998
        %v2080 = vpop.f32.mrf.mxu0
        %v2081 = vadd.f32 0.0, %v2080
        %v2082 = vpop.f32.mrf.mxu0
        %v2083 = vadd.f32 0.0, %v2082
        %2084 = vmatmul.bf16.gmra.mxu0 %v2001
        %v2085 = vpop.f32.mrf.mxu0
        %v2086 = vadd.f32 0.0, %v2085
        %v2087 = vpop.f32.mrf.mxu0
        %v2088 = vadd.f32 0.0, %v2087
        %2089 = vmatmul.bf16.gmra.mxu0 %v2004
        %v2090 = vpop.f32.mrf.mxu0
        %v2091 = vadd.f32 0.0, %v2090
        %v2092 = vpop.f32.mrf.mxu0
        %v2093 = vadd.f32 0.0, %v2092
        %2094 = vmatmul.bf16.gmra.mxu0 %v2007
        %v2095 = vpop.f32.mrf.mxu0
        %v2096 = vadd.f32 0.0, %v2095
        %v2097 = vpop.f32.mrf.mxu0
        %v2098 = vadd.f32 0.0, %v2097
        %2099 = vmatmul.bf16.gmra.mxu0 %v2010
        %v2100 = vpop.f32.mrf.mxu0
        %v2101 = vadd.f32 0.0, %v2100
        %v2102 = vpop.f32.mrf.mxu0
        %v2103 = vadd.f32 0.0, %v2102
        %2104 = vmatmul.bf16.gmra.mxu0 %v2013
        %v2105 = vpop.f32.mrf.mxu0
        %v2106 = vadd.f32 0.0, %v2105
        %v2107 = vpop.f32.mrf.mxu0
        %v2108 = vadd.f32 0.0, %v2107
        %2109 = vmatmul.bf16.gmra.mxu0 %v2016
        %v2110 = vpop.f32.mrf.mxu0
        %v2111 = vadd.f32 0.0, %v2110
        %v2112 = vpop.f32.mrf.mxu0
        %v2113 = vadd.f32 0.0, %v2112
        %2114 = vmatmul.bf16.gmra.mxu0 %v2019
        %v2115 = vpop.f32.mrf.mxu0
        %v2116 = vadd.f32 0.0, %v2115
        %v2117 = vpop.f32.mrf.mxu0
        %v2118 = vadd.f32 0.0, %v2117
        %2119 = vmatmul.bf16.gmra.mxu0 %v2022
        %v2120 = vpop.f32.mrf.mxu0
        %v2121 = vadd.f32 0.0, %v2120
        %v2122 = vpop.f32.mrf.mxu0
        %v2123 = vadd.f32 0.0, %v2122
        %2124 = vmatmul.bf16.gmra.mxu0 %v2025
        %v2125 = vpop.f32.mrf.mxu0
        %v2126 = vadd.f32 0.0, %v2125
        %v2127 = vpop.f32.mrf.mxu0
        %v2128 = vadd.f32 0.0, %v2127
        %2129 = vdwg.mxu0
        %2130 = vmatpush.bf16.msra.mxu0 0
        %2131 = vmatpush.bf16.msra.mxu0 0
        %2132 = vmatpush.bf16.msra.mxu0 0
        %2133 = vmatpush.bf16.msra.mxu0 0
        %2134 = vmatpush.bf16.msra.mxu0 0
        %2135 = vmatpush.bf16.msra.mxu0 0
        %2136 = vmatpush.bf16.msra.mxu0 0
        %2137 = vmatpush.bf16.msra.mxu0 %v2029
        %2138 = vmatmul.bf16.gmra.mxu0 %v1974
        %v2139 = vpop.f32.mrf.mxu0
        %v2140 = vadd.f32 0.0, %v2139
        %v2141 = vpop.f32.mrf.mxu0
        %v2142 = vadd.f32 0.0, %v2141
        %2143 = vmatmul.bf16.gmra.mxu0 %v1977
        %v2144 = vpop.f32.mrf.mxu0
        %v2145 = vadd.f32 0.0, %v2144
        %v2146 = vpop.f32.mrf.mxu0
        %v2147 = vadd.f32 0.0, %v2146
        %2148 = vmatmul.bf16.gmra.mxu0 %v1980
        %v2149 = vpop.f32.mrf.mxu0
        %v2150 = vadd.f32 0.0, %v2149
        %v2151 = vpop.f32.mrf.mxu0
        %v2152 = vadd.f32 0.0, %v2151
        %2153 = vmatmul.bf16.gmra.mxu0 %v1983
        %v2154 = vpop.f32.mrf.mxu0
        %v2155 = vadd.f32 0.0, %v2154
        %v2156 = vpop.f32.mrf.mxu0
        %v2157 = vadd.f32 0.0, %v2156
        %2158 = vmatmul.bf16.gmra.mxu0 %v1986
        %v2159 = vpop.f32.mrf.mxu0
        %v2160 = vadd.f32 0.0, %v2159
        %v2161 = vpop.f32.mrf.mxu0
        %v2162 = vadd.f32 0.0, %v2161
        %2163 = vmatmul.bf16.gmra.mxu0 %v1989
        %v2164 = vpop.f32.mrf.mxu0
        %v2165 = vadd.f32 0.0, %v2164
        %v2166 = vpop.f32.mrf.mxu0
        %v2167 = vadd.f32 0.0, %v2166
        %2168 = vmatmul.bf16.gmra.mxu0 %v1992
        %v2169 = vpop.f32.mrf.mxu0
        %v2170 = vadd.f32 0.0, %v2169
        %v2171 = vpop.f32.mrf.mxu0
        %v2172 = vadd.f32 0.0, %v2171
        %2173 = vmatmul.bf16.gmra.mxu0 %v1995
        %v2174 = vpop.f32.mrf.mxu0
        %v2175 = vadd.f32 0.0, %v2174
        %v2176 = vpop.f32.mrf.mxu0
        %v2177 = vadd.f32 0.0, %v2176
        %2178 = vmatmul.bf16.gmra.mxu0 %v1998
        %v2179 = vpop.f32.mrf.mxu0
        %v2180 = vadd.f32 0.0, %v2179
        %v2181 = vpop.f32.mrf.mxu0
        %v2182 = vadd.f32 0.0, %v2181
        %2183 = vmatmul.bf16.gmra.mxu0 %v2001
        %v2184 = vpop.f32.mrf.mxu0
        %v2185 = vadd.f32 0.0, %v2184
        %v2186 = vpop.f32.mrf.mxu0
        %v2187 = vadd.f32 0.0, %v2186
        %2188 = vmatmul.bf16.gmra.mxu0 %v2004
        %v2189 = vpop.f32.mrf.mxu0
        %v2190 = vadd.f32 0.0, %v2189
        %v2191 = vpop.f32.mrf.mxu0
        %v2192 = vadd.f32 0.0, %v2191
        %2193 = vmatmul.bf16.gmra.mxu0 %v2007
        %v2194 = vpop.f32.mrf.mxu0
        %v2195 = vadd.f32 0.0, %v2194
        %v2196 = vpop.f32.mrf.mxu0
        %v2197 = vadd.f32 0.0, %v2196
        %2198 = vmatmul.bf16.gmra.mxu0 %v2010
        %v2199 = vpop.f32.mrf.mxu0
        %v2200 = vadd.f32 0.0, %v2199
        %v2201 = vpop.f32.mrf.mxu0
        %v2202 = vadd.f32 0.0, %v2201
        %2203 = vmatmul.bf16.gmra.mxu0 %v2013
        %v2204 = vpop.f32.mrf.mxu0
        %v2205 = vadd.f32 0.0, %v2204
        %v2206 = vpop.f32.mrf.mxu0
        %v2207 = vadd.f32 0.0, %v2206
        %2208 = vmatmul.bf16.gmra.mxu0 %v2016
        %v2209 = vpop.f32.mrf.mxu0
        %v2210 = vadd.f32 0.0, %v2209
        %v2211 = vpop.f32.mrf.mxu0
        %v2212 = vadd.f32 0.0, %v2211
        %2213 = vmatmul.bf16.gmra.mxu0 %v2019
        %v2214 = vpop.f32.mrf.mxu0
        %v2215 = vadd.f32 0.0, %v2214
        %v2216 = vpop.f32.mrf.mxu0
        %v2217 = vadd.f32 0.0, %v2216
        %2218 = vmatmul.bf16.gmra.mxu0 %v2022
        %v2219 = vpop.f32.mrf.mxu0
        %v2220 = vadd.f32 0.0, %v2219
        %v2221 = vpop.f32.mrf.mxu0
        %v2222 = vadd.f32 0.0, %v2221
        %2223 = vmatmul.bf16.gmra.mxu0 %v2025
        %v2224 = vpop.f32.mrf.mxu0
        %v2225 = vadd.f32 0.0, %v2224
        %v2226 = vpop.f32.mrf.mxu0
        %v2227 = vadd.f32 0.0, %v2226
        %2228 = vdwg.mxu0
        %v2229 = vadd.f32 %v1809, %v2041
        %v2230 = vadd.f32 %v1810, %v2140
        %v2231 = vadd.f32 %v1811, %v2043
        %v2232 = vadd.f32 %v1812, %v2142
        %v2233 = vadd.f32 %v1813, %v2046
        %v2234 = vadd.f32 %v1814, %v2145
        %v2235 = vadd.f32 %v1815, %v2048
        %v2236 = vadd.f32 %v1816, %v2147
        %v2237 = vadd.f32 %v1817, %v2051
        %v2238 = vadd.f32 %v1818, %v2150
        %v2239 = vadd.f32 %v1819, %v2053
        %v2240 = vadd.f32 %v1820, %v2152
        %v2241 = vadd.f32 %v1821, %v2056
        %v2242 = vadd.f32 %v1822, %v2155
        %v2243 = vadd.f32 %v1823, %v2058
        %v2244 = vadd.f32 %v1824, %v2157
        %v2245 = vadd.f32 %v1825, %v2061
        %v2246 = vadd.f32 %v1826, %v2160
        %v2247 = vadd.f32 %v1827, %v2063
        %v2248 = vadd.f32 %v1828, %v2162
        %v2249 = vadd.f32 %v1829, %v2066
        %v2250 = vadd.f32 %v1830, %v2165
        %v2251 = vadd.f32 %v1831, %v2068
        %v2252 = vadd.f32 %v1832, %v2167
        %v2253 = vadd.f32 %v1833, %v2071
        %v2254 = vadd.f32 %v1834, %v2170
        %v2255 = vadd.f32 %v1835, %v2073
        %v2256 = vadd.f32 %v1836, %v2172
        %v2257 = vadd.f32 %v1837, %v2076
        %v2258 = vadd.f32 %v1838, %v2175
        %v2259 = vadd.f32 %v1839, %v2078
        %v2260 = vadd.f32 %v1840, %v2177
        %v2261 = vadd.f32 %v1841, %v2081
        %v2262 = vadd.f32 %v1842, %v2180
        %v2263 = vadd.f32 %v1843, %v2083
        %v2264 = vadd.f32 %v1844, %v2182
        %v2265 = vadd.f32 %v1845, %v2086
        %v2266 = vadd.f32 %v1846, %v2185
        %v2267 = vadd.f32 %v1847, %v2088
        %v2268 = vadd.f32 %v1848, %v2187
        %v2269 = vadd.f32 %v1849, %v2091
        %v2270 = vadd.f32 %v1850, %v2190
        %v2271 = vadd.f32 %v1851, %v2093
        %v2272 = vadd.f32 %v1852, %v2192
        %v2273 = vadd.f32 %v1853, %v2096
        %v2274 = vadd.f32 %v1854, %v2195
        %v2275 = vadd.f32 %v1855, %v2098
        %v2276 = vadd.f32 %v1856, %v2197
        %v2277 = vadd.f32 %v1857, %v2101
        %v2278 = vadd.f32 %v1858, %v2200
        %v2279 = vadd.f32 %v1859, %v2103
        %v2280 = vadd.f32 %v1860, %v2202
        %v2281 = vadd.f32 %v1861, %v2106
        %v2282 = vadd.f32 %v1862, %v2205
        %v2283 = vadd.f32 %v1863, %v2108
        %v2284 = vadd.f32 %v1864, %v2207
        %v2285 = vadd.f32 %v1865, %v2111
        %v2286 = vadd.f32 %v1866, %v2210
        %v2287 = vadd.f32 %v1867, %v2113
        %v2288 = vadd.f32 %v1868, %v2212
        %v2289 = vadd.f32 %v1869, %v2116
        %v2290 = vadd.f32 %v1870, %v2215
        %v2291 = vadd.f32 %v1871, %v2118
        %v2292 = vadd.f32 %v1872, %v2217
        %v2293 = vadd.f32 %v1873, %v2121
        %v2294 = vadd.f32 %v1874, %v2220
        %v2295 = vadd.f32 %v1875, %v2123
        %v2296 = vadd.f32 %v1876, %v2222
        %v2297 = vadd.f32 %v1877, %v2126
        %v2298 = vadd.f32 %v1878, %v2225
        %v2299 = vadd.f32 %v1879, %v2128
        %v2300 = vadd.f32 %v1880, %v2227
        %s2301 = scalar_lea.vmem %s368, 20 [#allocation3]
        %v2302 = vld [vmem:[%s2301] sm:$0xf]
        %vm2303 = vcmask 1045504
        %v2304 = vrot.slane %v522, 2
        %v2305 = vrot.slane %v523, 2
        %v2306 = vsel %vm2303, %v2304, %v2305
        %v2307 = vrot.slane %v524, 2
        %v2308 = vsel %vm2303, %v2305, %v2307
        %v2309 = vrot.slane %v525, 2
        %v2310 = vsel %vm2303, %v2307, %v2309
        %v2311 = vrot.slane %v526, 2
        %v2312 = vsel %vm2303, %v2309, %v2311
        %v2313 = vrot.slane %v527, 2
        %v2314 = vsel %vm2303, %v2311, %v2313
        %v2315 = vrot.slane %v528, 2
        %v2316 = vsel %vm2303, %v2313, %v2315
        %v2317 = vrot.slane %v529, 2
        %v2318 = vsel %vm2303, %v2315, %v2317
        %v2319 = vrot.slane %v530, 2
        %v2320 = vsel %vm2303, %v2317, %v2319
        %v2321 = vrot.slane %v531, 2
        %v2322 = vsel %vm2303, %v2319, %v2321
        %v2323 = vrot.slane %v532, 2
        %v2324 = vsel %vm2303, %v2321, %v2323
        %v2325 = vrot.slane %v533, 2
        %v2326 = vsel %vm2303, %v2323, %v2325
        %v2327 = vrot.slane %v534, 2
        %v2328 = vsel %vm2303, %v2325, %v2327
        %v2329 = vrot.slane %v535, 2
        %v2330 = vsel %vm2303, %v2327, %v2329
        %v2331 = vrot.slane %v536, 2
        %v2332 = vsel %vm2303, %v2329, %v2331
        %v2333 = vrot.slane %v537, 2
        %v2334 = vsel %vm2303, %v2331, %v2333
        %v2335 = vrot.slane %v538, 2
        %v2336 = vsel %vm2303, %v2333, %v2335
        %v2337 = vrot.slane %v1587, 2
        %v2338 = vsel %vm2303, %v2335, %v2337
        %v2339 = vrot.slane %v1588, 2
        %v2340 = vsel %vm2303, %v2337, %v2339
        %2342 = vst [vmem:[#allocation1] ss:$4 sm:$0xff] %v2302
        %v2343 = vld.sshfl [vmem:[#allocation1] sm:$0xff pattern:$0x73625140]
        %v2344 = vld.sshfl [vmem:[#allocation1 + $0x8] sm:$0xff pattern:$0x73625140]
        %v2346 = vsel %vm696, %v2306, 0
        %v2349 = vsel %vm696, %v2308, 0
        %v2352 = vsel %vm696, %v2310, 0
        %v2355 = vsel %vm696, %v2312, 0
        %v2358 = vsel %vm696, %v2314, 0
        %v2361 = vsel %vm696, %v2316, 0
        %v2364 = vsel %vm696, %v2318, 0
        %v2367 = vsel %vm696, %v2320, 0
        %v2370 = vsel %vm696, %v2322, 0
        %v2373 = vsel %vm696, %v2324, 0
        %v2376 = vsel %vm696, %v2326, 0
        %v2379 = vsel %vm696, %v2328, 0
        %v2382 = vsel %vm696, %v2330, 0
        %v2385 = vsel %vm696, %v2332, 0
        %v2388 = vsel %vm696, %v2334, 0
        %v2391 = vsel %vm696, %v2336, 0
        %v2394 = vsel %vm696, %v2338, 0
        %v2397 = vsel %vm696, %v2340, 0
        %v2399 = vsel %vm751, %v2343, 0
        %v2401 = vsel %vm751, %v2344, 0
        %2403 = vmatpush.bf16.msra.mxu0 0
        %2404 = vmatpush.bf16.msra.mxu0 0
        %2405 = vmatpush.bf16.msra.mxu0 0
        %2406 = vmatpush.bf16.msra.mxu0 0
        %2407 = vmatpush.bf16.msra.mxu0 0
        %2408 = vmatpush.bf16.msra.mxu0 0
        %2409 = vmatpush.bf16.msra.mxu0 0
        %2410 = vmatpush.bf16.msra.mxu0 %v2399
        %2411 = vmatmul.bf16.gmra.mxu0 %v2346
        %v2412 = vpop.f32.mrf.mxu0
        %v2413 = vadd.f32 0.0, %v2412
        %v2414 = vpop.f32.mrf.mxu0
        %v2415 = vadd.f32 0.0, %v2414
        %2416 = vmatmul.bf16.gmra.mxu0 %v2349
        %v2417 = vpop.f32.mrf.mxu0
        %v2418 = vadd.f32 0.0, %v2417
        %v2419 = vpop.f32.mrf.mxu0
        %v2420 = vadd.f32 0.0, %v2419
        %2421 = vmatmul.bf16.gmra.mxu0 %v2352
        %v2422 = vpop.f32.mrf.mxu0
        %v2423 = vadd.f32 0.0, %v2422
        %v2424 = vpop.f32.mrf.mxu0
        %v2425 = vadd.f32 0.0, %v2424
        %2426 = vmatmul.bf16.gmra.mxu0 %v2355
        %v2427 = vpop.f32.mrf.mxu0
        %v2428 = vadd.f32 0.0, %v2427
        %v2429 = vpop.f32.mrf.mxu0
        %v2430 = vadd.f32 0.0, %v2429
        %2431 = vmatmul.bf16.gmra.mxu0 %v2358
        %v2432 = vpop.f32.mrf.mxu0
        %v2433 = vadd.f32 0.0, %v2432
        %v2434 = vpop.f32.mrf.mxu0
        %v2435 = vadd.f32 0.0, %v2434
        %2436 = vmatmul.bf16.gmra.mxu0 %v2361
        %v2437 = vpop.f32.mrf.mxu0
        %v2438 = vadd.f32 0.0, %v2437
        %v2439 = vpop.f32.mrf.mxu0
        %v2440 = vadd.f32 0.0, %v2439
        %2441 = vmatmul.bf16.gmra.mxu0 %v2364
        %v2442 = vpop.f32.mrf.mxu0
        %v2443 = vadd.f32 0.0, %v2442
        %v2444 = vpop.f32.mrf.mxu0
        %v2445 = vadd.f32 0.0, %v2444
        %2446 = vmatmul.bf16.gmra.mxu0 %v2367
        %v2447 = vpop.f32.mrf.mxu0
        %v2448 = vadd.f32 0.0, %v2447
        %v2449 = vpop.f32.mrf.mxu0
        %v2450 = vadd.f32 0.0, %v2449
        %2451 = vmatmul.bf16.gmra.mxu0 %v2370
        %v2452 = vpop.f32.mrf.mxu0
        %v2453 = vadd.f32 0.0, %v2452
        %v2454 = vpop.f32.mrf.mxu0
        %v2455 = vadd.f32 0.0, %v2454
        %2456 = vmatmul.bf16.gmra.mxu0 %v2373
        %v2457 = vpop.f32.mrf.mxu0
        %v2458 = vadd.f32 0.0, %v2457
        %v2459 = vpop.f32.mrf.mxu0
        %v2460 = vadd.f32 0.0, %v2459
        %2461 = vmatmul.bf16.gmra.mxu0 %v2376
        %v2462 = vpop.f32.mrf.mxu0
        %v2463 = vadd.f32 0.0, %v2462
        %v2464 = vpop.f32.mrf.mxu0
        %v2465 = vadd.f32 0.0, %v2464
        %2466 = vmatmul.bf16.gmra.mxu0 %v2379
        %v2467 = vpop.f32.mrf.mxu0
        %v2468 = vadd.f32 0.0, %v2467
        %v2469 = vpop.f32.mrf.mxu0
        %v2470 = vadd.f32 0.0, %v2469
        %2471 = vmatmul.bf16.gmra.mxu0 %v2382
        %v2472 = vpop.f32.mrf.mxu0
        %v2473 = vadd.f32 0.0, %v2472
        %v2474 = vpop.f32.mrf.mxu0
        %v2475 = vadd.f32 0.0, %v2474
        %2476 = vmatmul.bf16.gmra.mxu0 %v2385
        %v2477 = vpop.f32.mrf.mxu0
        %v2478 = vadd.f32 0.0, %v2477
        %v2479 = vpop.f32.mrf.mxu0
        %v2480 = vadd.f32 0.0, %v2479
        %2481 = vmatmul.bf16.gmra.mxu0 %v2388
        %v2482 = vpop.f32.mrf.mxu0
        %v2483 = vadd.f32 0.0, %v2482
        %v2484 = vpop.f32.mrf.mxu0
        %v2485 = vadd.f32 0.0, %v2484
        %2486 = vmatmul.bf16.gmra.mxu0 %v2391
        %v2487 = vpop.f32.mrf.mxu0
        %v2488 = vadd.f32 0.0, %v2487
        %v2489 = vpop.f32.mrf.mxu0
        %v2490 = vadd.f32 0.0, %v2489
        %2491 = vmatmul.bf16.gmra.mxu0 %v2394
        %v2492 = vpop.f32.mrf.mxu0
        %v2493 = vadd.f32 0.0, %v2492
        %v2494 = vpop.f32.mrf.mxu0
        %v2495 = vadd.f32 0.0, %v2494
        %2496 = vmatmul.bf16.gmra.mxu0 %v2397
        %v2497 = vpop.f32.mrf.mxu0
        %v2498 = vadd.f32 0.0, %v2497
        %v2499 = vpop.f32.mrf.mxu0
        %v2500 = vadd.f32 0.0, %v2499
        %2501 = vdwg.mxu0
        %2502 = vmatpush.bf16.msra.mxu0 0
        %2503 = vmatpush.bf16.msra.mxu0 0
        %2504 = vmatpush.bf16.msra.mxu0 0
        %2505 = vmatpush.bf16.msra.mxu0 0
        %2506 = vmatpush.bf16.msra.mxu0 0
        %2507 = vmatpush.bf16.msra.mxu0 0
        %2508 = vmatpush.bf16.msra.mxu0 0
        %2509 = vmatpush.bf16.msra.mxu0 %v2401
        %2510 = vmatmul.bf16.gmra.mxu0 %v2346
        %v2511 = vpop.f32.mrf.mxu0
        %v2512 = vadd.f32 0.0, %v2511
        %v2513 = vpop.f32.mrf.mxu0
        %v2514 = vadd.f32 0.0, %v2513
        %2515 = vmatmul.bf16.gmra.mxu0 %v2349
        %v2516 = vpop.f32.mrf.mxu0
        %v2517 = vadd.f32 0.0, %v2516
        %v2518 = vpop.f32.mrf.mxu0
        %v2519 = vadd.f32 0.0, %v2518
        %2520 = vmatmul.bf16.gmra.mxu0 %v2352
        %v2521 = vpop.f32.mrf.mxu0
        %v2522 = vadd.f32 0.0, %v2521
        %v2523 = vpop.f32.mrf.mxu0
        %v2524 = vadd.f32 0.0, %v2523
        %2525 = vmatmul.bf16.gmra.mxu0 %v2355
        %v2526 = vpop.f32.mrf.mxu0
        %v2527 = vadd.f32 0.0, %v2526
        %v2528 = vpop.f32.mrf.mxu0
        %v2529 = vadd.f32 0.0, %v2528
        %2530 = vmatmul.bf16.gmra.mxu0 %v2358
        %v2531 = vpop.f32.mrf.mxu0
        %v2532 = vadd.f32 0.0, %v2531
        %v2533 = vpop.f32.mrf.mxu0
        %v2534 = vadd.f32 0.0, %v2533
        %2535 = vmatmul.bf16.gmra.mxu0 %v2361
        %v2536 = vpop.f32.mrf.mxu0
        %v2537 = vadd.f32 0.0, %v2536
        %v2538 = vpop.f32.mrf.mxu0
        %v2539 = vadd.f32 0.0, %v2538
        %2540 = vmatmul.bf16.gmra.mxu0 %v2364
        %v2541 = vpop.f32.mrf.mxu0
        %v2542 = vadd.f32 0.0, %v2541
        %v2543 = vpop.f32.mrf.mxu0
        %v2544 = vadd.f32 0.0, %v2543
        %2545 = vmatmul.bf16.gmra.mxu0 %v2367
        %v2546 = vpop.f32.mrf.mxu0
        %v2547 = vadd.f32 0.0, %v2546
        %v2548 = vpop.f32.mrf.mxu0
        %v2549 = vadd.f32 0.0, %v2548
        %2550 = vmatmul.bf16.gmra.mxu0 %v2370
        %v2551 = vpop.f32.mrf.mxu0
        %v2552 = vadd.f32 0.0, %v2551
        %v2553 = vpop.f32.mrf.mxu0
        %v2554 = vadd.f32 0.0, %v2553
        %2555 = vmatmul.bf16.gmra.mxu0 %v2373
        %v2556 = vpop.f32.mrf.mxu0
        %v2557 = vadd.f32 0.0, %v2556
        %v2558 = vpop.f32.mrf.mxu0
        %v2559 = vadd.f32 0.0, %v2558
        %2560 = vmatmul.bf16.gmra.mxu0 %v2376
        %v2561 = vpop.f32.mrf.mxu0
        %v2562 = vadd.f32 0.0, %v2561
        %v2563 = vpop.f32.mrf.mxu0
        %v2564 = vadd.f32 0.0, %v2563
        %2565 = vmatmul.bf16.gmra.mxu0 %v2379
        %v2566 = vpop.f32.mrf.mxu0
        %v2567 = vadd.f32 0.0, %v2566
        %v2568 = vpop.f32.mrf.mxu0
        %v2569 = vadd.f32 0.0, %v2568
        %2570 = vmatmul.bf16.gmra.mxu0 %v2382
        %v2571 = vpop.f32.mrf.mxu0
        %v2572 = vadd.f32 0.0, %v2571
        %v2573 = vpop.f32.mrf.mxu0
        %v2574 = vadd.f32 0.0, %v2573
        %2575 = vmatmul.bf16.gmra.mxu0 %v2385
        %v2576 = vpop.f32.mrf.mxu0
        %v2577 = vadd.f32 0.0, %v2576
        %v2578 = vpop.f32.mrf.mxu0
        %v2579 = vadd.f32 0.0, %v2578
        %2580 = vmatmul.bf16.gmra.mxu0 %v2388
        %v2581 = vpop.f32.mrf.mxu0
        %v2582 = vadd.f32 0.0, %v2581
        %v2583 = vpop.f32.mrf.mxu0
        %v2584 = vadd.f32 0.0, %v2583
        %2585 = vmatmul.bf16.gmra.mxu0 %v2391
        %v2586 = vpop.f32.mrf.mxu0
        %v2587 = vadd.f32 0.0, %v2586
        %v2588 = vpop.f32.mrf.mxu0
        %v2589 = vadd.f32 0.0, %v2588
        %2590 = vmatmul.bf16.gmra.mxu0 %v2394
        %v2591 = vpop.f32.mrf.mxu0
        %v2592 = vadd.f32 0.0, %v2591
        %v2593 = vpop.f32.mrf.mxu0
        %v2594 = vadd.f32 0.0, %v2593
        %2595 = vmatmul.bf16.gmra.mxu0 %v2397
        %v2596 = vpop.f32.mrf.mxu0
        %v2597 = vadd.f32 0.0, %v2596
        %v2598 = vpop.f32.mrf.mxu0
        %v2599 = vadd.f32 0.0, %v2598
        %2600 = vdwg.mxu0
        %v2601 = vadd.f32 %v2229, %v2413
        %v2602 = vadd.f32 %v2230, %v2512
        %v2603 = vadd.f32 %v2231, %v2415
        %v2604 = vadd.f32 %v2232, %v2514
        %v2605 = vadd.f32 %v2233, %v2418
        %v2606 = vadd.f32 %v2234, %v2517
        %v2607 = vadd.f32 %v2235, %v2420
        %v2608 = vadd.f32 %v2236, %v2519
        %v2609 = vadd.f32 %v2237, %v2423
        %v2610 = vadd.f32 %v2238, %v2522
        %v2611 = vadd.f32 %v2239, %v2425
        %v2612 = vadd.f32 %v2240, %v2524
        %v2613 = vadd.f32 %v2241, %v2428
        %v2614 = vadd.f32 %v2242, %v2527
        %v2615 = vadd.f32 %v2243, %v2430
        %v2616 = vadd.f32 %v2244, %v2529
        %v2617 = vadd.f32 %v2245, %v2433
        %v2618 = vadd.f32 %v2246, %v2532
        %v2619 = vadd.f32 %v2247, %v2435
        %v2620 = vadd.f32 %v2248, %v2534
        %v2621 = vadd.f32 %v2249, %v2438
        %v2622 = vadd.f32 %v2250, %v2537
        %v2623 = vadd.f32 %v2251, %v2440
        %v2624 = vadd.f32 %v2252, %v2539
        %v2625 = vadd.f32 %v2253, %v2443
        %v2626 = vadd.f32 %v2254, %v2542
        %v2627 = vadd.f32 %v2255, %v2445
        %v2628 = vadd.f32 %v2256, %v2544
        %v2629 = vadd.f32 %v2257, %v2448
        %v2630 = vadd.f32 %v2258, %v2547
        %v2631 = vadd.f32 %v2259, %v2450
        %v2632 = vadd.f32 %v2260, %v2549
        %v2633 = vadd.f32 %v2261, %v2453
        %v2634 = vadd.f32 %v2262, %v2552
        %v2635 = vadd.f32 %v2263, %v2455
        %v2636 = vadd.f32 %v2264, %v2554
        %v2637 = vadd.f32 %v2265, %v2458
        %v2638 = vadd.f32 %v2266, %v2557
        %v2639 = vadd.f32 %v2267, %v2460
        %v2640 = vadd.f32 %v2268, %v2559
        %v2641 = vadd.f32 %v2269, %v2463
        %v2642 = vadd.f32 %v2270, %v2562
        %v2643 = vadd.f32 %v2271, %v2465
        %v2644 = vadd.f32 %v2272, %v2564
        %v2645 = vadd.f32 %v2273, %v2468
        %v2646 = vadd.f32 %v2274, %v2567
        %v2647 = vadd.f32 %v2275, %v2470
        %v2648 = vadd.f32 %v2276, %v2569
        %v2649 = vadd.f32 %v2277, %v2473
        %v2650 = vadd.f32 %v2278, %v2572
        %v2651 = vadd.f32 %v2279, %v2475
        %v2652 = vadd.f32 %v2280, %v2574
        %v2653 = vadd.f32 %v2281, %v2478
        %v2654 = vadd.f32 %v2282, %v2577
        %v2655 = vadd.f32 %v2283, %v2480
        %v2656 = vadd.f32 %v2284, %v2579
        %v2657 = vadd.f32 %v2285, %v2483
        %v2658 = vadd.f32 %v2286, %v2582
        %v2659 = vadd.f32 %v2287, %v2485
        %v2660 = vadd.f32 %v2288, %v2584
        %v2661 = vadd.f32 %v2289, %v2488
        %v2662 = vadd.f32 %v2290, %v2587
        %v2663 = vadd.f32 %v2291, %v2490
        %v2664 = vadd.f32 %v2292, %v2589
        %v2665 = vadd.f32 %v2293, %v2493
        %v2666 = vadd.f32 %v2294, %v2592
        %v2667 = vadd.f32 %v2295, %v2495
        %v2668 = vadd.f32 %v2296, %v2594
        %v2669 = vadd.f32 %v2297, %v2498
        %v2670 = vadd.f32 %v2298, %v2597
        %v2671 = vadd.f32 %v2299, %v2500
        %v2672 = vadd.f32 %v2300, %v2599
        %v2673 = vpack.c.bf16 %v519, %v518
        %v2674 = vpack.c.bf16 %v520, %v520
        %s2675 = scalar_lea.vmem %s368, 24 [#allocation3]
        %v2676 = vld [vmem:[%s2675] sm:$0xf]
        %v2679 = vrot.slane %v2673, 2
        %v2680 = vsel %vm2303, %v2337, %v2679
        %v2681 = vrot.slane %v2674, 2
        %v2682 = vsel %vm2303, %v2679, %v2681
        %2684 = vst [vmem:[#allocation1] ss:$4 sm:$0xff] %v2676
        %v2685 = vld.sshfl [vmem:[#allocation1] sm:$0xff pattern:$0x73625140]
        %v2686 = vld.sshfl [vmem:[#allocation1 + $0x8] sm:$0xff pattern:$0x73625140]
        %v2688 = vsel %vm696, %v2680, 0
        %v2691 = vsel %vm696, %v2682, 0
        %v2693 = vsel %vm751, %v2685, 0
        %v2695 = vsel %vm751, %v2686, 0
        %2697 = vmatpush.bf16.msra.mxu0 0
        %2698 = vmatpush.bf16.msra.mxu0 0
        %2699 = vmatpush.bf16.msra.mxu0 0
        %2700 = vmatpush.bf16.msra.mxu0 0
        %2701 = vmatpush.bf16.msra.mxu0 0
        %2702 = vmatpush.bf16.msra.mxu0 0
        %2703 = vmatpush.bf16.msra.mxu0 0
        %2704 = vmatpush.bf16.msra.mxu0 %v2693
        %2705 = vmatmul.bf16.gmra.mxu0 %v2349
        %v2706 = vpop.f32.mrf.mxu0
        %v2707 = vadd.f32 0.0, %v2706
        %v2708 = vpop.f32.mrf.mxu0
        %v2709 = vadd.f32 0.0, %v2708
        %2710 = vmatmul.bf16.gmra.mxu0 %v2352
        %v2711 = vpop.f32.mrf.mxu0
        %v2712 = vadd.f32 0.0, %v2711
        %v2713 = vpop.f32.mrf.mxu0
        %v2714 = vadd.f32 0.0, %v2713
        %2715 = vmatmul.bf16.gmra.mxu0 %v2355
        %v2716 = vpop.f32.mrf.mxu0
        %v2717 = vadd.f32 0.0, %v2716
        %v2718 = vpop.f32.mrf.mxu0
        %v2719 = vadd.f32 0.0, %v2718
        %2720 = vmatmul.bf16.gmra.mxu0 %v2358
        %v2721 = vpop.f32.mrf.mxu0
        %v2722 = vadd.f32 0.0, %v2721
        %v2723 = vpop.f32.mrf.mxu0
        %v2724 = vadd.f32 0.0, %v2723
        %2725 = vmatmul.bf16.gmra.mxu0 %v2361
        %v2726 = vpop.f32.mrf.mxu0
        %v2727 = vadd.f32 0.0, %v2726
        %v2728 = vpop.f32.mrf.mxu0
        %v2729 = vadd.f32 0.0, %v2728
        %2730 = vmatmul.bf16.gmra.mxu0 %v2364
        %v2731 = vpop.f32.mrf.mxu0
        %v2732 = vadd.f32 0.0, %v2731
        %v2733 = vpop.f32.mrf.mxu0
        %v2734 = vadd.f32 0.0, %v2733
        %2735 = vmatmul.bf16.gmra.mxu0 %v2367
        %v2736 = vpop.f32.mrf.mxu0
        %v2737 = vadd.f32 0.0, %v2736
        %v2738 = vpop.f32.mrf.mxu0
        %v2739 = vadd.f32 0.0, %v2738
        %2740 = vmatmul.bf16.gmra.mxu0 %v2370
        %v2741 = vpop.f32.mrf.mxu0
        %v2742 = vadd.f32 0.0, %v2741
        %v2743 = vpop.f32.mrf.mxu0
        %v2744 = vadd.f32 0.0, %v2743
        %2745 = vmatmul.bf16.gmra.mxu0 %v2373
        %v2746 = vpop.f32.mrf.mxu0
        %v2747 = vadd.f32 0.0, %v2746
        %v2748 = vpop.f32.mrf.mxu0
        %v2749 = vadd.f32 0.0, %v2748
        %2750 = vmatmul.bf16.gmra.mxu0 %v2376
        %v2751 = vpop.f32.mrf.mxu0
        %v2752 = vadd.f32 0.0, %v2751
        %v2753 = vpop.f32.mrf.mxu0
        %v2754 = vadd.f32 0.0, %v2753
        %2755 = vmatmul.bf16.gmra.mxu0 %v2379
        %v2756 = vpop.f32.mrf.mxu0
        %v2757 = vadd.f32 0.0, %v2756
        %v2758 = vpop.f32.mrf.mxu0
        %v2759 = vadd.f32 0.0, %v2758
        %2760 = vmatmul.bf16.gmra.mxu0 %v2382
        %v2761 = vpop.f32.mrf.mxu0
        %v2762 = vadd.f32 0.0, %v2761
        %v2763 = vpop.f32.mrf.mxu0
        %v2764 = vadd.f32 0.0, %v2763
        %2765 = vmatmul.bf16.gmra.mxu0 %v2385
        %v2766 = vpop.f32.mrf.mxu0
        %v2767 = vadd.f32 0.0, %v2766
        %v2768 = vpop.f32.mrf.mxu0
        %v2769 = vadd.f32 0.0, %v2768
        %2770 = vmatmul.bf16.gmra.mxu0 %v2388
        %v2771 = vpop.f32.mrf.mxu0
        %v2772 = vadd.f32 0.0, %v2771
        %v2773 = vpop.f32.mrf.mxu0
        %v2774 = vadd.f32 0.0, %v2773
        %2775 = vmatmul.bf16.gmra.mxu0 %v2391
        %v2776 = vpop.f32.mrf.mxu0
        %v2777 = vadd.f32 0.0, %v2776
        %v2778 = vpop.f32.mrf.mxu0
        %v2779 = vadd.f32 0.0, %v2778
        %2780 = vmatmul.bf16.gmra.mxu0 %v2394
        %v2781 = vpop.f32.mrf.mxu0
        %v2782 = vadd.f32 0.0, %v2781
        %v2783 = vpop.f32.mrf.mxu0
        %v2784 = vadd.f32 0.0, %v2783
        %2785 = vmatmul.bf16.gmra.mxu0 %v2688
        %v2786 = vpop.f32.mrf.mxu0
        %v2787 = vadd.f32 0.0, %v2786
        %v2788 = vpop.f32.mrf.mxu0
        %v2789 = vadd.f32 0.0, %v2788
        %2790 = vmatmul.bf16.gmra.mxu0 %v2691
        %v2791 = vpop.f32.mrf.mxu0
        %v2792 = vadd.f32 0.0, %v2791
        %v2793 = vpop.f32.mrf.mxu0
        %v2794 = vadd.f32 0.0, %v2793
        %2795 = vdwg.mxu0
        %2796 = vmatpush.bf16.msra.mxu0 0
        %2797 = vmatpush.bf16.msra.mxu0 0
        %2798 = vmatpush.bf16.msra.mxu0 0
        %2799 = vmatpush.bf16.msra.mxu0 0
        %2800 = vmatpush.bf16.msra.mxu0 0
        %2801 = vmatpush.bf16.msra.mxu0 0
        %2802 = vmatpush.bf16.msra.mxu0 0
        %2803 = vmatpush.bf16.msra.mxu0 %v2695
        %2804 = vmatmul.bf16.gmra.mxu0 %v2349
        %v2805 = vpop.f32.mrf.mxu0
        %v2806 = vadd.f32 0.0, %v2805
        %v2807 = vpop.f32.mrf.mxu0
        %v2808 = vadd.f32 0.0, %v2807
        %2809 = vmatmul.bf16.gmra.mxu0 %v2352
        %v2810 = vpop.f32.mrf.mxu0
        %v2811 = vadd.f32 0.0, %v2810
        %v2812 = vpop.f32.mrf.mxu0
        %v2813 = vadd.f32 0.0, %v2812
        %2814 = vmatmul.bf16.gmra.mxu0 %v2355
        %v2815 = vpop.f32.mrf.mxu0
        %v2816 = vadd.f32 0.0, %v2815
        %v2817 = vpop.f32.mrf.mxu0
        %v2818 = vadd.f32 0.0, %v2817
        %2819 = vmatmul.bf16.gmra.mxu0 %v2358
        %v2820 = vpop.f32.mrf.mxu0
        %v2821 = vadd.f32 0.0, %v2820
        %v2822 = vpop.f32.mrf.mxu0
        %v2823 = vadd.f32 0.0, %v2822
        %2824 = vmatmul.bf16.gmra.mxu0 %v2361
        %v2825 = vpop.f32.mrf.mxu0
        %v2826 = vadd.f32 0.0, %v2825
        %v2827 = vpop.f32.mrf.mxu0
        %v2828 = vadd.f32 0.0, %v2827
        %2829 = vmatmul.bf16.gmra.mxu0 %v2364
        %v2830 = vpop.f32.mrf.mxu0
        %v2831 = vadd.f32 0.0, %v2830
        %v2832 = vpop.f32.mrf.mxu0
        %v2833 = vadd.f32 0.0, %v2832
        %2834 = vmatmul.bf16.gmra.mxu0 %v2367
        %v2835 = vpop.f32.mrf.mxu0
        %v2836 = vadd.f32 0.0, %v2835
        %v2837 = vpop.f32.mrf.mxu0
        %v2838 = vadd.f32 0.0, %v2837
        %2839 = vmatmul.bf16.gmra.mxu0 %v2370
        %v2840 = vpop.f32.mrf.mxu0
        %v2841 = vadd.f32 0.0, %v2840
        %v2842 = vpop.f32.mrf.mxu0
        %v2843 = vadd.f32 0.0, %v2842
        %2844 = vmatmul.bf16.gmra.mxu0 %v2373
        %v2845 = vpop.f32.mrf.mxu0
        %v2846 = vadd.f32 0.0, %v2845
        %v2847 = vpop.f32.mrf.mxu0
        %v2848 = vadd.f32 0.0, %v2847
        %2849 = vmatmul.bf16.gmra.mxu0 %v2376
        %v2850 = vpop.f32.mrf.mxu0
        %v2851 = vadd.f32 0.0, %v2850
        %v2852 = vpop.f32.mrf.mxu0
        %v2853 = vadd.f32 0.0, %v2852
        %2854 = vmatmul.bf16.gmra.mxu0 %v2379
        %v2855 = vpop.f32.mrf.mxu0
        %v2856 = vadd.f32 0.0, %v2855
        %v2857 = vpop.f32.mrf.mxu0
        %v2858 = vadd.f32 0.0, %v2857
        %2859 = vmatmul.bf16.gmra.mxu0 %v2382
        %v2860 = vpop.f32.mrf.mxu0
        %v2861 = vadd.f32 0.0, %v2860
        %v2862 = vpop.f32.mrf.mxu0
        %v2863 = vadd.f32 0.0, %v2862
        %2864 = vmatmul.bf16.gmra.mxu0 %v2385
        %v2865 = vpop.f32.mrf.mxu0
        %v2866 = vadd.f32 0.0, %v2865
        %v2867 = vpop.f32.mrf.mxu0
        %v2868 = vadd.f32 0.0, %v2867
        %2869 = vmatmul.bf16.gmra.mxu0 %v2388
        %v2870 = vpop.f32.mrf.mxu0
        %v2871 = vadd.f32 0.0, %v2870
        %v2872 = vpop.f32.mrf.mxu0
        %v2873 = vadd.f32 0.0, %v2872
        %2874 = vmatmul.bf16.gmra.mxu0 %v2391
        %v2875 = vpop.f32.mrf.mxu0
        %v2876 = vadd.f32 0.0, %v2875
        %v2877 = vpop.f32.mrf.mxu0
        %v2878 = vadd.f32 0.0, %v2877
        %2879 = vmatmul.bf16.gmra.mxu0 %v2394
        %v2880 = vpop.f32.mrf.mxu0
        %v2881 = vadd.f32 0.0, %v2880
        %v2882 = vpop.f32.mrf.mxu0
        %v2883 = vadd.f32 0.0, %v2882
        %2884 = vmatmul.bf16.gmra.mxu0 %v2688
        %v2885 = vpop.f32.mrf.mxu0
        %v2886 = vadd.f32 0.0, %v2885
        %v2887 = vpop.f32.mrf.mxu0
        %v2888 = vadd.f32 0.0, %v2887
        %2889 = vmatmul.bf16.gmra.mxu0 %v2691
        %v2890 = vpop.f32.mrf.mxu0
        %v2891 = vadd.f32 0.0, %v2890
        %v2892 = vpop.f32.mrf.mxu0
        %v2893 = vadd.f32 0.0, %v2892
        %2894 = vdwg.mxu0
        %v2895 = vadd.f32 %v2601, %v2707
        %v2896 = vadd.f32 %v2602, %v2806
        %v2897 = vadd.f32 %v2603, %v2709
        %v2898 = vadd.f32 %v2604, %v2808
        %v2899 = vadd.f32 %v2605, %v2712
        %v2900 = vadd.f32 %v2606, %v2811
        %v2901 = vadd.f32 %v2607, %v2714
        %v2902 = vadd.f32 %v2608, %v2813
        %v2903 = vadd.f32 %v2609, %v2717
        %v2904 = vadd.f32 %v2610, %v2816
        %v2905 = vadd.f32 %v2611, %v2719
        %v2906 = vadd.f32 %v2612, %v2818
        %v2907 = vadd.f32 %v2613, %v2722
        %v2908 = vadd.f32 %v2614, %v2821
        %v2909 = vadd.f32 %v2615, %v2724
        %v2910 = vadd.f32 %v2616, %v2823
        %v2911 = vadd.f32 %v2617, %v2727
        %v2912 = vadd.f32 %v2618, %v2826
        %v2913 = vadd.f32 %v2619, %v2729
        %v2914 = vadd.f32 %v2620, %v2828
        %v2915 = vadd.f32 %v2621, %v2732
        %v2916 = vadd.f32 %v2622, %v2831
        %v2917 = vadd.f32 %v2623, %v2734
        %v2918 = vadd.f32 %v2624, %v2833
        %v2919 = vadd.f32 %v2625, %v2737
        %v2920 = vadd.f32 %v2626, %v2836
        %v2921 = vadd.f32 %v2627, %v2739
        %v2922 = vadd.f32 %v2628, %v2838
        %v2923 = vadd.f32 %v2629, %v2742
        %v2924 = vadd.f32 %v2630, %v2841
        %v2925 = vadd.f32 %v2631, %v2744
        %v2926 = vadd.f32 %v2632, %v2843
        %v2927 = vadd.f32 %v2633, %v2747
        %v2928 = vadd.f32 %v2634, %v2846
        %v2929 = vadd.f32 %v2635, %v2749
        %v2930 = vadd.f32 %v2636, %v2848
        %v2931 = vadd.f32 %v2637, %v2752
        %v2932 = vadd.f32 %v2638, %v2851
        %v2933 = vadd.f32 %v2639, %v2754
        %v2934 = vadd.f32 %v2640, %v2853
        %v2935 = vadd.f32 %v2641, %v2757
        %v2936 = vadd.f32 %v2642, %v2856
        %v2937 = vadd.f32 %v2643, %v2759
        %v2938 = vadd.f32 %v2644, %v2858
        %v2939 = vadd.f32 %v2645, %v2762
        %v2940 = vadd.f32 %v2646, %v2861
        %v2941 = vadd.f32 %v2647, %v2764
        %v2942 = vadd.f32 %v2648, %v2863
        %v2943 = vadd.f32 %v2649, %v2767
        %v2944 = vadd.f32 %v2650, %v2866
        %v2945 = vadd.f32 %v2651, %v2769
        %v2946 = vadd.f32 %v2652, %v2868
        %v2947 = vadd.f32 %v2653, %v2772
        %v2948 = vadd.f32 %v2654, %v2871
        %v2949 = vadd.f32 %v2655, %v2774
        %v2950 = vadd.f32 %v2656, %v2873
        %v2951 = vadd.f32 %v2657, %v2777
        %v2952 = vadd.f32 %v2658, %v2876
        %v2953 = vadd.f32 %v2659, %v2779
        %v2954 = vadd.f32 %v2660, %v2878
        %v2955 = vadd.f32 %v2661, %v2782
        %v2956 = vadd.f32 %v2662, %v2881
        %v2957 = vadd.f32 %v2663, %v2784
        %v2958 = vadd.f32 %v2664, %v2883
        %v2959 = vadd.f32 %v2665, %v2787
        %v2960 = vadd.f32 %v2666, %v2886
        %v2961 = vadd.f32 %v2667, %v2789
        %v2962 = vadd.f32 %v2668, %v2888
        %v2963 = vadd.f32 %v2669, %v2792
        %v2964 = vadd.f32 %v2670, %v2891
        %v2965 = vadd.f32 %v2671, %v2794
        %v2966 = vadd.f32 %v2672, %v2893
        %s2967 = scalar_lea.vmem %s368, 28 [#allocation3]
        %v2968 = vld [vmem:[%s2967] sm:$0xf]
        %vm2969 = vsmask.f32 5376
        %v2970 = vrot.slane %v564, 2
        %v2971 = vrot.slane %v560, 3
        %v2972 = vor.u32 %v2970, %v2971
        %v2973 = vrot.slane %v572, 2
        %v2974 = vrot.slane %v568, 3
        %v2975 = vor.u32 %v2973, %v2974
        %v2976 = vsel %vm2969, %v2972, %v2975
        %v2977 = vrot.slane %v580, 2
        %v2978 = vrot.slane %v576, 3
        %v2979 = vor.u32 %v2977, %v2978
        %v2980 = vsel %vm2969, %v2975, %v2979
        %v2981 = vrot.slane %v588, 2
        %v2982 = vrot.slane %v584, 3
        %v2983 = vor.u32 %v2981, %v2982
        %v2984 = vsel %vm2969, %v2979, %v2983
        %v2985 = vrot.slane %v596, 2
        %v2986 = vrot.slane %v592, 3
        %v2987 = vor.u32 %v2985, %v2986
        %v2988 = vsel %vm2969, %v2983, %v2987
        %v2989 = vrot.slane %v604, 2
        %v2990 = vrot.slane %v600, 3
        %v2991 = vor.u32 %v2989, %v2990
        %v2992 = vsel %vm2969, %v2987, %v2991
        %v2993 = vrot.slane %v612, 2
        %v2994 = vrot.slane %v608, 3
        %v2995 = vor.u32 %v2993, %v2994
        %v2996 = vsel %vm2969, %v2991, %v2995
        %v2997 = vrot.slane %v620, 2
        %v2998 = vrot.slane %v616, 3
        %v2999 = vor.u32 %v2997, %v2998
        %v3000 = vsel %vm2969, %v2995, %v2999
        %v3001 = vrot.slane %v628, 2
        %v3002 = vrot.slane %v624, 3
        %v3003 = vor.u32 %v3001, %v3002
        %v3004 = vsel %vm2969, %v2999, %v3003
        %v3005 = vrot.slane %v636, 2
        %v3006 = vrot.slane %v632, 3
        %v3007 = vor.u32 %v3005, %v3006
        %v3008 = vsel %vm2969, %v3003, %v3007
        %v3009 = vrot.slane %v644, 2
        %v3010 = vrot.slane %v640, 3
        %v3011 = vor.u32 %v3009, %v3010
        %v3012 = vsel %vm2969, %v3007, %v3011
        %v3013 = vrot.slane %v652, 2
        %v3014 = vrot.slane %v648, 3
        %v3015 = vor.u32 %v3013, %v3014
        %v3016 = vsel %vm2969, %v3011, %v3015
        %v3017 = vrot.slane %v660, 2
        %v3018 = vrot.slane %v656, 3
        %v3019 = vor.u32 %v3017, %v3018
        %v3020 = vsel %vm2969, %v3015, %v3019
        %v3021 = vrot.slane %v668, 2
        %v3022 = vrot.slane %v664, 3
        %v3023 = vor.u32 %v3021, %v3022
        %v3024 = vsel %vm2969, %v3019, %v3023
        %v3025 = vrot.slane %v676, 2
        %v3026 = vrot.slane %v672, 3
        %v3027 = vor.u32 %v3025, %v3026
        %v3028 = vsel %vm2969, %v3023, %v3027
        %v3029 = vrot.slane %v684, 2
        %v3030 = vrot.slane %v680, 3
        %v3031 = vor.u32 %v3029, %v3030
        %v3032 = vsel %vm2969, %v3027, %v3031
        %v3033 = vrot.slane %v1952, 2
        %v3034 = vrot.slane %v1955, 3
        %v3035 = vor.u32 %v3033, %v3034
        %v3036 = vsel %vm2969, %v3031, %v3035
        %v3038 = vshrl.u32 %v2673, 16
        %v3040 = vrot.slane %v3038, 2
        %v3041 = vshll.u32 %v2673, 16
        %v3043 = vrot.slane %v3041, 3
        %v3044 = vor.u32 %v3040, %v3043
        %v3045 = vsel %vm2969, %v3035, %v3044
        %v3047 = vshrl.u32 %v2674, 16
        %v3049 = vrot.slane %v3047, 2
        %v3050 = vshll.u32 %v2674, 16
        %v3052 = vrot.slane %v3050, 3
        %v3053 = vor.u32 %v3049, %v3052
        %v3054 = vsel %vm2969, %v3044, %v3053
        %3056 = vst [vmem:[#allocation1] ss:$4 sm:$0xff] %v2968
        %v3057 = vld.sshfl [vmem:[#allocation1] sm:$0xff pattern:$0x73625140]
        %v3058 = vld.sshfl [vmem:[#allocation1 + $0x8] sm:$0xff pattern:$0x73625140]
        %v3060 = vsel %vm696, %v2976, 0
        %v3063 = vsel %vm696, %v2980, 0
        %v3066 = vsel %vm696, %v2984, 0
        %v3069 = vsel %vm696, %v2988, 0
        %v3072 = vsel %vm696, %v2992, 0
        %v3075 = vsel %vm696, %v2996, 0
        %v3078 = vsel %vm696, %v3000, 0
        %v3081 = vsel %vm696, %v3004, 0
        %v3084 = vsel %vm696, %v3008, 0
        %v3087 = vsel %vm696, %v3012, 0
        %v3090 = vsel %vm696, %v3016, 0
        %v3093 = vsel %vm696, %v3020, 0
        %v3096 = vsel %vm696, %v3024, 0
        %v3099 = vsel %vm696, %v3028, 0
        %v3102 = vsel %vm696, %v3032, 0
        %v3105 = vsel %vm696, %v3036, 0
        %v3108 = vsel %vm696, %v3045, 0
        %v3111 = vsel %vm696, %v3054, 0
        %v3113 = vsel %vm751, %v3057, 0
        %v3115 = vsel %vm751, %v3058, 0
        %3117 = vmatpush.bf16.msra.mxu0 0
        %3118 = vmatpush.bf16.msra.mxu0 0
        %3119 = vmatpush.bf16.msra.mxu0 0
        %3120 = vmatpush.bf16.msra.mxu0 0
        %3121 = vmatpush.bf16.msra.mxu0 0
        %3122 = vmatpush.bf16.msra.mxu0 0
        %3123 = vmatpush.bf16.msra.mxu0 0
        %3124 = vmatpush.bf16.msra.mxu0 %v3113
        %3125 = vmatmul.bf16.gmra.mxu0 %v3060
        %v3126 = vpop.f32.mrf.mxu0
        %v3127 = vadd.f32 0.0, %v3126
        %v3128 = vpop.f32.mrf.mxu0
        %v3129 = vadd.f32 0.0, %v3128
        %3130 = vmatmul.bf16.gmra.mxu0 %v3063
        %v3131 = vpop.f32.mrf.mxu0
        %v3132 = vadd.f32 0.0, %v3131
        %v3133 = vpop.f32.mrf.mxu0
        %v3134 = vadd.f32 0.0, %v3133
        %3135 = vmatmul.bf16.gmra.mxu0 %v3066
        %v3136 = vpop.f32.mrf.mxu0
        %v3137 = vadd.f32 0.0, %v3136
        %v3138 = vpop.f32.mrf.mxu0
        %v3139 = vadd.f32 0.0, %v3138
        %3140 = vmatmul.bf16.gmra.mxu0 %v3069
        %v3141 = vpop.f32.mrf.mxu0
        %v3142 = vadd.f32 0.0, %v3141
        %v3143 = vpop.f32.mrf.mxu0
        %v3144 = vadd.f32 0.0, %v3143
        %3145 = vmatmul.bf16.gmra.mxu0 %v3072
        %v3146 = vpop.f32.mrf.mxu0
        %v3147 = vadd.f32 0.0, %v3146
        %v3148 = vpop.f32.mrf.mxu0
        %v3149 = vadd.f32 0.0, %v3148
        %3150 = vmatmul.bf16.gmra.mxu0 %v3075
        %v3151 = vpop.f32.mrf.mxu0
        %v3152 = vadd.f32 0.0, %v3151
        %v3153 = vpop.f32.mrf.mxu0
        %v3154 = vadd.f32 0.0, %v3153
        %3155 = vmatmul.bf16.gmra.mxu0 %v3078
        %v3156 = vpop.f32.mrf.mxu0
        %v3157 = vadd.f32 0.0, %v3156
        %v3158 = vpop.f32.mrf.mxu0
        %v3159 = vadd.f32 0.0, %v3158
        %3160 = vmatmul.bf16.gmra.mxu0 %v3081
        %v3161 = vpop.f32.mrf.mxu0
        %v3162 = vadd.f32 0.0, %v3161
        %v3163 = vpop.f32.mrf.mxu0
        %v3164 = vadd.f32 0.0, %v3163
        %3165 = vmatmul.bf16.gmra.mxu0 %v3084
        %v3166 = vpop.f32.mrf.mxu0
        %v3167 = vadd.f32 0.0, %v3166
        %v3168 = vpop.f32.mrf.mxu0
        %v3169 = vadd.f32 0.0, %v3168
        %3170 = vmatmul.bf16.gmra.mxu0 %v3087
        %v3171 = vpop.f32.mrf.mxu0
        %v3172 = vadd.f32 0.0, %v3171
        %v3173 = vpop.f32.mrf.mxu0
        %v3174 = vadd.f32 0.0, %v3173
        %3175 = vmatmul.bf16.gmra.mxu0 %v3090
        %v3176 = vpop.f32.mrf.mxu0
        %v3177 = vadd.f32 0.0, %v3176
        %v3178 = vpop.f32.mrf.mxu0
        %v3179 = vadd.f32 0.0, %v3178
        %3180 = vmatmul.bf16.gmra.mxu0 %v3093
        %v3181 = vpop.f32.mrf.mxu0
        %v3182 = vadd.f32 0.0, %v3181
        %v3183 = vpop.f32.mrf.mxu0
        %v3184 = vadd.f32 0.0, %v3183
        %3185 = vmatmul.bf16.gmra.mxu0 %v3096
        %v3186 = vpop.f32.mrf.mxu0
        %v3187 = vadd.f32 0.0, %v3186
        %v3188 = vpop.f32.mrf.mxu0
        %v3189 = vadd.f32 0.0, %v3188
        %3190 = vmatmul.bf16.gmra.mxu0 %v3099
        %v3191 = vpop.f32.mrf.mxu0
        %v3192 = vadd.f32 0.0, %v3191
        %v3193 = vpop.f32.mrf.mxu0
        %v3194 = vadd.f32 0.0, %v3193
        %3195 = vmatmul.bf16.gmra.mxu0 %v3102
        %v3196 = vpop.f32.mrf.mxu0
        %v3197 = vadd.f32 0.0, %v3196
        %v3198 = vpop.f32.mrf.mxu0
        %v3199 = vadd.f32 0.0, %v3198
        %3200 = vmatmul.bf16.gmra.mxu0 %v3105
        %v3201 = vpop.f32.mrf.mxu0
        %v3202 = vadd.f32 0.0, %v3201
        %v3203 = vpop.f32.mrf.mxu0
        %v3204 = vadd.f32 0.0, %v3203
        %3205 = vmatmul.bf16.gmra.mxu0 %v3108
        %v3206 = vpop.f32.mrf.mxu0
        %v3207 = vadd.f32 0.0, %v3206
        %v3208 = vpop.f32.mrf.mxu0
        %v3209 = vadd.f32 0.0, %v3208
        %3210 = vmatmul.bf16.gmra.mxu0 %v3111
        %v3211 = vpop.f32.mrf.mxu0
        %v3212 = vadd.f32 0.0, %v3211
        %v3213 = vpop.f32.mrf.mxu0
        %v3214 = vadd.f32 0.0, %v3213
        %3215 = vdwg.mxu0
        %3216 = vmatpush.bf16.msra.mxu0 0
        %3217 = vmatpush.bf16.msra.mxu0 0
        %3218 = vmatpush.bf16.msra.mxu0 0
        %3219 = vmatpush.bf16.msra.mxu0 0
        %3220 = vmatpush.bf16.msra.mxu0 0
        %3221 = vmatpush.bf16.msra.mxu0 0
        %3222 = vmatpush.bf16.msra.mxu0 0
        %3223 = vmatpush.bf16.msra.mxu0 %v3115
        %3224 = vmatmul.bf16.gmra.mxu0 %v3060
        %v3225 = vpop.f32.mrf.mxu0
        %v3226 = vadd.f32 0.0, %v3225
        %v3227 = vpop.f32.mrf.mxu0
        %v3228 = vadd.f32 0.0, %v3227
        %3229 = vmatmul.bf16.gmra.mxu0 %v3063
        %v3230 = vpop.f32.mrf.mxu0
        %v3231 = vadd.f32 0.0, %v3230
        %v3232 = vpop.f32.mrf.mxu0
        %v3233 = vadd.f32 0.0, %v3232
        %3234 = vmatmul.bf16.gmra.mxu0 %v3066
        %v3235 = vpop.f32.mrf.mxu0
        %v3236 = vadd.f32 0.0, %v3235
        %v3237 = vpop.f32.mrf.mxu0
        %v3238 = vadd.f32 0.0, %v3237
        %3239 = vmatmul.bf16.gmra.mxu0 %v3069
        %v3240 = vpop.f32.mrf.mxu0
        %v3241 = vadd.f32 0.0, %v3240
        %v3242 = vpop.f32.mrf.mxu0
        %v3243 = vadd.f32 0.0, %v3242
        %3244 = vmatmul.bf16.gmra.mxu0 %v3072
        %v3245 = vpop.f32.mrf.mxu0
        %v3246 = vadd.f32 0.0, %v3245
        %v3247 = vpop.f32.mrf.mxu0
        %v3248 = vadd.f32 0.0, %v3247
        %3249 = vmatmul.bf16.gmra.mxu0 %v3075
        %v3250 = vpop.f32.mrf.mxu0
        %v3251 = vadd.f32 0.0, %v3250
        %v3252 = vpop.f32.mrf.mxu0
        %v3253 = vadd.f32 0.0, %v3252
        %3254 = vmatmul.bf16.gmra.mxu0 %v3078
        %v3255 = vpop.f32.mrf.mxu0
        %v3256 = vadd.f32 0.0, %v3255
        %v3257 = vpop.f32.mrf.mxu0
        %v3258 = vadd.f32 0.0, %v3257
        %3259 = vmatmul.bf16.gmra.mxu0 %v3081
        %v3260 = vpop.f32.mrf.mxu0
        %v3261 = vadd.f32 0.0, %v3260
        %v3262 = vpop.f32.mrf.mxu0
        %v3263 = vadd.f32 0.0, %v3262
        %3264 = vmatmul.bf16.gmra.mxu0 %v3084
        %v3265 = vpop.f32.mrf.mxu0
        %v3266 = vadd.f32 0.0, %v3265
        %v3267 = vpop.f32.mrf.mxu0
        %v3268 = vadd.f32 0.0, %v3267
        %3269 = vmatmul.bf16.gmra.mxu0 %v3087
        %v3270 = vpop.f32.mrf.mxu0
        %v3271 = vadd.f32 0.0, %v3270
        %v3272 = vpop.f32.mrf.mxu0
        %v3273 = vadd.f32 0.0, %v3272
        %3274 = vmatmul.bf16.gmra.mxu0 %v3090
        %v3275 = vpop.f32.mrf.mxu0
        %v3276 = vadd.f32 0.0, %v3275
        %v3277 = vpop.f32.mrf.mxu0
        %v3278 = vadd.f32 0.0, %v3277
        %3279 = vmatmul.bf16.gmra.mxu0 %v3093
        %v3280 = vpop.f32.mrf.mxu0
        %v3281 = vadd.f32 0.0, %v3280
        %v3282 = vpop.f32.mrf.mxu0
        %v3283 = vadd.f32 0.0, %v3282
        %3284 = vmatmul.bf16.gmra.mxu0 %v3096
        %v3285 = vpop.f32.mrf.mxu0
        %v3286 = vadd.f32 0.0, %v3285
        %v3287 = vpop.f32.mrf.mxu0
        %v3288 = vadd.f32 0.0, %v3287
        %3289 = vmatmul.bf16.gmra.mxu0 %v3099
        %v3290 = vpop.f32.mrf.mxu0
        %v3291 = vadd.f32 0.0, %v3290
        %v3292 = vpop.f32.mrf.mxu0
        %v3293 = vadd.f32 0.0, %v3292
        %3294 = vmatmul.bf16.gmra.mxu0 %v3102
        %v3295 = vpop.f32.mrf.mxu0
        %v3296 = vadd.f32 0.0, %v3295
        %v3297 = vpop.f32.mrf.mxu0
        %v3298 = vadd.f32 0.0, %v3297
        %3299 = vmatmul.bf16.gmra.mxu0 %v3105
        %v3300 = vpop.f32.mrf.mxu0
        %v3301 = vadd.f32 0.0, %v3300
        %v3302 = vpop.f32.mrf.mxu0
        %v3303 = vadd.f32 0.0, %v3302
        %3304 = vmatmul.bf16.gmra.mxu0 %v3108
        %v3305 = vpop.f32.mrf.mxu0
        %v3306 = vadd.f32 0.0, %v3305
        %v3307 = vpop.f32.mrf.mxu0
        %v3308 = vadd.f32 0.0, %v3307
        %3309 = vmatmul.bf16.gmra.mxu0 %v3111
        %v3310 = vpop.f32.mrf.mxu0
        %v3311 = vadd.f32 0.0, %v3310
        %v3312 = vpop.f32.mrf.mxu0
        %v3313 = vadd.f32 0.0, %v3312
        %3314 = vdwg.mxu0
        %v3315 = vadd.f32 %v2895, %v3127
        %v3316 = vadd.f32 %v2896, %v3226
        %v3317 = vadd.f32 %v2897, %v3129
        %v3318 = vadd.f32 %v2898, %v3228
        %v3319 = vadd.f32 %v2899, %v3132
        %v3320 = vadd.f32 %v2900, %v3231
        %v3321 = vadd.f32 %v2901, %v3134
        %v3322 = vadd.f32 %v2902, %v3233
        %v3323 = vadd.f32 %v2903, %v3137
        %v3324 = vadd.f32 %v2904, %v3236
        %v3325 = vadd.f32 %v2905, %v3139
        %v3326 = vadd.f32 %v2906, %v3238
        %v3327 = vadd.f32 %v2907, %v3142
        %v3328 = vadd.f32 %v2908, %v3241
        %v3329 = vadd.f32 %v2909, %v3144
        %v3330 = vadd.f32 %v2910, %v3243
        %v3331 = vadd.f32 %v2911, %v3147
        %v3332 = vadd.f32 %v2912, %v3246
        %v3333 = vadd.f32 %v2913, %v3149
        %v3334 = vadd.f32 %v2914, %v3248
        %v3335 = vadd.f32 %v2915, %v3152
        %v3336 = vadd.f32 %v2916, %v3251
        %v3337 = vadd.f32 %v2917, %v3154
        %v3338 = vadd.f32 %v2918, %v3253
        %v3339 = vadd.f32 %v2919, %v3157
        %v3340 = vadd.f32 %v2920, %v3256
        %v3341 = vadd.f32 %v2921, %v3159
        %v3342 = vadd.f32 %v2922, %v3258
        %v3343 = vadd.f32 %v2923, %v3162
        %v3344 = vadd.f32 %v2924, %v3261
        %v3345 = vadd.f32 %v2925, %v3164
        %v3346 = vadd.f32 %v2926, %v3263
        %v3347 = vadd.f32 %v2927, %v3167
        %v3348 = vadd.f32 %v2928, %v3266
        %v3349 = vadd.f32 %v2929, %v3169
        %v3350 = vadd.f32 %v2930, %v3268
        %v3351 = vadd.f32 %v2931, %v3172
        %v3352 = vadd.f32 %v2932, %v3271
        %v3353 = vadd.f32 %v2933, %v3174
        %v3354 = vadd.f32 %v2934, %v3273
        %v3355 = vadd.f32 %v2935, %v3177
        %v3356 = vadd.f32 %v2936, %v3276
        %v3357 = vadd.f32 %v2937, %v3179
        %v3358 = vadd.f32 %v2938, %v3278
        %v3359 = vadd.f32 %v2939, %v3182
        %v3360 = vadd.f32 %v2940, %v3281
        %v3361 = vadd.f32 %v2941, %v3184
        %v3362 = vadd.f32 %v2942, %v3283
        %v3363 = vadd.f32 %v2943, %v3187
        %v3364 = vadd.f32 %v2944, %v3286
        %v3365 = vadd.f32 %v2945, %v3189
        %v3366 = vadd.f32 %v2946, %v3288
        %v3367 = vadd.f32 %v2947, %v3192
        %v3368 = vadd.f32 %v2948, %v3291
        %v3369 = vadd.f32 %v2949, %v3194
        %v3370 = vadd.f32 %v2950, %v3293
        %v3371 = vadd.f32 %v2951, %v3197
        %v3372 = vadd.f32 %v2952, %v3296
        %v3373 = vadd.f32 %v2953, %v3199
        %v3374 = vadd.f32 %v2954, %v3298
        %v3375 = vadd.f32 %v2955, %v3202
        %v3376 = vadd.f32 %v2956, %v3301
        %v3377 = vadd.f32 %v2957, %v3204
        %v3378 = vadd.f32 %v2958, %v3303
        %v3379 = vadd.f32 %v2959, %v3207
        %v3380 = vadd.f32 %v2960, %v3306
        %v3381 = vadd.f32 %v2961, %v3209
        %v3382 = vadd.f32 %v2962, %v3308
        %v3383 = vadd.f32 %v2963, %v3212
        %v3384 = vadd.f32 %v2964, %v3311
        %v3385 = vadd.f32 %v2965, %v3214
        %v3386 = vadd.f32 %v2966, %v3313
        %s3387 = scalar_lea.vmem %s368, 32 [#allocation3]
        %v3388 = vld [vmem:[%s3387] sm:$0xf]
        %vm3389 = vcmask 1044480
        %v3390 = vrot.slane %v523, 3
        %v3391 = vrot.slane %v524, 3
        %v3392 = vsel %vm3389, %v3390, %v3391
        %v3393 = vrot.slane %v525, 3
        %v3394 = vsel %vm3389, %v3391, %v3393
        %v3395 = vrot.slane %v526, 3
        %v3396 = vsel %vm3389, %v3393, %v3395
        %v3397 = vrot.slane %v527, 3
        %v3398 = vsel %vm3389, %v3395, %v3397
        %v3399 = vrot.slane %v528, 3
        %v3400 = vsel %vm3389, %v3397, %v3399
        %v3401 = vrot.slane %v529, 3
        %v3402 = vsel %vm3389, %v3399, %v3401
        %v3403 = vrot.slane %v530, 3
        %v3404 = vsel %vm3389, %v3401, %v3403
        %v3405 = vrot.slane %v531, 3
        %v3406 = vsel %vm3389, %v3403, %v3405
        %v3407 = vrot.slane %v532, 3
        %v3408 = vsel %vm3389, %v3405, %v3407
        %v3409 = vrot.slane %v533, 3
        %v3410 = vsel %vm3389, %v3407, %v3409
        %v3411 = vrot.slane %v534, 3
        %v3412 = vsel %vm3389, %v3409, %v3411
        %v3413 = vrot.slane %v535, 3
        %v3414 = vsel %vm3389, %v3411, %v3413
        %v3415 = vrot.slane %v536, 3
        %v3416 = vsel %vm3389, %v3413, %v3415
        %v3417 = vrot.slane %v537, 3
        %v3418 = vsel %vm3389, %v3415, %v3417
        %v3419 = vrot.slane %v538, 3
        %v3420 = vsel %vm3389, %v3417, %v3419
        %v3421 = vrot.slane %v1587, 3
        %v3422 = vsel %vm3389, %v3419, %v3421
        %v3423 = vrot.slane %v2673, 3
        %v3424 = vsel %vm3389, %v3421, %v3423
        %v3425 = vrot.slane %v2674, 3
        %v3426 = vsel %vm3389, %v3423, %v3425
        %3428 = vst [vmem:[#allocation1] ss:$4 sm:$0xff] %v3388
        %v3429 = vld.sshfl [vmem:[#allocation1] sm:$0xff pattern:$0x73625140]
        %v3430 = vld.sshfl [vmem:[#allocation1 + $0x8] sm:$0xff pattern:$0x73625140]
        %v3432 = vsel %vm696, %v3392, 0
        %v3435 = vsel %vm696, %v3394, 0
        %v3438 = vsel %vm696, %v3396, 0
        %v3441 = vsel %vm696, %v3398, 0
        %v3444 = vsel %vm696, %v3400, 0
        %v3447 = vsel %vm696, %v3402, 0
        %v3450 = vsel %vm696, %v3404, 0
        %v3453 = vsel %vm696, %v3406, 0
        %v3456 = vsel %vm696, %v3408, 0
        %v3459 = vsel %vm696, %v3410, 0
        %v3462 = vsel %vm696, %v3412, 0
        %v3465 = vsel %vm696, %v3414, 0
        %v3468 = vsel %vm696, %v3416, 0
        %v3471 = vsel %vm696, %v3418, 0
        %v3474 = vsel %vm696, %v3420, 0
        %v3477 = vsel %vm696, %v3422, 0
        %v3480 = vsel %vm696, %v3424, 0
        %v3483 = vsel %vm696, %v3426, 0
        %v3485 = vsel %vm751, %v3429, 0
        %v3487 = vsel %vm751, %v3430, 0
        %3489 = vmatpush.bf16.msra.mxu0 0
        %3490 = vmatpush.bf16.msra.mxu0 0
        %3491 = vmatpush.bf16.msra.mxu0 0
        %3492 = vmatpush.bf16.msra.mxu0 0
        %3493 = vmatpush.bf16.msra.mxu0 0
        %3494 = vmatpush.bf16.msra.mxu0 0
        %3495 = vmatpush.bf16.msra.mxu0 0
        %3496 = vmatpush.bf16.msra.mxu0 %v3485
        %3497 = vmatmul.bf16.gmra.mxu0 %v3432
        %v3498 = vpop.f32.mrf.mxu0
        %v3499 = vadd.f32 0.0, %v3498
        %v3500 = vpop.f32.mrf.mxu0
        %v3501 = vadd.f32 0.0, %v3500
        %3502 = vmatmul.bf16.gmra.mxu0 %v3435
        %v3503 = vpop.f32.mrf.mxu0
        %v3504 = vadd.f32 0.0, %v3503
        %v3505 = vpop.f32.mrf.mxu0
        %v3506 = vadd.f32 0.0, %v3505
        %3507 = vmatmul.bf16.gmra.mxu0 %v3438
        %v3508 = vpop.f32.mrf.mxu0
        %v3509 = vadd.f32 0.0, %v3508
        %v3510 = vpop.f32.mrf.mxu0
        %v3511 = vadd.f32 0.0, %v3510
        %3512 = vmatmul.bf16.gmra.mxu0 %v3441
        %v3513 = vpop.f32.mrf.mxu0
        %v3514 = vadd.f32 0.0, %v3513
        %v3515 = vpop.f32.mrf.mxu0
        %v3516 = vadd.f32 0.0, %v3515
        %3517 = vmatmul.bf16.gmra.mxu0 %v3444
        %v3518 = vpop.f32.mrf.mxu0
        %v3519 = vadd.f32 0.0, %v3518
        %v3520 = vpop.f32.mrf.mxu0
        %v3521 = vadd.f32 0.0, %v3520
        %3522 = vmatmul.bf16.gmra.mxu0 %v3447
        %v3523 = vpop.f32.mrf.mxu0
        %v3524 = vadd.f32 0.0, %v3523
        %v3525 = vpop.f32.mrf.mxu0
        %v3526 = vadd.f32 0.0, %v3525
        %3527 = vmatmul.bf16.gmra.mxu0 %v3450
        %v3528 = vpop.f32.mrf.mxu0
        %v3529 = vadd.f32 0.0, %v3528
        %v3530 = vpop.f32.mrf.mxu0
        %v3531 = vadd.f32 0.0, %v3530
        %3532 = vmatmul.bf16.gmra.mxu0 %v3453
        %v3533 = vpop.f32.mrf.mxu0
        %v3534 = vadd.f32 0.0, %v3533
        %v3535 = vpop.f32.mrf.mxu0
        %v3536 = vadd.f32 0.0, %v3535
        %3537 = vmatmul.bf16.gmra.mxu0 %v3456
        %v3538 = vpop.f32.mrf.mxu0
        %v3539 = vadd.f32 0.0, %v3538
        %v3540 = vpop.f32.mrf.mxu0
        %v3541 = vadd.f32 0.0, %v3540
        %3542 = vmatmul.bf16.gmra.mxu0 %v3459
        %v3543 = vpop.f32.mrf.mxu0
        %v3544 = vadd.f32 0.0, %v3543
        %v3545 = vpop.f32.mrf.mxu0
        %v3546 = vadd.f32 0.0, %v3545
        %3547 = vmatmul.bf16.gmra.mxu0 %v3462
        %v3548 = vpop.f32.mrf.mxu0
        %v3549 = vadd.f32 0.0, %v3548
        %v3550 = vpop.f32.mrf.mxu0
        %v3551 = vadd.f32 0.0, %v3550
        %3552 = vmatmul.bf16.gmra.mxu0 %v3465
        %v3553 = vpop.f32.mrf.mxu0
        %v3554 = vadd.f32 0.0, %v3553
        %v3555 = vpop.f32.mrf.mxu0
        %v3556 = vadd.f32 0.0, %v3555
        %3557 = vmatmul.bf16.gmra.mxu0 %v3468
        %v3558 = vpop.f32.mrf.mxu0
        %v3559 = vadd.f32 0.0, %v3558
        %v3560 = vpop.f32.mrf.mxu0
        %v3561 = vadd.f32 0.0, %v3560
        %3562 = vmatmul.bf16.gmra.mxu0 %v3471
        %v3563 = vpop.f32.mrf.mxu0
        %v3564 = vadd.f32 0.0, %v3563
        %v3565 = vpop.f32.mrf.mxu0
        %v3566 = vadd.f32 0.0, %v3565
        %3567 = vmatmul.bf16.gmra.mxu0 %v3474
        %v3568 = vpop.f32.mrf.mxu0
        %v3569 = vadd.f32 0.0, %v3568
        %v3570 = vpop.f32.mrf.mxu0
        %v3571 = vadd.f32 0.0, %v3570
        %3572 = vmatmul.bf16.gmra.mxu0 %v3477
        %v3573 = vpop.f32.mrf.mxu0
        %v3574 = vadd.f32 0.0, %v3573
        %v3575 = vpop.f32.mrf.mxu0
        %v3576 = vadd.f32 0.0, %v3575
        %3577 = vmatmul.bf16.gmra.mxu0 %v3480
        %v3578 = vpop.f32.mrf.mxu0
        %v3579 = vadd.f32 0.0, %v3578
        %v3580 = vpop.f32.mrf.mxu0
        %v3581 = vadd.f32 0.0, %v3580
        %3582 = vmatmul.bf16.gmra.mxu0 %v3483
        %v3583 = vpop.f32.mrf.mxu0
        %v3584 = vadd.f32 0.0, %v3583
        %v3585 = vpop.f32.mrf.mxu0
        %v3586 = vadd.f32 0.0, %v3585
        %3587 = vdwg.mxu0
        %3588 = vmatpush.bf16.msra.mxu0 0
        %3589 = vmatpush.bf16.msra.mxu0 0
        %3590 = vmatpush.bf16.msra.mxu0 0
        %3591 = vmatpush.bf16.msra.mxu0 0
        %3592 = vmatpush.bf16.msra.mxu0 0
        %3593 = vmatpush.bf16.msra.mxu0 0
        %3594 = vmatpush.bf16.msra.mxu0 0
        %3595 = vmatpush.bf16.msra.mxu0 %v3487
        %3596 = vmatmul.bf16.gmra.mxu0 %v3432
        %v3597 = vpop.f32.mrf.mxu0
        %v3598 = vadd.f32 0.0, %v3597
        %v3599 = vpop.f32.mrf.mxu0
        %v3600 = vadd.f32 0.0, %v3599
        %3601 = vmatmul.bf16.gmra.mxu0 %v3435
        %v3602 = vpop.f32.mrf.mxu0
        %v3603 = vadd.f32 0.0, %v3602
        %v3604 = vpop.f32.mrf.mxu0
        %v3605 = vadd.f32 0.0, %v3604
        %3606 = vmatmul.bf16.gmra.mxu0 %v3438
        %v3607 = vpop.f32.mrf.mxu0
        %v3608 = vadd.f32 0.0, %v3607
        %v3609 = vpop.f32.mrf.mxu0
        %v3610 = vadd.f32 0.0, %v3609
        %3611 = vmatmul.bf16.gmra.mxu0 %v3441
        %v3612 = vpop.f32.mrf.mxu0
        %v3613 = vadd.f32 0.0, %v3612
        %v3614 = vpop.f32.mrf.mxu0
        %v3615 = vadd.f32 0.0, %v3614
        %3616 = vmatmul.bf16.gmra.mxu0 %v3444
        %v3617 = vpop.f32.mrf.mxu0
        %v3618 = vadd.f32 0.0, %v3617
        %v3619 = vpop.f32.mrf.mxu0
        %v3620 = vadd.f32 0.0, %v3619
        %3621 = vmatmul.bf16.gmra.mxu0 %v3447
        %v3622 = vpop.f32.mrf.mxu0
        %v3623 = vadd.f32 0.0, %v3622
        %v3624 = vpop.f32.mrf.mxu0
        %v3625 = vadd.f32 0.0, %v3624
        %3626 = vmatmul.bf16.gmra.mxu0 %v3450
        %v3627 = vpop.f32.mrf.mxu0
        %v3628 = vadd.f32 0.0, %v3627
        %v3629 = vpop.f32.mrf.mxu0
        %v3630 = vadd.f32 0.0, %v3629
        %3631 = vmatmul.bf16.gmra.mxu0 %v3453
        %v3632 = vpop.f32.mrf.mxu0
        %v3633 = vadd.f32 0.0, %v3632
        %v3634 = vpop.f32.mrf.mxu0
        %v3635 = vadd.f32 0.0, %v3634
        %3636 = vmatmul.bf16.gmra.mxu0 %v3456
        %v3637 = vpop.f32.mrf.mxu0
        %v3638 = vadd.f32 0.0, %v3637
        %v3639 = vpop.f32.mrf.mxu0
        %v3640 = vadd.f32 0.0, %v3639
        %3641 = vmatmul.bf16.gmra.mxu0 %v3459
        %v3642 = vpop.f32.mrf.mxu0
        %v3643 = vadd.f32 0.0, %v3642
        %v3644 = vpop.f32.mrf.mxu0
        %v3645 = vadd.f32 0.0, %v3644
        %3646 = vmatmul.bf16.gmra.mxu0 %v3462
        %v3647 = vpop.f32.mrf.mxu0
        %v3648 = vadd.f32 0.0, %v3647
        %v3649 = vpop.f32.mrf.mxu0
        %v3650 = vadd.f32 0.0, %v3649
        %3651 = vmatmul.bf16.gmra.mxu0 %v3465
        %v3652 = vpop.f32.mrf.mxu0
        %v3653 = vadd.f32 0.0, %v3652
        %v3654 = vpop.f32.mrf.mxu0
        %v3655 = vadd.f32 0.0, %v3654
        %3656 = vmatmul.bf16.gmra.mxu0 %v3468
        %v3657 = vpop.f32.mrf.mxu0
        %v3658 = vadd.f32 0.0, %v3657
        %v3659 = vpop.f32.mrf.mxu0
        %v3660 = vadd.f32 0.0, %v3659
        %3661 = vmatmul.bf16.gmra.mxu0 %v3471
        %v3662 = vpop.f32.mrf.mxu0
        %v3663 = vadd.f32 0.0, %v3662
        %v3664 = vpop.f32.mrf.mxu0
        %v3665 = vadd.f32 0.0, %v3664
        %3666 = vmatmul.bf16.gmra.mxu0 %v3474
        %v3667 = vpop.f32.mrf.mxu0
        %v3668 = vadd.f32 0.0, %v3667
        %v3669 = vpop.f32.mrf.mxu0
        %v3670 = vadd.f32 0.0, %v3669
        %3671 = vmatmul.bf16.gmra.mxu0 %v3477
        %v3672 = vpop.f32.mrf.mxu0
        %v3673 = vadd.f32 0.0, %v3672
        %v3674 = vpop.f32.mrf.mxu0
        %v3675 = vadd.f32 0.0, %v3674
        %3676 = vmatmul.bf16.gmra.mxu0 %v3480
        %v3677 = vpop.f32.mrf.mxu0
        %v3678 = vadd.f32 0.0, %v3677
        %v3679 = vpop.f32.mrf.mxu0
        %v3680 = vadd.f32 0.0, %v3679
        %3681 = vmatmul.bf16.gmra.mxu0 %v3483
        %v3682 = vpop.f32.mrf.mxu0
        %v3683 = vadd.f32 0.0, %v3682
        %v3684 = vpop.f32.mrf.mxu0
        %v3685 = vadd.f32 0.0, %v3684
        %3686 = vdwg.mxu0
        %v3687 = vadd.f32 %v3315, %v3499
        %v3688 = vadd.f32 %v3316, %v3598
        %v3689 = vadd.f32 %v3317, %v3501
        %v3690 = vadd.f32 %v3318, %v3600
        %v3691 = vadd.f32 %v3319, %v3504
        %v3692 = vadd.f32 %v3320, %v3603
        %v3693 = vadd.f32 %v3321, %v3506
        %v3694 = vadd.f32 %v3322, %v3605
        %v3695 = vadd.f32 %v3323, %v3509
        %v3696 = vadd.f32 %v3324, %v3608
        %v3697 = vadd.f32 %v3325, %v3511
        %v3698 = vadd.f32 %v3326, %v3610
        %v3699 = vadd.f32 %v3327, %v3514
        %v3700 = vadd.f32 %v3328, %v3613
        %v3701 = vadd.f32 %v3329, %v3516
        %v3702 = vadd.f32 %v3330, %v3615
        %v3703 = vadd.f32 %v3331, %v3519
        %v3704 = vadd.f32 %v3332, %v3618
        %v3705 = vadd.f32 %v3333, %v3521
        %v3706 = vadd.f32 %v3334, %v3620
        %v3707 = vadd.f32 %v3335, %v3524
        %v3708 = vadd.f32 %v3336, %v3623
        %v3709 = vadd.f32 %v3337, %v3526
        %v3710 = vadd.f32 %v3338, %v3625
        %v3711 = vadd.f32 %v3339, %v3529
        %v3712 = vadd.f32 %v3340, %v3628
        %v3713 = vadd.f32 %v3341, %v3531
        %v3714 = vadd.f32 %v3342, %v3630
        %v3715 = vadd.f32 %v3343, %v3534
        %v3716 = vadd.f32 %v3344, %v3633
        %v3717 = vadd.f32 %v3345, %v3536
        %v3718 = vadd.f32 %v3346, %v3635
        %v3719 = vadd.f32 %v3347, %v3539
        %v3720 = vadd.f32 %v3348, %v3638
        %v3721 = vadd.f32 %v3349, %v3541
        %v3722 = vadd.f32 %v3350, %v3640
        %v3723 = vadd.f32 %v3351, %v3544
        %v3724 = vadd.f32 %v3352, %v3643
        %v3725 = vadd.f32 %v3353, %v3546
        %v3726 = vadd.f32 %v3354, %v3645
        %v3727 = vadd.f32 %v3355, %v3549
        %v3728 = vadd.f32 %v3356, %v3648
        %v3729 = vadd.f32 %v3357, %v3551
        %v3730 = vadd.f32 %v3358, %v3650
        %v3731 = vadd.f32 %v3359, %v3554
        %v3732 = vadd.f32 %v3360, %v3653
        %v3733 = vadd.f32 %v3361, %v3556
        %v3734 = vadd.f32 %v3362, %v3655
        %v3735 = vadd.f32 %v3363, %v3559
        %v3736 = vadd.f32 %v3364, %v3658
        %v3737 = vadd.f32 %v3365, %v3561
        %v3738 = vadd.f32 %v3366, %v3660
        %v3739 = vadd.f32 %v3367, %v3564
        %v3740 = vadd.f32 %v3368, %v3663
        %v3741 = vadd.f32 %v3369, %v3566
        %v3742 = vadd.f32 %v3370, %v3665
        %v3743 = vadd.f32 %v3371, %v3569
        %v3744 = vadd.f32 %v3372, %v3668
        %v3745 = vadd.f32 %v3373, %v3571
        %v3746 = vadd.f32 %v3374, %v3670
        %v3747 = vadd.f32 %v3375, %v3574
        %v3748 = vadd.f32 %v3376, %v3673
        %v3749 = vadd.f32 %v3377, %v3576
        %v3750 = vadd.f32 %v3378, %v3675
        %v3751 = vadd.f32 %v3379, %v3579
        %v3752 = vadd.f32 %v3380, %v3678
        %v3753 = vadd.f32 %v3381, %v3581
        %v3754 = vadd.f32 %v3382, %v3680
        %v3755 = vadd.f32 %v3383, %v3584
        %v3756 = vadd.f32 %v3384, %v3683
        %v3757 = vadd.f32 %v3385, %v3586
        %v3758 = vadd.f32 %v3386, %v3685
        %v3759 = vld [vmem:[%s420] sm:$0x3]
        %v3761 = vperm.slane %v3759, 0
        %v3762 = vperm.slane %v3759, 1
        %v3765 = vadd.f32 %v3687, %v3761
        %v3766 = vadd.f32 %v3688, %v3762
        %v3767 = vadd.f32 %v3689, %v3761
        %v3768 = vadd.f32 %v3690, %v3762
        %v3769 = vadd.f32 %v3691, %v3761
        %v3770 = vadd.f32 %v3692, %v3762
        %v3771 = vadd.f32 %v3693, %v3761
        %v3772 = vadd.f32 %v3694, %v3762
        %v3773 = vadd.f32 %v3695, %v3761
        %v3774 = vadd.f32 %v3696, %v3762
        %v3775 = vadd.f32 %v3697, %v3761
        %v3776 = vadd.f32 %v3698, %v3762
        %v3777 = vadd.f32 %v3699, %v3761
        %v3778 = vadd.f32 %v3700, %v3762
        %v3779 = vadd.f32 %v3701, %v3761
        %v3780 = vadd.f32 %v3702, %v3762
        %v3781 = vadd.f32 %v3703, %v3761
        %v3782 = vadd.f32 %v3704, %v3762
        %v3783 = vadd.f32 %v3705, %v3761
        %v3784 = vadd.f32 %v3706, %v3762
        %v3785 = vadd.f32 %v3707, %v3761
        %v3786 = vadd.f32 %v3708, %v3762
        %v3787 = vadd.f32 %v3709, %v3761
        %v3788 = vadd.f32 %v3710, %v3762
        %v3789 = vadd.f32 %v3711, %v3761
        %v3790 = vadd.f32 %v3712, %v3762
        %v3791 = vadd.f32 %v3713, %v3761
        %v3792 = vadd.f32 %v3714, %v3762
        %v3793 = vadd.f32 %v3715, %v3761
        %v3794 = vadd.f32 %v3716, %v3762
        %v3795 = vadd.f32 %v3717, %v3761
        %v3796 = vadd.f32 %v3718, %v3762
        %v3797 = vadd.f32 %v3719, %v3761
        %v3798 = vadd.f32 %v3720, %v3762
        %v3799 = vadd.f32 %v3721, %v3761
        %v3800 = vadd.f32 %v3722, %v3762
        %v3801 = vadd.f32 %v3723, %v3761
        %v3802 = vadd.f32 %v3724, %v3762
        %v3803 = vadd.f32 %v3725, %v3761
        %v3804 = vadd.f32 %v3726, %v3762
        %v3805 = vadd.f32 %v3727, %v3761
        %v3806 = vadd.f32 %v3728, %v3762
        %v3807 = vadd.f32 %v3729, %v3761
        %v3808 = vadd.f32 %v3730, %v3762
        %v3809 = vadd.f32 %v3731, %v3761
        %v3810 = vadd.f32 %v3732, %v3762
        %v3811 = vadd.f32 %v3733, %v3761
        %v3812 = vadd.f32 %v3734, %v3762
        %v3813 = vadd.f32 %v3735, %v3761
        %v3814 = vadd.f32 %v3736, %v3762
        %v3815 = vadd.f32 %v3737, %v3761
        %v3816 = vadd.f32 %v3738, %v3762
        %v3817 = vadd.f32 %v3739, %v3761
        %v3818 = vadd.f32 %v3740, %v3762
        %v3819 = vadd.f32 %v3741, %v3761
        %v3820 = vadd.f32 %v3742, %v3762
        %v3821 = vadd.f32 %v3743, %v3761
        %v3822 = vadd.f32 %v3744, %v3762
        %v3823 = vadd.f32 %v3745, %v3761
        %v3824 = vadd.f32 %v3746, %v3762
        %v3825 = vadd.f32 %v3747, %v3761
        %v3826 = vadd.f32 %v3748, %v3762
        %v3827 = vadd.f32 %v3749, %v3761
        %v3828 = vadd.f32 %v3750, %v3762
        %v3829 = vadd.f32 %v3751, %v3761
        %v3830 = vadd.f32 %v3752, %v3762
        %v3831 = vadd.f32 %v3753, %v3761
        %v3832 = vadd.f32 %v3754, %v3762
        %v3833 = vadd.f32 %v3755, %v3761
        %v3834 = vadd.f32 %v3756, %v3762
        %v3835 = vadd.f32 %v3757, %v3761
        %v3836 = vadd.f32 %v3758, %v3762
        %v3837 = vsub.f32 0.0, %v3765
        %v3838 = vsub.f32 0.0, %v3766
        %v3839 = vsub.f32 0.0, %v3767
        %v3840 = vsub.f32 0.0, %v3768
        %v3841 = vsub.f32 0.0, %v3769
        %v3842 = vsub.f32 0.0, %v3770
        %v3843 = vsub.f32 0.0, %v3771
        %v3844 = vsub.f32 0.0, %v3772
        %v3845 = vsub.f32 0.0, %v3773
        %v3846 = vsub.f32 0.0, %v3774
        %v3847 = vsub.f32 0.0, %v3775
        %v3848 = vsub.f32 0.0, %v3776
        %v3849 = vsub.f32 0.0, %v3777
        %v3850 = vsub.f32 0.0, %v3778
        %v3851 = vsub.f32 0.0, %v3779
        %v3852 = vsub.f32 0.0, %v3780
        %v3853 = vsub.f32 0.0, %v3781
        %v3854 = vsub.f32 0.0, %v3782
        %v3855 = vsub.f32 0.0, %v3783
        %v3856 = vsub.f32 0.0, %v3784
        %v3857 = vsub.f32 0.0, %v3785
        %v3858 = vsub.f32 0.0, %v3786
        %v3859 = vsub.f32 0.0, %v3787
        %v3860 = vsub.f32 0.0, %v3788
        %v3861 = vsub.f32 0.0, %v3789
        %v3862 = vsub.f32 0.0, %v3790
        %v3863 = vsub.f32 0.0, %v3791
        %v3864 = vsub.f32 0.0, %v3792
        %v3865 = vsub.f32 0.0, %v3793
        %v3866 = vsub.f32 0.0, %v3794
        %v3867 = vsub.f32 0.0, %v3795
        %v3868 = vsub.f32 0.0, %v3796
        %v3869 = vsub.f32 0.0, %v3797
        %v3870 = vsub.f32 0.0, %v3798
        %v3871 = vsub.f32 0.0, %v3799
        %v3872 = vsub.f32 0.0, %v3800
        %v3873 = vsub.f32 0.0, %v3801
        %v3874 = vsub.f32 0.0, %v3802
        %v3875 = vsub.f32 0.0, %v3803
        %v3876 = vsub.f32 0.0, %v3804
        %v3877 = vsub.f32 0.0, %v3805
        %v3878 = vsub.f32 0.0, %v3806
        %v3879 = vsub.f32 0.0, %v3807
        %v3880 = vsub.f32 0.0, %v3808
        %v3881 = vsub.f32 0.0, %v3809
        %v3882 = vsub.f32 0.0, %v3810
        %v3883 = vsub.f32 0.0, %v3811
        %v3884 = vsub.f32 0.0, %v3812
        %v3885 = vsub.f32 0.0, %v3813
        %v3886 = vsub.f32 0.0, %v3814
        %v3887 = vsub.f32 0.0, %v3815
        %v3888 = vsub.f32 0.0, %v3816
        %v3889 = vsub.f32 0.0, %v3817
        %v3890 = vsub.f32 0.0, %v3818
        %v3891 = vsub.f32 0.0, %v3819
        %v3892 = vsub.f32 0.0, %v3820
        %v3893 = vsub.f32 0.0, %v3821
        %v3894 = vsub.f32 0.0, %v3822
        %v3895 = vsub.f32 0.0, %v3823
        %v3896 = vsub.f32 0.0, %v3824
        %v3897 = vsub.f32 0.0, %v3825
        %v3898 = vsub.f32 0.0, %v3826
        %v3899 = vsub.f32 0.0, %v3827
        %v3900 = vsub.f32 0.0, %v3828
        %v3901 = vsub.f32 0.0, %v3829
        %v3902 = vsub.f32 0.0, %v3830
        %v3903 = vsub.f32 0.0, %v3831
        %v3904 = vsub.f32 0.0, %v3832
        %v3905 = vsub.f32 0.0, %v3833
        %v3906 = vsub.f32 0.0, %v3834
        %v3907 = vsub.f32 0.0, %v3835
        %v3908 = vsub.f32 0.0, %v3836
        %v3909 = vmul.f32 %v3837, 1.442695
        %v3910 = vpow.pop %v3909
        %v3911 = vmul.f32 %v3838, 1.442695
        %v3912 = vpow.pop %v3911
        %v3913 = vmul.f32 %v3839, 1.442695
        %v3914 = vpow.pop %v3913
        %v3915 = vmul.f32 %v3840, 1.442695
        %v3916 = vpow.pop %v3915
        %v3917 = vmul.f32 %v3841, 1.442695
        %v3918 = vpow.pop %v3917
        %v3919 = vmul.f32 %v3842, 1.442695
        %v3920 = vpow.pop %v3919
        %v3921 = vmul.f32 %v3843, 1.442695
        %v3922 = vpow.pop %v3921
        %v3923 = vmul.f32 %v3844, 1.442695
        %v3924 = vpow.pop %v3923
        %v3925 = vmul.f32 %v3845, 1.442695
        %v3926 = vpow.pop %v3925
        %v3927 = vmul.f32 %v3846, 1.442695
        %v3928 = vpow.pop %v3927
        %v3929 = vmul.f32 %v3847, 1.442695
        %v3930 = vpow.pop %v3929
        %v3931 = vmul.f32 %v3848, 1.442695
        %v3932 = vpow.pop %v3931
        %v3933 = vmul.f32 %v3849, 1.442695
        %v3934 = vpow.pop %v3933
        %v3935 = vmul.f32 %v3850, 1.442695
        %v3936 = vpow.pop %v3935
        %v3937 = vmul.f32 %v3851, 1.442695
        %v3938 = vpow.pop %v3937
        %v3939 = vmul.f32 %v3852, 1.442695
        %v3940 = vpow.pop %v3939
        %v3941 = vmul.f32 %v3853, 1.442695
        %v3942 = vpow.pop %v3941
        %v3943 = vmul.f32 %v3854, 1.442695
        %v3944 = vpow.pop %v3943
        %v3945 = vmul.f32 %v3855, 1.442695
        %v3946 = vpow.pop %v3945
        %v3947 = vmul.f32 %v3856, 1.442695
        %v3948 = vpow.pop %v3947
        %v3949 = vmul.f32 %v3857, 1.442695
        %v3950 = vpow.pop %v3949
        %v3951 = vmul.f32 %v3858, 1.442695
        %v3952 = vpow.pop %v3951
        %v3953 = vmul.f32 %v3859, 1.442695
        %v3954 = vpow.pop %v3953
        %v3955 = vmul.f32 %v3860, 1.442695
        %v3956 = vpow.pop %v3955
        %v3957 = vmul.f32 %v3861, 1.442695
        %v3958 = vpow.pop %v3957
        %v3959 = vmul.f32 %v3862, 1.442695
        %v3960 = vpow.pop %v3959
        %v3961 = vmul.f32 %v3863, 1.442695
        %v3962 = vpow.pop %v3961
        %v3963 = vmul.f32 %v3864, 1.442695
        %v3964 = vpow.pop %v3963
        %v3965 = vmul.f32 %v3865, 1.442695
        %v3966 = vpow.pop %v3965
        %v3967 = vmul.f32 %v3866, 1.442695
        %v3968 = vpow.pop %v3967
        %v3969 = vmul.f32 %v3867, 1.442695
        %v3970 = vpow.pop %v3969
        %v3971 = vmul.f32 %v3868, 1.442695
        %v3972 = vpow.pop %v3971
        %v3973 = vmul.f32 %v3869, 1.442695
        %v3974 = vpow.pop %v3973
        %v3975 = vmul.f32 %v3870, 1.442695
        %v3976 = vpow.pop %v3975
        %v3977 = vmul.f32 %v3871, 1.442695
        %v3978 = vpow.pop %v3977
        %v3979 = vmul.f32 %v3872, 1.442695
        %v3980 = vpow.pop %v3979
        %v3981 = vmul.f32 %v3873, 1.442695
        %v3982 = vpow.pop %v3981
        %v3983 = vmul.f32 %v3874, 1.442695
        %v3984 = vpow.pop %v3983
        %v3985 = vmul.f32 %v3875, 1.442695
        %v3986 = vpow.pop %v3985
        %v3987 = vmul.f32 %v3876, 1.442695
        %v3988 = vpow.pop %v3987
        %v3989 = vmul.f32 %v3877, 1.442695
        %v3990 = vpow.pop %v3989
        %v3991 = vmul.f32 %v3878, 1.442695
        %v3992 = vpow.pop %v3991
        %v3993 = vmul.f32 %v3879, 1.442695
        %v3994 = vpow.pop %v3993
        %v3995 = vmul.f32 %v3880, 1.442695
        %v3996 = vpow.pop %v3995
        %v3997 = vmul.f32 %v3881, 1.442695
        %v3998 = vpow.pop %v3997
        %v3999 = vmul.f32 %v3882, 1.442695
        %v4000 = vpow.pop %v3999
        %v4001 = vmul.f32 %v3883, 1.442695
        %v4002 = vpow.pop %v4001
        %v4003 = vmul.f32 %v3884, 1.442695
        %v4004 = vpow.pop %v4003
        %v4005 = vmul.f32 %v3885, 1.442695
        %v4006 = vpow.pop %v4005
        %v4007 = vmul.f32 %v3886, 1.442695
        %v4008 = vpow.pop %v4007
        %v4009 = vmul.f32 %v3887, 1.442695
        %v4010 = vpow.pop %v4009
        %v4011 = vmul.f32 %v3888, 1.442695
        %v4012 = vpow.pop %v4011
        %v4013 = vmul.f32 %v3889, 1.442695
        %v4014 = vpow.pop %v4013
        %v4015 = vmul.f32 %v3890, 1.442695
        %v4016 = vpow.pop %v4015
        %v4017 = vmul.f32 %v3891, 1.442695
        %v4018 = vpow.pop %v4017
        %v4019 = vmul.f32 %v3892, 1.442695
        %v4020 = vpow.pop %v4019
        %v4021 = vmul.f32 %v3893, 1.442695
        %v4022 = vpow.pop %v4021
        %v4023 = vmul.f32 %v3894, 1.442695
        %v4024 = vpow.pop %v4023
        %v4025 = vmul.f32 %v3895, 1.442695
        %v4026 = vpow.pop %v4025
        %v4027 = vmul.f32 %v3896, 1.442695
        %v4028 = vpow.pop %v4027
        %v4029 = vmul.f32 %v3897, 1.442695
        %v4030 = vpow.pop %v4029
        %v4031 = vmul.f32 %v3898, 1.442695
        %v4032 = vpow.pop %v4031
        %v4033 = vmul.f32 %v3899, 1.442695
        %v4034 = vpow.pop %v4033
        %v4035 = vmul.f32 %v3900, 1.442695
        %v4036 = vpow.pop %v4035
        %v4037 = vmul.f32 %v3901, 1.442695
        %v4038 = vpow.pop %v4037
        %v4039 = vmul.f32 %v3902, 1.442695
        %v4040 = vpow.pop %v4039
        %v4041 = vmul.f32 %v3903, 1.442695
        %v4042 = vpow.pop %v4041
        %v4043 = vmul.f32 %v3904, 1.442695
        %v4044 = vpow.pop %v4043
        %v4045 = vmul.f32 %v3905, 1.442695
        %v4046 = vpow.pop %v4045
        %v4047 = vmul.f32 %v3906, 1.442695
        %v4048 = vpow.pop %v4047
        %v4049 = vmul.f32 %v3907, 1.442695
        %v4050 = vpow.pop %v4049
        %v4051 = vmul.f32 %v3908, 1.442695
        %v4052 = vpow.pop %v4051
        %v4053 = vadd.f32 %v3910, 1.0
        %v4054 = vadd.f32 %v3912, 1.0
        %v4055 = vadd.f32 %v3914, 1.0
        %v4056 = vadd.f32 %v3916, 1.0
        %v4057 = vadd.f32 %v3918, 1.0
        %v4058 = vadd.f32 %v3920, 1.0
        %v4059 = vadd.f32 %v3922, 1.0
        %v4060 = vadd.f32 %v3924, 1.0
        %v4061 = vadd.f32 %v3926, 1.0
        %v4062 = vadd.f32 %v3928, 1.0
        %v4063 = vadd.f32 %v3930, 1.0
        %v4064 = vadd.f32 %v3932, 1.0
        %v4065 = vadd.f32 %v3934, 1.0
        %v4066 = vadd.f32 %v3936, 1.0
        %v4067 = vadd.f32 %v3938, 1.0
        %v4068 = vadd.f32 %v3940, 1.0
        %v4069 = vadd.f32 %v3942, 1.0
        %v4070 = vadd.f32 %v3944, 1.0
        %v4071 = vadd.f32 %v3946, 1.0
        %v4072 = vadd.f32 %v3948, 1.0
        %v4073 = vadd.f32 %v3950, 1.0
        %v4074 = vadd.f32 %v3952, 1.0
        %v4075 = vadd.f32 %v3954, 1.0
        %v4076 = vadd.f32 %v3956, 1.0
        %v4077 = vadd.f32 %v3958, 1.0
        %v4078 = vadd.f32 %v3960, 1.0
        %v4079 = vadd.f32 %v3962, 1.0
        %v4080 = vadd.f32 %v3964, 1.0
        %v4081 = vadd.f32 %v3966, 1.0
        %v4082 = vadd.f32 %v3968, 1.0
        %v4083 = vadd.f32 %v3970, 1.0
        %v4084 = vadd.f32 %v3972, 1.0
        %v4085 = vadd.f32 %v3974, 1.0
        %v4086 = vadd.f32 %v3976, 1.0
        %v4087 = vadd.f32 %v3978, 1.0
        %v4088 = vadd.f32 %v3980, 1.0
        %v4089 = vadd.f32 %v3982, 1.0
        %v4090 = vadd.f32 %v3984, 1.0
        %v4091 = vadd.f32 %v3986, 1.0
        %v4092 = vadd.f32 %v3988, 1.0
        %v4093 = vadd.f32 %v3990, 1.0
        %v4094 = vadd.f32 %v3992, 1.0
        %v4095 = vadd.f32 %v3994, 1.0
        %v4096 = vadd.f32 %v3996, 1.0
        %v4097 = vadd.f32 %v3998, 1.0
        %v4098 = vadd.f32 %v4000, 1.0
        %v4099 = vadd.f32 %v4002, 1.0
        %v4100 = vadd.f32 %v4004, 1.0
        %v4101 = vadd.f32 %v4006, 1.0
        %v4102 = vadd.f32 %v4008, 1.0
        %v4103 = vadd.f32 %v4010, 1.0
        %v4104 = vadd.f32 %v4012, 1.0
        %v4105 = vadd.f32 %v4014, 1.0
        %v4106 = vadd.f32 %v4016, 1.0
        %v4107 = vadd.f32 %v4018, 1.0
        %v4108 = vadd.f32 %v4020, 1.0
        %v4109 = vadd.f32 %v4022, 1.0
        %v4110 = vadd.f32 %v4024, 1.0
        %v4111 = vadd.f32 %v4026, 1.0
        %v4112 = vadd.f32 %v4028, 1.0
        %v4113 = vadd.f32 %v4030, 1.0
        %v4114 = vadd.f32 %v4032, 1.0
        %v4115 = vadd.f32 %v4034, 1.0
        %v4116 = vadd.f32 %v4036, 1.0
        %v4117 = vadd.f32 %v4038, 1.0
        %v4118 = vadd.f32 %v4040, 1.0
        %v4119 = vadd.f32 %v4042, 1.0
        %v4120 = vadd.f32 %v4044, 1.0
        %v4121 = vadd.f32 %v4046, 1.0
        %v4122 = vadd.f32 %v4048, 1.0
        %v4123 = vadd.f32 %v4050, 1.0
        %v4124 = vadd.f32 %v4052, 1.0
        %v4125 = vrcp.pop %v4053
        %v4126 = vmul.f32 %v4053, %v4125
        %v4127 = vsub.f32 1.0, %v4126
        %v4128 = vmul.f32 %v4125, %v4127
        %v4129 = vadd.f32 %v4125, %v4128
        %vm4130 = vweird.f32 %v4053
        %vm4131 = vweird.f32 %v4125
        %vm4132 = vmor %vm4130, %vm4131
        %v4133 = vsel %vm4132, %v4125, %v4129
        %v4134 = vand.u32 2147483647, %v4053
        %vm4135 = vcmp.eq.f32.partialorder %v4134, 8.507059e+37
        %v4136 = vand.u32 %v4053, 2147483648
        %v4137 = vor.u32 1.1754944e-38, %v4136
        %v4138 = vsel %vm4135, %v4137, %v4133
        %v4139 = vrcp.pop %v4054
        %v4140 = vmul.f32 %v4054, %v4139
        %v4141 = vsub.f32 1.0, %v4140
        %v4142 = vmul.f32 %v4139, %v4141
        %v4143 = vadd.f32 %v4139, %v4142
        %vm4144 = vweird.f32 %v4054
        %vm4145 = vweird.f32 %v4139
        %vm4146 = vmor %vm4144, %vm4145
        %v4147 = vsel %vm4146, %v4139, %v4143
        %v4148 = vand.u32 2147483647, %v4054
        %vm4149 = vcmp.eq.f32.partialorder %v4148, 8.507059e+37
        %v4150 = vand.u32 %v4054, 2147483648
        %v4151 = vor.u32 1.1754944e-38, %v4150
        %v4152 = vsel %vm4149, %v4151, %v4147
        %v4153 = vrcp.pop %v4055
        %v4154 = vmul.f32 %v4055, %v4153
        %v4155 = vsub.f32 1.0, %v4154
        %v4156 = vmul.f32 %v4153, %v4155
        %v4157 = vadd.f32 %v4153, %v4156
        %vm4158 = vweird.f32 %v4055
        %vm4159 = vweird.f32 %v4153
        %vm4160 = vmor %vm4158, %vm4159
        %v4161 = vsel %vm4160, %v4153, %v4157
        %v4162 = vand.u32 2147483647, %v4055
        %vm4163 = vcmp.eq.f32.partialorder %v4162, 8.507059e+37
        %v4164 = vand.u32 %v4055, 2147483648
        %v4165 = vor.u32 1.1754944e-38, %v4164
        %v4166 = vsel %vm4163, %v4165, %v4161
        %v4167 = vrcp.pop %v4056
        %v4168 = vmul.f32 %v4056, %v4167
        %v4169 = vsub.f32 1.0, %v4168
        %v4170 = vmul.f32 %v4167, %v4169
        %v4171 = vadd.f32 %v4167, %v4170
        %vm4172 = vweird.f32 %v4056
        %vm4173 = vweird.f32 %v4167
        %vm4174 = vmor %vm4172, %vm4173
        %v4175 = vsel %vm4174, %v4167, %v4171
        %v4176 = vand.u32 2147483647, %v4056
        %vm4177 = vcmp.eq.f32.partialorder %v4176, 8.507059e+37
        %v4178 = vand.u32 %v4056, 2147483648
        %v4179 = vor.u32 1.1754944e-38, %v4178
        %v4180 = vsel %vm4177, %v4179, %v4175
        %v4181 = vrcp.pop %v4057
        %v4182 = vmul.f32 %v4057, %v4181
        %v4183 = vsub.f32 1.0, %v4182
        %v4184 = vmul.f32 %v4181, %v4183
        %v4185 = vadd.f32 %v4181, %v4184
        %vm4186 = vweird.f32 %v4057
        %vm4187 = vweird.f32 %v4181
        %vm4188 = vmor %vm4186, %vm4187
        %v4189 = vsel %vm4188, %v4181, %v4185
        %v4190 = vand.u32 2147483647, %v4057
        %vm4191 = vcmp.eq.f32.partialorder %v4190, 8.507059e+37
        %v4192 = vand.u32 %v4057, 2147483648
        %v4193 = vor.u32 1.1754944e-38, %v4192
        %v4194 = vsel %vm4191, %v4193, %v4189
        %v4195 = vrcp.pop %v4058
        %v4196 = vmul.f32 %v4058, %v4195
        %v4197 = vsub.f32 1.0, %v4196
        %v4198 = vmul.f32 %v4195, %v4197
        %v4199 = vadd.f32 %v4195, %v4198
        %vm4200 = vweird.f32 %v4058
        %vm4201 = vweird.f32 %v4195
        %vm4202 = vmor %vm4200, %vm4201
        %v4203 = vsel %vm4202, %v4195, %v4199
        %v4204 = vand.u32 2147483647, %v4058
        %vm4205 = vcmp.eq.f32.partialorder %v4204, 8.507059e+37
        %v4206 = vand.u32 %v4058, 2147483648
        %v4207 = vor.u32 1.1754944e-38, %v4206
        %v4208 = vsel %vm4205, %v4207, %v4203
        %v4209 = vrcp.pop %v4059
        %v4210 = vmul.f32 %v4059, %v4209
        %v4211 = vsub.f32 1.0, %v4210
        %v4212 = vmul.f32 %v4209, %v4211
        %v4213 = vadd.f32 %v4209, %v4212
        %vm4214 = vweird.f32 %v4059
        %vm4215 = vweird.f32 %v4209
        %vm4216 = vmor %vm4214, %vm4215
        %v4217 = vsel %vm4216, %v4209, %v4213
        %v4218 = vand.u32 2147483647, %v4059
        %vm4219 = vcmp.eq.f32.partialorder %v4218, 8.507059e+37
        %v4220 = vand.u32 %v4059, 2147483648
        %v4221 = vor.u32 1.1754944e-38, %v4220
        %v4222 = vsel %vm4219, %v4221, %v4217
        %v4223 = vrcp.pop %v4060
        %v4224 = vmul.f32 %v4060, %v4223
        %v4225 = vsub.f32 1.0, %v4224
        %v4226 = vmul.f32 %v4223, %v4225
        %v4227 = vadd.f32 %v4223, %v4226
        %vm4228 = vweird.f32 %v4060
        %vm4229 = vweird.f32 %v4223
        %vm4230 = vmor %vm4228, %vm4229
        %v4231 = vsel %vm4230, %v4223, %v4227
        %v4232 = vand.u32 2147483647, %v4060
        %vm4233 = vcmp.eq.f32.partialorder %v4232, 8.507059e+37
        %v4234 = vand.u32 %v4060, 2147483648
        %v4235 = vor.u32 1.1754944e-38, %v4234
        %v4236 = vsel %vm4233, %v4235, %v4231
        %v4237 = vrcp.pop %v4061
        %v4238 = vmul.f32 %v4061, %v4237
        %v4239 = vsub.f32 1.0, %v4238
        %v4240 = vmul.f32 %v4237, %v4239
        %v4241 = vadd.f32 %v4237, %v4240
        %vm4242 = vweird.f32 %v4061
        %vm4243 = vweird.f32 %v4237
        %vm4244 = vmor %vm4242, %vm4243
        %v4245 = vsel %vm4244, %v4237, %v4241
        %v4246 = vand.u32 2147483647, %v4061
        %vm4247 = vcmp.eq.f32.partialorder %v4246, 8.507059e+37
        %v4248 = vand.u32 %v4061, 2147483648
        %v4249 = vor.u32 1.1754944e-38, %v4248
        %v4250 = vsel %vm4247, %v4249, %v4245
        %v4251 = vrcp.pop %v4062
        %v4252 = vmul.f32 %v4062, %v4251
        %v4253 = vsub.f32 1.0, %v4252
        %v4254 = vmul.f32 %v4251, %v4253
        %v4255 = vadd.f32 %v4251, %v4254
        %vm4256 = vweird.f32 %v4062
        %vm4257 = vweird.f32 %v4251
        %vm4258 = vmor %vm4256, %vm4257
        %v4259 = vsel %vm4258, %v4251, %v4255
        %v4260 = vand.u32 2147483647, %v4062
        %vm4261 = vcmp.eq.f32.partialorder %v4260, 8.507059e+37
        %v4262 = vand.u32 %v4062, 2147483648
        %v4263 = vor.u32 1.1754944e-38, %v4262
        %v4264 = vsel %vm4261, %v4263, %v4259
        %v4265 = vrcp.pop %v4063
        %v4266 = vmul.f32 %v4063, %v4265
        %v4267 = vsub.f32 1.0, %v4266
        %v4268 = vmul.f32 %v4265, %v4267
        %v4269 = vadd.f32 %v4265, %v4268
        %vm4270 = vweird.f32 %v4063
        %vm4271 = vweird.f32 %v4265
        %vm4272 = vmor %vm4270, %vm4271
        %v4273 = vsel %vm4272, %v4265, %v4269
        %v4274 = vand.u32 2147483647, %v4063
        %vm4275 = vcmp.eq.f32.partialorder %v4274, 8.507059e+37
        %v4276 = vand.u32 %v4063, 2147483648
        %v4277 = vor.u32 1.1754944e-38, %v4276
        %v4278 = vsel %vm4275, %v4277, %v4273
        %v4279 = vrcp.pop %v4064
        %v4280 = vmul.f32 %v4064, %v4279
        %v4281 = vsub.f32 1.0, %v4280
        %v4282 = vmul.f32 %v4279, %v4281
        %v4283 = vadd.f32 %v4279, %v4282
        %vm4284 = vweird.f32 %v4064
        %vm4285 = vweird.f32 %v4279
        %vm4286 = vmor %vm4284, %vm4285
        %v4287 = vsel %vm4286, %v4279, %v4283
        %v4288 = vand.u32 2147483647, %v4064
        %vm4289 = vcmp.eq.f32.partialorder %v4288, 8.507059e+37
        %v4290 = vand.u32 %v4064, 2147483648
        %v4291 = vor.u32 1.1754944e-38, %v4290
        %v4292 = vsel %vm4289, %v4291, %v4287
        %v4293 = vrcp.pop %v4065
        %v4294 = vmul.f32 %v4065, %v4293
        %v4295 = vsub.f32 1.0, %v4294
        %v4296 = vmul.f32 %v4293, %v4295
        %v4297 = vadd.f32 %v4293, %v4296
        %vm4298 = vweird.f32 %v4065
        %vm4299 = vweird.f32 %v4293
        %vm4300 = vmor %vm4298, %vm4299
        %v4301 = vsel %vm4300, %v4293, %v4297
        %v4302 = vand.u32 2147483647, %v4065
        %vm4303 = vcmp.eq.f32.partialorder %v4302, 8.507059e+37
        %v4304 = vand.u32 %v4065, 2147483648
        %v4305 = vor.u32 1.1754944e-38, %v4304
        %v4306 = vsel %vm4303, %v4305, %v4301
        %v4307 = vrcp.pop %v4066
        %v4308 = vmul.f32 %v4066, %v4307
        %v4309 = vsub.f32 1.0, %v4308
        %v4310 = vmul.f32 %v4307, %v4309
        %v4311 = vadd.f32 %v4307, %v4310
        %vm4312 = vweird.f32 %v4066
        %vm4313 = vweird.f32 %v4307
        %vm4314 = vmor %vm4312, %vm4313
        %v4315 = vsel %vm4314, %v4307, %v4311
        %v4316 = vand.u32 2147483647, %v4066
        %vm4317 = vcmp.eq.f32.partialorder %v4316, 8.507059e+37
        %v4318 = vand.u32 %v4066, 2147483648
        %v4319 = vor.u32 1.1754944e-38, %v4318
        %v4320 = vsel %vm4317, %v4319, %v4315
        %v4321 = vrcp.pop %v4067
        %v4322 = vmul.f32 %v4067, %v4321
        %v4323 = vsub.f32 1.0, %v4322
        %v4324 = vmul.f32 %v4321, %v4323
        %v4325 = vadd.f32 %v4321, %v4324
        %vm4326 = vweird.f32 %v4067
        %vm4327 = vweird.f32 %v4321
        %vm4328 = vmor %vm4326, %vm4327
        %v4329 = vsel %vm4328, %v4321, %v4325
        %v4330 = vand.u32 2147483647, %v4067
        %vm4331 = vcmp.eq.f32.partialorder %v4330, 8.507059e+37
        %v4332 = vand.u32 %v4067, 2147483648
        %v4333 = vor.u32 1.1754944e-38, %v4332
        %v4334 = vsel %vm4331, %v4333, %v4329
        %v4335 = vrcp.pop %v4068
        %v4336 = vmul.f32 %v4068, %v4335
        %v4337 = vsub.f32 1.0, %v4336
        %v4338 = vmul.f32 %v4335, %v4337
        %v4339 = vadd.f32 %v4335, %v4338
        %vm4340 = vweird.f32 %v4068
        %vm4341 = vweird.f32 %v4335
        %vm4342 = vmor %vm4340, %vm4341
        %v4343 = vsel %vm4342, %v4335, %v4339
        %v4344 = vand.u32 2147483647, %v4068
        %vm4345 = vcmp.eq.f32.partialorder %v4344, 8.507059e+37
        %v4346 = vand.u32 %v4068, 2147483648
        %v4347 = vor.u32 1.1754944e-38, %v4346
        %v4348 = vsel %vm4345, %v4347, %v4343
        %v4349 = vrcp.pop %v4069
        %v4350 = vmul.f32 %v4069, %v4349
        %v4351 = vsub.f32 1.0, %v4350
        %v4352 = vmul.f32 %v4349, %v4351
        %v4353 = vadd.f32 %v4349, %v4352
        %vm4354 = vweird.f32 %v4069
        %vm4355 = vweird.f32 %v4349
        %vm4356 = vmor %vm4354, %vm4355
        %v4357 = vsel %vm4356, %v4349, %v4353
        %v4358 = vand.u32 2147483647, %v4069
        %vm4359 = vcmp.eq.f32.partialorder %v4358, 8.507059e+37
        %v4360 = vand.u32 %v4069, 2147483648
        %v4361 = vor.u32 1.1754944e-38, %v4360
        %v4362 = vsel %vm4359, %v4361, %v4357
        %v4363 = vrcp.pop %v4070
        %v4364 = vmul.f32 %v4070, %v4363
        %v4365 = vsub.f32 1.0, %v4364
        %v4366 = vmul.f32 %v4363, %v4365
        %v4367 = vadd.f32 %v4363, %v4366
        %vm4368 = vweird.f32 %v4070
        %vm4369 = vweird.f32 %v4363
        %vm4370 = vmor %vm4368, %vm4369
        %v4371 = vsel %vm4370, %v4363, %v4367
        %v4372 = vand.u32 2147483647, %v4070
        %vm4373 = vcmp.eq.f32.partialorder %v4372, 8.507059e+37
        %v4374 = vand.u32 %v4070, 2147483648
        %v4375 = vor.u32 1.1754944e-38, %v4374
        %v4376 = vsel %vm4373, %v4375, %v4371
        %v4377 = vrcp.pop %v4071
        %v4378 = vmul.f32 %v4071, %v4377
        %v4379 = vsub.f32 1.0, %v4378
        %v4380 = vmul.f32 %v4377, %v4379
        %v4381 = vadd.f32 %v4377, %v4380
        %vm4382 = vweird.f32 %v4071
        %vm4383 = vweird.f32 %v4377
        %vm4384 = vmor %vm4382, %vm4383
        %v4385 = vsel %vm4384, %v4377, %v4381
        %v4386 = vand.u32 2147483647, %v4071
        %vm4387 = vcmp.eq.f32.partialorder %v4386, 8.507059e+37
        %v4388 = vand.u32 %v4071, 2147483648
        %v4389 = vor.u32 1.1754944e-38, %v4388
        %v4390 = vsel %vm4387, %v4389, %v4385
        %v4391 = vrcp.pop %v4072
        %v4392 = vmul.f32 %v4072, %v4391
        %v4393 = vsub.f32 1.0, %v4392
        %v4394 = vmul.f32 %v4391, %v4393
        %v4395 = vadd.f32 %v4391, %v4394
        %vm4396 = vweird.f32 %v4072
        %vm4397 = vweird.f32 %v4391
        %vm4398 = vmor %vm4396, %vm4397
        %v4399 = vsel %vm4398, %v4391, %v4395
        %v4400 = vand.u32 2147483647, %v4072
        %vm4401 = vcmp.eq.f32.partialorder %v4400, 8.507059e+37
        %v4402 = vand.u32 %v4072, 2147483648
        %v4403 = vor.u32 1.1754944e-38, %v4402
        %v4404 = vsel %vm4401, %v4403, %v4399
        %v4405 = vrcp.pop %v4073
        %v4406 = vmul.f32 %v4073, %v4405
        %v4407 = vsub.f32 1.0, %v4406
        %v4408 = vmul.f32 %v4405, %v4407
        %v4409 = vadd.f32 %v4405, %v4408
        %vm4410 = vweird.f32 %v4073
        %vm4411 = vweird.f32 %v4405
        %vm4412 = vmor %vm4410, %vm4411
        %v4413 = vsel %vm4412, %v4405, %v4409
        %v4414 = vand.u32 2147483647, %v4073
        %vm4415 = vcmp.eq.f32.partialorder %v4414, 8.507059e+37
        %v4416 = vand.u32 %v4073, 2147483648
        %v4417 = vor.u32 1.1754944e-38, %v4416
        %v4418 = vsel %vm4415, %v4417, %v4413
        %v4419 = vrcp.pop %v4074
        %v4420 = vmul.f32 %v4074, %v4419
        %v4421 = vsub.f32 1.0, %v4420
        %v4422 = vmul.f32 %v4419, %v4421
        %v4423 = vadd.f32 %v4419, %v4422
        %vm4424 = vweird.f32 %v4074
        %vm4425 = vweird.f32 %v4419
        %vm4426 = vmor %vm4424, %vm4425
        %v4427 = vsel %vm4426, %v4419, %v4423
        %v4428 = vand.u32 2147483647, %v4074
        %vm4429 = vcmp.eq.f32.partialorder %v4428, 8.507059e+37
        %v4430 = vand.u32 %v4074, 2147483648
        %v4431 = vor.u32 1.1754944e-38, %v4430
        %v4432 = vsel %vm4429, %v4431, %v4427
        %v4433 = vrcp.pop %v4075
        %v4434 = vmul.f32 %v4075, %v4433
        %v4435 = vsub.f32 1.0, %v4434
        %v4436 = vmul.f32 %v4433, %v4435
        %v4437 = vadd.f32 %v4433, %v4436
        %vm4438 = vweird.f32 %v4075
        %vm4439 = vweird.f32 %v4433
        %vm4440 = vmor %vm4438, %vm4439
        %v4441 = vsel %vm4440, %v4433, %v4437
        %v4442 = vand.u32 2147483647, %v4075
        %vm4443 = vcmp.eq.f32.partialorder %v4442, 8.507059e+37
        %v4444 = vand.u32 %v4075, 2147483648
        %v4445 = vor.u32 1.1754944e-38, %v4444
        %v4446 = vsel %vm4443, %v4445, %v4441
        %v4447 = vrcp.pop %v4076
        %v4448 = vmul.f32 %v4076, %v4447
        %v4449 = vsub.f32 1.0, %v4448
        %v4450 = vmul.f32 %v4447, %v4449
        %v4451 = vadd.f32 %v4447, %v4450
        %vm4452 = vweird.f32 %v4076
        %vm4453 = vweird.f32 %v4447
        %vm4454 = vmor %vm4452, %vm4453
        %v4455 = vsel %vm4454, %v4447, %v4451
        %v4456 = vand.u32 2147483647, %v4076
        %vm4457 = vcmp.eq.f32.partialorder %v4456, 8.507059e+37
        %v4458 = vand.u32 %v4076, 2147483648
        %v4459 = vor.u32 1.1754944e-38, %v4458
        %v4460 = vsel %vm4457, %v4459, %v4455
        %v4461 = vrcp.pop %v4077
        %v4462 = vmul.f32 %v4077, %v4461
        %v4463 = vsub.f32 1.0, %v4462
        %v4464 = vmul.f32 %v4461, %v4463
        %v4465 = vadd.f32 %v4461, %v4464
        %vm4466 = vweird.f32 %v4077
        %vm4467 = vweird.f32 %v4461
        %vm4468 = vmor %vm4466, %vm4467
        %v4469 = vsel %vm4468, %v4461, %v4465
        %v4470 = vand.u32 2147483647, %v4077
        %vm4471 = vcmp.eq.f32.partialorder %v4470, 8.507059e+37
        %v4472 = vand.u32 %v4077, 2147483648
        %v4473 = vor.u32 1.1754944e-38, %v4472
        %v4474 = vsel %vm4471, %v4473, %v4469
        %v4475 = vrcp.pop %v4078
        %v4476 = vmul.f32 %v4078, %v4475
        %v4477 = vsub.f32 1.0, %v4476
        %v4478 = vmul.f32 %v4475, %v4477
        %v4479 = vadd.f32 %v4475, %v4478
        %vm4480 = vweird.f32 %v4078
        %vm4481 = vweird.f32 %v4475
        %vm4482 = vmor %vm4480, %vm4481
        %v4483 = vsel %vm4482, %v4475, %v4479
        %v4484 = vand.u32 2147483647, %v4078
        %vm4485 = vcmp.eq.f32.partialorder %v4484, 8.507059e+37
        %v4486 = vand.u32 %v4078, 2147483648
        %v4487 = vor.u32 1.1754944e-38, %v4486
        %v4488 = vsel %vm4485, %v4487, %v4483
        %v4489 = vrcp.pop %v4079
        %v4490 = vmul.f32 %v4079, %v4489
        %v4491 = vsub.f32 1.0, %v4490
        %v4492 = vmul.f32 %v4489, %v4491
        %v4493 = vadd.f32 %v4489, %v4492
        %vm4494 = vweird.f32 %v4079
        %vm4495 = vweird.f32 %v4489
        %vm4496 = vmor %vm4494, %vm4495
        %v4497 = vsel %vm4496, %v4489, %v4493
        %v4498 = vand.u32 2147483647, %v4079
        %vm4499 = vcmp.eq.f32.partialorder %v4498, 8.507059e+37
        %v4500 = vand.u32 %v4079, 2147483648
        %v4501 = vor.u32 1.1754944e-38, %v4500
        %v4502 = vsel %vm4499, %v4501, %v4497
        %v4503 = vrcp.pop %v4080
        %v4504 = vmul.f32 %v4080, %v4503
        %v4505 = vsub.f32 1.0, %v4504
        %v4506 = vmul.f32 %v4503, %v4505
        %v4507 = vadd.f32 %v4503, %v4506
        %vm4508 = vweird.f32 %v4080
        %vm4509 = vweird.f32 %v4503
        %vm4510 = vmor %vm4508, %vm4509
        %v4511 = vsel %vm4510, %v4503, %v4507
        %v4512 = vand.u32 2147483647, %v4080
        %vm4513 = vcmp.eq.f32.partialorder %v4512, 8.507059e+37
        %v4514 = vand.u32 %v4080, 2147483648
        %v4515 = vor.u32 1.1754944e-38, %v4514
        %v4516 = vsel %vm4513, %v4515, %v4511
        %v4517 = vrcp.pop %v4081
        %v4518 = vmul.f32 %v4081, %v4517
        %v4519 = vsub.f32 1.0, %v4518
        %v4520 = vmul.f32 %v4517, %v4519
        %v4521 = vadd.f32 %v4517, %v4520
        %vm4522 = vweird.f32 %v4081
        %vm4523 = vweird.f32 %v4517
        %vm4524 = vmor %vm4522, %vm4523
        %v4525 = vsel %vm4524, %v4517, %v4521
        %v4526 = vand.u32 2147483647, %v4081
        %vm4527 = vcmp.eq.f32.partialorder %v4526, 8.507059e+37
        %v4528 = vand.u32 %v4081, 2147483648
        %v4529 = vor.u32 1.1754944e-38, %v4528
        %v4530 = vsel %vm4527, %v4529, %v4525
        %v4531 = vrcp.pop %v4082
        %v4532 = vmul.f32 %v4082, %v4531
        %v4533 = vsub.f32 1.0, %v4532
        %v4534 = vmul.f32 %v4531, %v4533
        %v4535 = vadd.f32 %v4531, %v4534
        %vm4536 = vweird.f32 %v4082
        %vm4537 = vweird.f32 %v4531
        %vm4538 = vmor %vm4536, %vm4537
        %v4539 = vsel %vm4538, %v4531, %v4535
        %v4540 = vand.u32 2147483647, %v4082
        %vm4541 = vcmp.eq.f32.partialorder %v4540, 8.507059e+37
        %v4542 = vand.u32 %v4082, 2147483648
        %v4543 = vor.u32 1.1754944e-38, %v4542
        %v4544 = vsel %vm4541, %v4543, %v4539
        %v4545 = vrcp.pop %v4083
        %v4546 = vmul.f32 %v4083, %v4545
        %v4547 = vsub.f32 1.0, %v4546
        %v4548 = vmul.f32 %v4545, %v4547
        %v4549 = vadd.f32 %v4545, %v4548
        %vm4550 = vweird.f32 %v4083
        %vm4551 = vweird.f32 %v4545
        %vm4552 = vmor %vm4550, %vm4551
        %v4553 = vsel %vm4552, %v4545, %v4549
        %v4554 = vand.u32 2147483647, %v4083
        %vm4555 = vcmp.eq.f32.partialorder %v4554, 8.507059e+37
        %v4556 = vand.u32 %v4083, 2147483648
        %v4557 = vor.u32 1.1754944e-38, %v4556
        %v4558 = vsel %vm4555, %v4557, %v4553
        %v4559 = vrcp.pop %v4084
        %v4560 = vmul.f32 %v4084, %v4559
        %v4561 = vsub.f32 1.0, %v4560
        %v4562 = vmul.f32 %v4559, %v4561
        %v4563 = vadd.f32 %v4559, %v4562
        %vm4564 = vweird.f32 %v4084
        %vm4565 = vweird.f32 %v4559
        %vm4566 = vmor %vm4564, %vm4565
        %v4567 = vsel %vm4566, %v4559, %v4563
        %v4568 = vand.u32 2147483647, %v4084
        %vm4569 = vcmp.eq.f32.partialorder %v4568, 8.507059e+37
        %v4570 = vand.u32 %v4084, 2147483648
        %v4571 = vor.u32 1.1754944e-38, %v4570
        %v4572 = vsel %vm4569, %v4571, %v4567
        %v4573 = vrcp.pop %v4085
        %v4574 = vmul.f32 %v4085, %v4573
        %v4575 = vsub.f32 1.0, %v4574
        %v4576 = vmul.f32 %v4573, %v4575
        %v4577 = vadd.f32 %v4573, %v4576
        %vm4578 = vweird.f32 %v4085
        %vm4579 = vweird.f32 %v4573
        %vm4580 = vmor %vm4578, %vm4579
        %v4581 = vsel %vm4580, %v4573, %v4577
        %v4582 = vand.u32 2147483647, %v4085
        %vm4583 = vcmp.eq.f32.partialorder %v4582, 8.507059e+37
        %v4584 = vand.u32 %v4085, 2147483648
        %v4585 = vor.u32 1.1754944e-38, %v4584
        %v4586 = vsel %vm4583, %v4585, %v4581
        %v4587 = vrcp.pop %v4086
        %v4588 = vmul.f32 %v4086, %v4587
        %v4589 = vsub.f32 1.0, %v4588
        %v4590 = vmul.f32 %v4587, %v4589
        %v4591 = vadd.f32 %v4587, %v4590
        %vm4592 = vweird.f32 %v4086
        %vm4593 = vweird.f32 %v4587
        %vm4594 = vmor %vm4592, %vm4593
        %v4595 = vsel %vm4594, %v4587, %v4591
        %v4596 = vand.u32 2147483647, %v4086
        %vm4597 = vcmp.eq.f32.partialorder %v4596, 8.507059e+37
        %v4598 = vand.u32 %v4086, 2147483648
        %v4599 = vor.u32 1.1754944e-38, %v4598
        %v4600 = vsel %vm4597, %v4599, %v4595
        %v4601 = vrcp.pop %v4087
        %v4602 = vmul.f32 %v4087, %v4601
        %v4603 = vsub.f32 1.0, %v4602
        %v4604 = vmul.f32 %v4601, %v4603
        %v4605 = vadd.f32 %v4601, %v4604
        %vm4606 = vweird.f32 %v4087
        %vm4607 = vweird.f32 %v4601
        %vm4608 = vmor %vm4606, %vm4607
        %v4609 = vsel %vm4608, %v4601, %v4605
        %v4610 = vand.u32 2147483647, %v4087
        %vm4611 = vcmp.eq.f32.partialorder %v4610, 8.507059e+37
        %v4612 = vand.u32 %v4087, 2147483648
        %v4613 = vor.u32 1.1754944e-38, %v4612
        %v4614 = vsel %vm4611, %v4613, %v4609
        %v4615 = vrcp.pop %v4088
        %v4616 = vmul.f32 %v4088, %v4615
        %v4617 = vsub.f32 1.0, %v4616
        %v4618 = vmul.f32 %v4615, %v4617
        %v4619 = vadd.f32 %v4615, %v4618
        %vm4620 = vweird.f32 %v4088
        %vm4621 = vweird.f32 %v4615
        %vm4622 = vmor %vm4620, %vm4621
        %v4623 = vsel %vm4622, %v4615, %v4619
        %v4624 = vand.u32 2147483647, %v4088
        %vm4625 = vcmp.eq.f32.partialorder %v4624, 8.507059e+37
        %v4626 = vand.u32 %v4088, 2147483648
        %v4627 = vor.u32 1.1754944e-38, %v4626
        %v4628 = vsel %vm4625, %v4627, %v4623
        %v4629 = vrcp.pop %v4089
        %v4630 = vmul.f32 %v4089, %v4629
        %v4631 = vsub.f32 1.0, %v4630
        %v4632 = vmul.f32 %v4629, %v4631
        %v4633 = vadd.f32 %v4629, %v4632
        %vm4634 = vweird.f32 %v4089
        %vm4635 = vweird.f32 %v4629
        %vm4636 = vmor %vm4634, %vm4635
        %v4637 = vsel %vm4636, %v4629, %v4633
        %v4638 = vand.u32 2147483647, %v4089
        %vm4639 = vcmp.eq.f32.partialorder %v4638, 8.507059e+37
        %v4640 = vand.u32 %v4089, 2147483648
        %v4641 = vor.u32 1.1754944e-38, %v4640
        %v4642 = vsel %vm4639, %v4641, %v4637
        %v4643 = vrcp.pop %v4090
        %v4644 = vmul.f32 %v4090, %v4643
        %v4645 = vsub.f32 1.0, %v4644
        %v4646 = vmul.f32 %v4643, %v4645
        %v4647 = vadd.f32 %v4643, %v4646
        %vm4648 = vweird.f32 %v4090
        %vm4649 = vweird.f32 %v4643
        %vm4650 = vmor %vm4648, %vm4649
        %v4651 = vsel %vm4650, %v4643, %v4647
        %v4652 = vand.u32 2147483647, %v4090
        %vm4653 = vcmp.eq.f32.partialorder %v4652, 8.507059e+37
        %v4654 = vand.u32 %v4090, 2147483648
        %v4655 = vor.u32 1.1754944e-38, %v4654
        %v4656 = vsel %vm4653, %v4655, %v4651
        %v4657 = vrcp.pop %v4091
        %v4658 = vmul.f32 %v4091, %v4657
        %v4659 = vsub.f32 1.0, %v4658
        %v4660 = vmul.f32 %v4657, %v4659
        %v4661 = vadd.f32 %v4657, %v4660
        %vm4662 = vweird.f32 %v4091
        %vm4663 = vweird.f32 %v4657
        %vm4664 = vmor %vm4662, %vm4663
        %v4665 = vsel %vm4664, %v4657, %v4661
        %v4666 = vand.u32 2147483647, %v4091
        %vm4667 = vcmp.eq.f32.partialorder %v4666, 8.507059e+37
        %v4668 = vand.u32 %v4091, 2147483648
        %v4669 = vor.u32 1.1754944e-38, %v4668
        %v4670 = vsel %vm4667, %v4669, %v4665
        %v4671 = vrcp.pop %v4092
        %v4672 = vmul.f32 %v4092, %v4671
        %v4673 = vsub.f32 1.0, %v4672
        %v4674 = vmul.f32 %v4671, %v4673
        %v4675 = vadd.f32 %v4671, %v4674
        %vm4676 = vweird.f32 %v4092
        %vm4677 = vweird.f32 %v4671
        %vm4678 = vmor %vm4676, %vm4677
        %v4679 = vsel %vm4678, %v4671, %v4675
        %v4680 = vand.u32 2147483647, %v4092
        %vm4681 = vcmp.eq.f32.partialorder %v4680, 8.507059e+37
        %v4682 = vand.u32 %v4092, 2147483648
        %v4683 = vor.u32 1.1754944e-38, %v4682
        %v4684 = vsel %vm4681, %v4683, %v4679
        %v4685 = vrcp.pop %v4093
        %v4686 = vmul.f32 %v4093, %v4685
        %v4687 = vsub.f32 1.0, %v4686
        %v4688 = vmul.f32 %v4685, %v4687
        %v4689 = vadd.f32 %v4685, %v4688
        %vm4690 = vweird.f32 %v4093
        %vm4691 = vweird.f32 %v4685
        %vm4692 = vmor %vm4690, %vm4691
        %v4693 = vsel %vm4692, %v4685, %v4689
        %v4694 = vand.u32 2147483647, %v4093
        %vm4695 = vcmp.eq.f32.partialorder %v4694, 8.507059e+37
        %v4696 = vand.u32 %v4093, 2147483648
        %v4697 = vor.u32 1.1754944e-38, %v4696
        %v4698 = vsel %vm4695, %v4697, %v4693
        %v4699 = vrcp.pop %v4094
        %v4700 = vmul.f32 %v4094, %v4699
        %v4701 = vsub.f32 1.0, %v4700
        %v4702 = vmul.f32 %v4699, %v4701
        %v4703 = vadd.f32 %v4699, %v4702
        %vm4704 = vweird.f32 %v4094
        %vm4705 = vweird.f32 %v4699
        %vm4706 = vmor %vm4704, %vm4705
        %v4707 = vsel %vm4706, %v4699, %v4703
        %v4708 = vand.u32 2147483647, %v4094
        %vm4709 = vcmp.eq.f32.partialorder %v4708, 8.507059e+37
        %v4710 = vand.u32 %v4094, 2147483648
        %v4711 = vor.u32 1.1754944e-38, %v4710
        %v4712 = vsel %vm4709, %v4711, %v4707
        %v4713 = vrcp.pop %v4095
        %v4714 = vmul.f32 %v4095, %v4713
        %v4715 = vsub.f32 1.0, %v4714
        %v4716 = vmul.f32 %v4713, %v4715
        %v4717 = vadd.f32 %v4713, %v4716
        %vm4718 = vweird.f32 %v4095
        %vm4719 = vweird.f32 %v4713
        %vm4720 = vmor %vm4718, %vm4719
        %v4721 = vsel %vm4720, %v4713, %v4717
        %v4722 = vand.u32 2147483647, %v4095
        %vm4723 = vcmp.eq.f32.partialorder %v4722, 8.507059e+37
        %v4724 = vand.u32 %v4095, 2147483648
        %v4725 = vor.u32 1.1754944e-38, %v4724
        %v4726 = vsel %vm4723, %v4725, %v4721
        %v4727 = vrcp.pop %v4096
        %v4728 = vmul.f32 %v4096, %v4727
        %v4729 = vsub.f32 1.0, %v4728
        %v4730 = vmul.f32 %v4727, %v4729
        %v4731 = vadd.f32 %v4727, %v4730
        %vm4732 = vweird.f32 %v4096
        %vm4733 = vweird.f32 %v4727
        %vm4734 = vmor %vm4732, %vm4733
        %v4735 = vsel %vm4734, %v4727, %v4731
        %v4736 = vand.u32 2147483647, %v4096
        %vm4737 = vcmp.eq.f32.partialorder %v4736, 8.507059e+37
        %v4738 = vand.u32 %v4096, 2147483648
        %v4739 = vor.u32 1.1754944e-38, %v4738
        %v4740 = vsel %vm4737, %v4739, %v4735
        %v4741 = vrcp.pop %v4097
        %v4742 = vmul.f32 %v4097, %v4741
        %v4743 = vsub.f32 1.0, %v4742
        %v4744 = vmul.f32 %v4741, %v4743
        %v4745 = vadd.f32 %v4741, %v4744
        %vm4746 = vweird.f32 %v4097
        %vm4747 = vweird.f32 %v4741
        %vm4748 = vmor %vm4746, %vm4747
        %v4749 = vsel %vm4748, %v4741, %v4745
        %v4750 = vand.u32 2147483647, %v4097
        %vm4751 = vcmp.eq.f32.partialorder %v4750, 8.507059e+37
        %v4752 = vand.u32 %v4097, 2147483648
        %v4753 = vor.u32 1.1754944e-38, %v4752
        %v4754 = vsel %vm4751, %v4753, %v4749
        %v4755 = vrcp.pop %v4098
        %v4756 = vmul.f32 %v4098, %v4755
        %v4757 = vsub.f32 1.0, %v4756
        %v4758 = vmul.f32 %v4755, %v4757
        %v4759 = vadd.f32 %v4755, %v4758
        %vm4760 = vweird.f32 %v4098
        %vm4761 = vweird.f32 %v4755
        %vm4762 = vmor %vm4760, %vm4761
        %v4763 = vsel %vm4762, %v4755, %v4759
        %v4764 = vand.u32 2147483647, %v4098
        %vm4765 = vcmp.eq.f32.partialorder %v4764, 8.507059e+37
        %v4766 = vand.u32 %v4098, 2147483648
        %v4767 = vor.u32 1.1754944e-38, %v4766
        %v4768 = vsel %vm4765, %v4767, %v4763
        %v4769 = vrcp.pop %v4099
        %v4770 = vmul.f32 %v4099, %v4769
        %v4771 = vsub.f32 1.0, %v4770
        %v4772 = vmul.f32 %v4769, %v4771
        %v4773 = vadd.f32 %v4769, %v4772
        %vm4774 = vweird.f32 %v4099
        %vm4775 = vweird.f32 %v4769
        %vm4776 = vmor %vm4774, %vm4775
        %v4777 = vsel %vm4776, %v4769, %v4773
        %v4778 = vand.u32 2147483647, %v4099
        %vm4779 = vcmp.eq.f32.partialorder %v4778, 8.507059e+37
        %v4780 = vand.u32 %v4099, 2147483648
        %v4781 = vor.u32 1.1754944e-38, %v4780
        %v4782 = vsel %vm4779, %v4781, %v4777
        %v4783 = vrcp.pop %v4100
        %v4784 = vmul.f32 %v4100, %v4783
        %v4785 = vsub.f32 1.0, %v4784
        %v4786 = vmul.f32 %v4783, %v4785
        %v4787 = vadd.f32 %v4783, %v4786
        %vm4788 = vweird.f32 %v4100
        %vm4789 = vweird.f32 %v4783
        %vm4790 = vmor %vm4788, %vm4789
        %v4791 = vsel %vm4790, %v4783, %v4787
        %v4792 = vand.u32 2147483647, %v4100
        %vm4793 = vcmp.eq.f32.partialorder %v4792, 8.507059e+37
        %v4794 = vand.u32 %v4100, 2147483648
        %v4795 = vor.u32 1.1754944e-38, %v4794
        %v4796 = vsel %vm4793, %v4795, %v4791
        %v4797 = vrcp.pop %v4101
        %v4798 = vmul.f32 %v4101, %v4797
        %v4799 = vsub.f32 1.0, %v4798
        %v4800 = vmul.f32 %v4797, %v4799
        %v4801 = vadd.f32 %v4797, %v4800
        %vm4802 = vweird.f32 %v4101
        %vm4803 = vweird.f32 %v4797
        %vm4804 = vmor %vm4802, %vm4803
        %v4805 = vsel %vm4804, %v4797, %v4801
        %v4806 = vand.u32 2147483647, %v4101
        %vm4807 = vcmp.eq.f32.partialorder %v4806, 8.507059e+37
        %v4808 = vand.u32 %v4101, 2147483648
        %v4809 = vor.u32 1.1754944e-38, %v4808
        %v4810 = vsel %vm4807, %v4809, %v4805
        %v4811 = vrcp.pop %v4102
        %v4812 = vmul.f32 %v4102, %v4811
        %v4813 = vsub.f32 1.0, %v4812
        %v4814 = vmul.f32 %v4811, %v4813
        %v4815 = vadd.f32 %v4811, %v4814
        %vm4816 = vweird.f32 %v4102
        %vm4817 = vweird.f32 %v4811
        %vm4818 = vmor %vm4816, %vm4817
        %v4819 = vsel %vm4818, %v4811, %v4815
        %v4820 = vand.u32 2147483647, %v4102
        %vm4821 = vcmp.eq.f32.partialorder %v4820, 8.507059e+37
        %v4822 = vand.u32 %v4102, 2147483648
        %v4823 = vor.u32 1.1754944e-38, %v4822
        %v4824 = vsel %vm4821, %v4823, %v4819
        %v4825 = vrcp.pop %v4103
        %v4826 = vmul.f32 %v4103, %v4825
        %v4827 = vsub.f32 1.0, %v4826
        %v4828 = vmul.f32 %v4825, %v4827
        %v4829 = vadd.f32 %v4825, %v4828
        %vm4830 = vweird.f32 %v4103
        %vm4831 = vweird.f32 %v4825
        %vm4832 = vmor %vm4830, %vm4831
        %v4833 = vsel %vm4832, %v4825, %v4829
        %v4834 = vand.u32 2147483647, %v4103
        %vm4835 = vcmp.eq.f32.partialorder %v4834, 8.507059e+37
        %v4836 = vand.u32 %v4103, 2147483648
        %v4837 = vor.u32 1.1754944e-38, %v4836
        %v4838 = vsel %vm4835, %v4837, %v4833
        %v4839 = vrcp.pop %v4104
        %v4840 = vmul.f32 %v4104, %v4839
        %v4841 = vsub.f32 1.0, %v4840
        %v4842 = vmul.f32 %v4839, %v4841
        %v4843 = vadd.f32 %v4839, %v4842
        %vm4844 = vweird.f32 %v4104
        %vm4845 = vweird.f32 %v4839
        %vm4846 = vmor %vm4844, %vm4845
        %v4847 = vsel %vm4846, %v4839, %v4843
        %v4848 = vand.u32 2147483647, %v4104
        %vm4849 = vcmp.eq.f32.partialorder %v4848, 8.507059e+37
        %v4850 = vand.u32 %v4104, 2147483648
        %v4851 = vor.u32 1.1754944e-38, %v4850
        %v4852 = vsel %vm4849, %v4851, %v4847
        %v4853 = vrcp.pop %v4105
        %v4854 = vmul.f32 %v4105, %v4853
        %v4855 = vsub.f32 1.0, %v4854
        %v4856 = vmul.f32 %v4853, %v4855
        %v4857 = vadd.f32 %v4853, %v4856
        %vm4858 = vweird.f32 %v4105
        %vm4859 = vweird.f32 %v4853
        %vm4860 = vmor %vm4858, %vm4859
        %v4861 = vsel %vm4860, %v4853, %v4857
        %v4862 = vand.u32 2147483647, %v4105
        %vm4863 = vcmp.eq.f32.partialorder %v4862, 8.507059e+37
        %v4864 = vand.u32 %v4105, 2147483648
        %v4865 = vor.u32 1.1754944e-38, %v4864
        %v4866 = vsel %vm4863, %v4865, %v4861
        %v4867 = vrcp.pop %v4106
        %v4868 = vmul.f32 %v4106, %v4867
        %v4869 = vsub.f32 1.0, %v4868
        %v4870 = vmul.f32 %v4867, %v4869
        %v4871 = vadd.f32 %v4867, %v4870
        %vm4872 = vweird.f32 %v4106
        %vm4873 = vweird.f32 %v4867
        %vm4874 = vmor %vm4872, %vm4873
        %v4875 = vsel %vm4874, %v4867, %v4871
        %v4876 = vand.u32 2147483647, %v4106
        %vm4877 = vcmp.eq.f32.partialorder %v4876, 8.507059e+37
        %v4878 = vand.u32 %v4106, 2147483648
        %v4879 = vor.u32 1.1754944e-38, %v4878
        %v4880 = vsel %vm4877, %v4879, %v4875
        %v4881 = vrcp.pop %v4107
        %v4882 = vmul.f32 %v4107, %v4881
        %v4883 = vsub.f32 1.0, %v4882
        %v4884 = vmul.f32 %v4881, %v4883
        %v4885 = vadd.f32 %v4881, %v4884
        %vm4886 = vweird.f32 %v4107
        %vm4887 = vweird.f32 %v4881
        %vm4888 = vmor %vm4886, %vm4887
        %v4889 = vsel %vm4888, %v4881, %v4885
        %v4890 = vand.u32 2147483647, %v4107
        %vm4891 = vcmp.eq.f32.partialorder %v4890, 8.507059e+37
        %v4892 = vand.u32 %v4107, 2147483648
        %v4893 = vor.u32 1.1754944e-38, %v4892
        %v4894 = vsel %vm4891, %v4893, %v4889
        %v4895 = vrcp.pop %v4108
        %v4896 = vmul.f32 %v4108, %v4895
        %v4897 = vsub.f32 1.0, %v4896
        %v4898 = vmul.f32 %v4895, %v4897
        %v4899 = vadd.f32 %v4895, %v4898
        %vm4900 = vweird.f32 %v4108
        %vm4901 = vweird.f32 %v4895
        %vm4902 = vmor %vm4900, %vm4901
        %v4903 = vsel %vm4902, %v4895, %v4899
        %v4904 = vand.u32 2147483647, %v4108
        %vm4905 = vcmp.eq.f32.partialorder %v4904, 8.507059e+37
        %v4906 = vand.u32 %v4108, 2147483648
        %v4907 = vor.u32 1.1754944e-38, %v4906
        %v4908 = vsel %vm4905, %v4907, %v4903
        %v4909 = vrcp.pop %v4109
        %v4910 = vmul.f32 %v4109, %v4909
        %v4911 = vsub.f32 1.0, %v4910
        %v4912 = vmul.f32 %v4909, %v4911
        %v4913 = vadd.f32 %v4909, %v4912
        %vm4914 = vweird.f32 %v4109
        %vm4915 = vweird.f32 %v4909
        %vm4916 = vmor %vm4914, %vm4915
        %v4917 = vsel %vm4916, %v4909, %v4913
        %v4918 = vand.u32 2147483647, %v4109
        %vm4919 = vcmp.eq.f32.partialorder %v4918, 8.507059e+37
        %v4920 = vand.u32 %v4109, 2147483648
        %v4921 = vor.u32 1.1754944e-38, %v4920
        %v4922 = vsel %vm4919, %v4921, %v4917
        %v4923 = vrcp.pop %v4110
        %v4924 = vmul.f32 %v4110, %v4923
        %v4925 = vsub.f32 1.0, %v4924
        %v4926 = vmul.f32 %v4923, %v4925
        %v4927 = vadd.f32 %v4923, %v4926
        %vm4928 = vweird.f32 %v4110
        %vm4929 = vweird.f32 %v4923
        %vm4930 = vmor %vm4928, %vm4929
        %v4931 = vsel %vm4930, %v4923, %v4927
        %v4932 = vand.u32 2147483647, %v4110
        %vm4933 = vcmp.eq.f32.partialorder %v4932, 8.507059e+37
        %v4934 = vand.u32 %v4110, 2147483648
        %v4935 = vor.u32 1.1754944e-38, %v4934
        %v4936 = vsel %vm4933, %v4935, %v4931
        %v4937 = vrcp.pop %v4111
        %v4938 = vmul.f32 %v4111, %v4937
        %v4939 = vsub.f32 1.0, %v4938
        %v4940 = vmul.f32 %v4937, %v4939
        %v4941 = vadd.f32 %v4937, %v4940
        %vm4942 = vweird.f32 %v4111
        %vm4943 = vweird.f32 %v4937
        %vm4944 = vmor %vm4942, %vm4943
        %v4945 = vsel %vm4944, %v4937, %v4941
        %v4946 = vand.u32 2147483647, %v4111
        %vm4947 = vcmp.eq.f32.partialorder %v4946, 8.507059e+37
        %v4948 = vand.u32 %v4111, 2147483648
        %v4949 = vor.u32 1.1754944e-38, %v4948
        %v4950 = vsel %vm4947, %v4949, %v4945
        %v4951 = vrcp.pop %v4112
        %v4952 = vmul.f32 %v4112, %v4951
        %v4953 = vsub.f32 1.0, %v4952
        %v4954 = vmul.f32 %v4951, %v4953
        %v4955 = vadd.f32 %v4951, %v4954
        %vm4956 = vweird.f32 %v4112
        %vm4957 = vweird.f32 %v4951
        %vm4958 = vmor %vm4956, %vm4957
        %v4959 = vsel %vm4958, %v4951, %v4955
        %v4960 = vand.u32 2147483647, %v4112
        %vm4961 = vcmp.eq.f32.partialorder %v4960, 8.507059e+37
        %v4962 = vand.u32 %v4112, 2147483648
        %v4963 = vor.u32 1.1754944e-38, %v4962
        %v4964 = vsel %vm4961, %v4963, %v4959
        %v4965 = vrcp.pop %v4113
        %v4966 = vmul.f32 %v4113, %v4965
        %v4967 = vsub.f32 1.0, %v4966
        %v4968 = vmul.f32 %v4965, %v4967
        %v4969 = vadd.f32 %v4965, %v4968
        %vm4970 = vweird.f32 %v4113
        %vm4971 = vweird.f32 %v4965
        %vm4972 = vmor %vm4970, %vm4971
        %v4973 = vsel %vm4972, %v4965, %v4969
        %v4974 = vand.u32 2147483647, %v4113
        %vm4975 = vcmp.eq.f32.partialorder %v4974, 8.507059e+37
        %v4976 = vand.u32 %v4113, 2147483648
        %v4977 = vor.u32 1.1754944e-38, %v4976
        %v4978 = vsel %vm4975, %v4977, %v4973
        %v4979 = vrcp.pop %v4114
        %v4980 = vmul.f32 %v4114, %v4979
        %v4981 = vsub.f32 1.0, %v4980
        %v4982 = vmul.f32 %v4979, %v4981
        %v4983 = vadd.f32 %v4979, %v4982
        %vm4984 = vweird.f32 %v4114
        %vm4985 = vweird.f32 %v4979
        %vm4986 = vmor %vm4984, %vm4985
        %v4987 = vsel %vm4986, %v4979, %v4983
        %v4988 = vand.u32 2147483647, %v4114
        %vm4989 = vcmp.eq.f32.partialorder %v4988, 8.507059e+37
        %v4990 = vand.u32 %v4114, 2147483648
        %v4991 = vor.u32 1.1754944e-38, %v4990
        %v4992 = vsel %vm4989, %v4991, %v4987
        %v4993 = vrcp.pop %v4115
        %v4994 = vmul.f32 %v4115, %v4993
        %v4995 = vsub.f32 1.0, %v4994
        %v4996 = vmul.f32 %v4993, %v4995
        %v4997 = vadd.f32 %v4993, %v4996
        %vm4998 = vweird.f32 %v4115
        %vm4999 = vweird.f32 %v4993
        %vm5000 = vmor %vm4998, %vm4999
        %v5001 = vsel %vm5000, %v4993, %v4997
        %v5002 = vand.u32 2147483647, %v4115
        %vm5003 = vcmp.eq.f32.partialorder %v5002, 8.507059e+37
        %v5004 = vand.u32 %v4115, 2147483648
        %v5005 = vor.u32 1.1754944e-38, %v5004
        %v5006 = vsel %vm5003, %v5005, %v5001
        %v5007 = vrcp.pop %v4116
        %v5008 = vmul.f32 %v4116, %v5007
        %v5009 = vsub.f32 1.0, %v5008
        %v5010 = vmul.f32 %v5007, %v5009
        %v5011 = vadd.f32 %v5007, %v5010
        %vm5012 = vweird.f32 %v4116
        %vm5013 = vweird.f32 %v5007
        %vm5014 = vmor %vm5012, %vm5013
        %v5015 = vsel %vm5014, %v5007, %v5011
        %v5016 = vand.u32 2147483647, %v4116
        %vm5017 = vcmp.eq.f32.partialorder %v5016, 8.507059e+37
        %v5018 = vand.u32 %v4116, 2147483648
        %v5019 = vor.u32 1.1754944e-38, %v5018
        %v5020 = vsel %vm5017, %v5019, %v5015
        %v5021 = vrcp.pop %v4117
        %v5022 = vmul.f32 %v4117, %v5021
        %v5023 = vsub.f32 1.0, %v5022
        %v5024 = vmul.f32 %v5021, %v5023
        %v5025 = vadd.f32 %v5021, %v5024
        %vm5026 = vweird.f32 %v4117
        %vm5027 = vweird.f32 %v5021
        %vm5028 = vmor %vm5026, %vm5027
        %v5029 = vsel %vm5028, %v5021, %v5025
        %v5030 = vand.u32 2147483647, %v4117
        %vm5031 = vcmp.eq.f32.partialorder %v5030, 8.507059e+37
        %v5032 = vand.u32 %v4117, 2147483648
        %v5033 = vor.u32 1.1754944e-38, %v5032
        %v5034 = vsel %vm5031, %v5033, %v5029
        %v5035 = vrcp.pop %v4118
        %v5036 = vmul.f32 %v4118, %v5035
        %v5037 = vsub.f32 1.0, %v5036
        %v5038 = vmul.f32 %v5035, %v5037
        %v5039 = vadd.f32 %v5035, %v5038
        %vm5040 = vweird.f32 %v4118
        %vm5041 = vweird.f32 %v5035
        %vm5042 = vmor %vm5040, %vm5041
        %v5043 = vsel %vm5042, %v5035, %v5039
        %v5044 = vand.u32 2147483647, %v4118
        %vm5045 = vcmp.eq.f32.partialorder %v5044, 8.507059e+37
        %v5046 = vand.u32 %v4118, 2147483648
        %v5047 = vor.u32 1.1754944e-38, %v5046
        %v5048 = vsel %vm5045, %v5047, %v5043
        %v5049 = vrcp.pop %v4119
        %v5050 = vmul.f32 %v4119, %v5049
        %v5051 = vsub.f32 1.0, %v5050
        %v5052 = vmul.f32 %v5049, %v5051
        %v5053 = vadd.f32 %v5049, %v5052
        %vm5054 = vweird.f32 %v4119
        %vm5055 = vweird.f32 %v5049
        %vm5056 = vmor %vm5054, %vm5055
        %v5057 = vsel %vm5056, %v5049, %v5053
        %v5058 = vand.u32 2147483647, %v4119
        %vm5059 = vcmp.eq.f32.partialorder %v5058, 8.507059e+37
        %v5060 = vand.u32 %v4119, 2147483648
        %v5061 = vor.u32 1.1754944e-38, %v5060
        %v5062 = vsel %vm5059, %v5061, %v5057
        %v5063 = vrcp.pop %v4120
        %v5064 = vmul.f32 %v4120, %v5063
        %v5065 = vsub.f32 1.0, %v5064
        %v5066 = vmul.f32 %v5063, %v5065
        %v5067 = vadd.f32 %v5063, %v5066
        %vm5068 = vweird.f32 %v4120
        %vm5069 = vweird.f32 %v5063
        %vm5070 = vmor %vm5068, %vm5069
        %v5071 = vsel %vm5070, %v5063, %v5067
        %v5072 = vand.u32 2147483647, %v4120
        %vm5073 = vcmp.eq.f32.partialorder %v5072, 8.507059e+37
        %v5074 = vand.u32 %v4120, 2147483648
        %v5075 = vor.u32 1.1754944e-38, %v5074
        %v5076 = vsel %vm5073, %v5075, %v5071
        %v5077 = vrcp.pop %v4121
        %v5078 = vmul.f32 %v4121, %v5077
        %v5079 = vsub.f32 1.0, %v5078
        %v5080 = vmul.f32 %v5077, %v5079
        %v5081 = vadd.f32 %v5077, %v5080
        %vm5082 = vweird.f32 %v4121
        %vm5083 = vweird.f32 %v5077
        %vm5084 = vmor %vm5082, %vm5083
        %v5085 = vsel %vm5084, %v5077, %v5081
        %v5086 = vand.u32 2147483647, %v4121
        %vm5087 = vcmp.eq.f32.partialorder %v5086, 8.507059e+37
        %v5088 = vand.u32 %v4121, 2147483648
        %v5089 = vor.u32 1.1754944e-38, %v5088
        %v5090 = vsel %vm5087, %v5089, %v5085
        %v5091 = vrcp.pop %v4122
        %v5092 = vmul.f32 %v4122, %v5091
        %v5093 = vsub.f32 1.0, %v5092
        %v5094 = vmul.f32 %v5091, %v5093
        %v5095 = vadd.f32 %v5091, %v5094
        %vm5096 = vweird.f32 %v4122
        %vm5097 = vweird.f32 %v5091
        %vm5098 = vmor %vm5096, %vm5097
        %v5099 = vsel %vm5098, %v5091, %v5095
        %v5100 = vand.u32 2147483647, %v4122
        %vm5101 = vcmp.eq.f32.partialorder %v5100, 8.507059e+37
        %v5102 = vand.u32 %v4122, 2147483648
        %v5103 = vor.u32 1.1754944e-38, %v5102
        %v5104 = vsel %vm5101, %v5103, %v5099
        %v5105 = vrcp.pop %v4123
        %v5106 = vmul.f32 %v4123, %v5105
        %v5107 = vsub.f32 1.0, %v5106
        %v5108 = vmul.f32 %v5105, %v5107
        %v5109 = vadd.f32 %v5105, %v5108
        %vm5110 = vweird.f32 %v4123
        %vm5111 = vweird.f32 %v5105
        %vm5112 = vmor %vm5110, %vm5111
        %v5113 = vsel %vm5112, %v5105, %v5109
        %v5114 = vand.u32 2147483647, %v4123
        %vm5115 = vcmp.eq.f32.partialorder %v5114, 8.507059e+37
        %v5116 = vand.u32 %v4123, 2147483648
        %v5117 = vor.u32 1.1754944e-38, %v5116
        %v5118 = vsel %vm5115, %v5117, %v5113
        %v5119 = vrcp.pop %v4124
        %v5120 = vmul.f32 %v4124, %v5119
        %v5121 = vsub.f32 1.0, %v5120
        %v5122 = vmul.f32 %v5119, %v5121
        %v5123 = vadd.f32 %v5119, %v5122
        %vm5124 = vweird.f32 %v4124
        %vm5125 = vweird.f32 %v5119
        %vm5126 = vmor %vm5124, %vm5125
        %v5127 = vsel %vm5126, %v5119, %v5123
        %v5128 = vand.u32 2147483647, %v4124
        %vm5129 = vcmp.eq.f32.partialorder %v5128, 8.507059e+37
        %v5130 = vand.u32 %v4124, 2147483648
        %v5131 = vor.u32 1.1754944e-38, %v5130
        %v5132 = vsel %vm5129, %v5131, %v5127
        %v5133 = vmul.f32 %v3765, %v4138
        %v5134 = vmul.f32 %v3766, %v4152
        %v5135 = vmul.f32 %v3767, %v4166
        %v5136 = vmul.f32 %v3768, %v4180
        %v5137 = vmul.f32 %v3769, %v4194
        %v5138 = vmul.f32 %v3770, %v4208
        %v5139 = vmul.f32 %v3771, %v4222
        %v5140 = vmul.f32 %v3772, %v4236
        %v5141 = vmul.f32 %v3773, %v4250
        %v5142 = vmul.f32 %v3774, %v4264
        %v5143 = vmul.f32 %v3775, %v4278
        %v5144 = vmul.f32 %v3776, %v4292
        %v5145 = vmul.f32 %v3777, %v4306
        %v5146 = vmul.f32 %v3778, %v4320
        %v5147 = vmul.f32 %v3779, %v4334
        %v5148 = vmul.f32 %v3780, %v4348
        %v5149 = vmul.f32 %v3781, %v4362
        %v5150 = vmul.f32 %v3782, %v4376
        %v5151 = vmul.f32 %v3783, %v4390
        %v5152 = vmul.f32 %v3784, %v4404
        %v5153 = vmul.f32 %v3785, %v4418
        %v5154 = vmul.f32 %v3786, %v4432
        %v5155 = vmul.f32 %v3787, %v4446
        %v5156 = vmul.f32 %v3788, %v4460
        %v5157 = vmul.f32 %v3789, %v4474
        %v5158 = vmul.f32 %v3790, %v4488
        %v5159 = vmul.f32 %v3791, %v4502
        %v5160 = vmul.f32 %v3792, %v4516
        %v5161 = vmul.f32 %v3793, %v4530
        %v5162 = vmul.f32 %v3794, %v4544
        %v5163 = vmul.f32 %v3795, %v4558
        %v5164 = vmul.f32 %v3796, %v4572
        %v5165 = vmul.f32 %v3797, %v4586
        %v5166 = vmul.f32 %v3798, %v4600
        %v5167 = vmul.f32 %v3799, %v4614
        %v5168 = vmul.f32 %v3800, %v4628
        %v5169 = vmul.f32 %v3801, %v4642
        %v5170 = vmul.f32 %v3802, %v4656
        %v5171 = vmul.f32 %v3803, %v4670
        %v5172 = vmul.f32 %v3804, %v4684
        %v5173 = vmul.f32 %v3805, %v4698
        %v5174 = vmul.f32 %v3806, %v4712
        %v5175 = vmul.f32 %v3807, %v4726
        %v5176 = vmul.f32 %v3808, %v4740
        %v5177 = vmul.f32 %v3809, %v4754
        %v5178 = vmul.f32 %v3810, %v4768
        %v5179 = vmul.f32 %v3811, %v4782
        %v5180 = vmul.f32 %v3812, %v4796
        %v5181 = vmul.f32 %v3813, %v4810
        %v5182 = vmul.f32 %v3814, %v4824
        %v5183 = vmul.f32 %v3815, %v4838
        %v5184 = vmul.f32 %v3816, %v4852
        %v5185 = vmul.f32 %v3817, %v4866
        %v5186 = vmul.f32 %v3818, %v4880
        %v5187 = vmul.f32 %v3819, %v4894
        %v5188 = vmul.f32 %v3820, %v4908
        %v5189 = vmul.f32 %v3821, %v4922
        %v5190 = vmul.f32 %v3822, %v4936
        %v5191 = vmul.f32 %v3823, %v4950
        %v5192 = vmul.f32 %v3824, %v4964
        %v5193 = vmul.f32 %v3825, %v4978
        %v5194 = vmul.f32 %v3826, %v4992
        %v5195 = vmul.f32 %v3827, %v5006
        %v5196 = vmul.f32 %v3828, %v5020
        %v5197 = vmul.f32 %v3829, %v5034
        %v5198 = vmul.f32 %v3830, %v5048
        %v5199 = vmul.f32 %v3831, %v5062
        %v5200 = vmul.f32 %v3832, %v5076
        %v5201 = vmul.f32 %v3833, %v5090
        %v5202 = vmul.f32 %v3834, %v5104
        %v5203 = vmul.f32 %v3835, %v5118
        %v5204 = vmul.f32 %v3836, %v5132
        %v5205 = vlaneseq
        %v5206 = vshrl.u32 %v5205, 7
        %v5207 = vadd.s32 %v5206, 8
        %v5208 = vadd.s32 %v5206, 16
        %v5209 = vadd.s32 %v5206, 24
        %v5210 = vadd.s32 %v5206, 32
        %v5211 = vadd.s32 %v5206, 40
        %v5212 = vadd.s32 %v5206, 48
        %v5213 = vadd.s32 %v5206, 56
        %v5214 = vadd.s32 %v5206, 64
        %v5215 = vadd.s32 %v5206, 72
        %v5216 = vadd.s32 %v5206, 80
        %v5217 = vadd.s32 %v5206, 88
        %v5218 = vadd.s32 %v5206, 96
        %v5219 = vadd.s32 %v5206, 104
        %v5220 = vadd.s32 %v5206, 112
        %v5221 = vadd.s32 %v5206, 120
        %v5222 = vadd.s32 %v5206, 128
        %v5223 = vadd.s32 %v5206, 136
        %v5224 = vadd.s32 %v5206, 144
        %v5225 = vadd.s32 %v5206, 152
        %v5226 = vadd.s32 %v5206, 160
        %v5227 = vadd.s32 %v5206, 168
        %v5228 = vadd.s32 %v5206, 176
        %v5229 = vadd.s32 %v5206, 184
        %v5230 = vadd.s32 %v5206, 192
        %v5231 = vadd.s32 %v5206, 200
        %v5232 = vadd.s32 %v5206, 208
        %v5233 = vadd.s32 %v5206, 216
        %v5234 = vadd.s32 %v5206, 224
        %v5235 = vadd.s32 %v5206, 232
        %v5236 = vadd.s32 %v5206, 240
        %v5237 = vadd.s32 %v5206, 248
        %v5238 = vadd.s32 %v5206, 256
        %v5239 = vadd.s32 %v5206, 264
        %v5240 = vadd.s32 %v5206, 272
        %v5241 = vadd.s32 %v5206, 280
        %vm5242 = vcmp.lt.s32.totalorder %v5206, 0
        %v5243 = vsub.s32 0, %v5206
        %v5244 = vsel %vm5242, %v5243, %v5206
        %v5245 = vand.u32 %v5244, 65535
        %v5246 = vshrl.u32 %v5244, 16
        %v5248 = vmul.u32 %v5245, 14564
        %v5249 = vmul.u32 %v5245, 58254
        %v5250 = vmul.u32 %v5246, 14564
        %v5251 = vmul.u32 %v5246, 58254
        %v5252 = vshll.u32 %v5249, 16
        %v5253 = vshrl.u32 %v5249, 16
        %v5254 = vshll.u32 %v5250, 16
        %v5255 = vshrl.u32 %v5250, 16
        %vm5256 = vc.u32 %v5248, %v5252
        %v5257 = vsel %vm5256, 1, 0
        %v5258 = vadd.s32 %v5248, %v5252
        %v5259 = vadd.s32 %v5251, %v5257
        %vm5260 = vc.u32 %v5258, %v5254
        %v5261 = vsel %vm5260, 1, 0
        %v5262 = vadd.s32 %v5258, %v5254
        %v5263 = vadd.s32 %v5259, %v5261
        %v5264 = vadd.s32 %v5263, %v5253
        %v5265 = vadd.s32 %v5264, %v5255
        %v5266 = vshrl.u32 %v5265, 4
        %v5267 = vmul.u32 %v5266, 18
        %v5268 = vsub.s32 %v5244, %v5267
        %v5269 = vsub.s32 0, %v5268
        %v5270 = vsel %vm5242, %v5269, %v5268
        %vm5271 = vcmp.lt.s32.totalorder %v5207, 0
        %v5272 = vsub.s32 0, %v5207
        %v5273 = vsel %vm5271, %v5272, %v5207
        %v5274 = vand.u32 %v5273, 65535
        %v5275 = vshrl.u32 %v5273, 16
        %v5277 = vmul.u32 %v5274, 14564
        %v5278 = vmul.u32 %v5274, 58254
        %v5279 = vmul.u32 %v5275, 14564
        %v5280 = vmul.u32 %v5275, 58254
        %v5281 = vshll.u32 %v5278, 16
        %v5282 = vshrl.u32 %v5278, 16
        %v5283 = vshll.u32 %v5279, 16
        %v5284 = vshrl.u32 %v5279, 16
        %vm5285 = vc.u32 %v5277, %v5281
        %v5286 = vsel %vm5285, 1, 0
        %v5287 = vadd.s32 %v5277, %v5281
        %v5288 = vadd.s32 %v5280, %v5286
        %vm5289 = vc.u32 %v5287, %v5283
        %v5290 = vsel %vm5289, 1, 0
        %v5291 = vadd.s32 %v5287, %v5283
        %v5292 = vadd.s32 %v5288, %v5290
        %v5293 = vadd.s32 %v5292, %v5282
        %v5294 = vadd.s32 %v5293, %v5284
        %v5295 = vshrl.u32 %v5294, 4
        %v5296 = vmul.u32 %v5295, 18
        %v5297 = vsub.s32 %v5273, %v5296
        %v5298 = vsub.s32 0, %v5297
        %v5299 = vsel %vm5271, %v5298, %v5297
        %vm5300 = vcmp.lt.s32.totalorder %v5208, 0
        %v5301 = vsub.s32 0, %v5208
        %v5302 = vsel %vm5300, %v5301, %v5208
        %v5303 = vand.u32 %v5302, 65535
        %v5304 = vshrl.u32 %v5302, 16
        %v5306 = vmul.u32 %v5303, 14564
        %v5307 = vmul.u32 %v5303, 58254
        %v5308 = vmul.u32 %v5304, 14564
        %v5309 = vmul.u32 %v5304, 58254
        %v5310 = vshll.u32 %v5307, 16
        %v5311 = vshrl.u32 %v5307, 16
        %v5312 = vshll.u32 %v5308, 16
        %v5313 = vshrl.u32 %v5308, 16
        %vm5314 = vc.u32 %v5306, %v5310
        %v5315 = vsel %vm5314, 1, 0
        %v5316 = vadd.s32 %v5306, %v5310
        %v5317 = vadd.s32 %v5309, %v5315
        %vm5318 = vc.u32 %v5316, %v5312
        %v5319 = vsel %vm5318, 1, 0
        %v5320 = vadd.s32 %v5316, %v5312
        %v5321 = vadd.s32 %v5317, %v5319
        %v5322 = vadd.s32 %v5321, %v5311
        %v5323 = vadd.s32 %v5322, %v5313
        %v5324 = vshrl.u32 %v5323, 4
        %v5325 = vmul.u32 %v5324, 18
        %v5326 = vsub.s32 %v5302, %v5325
        %v5327 = vsub.s32 0, %v5326
        %v5328 = vsel %vm5300, %v5327, %v5326
        %vm5329 = vcmp.lt.s32.totalorder %v5209, 0
        %v5330 = vsub.s32 0, %v5209
        %v5331 = vsel %vm5329, %v5330, %v5209
        %v5332 = vand.u32 %v5331, 65535
        %v5333 = vshrl.u32 %v5331, 16
        %v5335 = vmul.u32 %v5332, 14564
        %v5336 = vmul.u32 %v5332, 58254
        %v5337 = vmul.u32 %v5333, 14564
        %v5338 = vmul.u32 %v5333, 58254
        %v5339 = vshll.u32 %v5336, 16
        %v5340 = vshrl.u32 %v5336, 16
        %v5341 = vshll.u32 %v5337, 16
        %v5342 = vshrl.u32 %v5337, 16
        %vm5343 = vc.u32 %v5335, %v5339
        %v5344 = vsel %vm5343, 1, 0
        %v5345 = vadd.s32 %v5335, %v5339
        %v5346 = vadd.s32 %v5338, %v5344
        %vm5347 = vc.u32 %v5345, %v5341
        %v5348 = vsel %vm5347, 1, 0
        %v5349 = vadd.s32 %v5345, %v5341
        %v5350 = vadd.s32 %v5346, %v5348
        %v5351 = vadd.s32 %v5350, %v5340
        %v5352 = vadd.s32 %v5351, %v5342
        %v5353 = vshrl.u32 %v5352, 4
        %v5354 = vmul.u32 %v5353, 18
        %v5355 = vsub.s32 %v5331, %v5354
        %v5356 = vsub.s32 0, %v5355
        %v5357 = vsel %vm5329, %v5356, %v5355
        %vm5358 = vcmp.lt.s32.totalorder %v5210, 0
        %v5359 = vsub.s32 0, %v5210
        %v5360 = vsel %vm5358, %v5359, %v5210
        %v5361 = vand.u32 %v5360, 65535
        %v5362 = vshrl.u32 %v5360, 16
        %v5364 = vmul.u32 %v5361, 14564
        %v5365 = vmul.u32 %v5361, 58254
        %v5366 = vmul.u32 %v5362, 14564
        %v5367 = vmul.u32 %v5362, 58254
        %v5368 = vshll.u32 %v5365, 16
        %v5369 = vshrl.u32 %v5365, 16
        %v5370 = vshll.u32 %v5366, 16
        %v5371 = vshrl.u32 %v5366, 16
        %vm5372 = vc.u32 %v5364, %v5368
        %v5373 = vsel %vm5372, 1, 0
        %v5374 = vadd.s32 %v5364, %v5368
        %v5375 = vadd.s32 %v5367, %v5373
        %vm5376 = vc.u32 %v5374, %v5370
        %v5377 = vsel %vm5376, 1, 0
        %v5378 = vadd.s32 %v5374, %v5370
        %v5379 = vadd.s32 %v5375, %v5377
        %v5380 = vadd.s32 %v5379, %v5369
        %v5381 = vadd.s32 %v5380, %v5371
        %v5382 = vshrl.u32 %v5381, 4
        %v5383 = vmul.u32 %v5382, 18
        %v5384 = vsub.s32 %v5360, %v5383
        %v5385 = vsub.s32 0, %v5384
        %v5386 = vsel %vm5358, %v5385, %v5384
        %vm5387 = vcmp.lt.s32.totalorder %v5211, 0
        %v5388 = vsub.s32 0, %v5211
        %v5389 = vsel %vm5387, %v5388, %v5211
        %v5390 = vand.u32 %v5389, 65535
        %v5391 = vshrl.u32 %v5389, 16
        %v5393 = vmul.u32 %v5390, 14564
        %v5394 = vmul.u32 %v5390, 58254
        %v5395 = vmul.u32 %v5391, 14564
        %v5396 = vmul.u32 %v5391, 58254
        %v5397 = vshll.u32 %v5394, 16
        %v5398 = vshrl.u32 %v5394, 16
        %v5399 = vshll.u32 %v5395, 16
        %v5400 = vshrl.u32 %v5395, 16
        %vm5401 = vc.u32 %v5393, %v5397
        %v5402 = vsel %vm5401, 1, 0
        %v5403 = vadd.s32 %v5393, %v5397
        %v5404 = vadd.s32 %v5396, %v5402
        %vm5405 = vc.u32 %v5403, %v5399
        %v5406 = vsel %vm5405, 1, 0
        %v5407 = vadd.s32 %v5403, %v5399
        %v5408 = vadd.s32 %v5404, %v5406
        %v5409 = vadd.s32 %v5408, %v5398
        %v5410 = vadd.s32 %v5409, %v5400
        %v5411 = vshrl.u32 %v5410, 4
        %v5412 = vmul.u32 %v5411, 18
        %v5413 = vsub.s32 %v5389, %v5412
        %v5414 = vsub.s32 0, %v5413
        %v5415 = vsel %vm5387, %v5414, %v5413
        %vm5416 = vcmp.lt.s32.totalorder %v5212, 0
        %v5417 = vsub.s32 0, %v5212
        %v5418 = vsel %vm5416, %v5417, %v5212
        %v5419 = vand.u32 %v5418, 65535
        %v5420 = vshrl.u32 %v5418, 16
        %v5422 = vmul.u32 %v5419, 14564
        %v5423 = vmul.u32 %v5419, 58254
        %v5424 = vmul.u32 %v5420, 14564
        %v5425 = vmul.u32 %v5420, 58254
        %v5426 = vshll.u32 %v5423, 16
        %v5427 = vshrl.u32 %v5423, 16
        %v5428 = vshll.u32 %v5424, 16
        %v5429 = vshrl.u32 %v5424, 16
        %vm5430 = vc.u32 %v5422, %v5426
        %v5431 = vsel %vm5430, 1, 0
        %v5432 = vadd.s32 %v5422, %v5426
        %v5433 = vadd.s32 %v5425, %v5431
        %vm5434 = vc.u32 %v5432, %v5428
        %v5435 = vsel %vm5434, 1, 0
        %v5436 = vadd.s32 %v5432, %v5428
        %v5437 = vadd.s32 %v5433, %v5435
        %v5438 = vadd.s32 %v5437, %v5427
        %v5439 = vadd.s32 %v5438, %v5429
        %v5440 = vshrl.u32 %v5439, 4
        %v5441 = vmul.u32 %v5440, 18
        %v5442 = vsub.s32 %v5418, %v5441
        %v5443 = vsub.s32 0, %v5442
        %v5444 = vsel %vm5416, %v5443, %v5442
        %vm5445 = vcmp.lt.s32.totalorder %v5213, 0
        %v5446 = vsub.s32 0, %v5213
        %v5447 = vsel %vm5445, %v5446, %v5213
        %v5448 = vand.u32 %v5447, 65535
        %v5449 = vshrl.u32 %v5447, 16
        %v5451 = vmul.u32 %v5448, 14564
        %v5452 = vmul.u32 %v5448, 58254
        %v5453 = vmul.u32 %v5449, 14564
        %v5454 = vmul.u32 %v5449, 58254
        %v5455 = vshll.u32 %v5452, 16
        %v5456 = vshrl.u32 %v5452, 16
        %v5457 = vshll.u32 %v5453, 16
        %v5458 = vshrl.u32 %v5453, 16
        %vm5459 = vc.u32 %v5451, %v5455
        %v5460 = vsel %vm5459, 1, 0
        %v5461 = vadd.s32 %v5451, %v5455
        %v5462 = vadd.s32 %v5454, %v5460
        %vm5463 = vc.u32 %v5461, %v5457
        %v5464 = vsel %vm5463, 1, 0
        %v5465 = vadd.s32 %v5461, %v5457
        %v5466 = vadd.s32 %v5462, %v5464
        %v5467 = vadd.s32 %v5466, %v5456
        %v5468 = vadd.s32 %v5467, %v5458
        %v5469 = vshrl.u32 %v5468, 4
        %v5470 = vmul.u32 %v5469, 18
        %v5471 = vsub.s32 %v5447, %v5470
        %v5472 = vsub.s32 0, %v5471
        %v5473 = vsel %vm5445, %v5472, %v5471
        %vm5474 = vcmp.lt.s32.totalorder %v5214, 0
        %v5475 = vsub.s32 0, %v5214
        %v5476 = vsel %vm5474, %v5475, %v5214
        %v5477 = vand.u32 %v5476, 65535
        %v5478 = vshrl.u32 %v5476, 16
        %v5480 = vmul.u32 %v5477, 14564
        %v5481 = vmul.u32 %v5477, 58254
        %v5482 = vmul.u32 %v5478, 14564
        %v5483 = vmul.u32 %v5478, 58254
        %v5484 = vshll.u32 %v5481, 16
        %v5485 = vshrl.u32 %v5481, 16
        %v5486 = vshll.u32 %v5482, 16
        %v5487 = vshrl.u32 %v5482, 16
        %vm5488 = vc.u32 %v5480, %v5484
        %v5489 = vsel %vm5488, 1, 0
        %v5490 = vadd.s32 %v5480, %v5484
        %v5491 = vadd.s32 %v5483, %v5489
        %vm5492 = vc.u32 %v5490, %v5486
        %v5493 = vsel %vm5492, 1, 0
        %v5494 = vadd.s32 %v5490, %v5486
        %v5495 = vadd.s32 %v5491, %v5493
        %v5496 = vadd.s32 %v5495, %v5485
        %v5497 = vadd.s32 %v5496, %v5487
        %v5498 = vshrl.u32 %v5497, 4
        %v5499 = vmul.u32 %v5498, 18
        %v5500 = vsub.s32 %v5476, %v5499
        %v5501 = vsub.s32 0, %v5500
        %v5502 = vsel %vm5474, %v5501, %v5500
        %vm5503 = vcmp.lt.s32.totalorder %v5215, 0
        %v5504 = vsub.s32 0, %v5215
        %v5505 = vsel %vm5503, %v5504, %v5215
        %v5506 = vand.u32 %v5505, 65535
        %v5507 = vshrl.u32 %v5505, 16
        %v5509 = vmul.u32 %v5506, 14564
        %v5510 = vmul.u32 %v5506, 58254
        %v5511 = vmul.u32 %v5507, 14564
        %v5512 = vmul.u32 %v5507, 58254
        %v5513 = vshll.u32 %v5510, 16
        %v5514 = vshrl.u32 %v5510, 16
        %v5515 = vshll.u32 %v5511, 16
        %v5516 = vshrl.u32 %v5511, 16
        %vm5517 = vc.u32 %v5509, %v5513
        %v5518 = vsel %vm5517, 1, 0
        %v5519 = vadd.s32 %v5509, %v5513
        %v5520 = vadd.s32 %v5512, %v5518
        %vm5521 = vc.u32 %v5519, %v5515
        %v5522 = vsel %vm5521, 1, 0
        %v5523 = vadd.s32 %v5519, %v5515
        %v5524 = vadd.s32 %v5520, %v5522
        %v5525 = vadd.s32 %v5524, %v5514
        %v5526 = vadd.s32 %v5525, %v5516
        %v5527 = vshrl.u32 %v5526, 4
        %v5528 = vmul.u32 %v5527, 18
        %v5529 = vsub.s32 %v5505, %v5528
        %v5530 = vsub.s32 0, %v5529
        %v5531 = vsel %vm5503, %v5530, %v5529
        %vm5532 = vcmp.lt.s32.totalorder %v5216, 0
        %v5533 = vsub.s32 0, %v5216
        %v5534 = vsel %vm5532, %v5533, %v5216
        %v5535 = vand.u32 %v5534, 65535
        %v5536 = vshrl.u32 %v5534, 16
        %v5538 = vmul.u32 %v5535, 14564
        %v5539 = vmul.u32 %v5535, 58254
        %v5540 = vmul.u32 %v5536, 14564
        %v5541 = vmul.u32 %v5536, 58254
        %v5542 = vshll.u32 %v5539, 16
        %v5543 = vshrl.u32 %v5539, 16
        %v5544 = vshll.u32 %v5540, 16
        %v5545 = vshrl.u32 %v5540, 16
        %vm5546 = vc.u32 %v5538, %v5542
        %v5547 = vsel %vm5546, 1, 0
        %v5548 = vadd.s32 %v5538, %v5542
        %v5549 = vadd.s32 %v5541, %v5547
        %vm5550 = vc.u32 %v5548, %v5544
        %v5551 = vsel %vm5550, 1, 0
        %v5552 = vadd.s32 %v5548, %v5544
        %v5553 = vadd.s32 %v5549, %v5551
        %v5554 = vadd.s32 %v5553, %v5543
        %v5555 = vadd.s32 %v5554, %v5545
        %v5556 = vshrl.u32 %v5555, 4
        %v5557 = vmul.u32 %v5556, 18
        %v5558 = vsub.s32 %v5534, %v5557
        %v5559 = vsub.s32 0, %v5558
        %v5560 = vsel %vm5532, %v5559, %v5558
        %vm5561 = vcmp.lt.s32.totalorder %v5217, 0
        %v5562 = vsub.s32 0, %v5217
        %v5563 = vsel %vm5561, %v5562, %v5217
        %v5564 = vand.u32 %v5563, 65535
        %v5565 = vshrl.u32 %v5563, 16
        %v5567 = vmul.u32 %v5564, 14564
        %v5568 = vmul.u32 %v5564, 58254
        %v5569 = vmul.u32 %v5565, 14564
        %v5570 = vmul.u32 %v5565, 58254
        %v5571 = vshll.u32 %v5568, 16
        %v5572 = vshrl.u32 %v5568, 16
        %v5573 = vshll.u32 %v5569, 16
        %v5574 = vshrl.u32 %v5569, 16
        %vm5575 = vc.u32 %v5567, %v5571
        %v5576 = vsel %vm5575, 1, 0
        %v5577 = vadd.s32 %v5567, %v5571
        %v5578 = vadd.s32 %v5570, %v5576
        %vm5579 = vc.u32 %v5577, %v5573
        %v5580 = vsel %vm5579, 1, 0
        %v5581 = vadd.s32 %v5577, %v5573
        %v5582 = vadd.s32 %v5578, %v5580
        %v5583 = vadd.s32 %v5582, %v5572
        %v5584 = vadd.s32 %v5583, %v5574
        %v5585 = vshrl.u32 %v5584, 4
        %v5586 = vmul.u32 %v5585, 18
        %v5587 = vsub.s32 %v5563, %v5586
        %v5588 = vsub.s32 0, %v5587
        %v5589 = vsel %vm5561, %v5588, %v5587
        %vm5590 = vcmp.lt.s32.totalorder %v5218, 0
        %v5591 = vsub.s32 0, %v5218
        %v5592 = vsel %vm5590, %v5591, %v5218
        %v5593 = vand.u32 %v5592, 65535
        %v5594 = vshrl.u32 %v5592, 16
        %v5596 = vmul.u32 %v5593, 14564
        %v5597 = vmul.u32 %v5593, 58254
        %v5598 = vmul.u32 %v5594, 14564
        %v5599 = vmul.u32 %v5594, 58254
        %v5600 = vshll.u32 %v5597, 16
        %v5601 = vshrl.u32 %v5597, 16
        %v5602 = vshll.u32 %v5598, 16
        %v5603 = vshrl.u32 %v5598, 16
        %vm5604 = vc.u32 %v5596, %v5600
        %v5605 = vsel %vm5604, 1, 0
        %v5606 = vadd.s32 %v5596, %v5600
        %v5607 = vadd.s32 %v5599, %v5605
        %vm5608 = vc.u32 %v5606, %v5602
        %v5609 = vsel %vm5608, 1, 0
        %v5610 = vadd.s32 %v5606, %v5602
        %v5611 = vadd.s32 %v5607, %v5609
        %v5612 = vadd.s32 %v5611, %v5601
        %v5613 = vadd.s32 %v5612, %v5603
        %v5614 = vshrl.u32 %v5613, 4
        %v5615 = vmul.u32 %v5614, 18
        %v5616 = vsub.s32 %v5592, %v5615
        %v5617 = vsub.s32 0, %v5616
        %v5618 = vsel %vm5590, %v5617, %v5616
        %vm5619 = vcmp.lt.s32.totalorder %v5219, 0
        %v5620 = vsub.s32 0, %v5219
        %v5621 = vsel %vm5619, %v5620, %v5219
        %v5622 = vand.u32 %v5621, 65535
        %v5623 = vshrl.u32 %v5621, 16
        %v5625 = vmul.u32 %v5622, 14564
        %v5626 = vmul.u32 %v5622, 58254
        %v5627 = vmul.u32 %v5623, 14564
        %v5628 = vmul.u32 %v5623, 58254
        %v5629 = vshll.u32 %v5626, 16
        %v5630 = vshrl.u32 %v5626, 16
        %v5631 = vshll.u32 %v5627, 16
        %v5632 = vshrl.u32 %v5627, 16
        %vm5633 = vc.u32 %v5625, %v5629
        %v5634 = vsel %vm5633, 1, 0
        %v5635 = vadd.s32 %v5625, %v5629
        %v5636 = vadd.s32 %v5628, %v5634
        %vm5637 = vc.u32 %v5635, %v5631
        %v5638 = vsel %vm5637, 1, 0
        %v5639 = vadd.s32 %v5635, %v5631
        %v5640 = vadd.s32 %v5636, %v5638
        %v5641 = vadd.s32 %v5640, %v5630
        %v5642 = vadd.s32 %v5641, %v5632
        %v5643 = vshrl.u32 %v5642, 4
        %v5644 = vmul.u32 %v5643, 18
        %v5645 = vsub.s32 %v5621, %v5644
        %v5646 = vsub.s32 0, %v5645
        %v5647 = vsel %vm5619, %v5646, %v5645
        %vm5648 = vcmp.lt.s32.totalorder %v5220, 0
        %v5649 = vsub.s32 0, %v5220
        %v5650 = vsel %vm5648, %v5649, %v5220
        %v5651 = vand.u32 %v5650, 65535
        %v5652 = vshrl.u32 %v5650, 16
        %v5654 = vmul.u32 %v5651, 14564
        %v5655 = vmul.u32 %v5651, 58254
        %v5656 = vmul.u32 %v5652, 14564
        %v5657 = vmul.u32 %v5652, 58254
        %v5658 = vshll.u32 %v5655, 16
        %v5659 = vshrl.u32 %v5655, 16
        %v5660 = vshll.u32 %v5656, 16
        %v5661 = vshrl.u32 %v5656, 16
        %vm5662 = vc.u32 %v5654, %v5658
        %v5663 = vsel %vm5662, 1, 0
        %v5664 = vadd.s32 %v5654, %v5658
        %v5665 = vadd.s32 %v5657, %v5663
        %vm5666 = vc.u32 %v5664, %v5660
        %v5667 = vsel %vm5666, 1, 0
        %v5668 = vadd.s32 %v5664, %v5660
        %v5669 = vadd.s32 %v5665, %v5667
        %v5670 = vadd.s32 %v5669, %v5659
        %v5671 = vadd.s32 %v5670, %v5661
        %v5672 = vshrl.u32 %v5671, 4
        %v5673 = vmul.u32 %v5672, 18
        %v5674 = vsub.s32 %v5650, %v5673
        %v5675 = vsub.s32 0, %v5674
        %v5676 = vsel %vm5648, %v5675, %v5674
        %vm5677 = vcmp.lt.s32.totalorder %v5221, 0
        %v5678 = vsub.s32 0, %v5221
        %v5679 = vsel %vm5677, %v5678, %v5221
        %v5680 = vand.u32 %v5679, 65535
        %v5681 = vshrl.u32 %v5679, 16
        %v5683 = vmul.u32 %v5680, 14564
        %v5684 = vmul.u32 %v5680, 58254
        %v5685 = vmul.u32 %v5681, 14564
        %v5686 = vmul.u32 %v5681, 58254
        %v5687 = vshll.u32 %v5684, 16
        %v5688 = vshrl.u32 %v5684, 16
        %v5689 = vshll.u32 %v5685, 16
        %v5690 = vshrl.u32 %v5685, 16
        %vm5691 = vc.u32 %v5683, %v5687
        %v5692 = vsel %vm5691, 1, 0
        %v5693 = vadd.s32 %v5683, %v5687
        %v5694 = vadd.s32 %v5686, %v5692
        %vm5695 = vc.u32 %v5693, %v5689
        %v5696 = vsel %vm5695, 1, 0
        %v5697 = vadd.s32 %v5693, %v5689
        %v5698 = vadd.s32 %v5694, %v5696
        %v5699 = vadd.s32 %v5698, %v5688
        %v5700 = vadd.s32 %v5699, %v5690
        %v5701 = vshrl.u32 %v5700, 4
        %v5702 = vmul.u32 %v5701, 18
        %v5703 = vsub.s32 %v5679, %v5702
        %v5704 = vsub.s32 0, %v5703
        %v5705 = vsel %vm5677, %v5704, %v5703
        %vm5706 = vcmp.lt.s32.totalorder %v5222, 0
        %v5707 = vsub.s32 0, %v5222
        %v5708 = vsel %vm5706, %v5707, %v5222
        %v5709 = vand.u32 %v5708, 65535
        %v5710 = vshrl.u32 %v5708, 16
        %v5712 = vmul.u32 %v5709, 14564
        %v5713 = vmul.u32 %v5709, 58254
        %v5714 = vmul.u32 %v5710, 14564
        %v5715 = vmul.u32 %v5710, 58254
        %v5716 = vshll.u32 %v5713, 16
        %v5717 = vshrl.u32 %v5713, 16
        %v5718 = vshll.u32 %v5714, 16
        %v5719 = vshrl.u32 %v5714, 16
        %vm5720 = vc.u32 %v5712, %v5716
        %v5721 = vsel %vm5720, 1, 0
        %v5722 = vadd.s32 %v5712, %v5716
        %v5723 = vadd.s32 %v5715, %v5721
        %vm5724 = vc.u32 %v5722, %v5718
        %v5725 = vsel %vm5724, 1, 0
        %v5726 = vadd.s32 %v5722, %v5718
        %v5727 = vadd.s32 %v5723, %v5725
        %v5728 = vadd.s32 %v5727, %v5717
        %v5729 = vadd.s32 %v5728, %v5719
        %v5730 = vshrl.u32 %v5729, 4
        %v5731 = vmul.u32 %v5730, 18
        %v5732 = vsub.s32 %v5708, %v5731
        %v5733 = vsub.s32 0, %v5732
        %v5734 = vsel %vm5706, %v5733, %v5732
        %vm5735 = vcmp.lt.s32.totalorder %v5223, 0
        %v5736 = vsub.s32 0, %v5223
        %v5737 = vsel %vm5735, %v5736, %v5223
        %v5738 = vand.u32 %v5737, 65535
        %v5739 = vshrl.u32 %v5737, 16
        %v5741 = vmul.u32 %v5738, 14564
        %v5742 = vmul.u32 %v5738, 58254
        %v5743 = vmul.u32 %v5739, 14564
        %v5744 = vmul.u32 %v5739, 58254
        %v5745 = vshll.u32 %v5742, 16
        %v5746 = vshrl.u32 %v5742, 16
        %v5747 = vshll.u32 %v5743, 16
        %v5748 = vshrl.u32 %v5743, 16
        %vm5749 = vc.u32 %v5741, %v5745
        %v5750 = vsel %vm5749, 1, 0
        %v5751 = vadd.s32 %v5741, %v5745
        %v5752 = vadd.s32 %v5744, %v5750
        %vm5753 = vc.u32 %v5751, %v5747
        %v5754 = vsel %vm5753, 1, 0
        %v5755 = vadd.s32 %v5751, %v5747
        %v5756 = vadd.s32 %v5752, %v5754
        %v5757 = vadd.s32 %v5756, %v5746
        %v5758 = vadd.s32 %v5757, %v5748
        %v5759 = vshrl.u32 %v5758, 4
        %v5760 = vmul.u32 %v5759, 18
        %v5761 = vsub.s32 %v5737, %v5760
        %v5762 = vsub.s32 0, %v5761
        %v5763 = vsel %vm5735, %v5762, %v5761
        %vm5764 = vcmp.lt.s32.totalorder %v5224, 0
        %v5765 = vsub.s32 0, %v5224
        %v5766 = vsel %vm5764, %v5765, %v5224
        %v5767 = vand.u32 %v5766, 65535
        %v5768 = vshrl.u32 %v5766, 16
        %v5770 = vmul.u32 %v5767, 14564
        %v5771 = vmul.u32 %v5767, 58254
        %v5772 = vmul.u32 %v5768, 14564
        %v5773 = vmul.u32 %v5768, 58254
        %v5774 = vshll.u32 %v5771, 16
        %v5775 = vshrl.u32 %v5771, 16
        %v5776 = vshll.u32 %v5772, 16
        %v5777 = vshrl.u32 %v5772, 16
        %vm5778 = vc.u32 %v5770, %v5774
        %v5779 = vsel %vm5778, 1, 0
        %v5780 = vadd.s32 %v5770, %v5774
        %v5781 = vadd.s32 %v5773, %v5779
        %vm5782 = vc.u32 %v5780, %v5776
        %v5783 = vsel %vm5782, 1, 0
        %v5784 = vadd.s32 %v5780, %v5776
        %v5785 = vadd.s32 %v5781, %v5783
        %v5786 = vadd.s32 %v5785, %v5775
        %v5787 = vadd.s32 %v5786, %v5777
        %v5788 = vshrl.u32 %v5787, 4
        %v5789 = vmul.u32 %v5788, 18
        %v5790 = vsub.s32 %v5766, %v5789
        %v5791 = vsub.s32 0, %v5790
        %v5792 = vsel %vm5764, %v5791, %v5790
        %vm5793 = vcmp.lt.s32.totalorder %v5225, 0
        %v5794 = vsub.s32 0, %v5225
        %v5795 = vsel %vm5793, %v5794, %v5225
        %v5796 = vand.u32 %v5795, 65535
        %v5797 = vshrl.u32 %v5795, 16
        %v5799 = vmul.u32 %v5796, 14564
        %v5800 = vmul.u32 %v5796, 58254
        %v5801 = vmul.u32 %v5797, 14564
        %v5802 = vmul.u32 %v5797, 58254
        %v5803 = vshll.u32 %v5800, 16
        %v5804 = vshrl.u32 %v5800, 16
        %v5805 = vshll.u32 %v5801, 16
        %v5806 = vshrl.u32 %v5801, 16
        %vm5807 = vc.u32 %v5799, %v5803
        %v5808 = vsel %vm5807, 1, 0
        %v5809 = vadd.s32 %v5799, %v5803
        %v5810 = vadd.s32 %v5802, %v5808
        %vm5811 = vc.u32 %v5809, %v5805
        %v5812 = vsel %vm5811, 1, 0
        %v5813 = vadd.s32 %v5809, %v5805
        %v5814 = vadd.s32 %v5810, %v5812
        %v5815 = vadd.s32 %v5814, %v5804
        %v5816 = vadd.s32 %v5815, %v5806
        %v5817 = vshrl.u32 %v5816, 4
        %v5818 = vmul.u32 %v5817, 18
        %v5819 = vsub.s32 %v5795, %v5818
        %v5820 = vsub.s32 0, %v5819
        %v5821 = vsel %vm5793, %v5820, %v5819
        %vm5822 = vcmp.lt.s32.totalorder %v5226, 0
        %v5823 = vsub.s32 0, %v5226
        %v5824 = vsel %vm5822, %v5823, %v5226
        %v5825 = vand.u32 %v5824, 65535
        %v5826 = vshrl.u32 %v5824, 16
        %v5828 = vmul.u32 %v5825, 14564
        %v5829 = vmul.u32 %v5825, 58254
        %v5830 = vmul.u32 %v5826, 14564
        %v5831 = vmul.u32 %v5826, 58254
        %v5832 = vshll.u32 %v5829, 16
        %v5833 = vshrl.u32 %v5829, 16
        %v5834 = vshll.u32 %v5830, 16
        %v5835 = vshrl.u32 %v5830, 16
        %vm5836 = vc.u32 %v5828, %v5832
        %v5837 = vsel %vm5836, 1, 0
        %v5838 = vadd.s32 %v5828, %v5832
        %v5839 = vadd.s32 %v5831, %v5837
        %vm5840 = vc.u32 %v5838, %v5834
        %v5841 = vsel %vm5840, 1, 0
        %v5842 = vadd.s32 %v5838, %v5834
        %v5843 = vadd.s32 %v5839, %v5841
        %v5844 = vadd.s32 %v5843, %v5833
        %v5845 = vadd.s32 %v5844, %v5835
        %v5846 = vshrl.u32 %v5845, 4
        %v5847 = vmul.u32 %v5846, 18
        %v5848 = vsub.s32 %v5824, %v5847
        %v5849 = vsub.s32 0, %v5848
        %v5850 = vsel %vm5822, %v5849, %v5848
        %vm5851 = vcmp.lt.s32.totalorder %v5227, 0
        %v5852 = vsub.s32 0, %v5227
        %v5853 = vsel %vm5851, %v5852, %v5227
        %v5854 = vand.u32 %v5853, 65535
        %v5855 = vshrl.u32 %v5853, 16
        %v5857 = vmul.u32 %v5854, 14564
        %v5858 = vmul.u32 %v5854, 58254
        %v5859 = vmul.u32 %v5855, 14564
        %v5860 = vmul.u32 %v5855, 58254
        %v5861 = vshll.u32 %v5858, 16
        %v5862 = vshrl.u32 %v5858, 16
        %v5863 = vshll.u32 %v5859, 16
        %v5864 = vshrl.u32 %v5859, 16
        %vm5865 = vc.u32 %v5857, %v5861
        %v5866 = vsel %vm5865, 1, 0
        %v5867 = vadd.s32 %v5857, %v5861
        %v5868 = vadd.s32 %v5860, %v5866
        %vm5869 = vc.u32 %v5867, %v5863
        %v5870 = vsel %vm5869, 1, 0
        %v5871 = vadd.s32 %v5867, %v5863
        %v5872 = vadd.s32 %v5868, %v5870
        %v5873 = vadd.s32 %v5872, %v5862
        %v5874 = vadd.s32 %v5873, %v5864
        %v5875 = vshrl.u32 %v5874, 4
        %v5876 = vmul.u32 %v5875, 18
        %v5877 = vsub.s32 %v5853, %v5876
        %v5878 = vsub.s32 0, %v5877
        %v5879 = vsel %vm5851, %v5878, %v5877
        %vm5880 = vcmp.lt.s32.totalorder %v5228, 0
        %v5881 = vsub.s32 0, %v5228
        %v5882 = vsel %vm5880, %v5881, %v5228
        %v5883 = vand.u32 %v5882, 65535
        %v5884 = vshrl.u32 %v5882, 16
        %v5886 = vmul.u32 %v5883, 14564
        %v5887 = vmul.u32 %v5883, 58254
        %v5888 = vmul.u32 %v5884, 14564
        %v5889 = vmul.u32 %v5884, 58254
        %v5890 = vshll.u32 %v5887, 16
        %v5891 = vshrl.u32 %v5887, 16
        %v5892 = vshll.u32 %v5888, 16
        %v5893 = vshrl.u32 %v5888, 16
        %vm5894 = vc.u32 %v5886, %v5890
        %v5895 = vsel %vm5894, 1, 0
        %v5896 = vadd.s32 %v5886, %v5890
        %v5897 = vadd.s32 %v5889, %v5895
        %vm5898 = vc.u32 %v5896, %v5892
        %v5899 = vsel %vm5898, 1, 0
        %v5900 = vadd.s32 %v5896, %v5892
        %v5901 = vadd.s32 %v5897, %v5899
        %v5902 = vadd.s32 %v5901, %v5891
        %v5903 = vadd.s32 %v5902, %v5893
        %v5904 = vshrl.u32 %v5903, 4
        %v5905 = vmul.u32 %v5904, 18
        %v5906 = vsub.s32 %v5882, %v5905
        %v5907 = vsub.s32 0, %v5906
        %v5908 = vsel %vm5880, %v5907, %v5906
        %vm5909 = vcmp.lt.s32.totalorder %v5229, 0
        %v5910 = vsub.s32 0, %v5229
        %v5911 = vsel %vm5909, %v5910, %v5229
        %v5912 = vand.u32 %v5911, 65535
        %v5913 = vshrl.u32 %v5911, 16
        %v5915 = vmul.u32 %v5912, 14564
        %v5916 = vmul.u32 %v5912, 58254
        %v5917 = vmul.u32 %v5913, 14564
        %v5918 = vmul.u32 %v5913, 58254
        %v5919 = vshll.u32 %v5916, 16
        %v5920 = vshrl.u32 %v5916, 16
        %v5921 = vshll.u32 %v5917, 16
        %v5922 = vshrl.u32 %v5917, 16
        %vm5923 = vc.u32 %v5915, %v5919
        %v5924 = vsel %vm5923, 1, 0
        %v5925 = vadd.s32 %v5915, %v5919
        %v5926 = vadd.s32 %v5918, %v5924
        %vm5927 = vc.u32 %v5925, %v5921
        %v5928 = vsel %vm5927, 1, 0
        %v5929 = vadd.s32 %v5925, %v5921
        %v5930 = vadd.s32 %v5926, %v5928
        %v5931 = vadd.s32 %v5930, %v5920
        %v5932 = vadd.s32 %v5931, %v5922
        %v5933 = vshrl.u32 %v5932, 4
        %v5934 = vmul.u32 %v5933, 18
        %v5935 = vsub.s32 %v5911, %v5934
        %v5936 = vsub.s32 0, %v5935
        %v5937 = vsel %vm5909, %v5936, %v5935
        %vm5938 = vcmp.lt.s32.totalorder %v5230, 0
        %v5939 = vsub.s32 0, %v5230
        %v5940 = vsel %vm5938, %v5939, %v5230
        %v5941 = vand.u32 %v5940, 65535
        %v5942 = vshrl.u32 %v5940, 16
        %v5944 = vmul.u32 %v5941, 14564
        %v5945 = vmul.u32 %v5941, 58254
        %v5946 = vmul.u32 %v5942, 14564
        %v5947 = vmul.u32 %v5942, 58254
        %v5948 = vshll.u32 %v5945, 16
        %v5949 = vshrl.u32 %v5945, 16
        %v5950 = vshll.u32 %v5946, 16
        %v5951 = vshrl.u32 %v5946, 16
        %vm5952 = vc.u32 %v5944, %v5948
        %v5953 = vsel %vm5952, 1, 0
        %v5954 = vadd.s32 %v5944, %v5948
        %v5955 = vadd.s32 %v5947, %v5953
        %vm5956 = vc.u32 %v5954, %v5950
        %v5957 = vsel %vm5956, 1, 0
        %v5958 = vadd.s32 %v5954, %v5950
        %v5959 = vadd.s32 %v5955, %v5957
        %v5960 = vadd.s32 %v5959, %v5949
        %v5961 = vadd.s32 %v5960, %v5951
        %v5962 = vshrl.u32 %v5961, 4
        %v5963 = vmul.u32 %v5962, 18
        %v5964 = vsub.s32 %v5940, %v5963
        %v5965 = vsub.s32 0, %v5964
        %v5966 = vsel %vm5938, %v5965, %v5964
        %vm5967 = vcmp.lt.s32.totalorder %v5231, 0
        %v5968 = vsub.s32 0, %v5231
        %v5969 = vsel %vm5967, %v5968, %v5231
        %v5970 = vand.u32 %v5969, 65535
        %v5971 = vshrl.u32 %v5969, 16
        %v5973 = vmul.u32 %v5970, 14564
        %v5974 = vmul.u32 %v5970, 58254
        %v5975 = vmul.u32 %v5971, 14564
        %v5976 = vmul.u32 %v5971, 58254
        %v5977 = vshll.u32 %v5974, 16
        %v5978 = vshrl.u32 %v5974, 16
        %v5979 = vshll.u32 %v5975, 16
        %v5980 = vshrl.u32 %v5975, 16
        %vm5981 = vc.u32 %v5973, %v5977
        %v5982 = vsel %vm5981, 1, 0
        %v5983 = vadd.s32 %v5973, %v5977
        %v5984 = vadd.s32 %v5976, %v5982
        %vm5985 = vc.u32 %v5983, %v5979
        %v5986 = vsel %vm5985, 1, 0
        %v5987 = vadd.s32 %v5983, %v5979
        %v5988 = vadd.s32 %v5984, %v5986
        %v5989 = vadd.s32 %v5988, %v5978
        %v5990 = vadd.s32 %v5989, %v5980
        %v5991 = vshrl.u32 %v5990, 4
        %v5992 = vmul.u32 %v5991, 18
        %v5993 = vsub.s32 %v5969, %v5992
        %v5994 = vsub.s32 0, %v5993
        %v5995 = vsel %vm5967, %v5994, %v5993
        %vm5996 = vcmp.lt.s32.totalorder %v5232, 0
        %v5997 = vsub.s32 0, %v5232
        %v5998 = vsel %vm5996, %v5997, %v5232
        %v5999 = vand.u32 %v5998, 65535
        %v6000 = vshrl.u32 %v5998, 16
        %v6002 = vmul.u32 %v5999, 14564
        %v6003 = vmul.u32 %v5999, 58254
        %v6004 = vmul.u32 %v6000, 14564
        %v6005 = vmul.u32 %v6000, 58254
        %v6006 = vshll.u32 %v6003, 16
        %v6007 = vshrl.u32 %v6003, 16
        %v6008 = vshll.u32 %v6004, 16
        %v6009 = vshrl.u32 %v6004, 16
        %vm6010 = vc.u32 %v6002, %v6006
        %v6011 = vsel %vm6010, 1, 0
        %v6012 = vadd.s32 %v6002, %v6006
        %v6013 = vadd.s32 %v6005, %v6011
        %vm6014 = vc.u32 %v6012, %v6008
        %v6015 = vsel %vm6014, 1, 0
        %v6016 = vadd.s32 %v6012, %v6008
        %v6017 = vadd.s32 %v6013, %v6015
        %v6018 = vadd.s32 %v6017, %v6007
        %v6019 = vadd.s32 %v6018, %v6009
        %v6020 = vshrl.u32 %v6019, 4
        %v6021 = vmul.u32 %v6020, 18
        %v6022 = vsub.s32 %v5998, %v6021
        %v6023 = vsub.s32 0, %v6022
        %v6024 = vsel %vm5996, %v6023, %v6022
        %vm6025 = vcmp.lt.s32.totalorder %v5233, 0
        %v6026 = vsub.s32 0, %v5233
        %v6027 = vsel %vm6025, %v6026, %v5233
        %v6028 = vand.u32 %v6027, 65535
        %v6029 = vshrl.u32 %v6027, 16
        %v6031 = vmul.u32 %v6028, 14564
        %v6032 = vmul.u32 %v6028, 58254
        %v6033 = vmul.u32 %v6029, 14564
        %v6034 = vmul.u32 %v6029, 58254
        %v6035 = vshll.u32 %v6032, 16
        %v6036 = vshrl.u32 %v6032, 16
        %v6037 = vshll.u32 %v6033, 16
        %v6038 = vshrl.u32 %v6033, 16
        %vm6039 = vc.u32 %v6031, %v6035
        %v6040 = vsel %vm6039, 1, 0
        %v6041 = vadd.s32 %v6031, %v6035
        %v6042 = vadd.s32 %v6034, %v6040
        %vm6043 = vc.u32 %v6041, %v6037
        %v6044 = vsel %vm6043, 1, 0
        %v6045 = vadd.s32 %v6041, %v6037
        %v6046 = vadd.s32 %v6042, %v6044
        %v6047 = vadd.s32 %v6046, %v6036
        %v6048 = vadd.s32 %v6047, %v6038
        %v6049 = vshrl.u32 %v6048, 4
        %v6050 = vmul.u32 %v6049, 18
        %v6051 = vsub.s32 %v6027, %v6050
        %v6052 = vsub.s32 0, %v6051
        %v6053 = vsel %vm6025, %v6052, %v6051
        %vm6054 = vcmp.lt.s32.totalorder %v5234, 0
        %v6055 = vsub.s32 0, %v5234
        %v6056 = vsel %vm6054, %v6055, %v5234
        %v6057 = vand.u32 %v6056, 65535
        %v6058 = vshrl.u32 %v6056, 16
        %v6060 = vmul.u32 %v6057, 14564
        %v6061 = vmul.u32 %v6057, 58254
        %v6062 = vmul.u32 %v6058, 14564
        %v6063 = vmul.u32 %v6058, 58254
        %v6064 = vshll.u32 %v6061, 16
        %v6065 = vshrl.u32 %v6061, 16
        %v6066 = vshll.u32 %v6062, 16
        %v6067 = vshrl.u32 %v6062, 16
        %vm6068 = vc.u32 %v6060, %v6064
        %v6069 = vsel %vm6068, 1, 0
        %v6070 = vadd.s32 %v6060, %v6064
        %v6071 = vadd.s32 %v6063, %v6069
        %vm6072 = vc.u32 %v6070, %v6066
        %v6073 = vsel %vm6072, 1, 0
        %v6074 = vadd.s32 %v6070, %v6066
        %v6075 = vadd.s32 %v6071, %v6073
        %v6076 = vadd.s32 %v6075, %v6065
        %v6077 = vadd.s32 %v6076, %v6067
        %v6078 = vshrl.u32 %v6077, 4
        %v6079 = vmul.u32 %v6078, 18
        %v6080 = vsub.s32 %v6056, %v6079
        %v6081 = vsub.s32 0, %v6080
        %v6082 = vsel %vm6054, %v6081, %v6080
        %vm6083 = vcmp.lt.s32.totalorder %v5235, 0
        %v6084 = vsub.s32 0, %v5235
        %v6085 = vsel %vm6083, %v6084, %v5235
        %v6086 = vand.u32 %v6085, 65535
        %v6087 = vshrl.u32 %v6085, 16
        %v6089 = vmul.u32 %v6086, 14564
        %v6090 = vmul.u32 %v6086, 58254
        %v6091 = vmul.u32 %v6087, 14564
        %v6092 = vmul.u32 %v6087, 58254
        %v6093 = vshll.u32 %v6090, 16
        %v6094 = vshrl.u32 %v6090, 16
        %v6095 = vshll.u32 %v6091, 16
        %v6096 = vshrl.u32 %v6091, 16
        %vm6097 = vc.u32 %v6089, %v6093
        %v6098 = vsel %vm6097, 1, 0
        %v6099 = vadd.s32 %v6089, %v6093
        %v6100 = vadd.s32 %v6092, %v6098
        %vm6101 = vc.u32 %v6099, %v6095
        %v6102 = vsel %vm6101, 1, 0
        %v6103 = vadd.s32 %v6099, %v6095
        %v6104 = vadd.s32 %v6100, %v6102
        %v6105 = vadd.s32 %v6104, %v6094
        %v6106 = vadd.s32 %v6105, %v6096
        %v6107 = vshrl.u32 %v6106, 4
        %v6108 = vmul.u32 %v6107, 18
        %v6109 = vsub.s32 %v6085, %v6108
        %v6110 = vsub.s32 0, %v6109
        %v6111 = vsel %vm6083, %v6110, %v6109
        %vm6112 = vcmp.lt.s32.totalorder %v5236, 0
        %v6113 = vsub.s32 0, %v5236
        %v6114 = vsel %vm6112, %v6113, %v5236
        %v6115 = vand.u32 %v6114, 65535
        %v6116 = vshrl.u32 %v6114, 16
        %v6118 = vmul.u32 %v6115, 14564
        %v6119 = vmul.u32 %v6115, 58254
        %v6120 = vmul.u32 %v6116, 14564
        %v6121 = vmul.u32 %v6116, 58254
        %v6122 = vshll.u32 %v6119, 16
        %v6123 = vshrl.u32 %v6119, 16
        %v6124 = vshll.u32 %v6120, 16
        %v6125 = vshrl.u32 %v6120, 16
        %vm6126 = vc.u32 %v6118, %v6122
        %v6127 = vsel %vm6126, 1, 0
        %v6128 = vadd.s32 %v6118, %v6122
        %v6129 = vadd.s32 %v6121, %v6127
        %vm6130 = vc.u32 %v6128, %v6124
        %v6131 = vsel %vm6130, 1, 0
        %v6132 = vadd.s32 %v6128, %v6124
        %v6133 = vadd.s32 %v6129, %v6131
        %v6134 = vadd.s32 %v6133, %v6123
        %v6135 = vadd.s32 %v6134, %v6125
        %v6136 = vshrl.u32 %v6135, 4
        %v6137 = vmul.u32 %v6136, 18
        %v6138 = vsub.s32 %v6114, %v6137
        %v6139 = vsub.s32 0, %v6138
        %v6140 = vsel %vm6112, %v6139, %v6138
        %vm6141 = vcmp.lt.s32.totalorder %v5237, 0
        %v6142 = vsub.s32 0, %v5237
        %v6143 = vsel %vm6141, %v6142, %v5237
        %v6144 = vand.u32 %v6143, 65535
        %v6145 = vshrl.u32 %v6143, 16
        %v6147 = vmul.u32 %v6144, 14564
        %v6148 = vmul.u32 %v6144, 58254
        %v6149 = vmul.u32 %v6145, 14564
        %v6150 = vmul.u32 %v6145, 58254
        %v6151 = vshll.u32 %v6148, 16
        %v6152 = vshrl.u32 %v6148, 16
        %v6153 = vshll.u32 %v6149, 16
        %v6154 = vshrl.u32 %v6149, 16
        %vm6155 = vc.u32 %v6147, %v6151
        %v6156 = vsel %vm6155, 1, 0
        %v6157 = vadd.s32 %v6147, %v6151
        %v6158 = vadd.s32 %v6150, %v6156
        %vm6159 = vc.u32 %v6157, %v6153
        %v6160 = vsel %vm6159, 1, 0
        %v6161 = vadd.s32 %v6157, %v6153
        %v6162 = vadd.s32 %v6158, %v6160
        %v6163 = vadd.s32 %v6162, %v6152
        %v6164 = vadd.s32 %v6163, %v6154
        %v6165 = vshrl.u32 %v6164, 4
        %v6166 = vmul.u32 %v6165, 18
        %v6167 = vsub.s32 %v6143, %v6166
        %v6168 = vsub.s32 0, %v6167
        %v6169 = vsel %vm6141, %v6168, %v6167
        %vm6170 = vcmp.lt.s32.totalorder %v5238, 0
        %v6171 = vsub.s32 0, %v5238
        %v6172 = vsel %vm6170, %v6171, %v5238
        %v6173 = vand.u32 %v6172, 65535
        %v6174 = vshrl.u32 %v6172, 16
        %v6176 = vmul.u32 %v6173, 14564
        %v6177 = vmul.u32 %v6173, 58254
        %v6178 = vmul.u32 %v6174, 14564
        %v6179 = vmul.u32 %v6174, 58254
        %v6180 = vshll.u32 %v6177, 16
        %v6181 = vshrl.u32 %v6177, 16
        %v6182 = vshll.u32 %v6178, 16
        %v6183 = vshrl.u32 %v6178, 16
        %vm6184 = vc.u32 %v6176, %v6180
        %v6185 = vsel %vm6184, 1, 0
        %v6186 = vadd.s32 %v6176, %v6180
        %v6187 = vadd.s32 %v6179, %v6185
        %vm6188 = vc.u32 %v6186, %v6182
        %v6189 = vsel %vm6188, 1, 0
        %v6190 = vadd.s32 %v6186, %v6182
        %v6191 = vadd.s32 %v6187, %v6189
        %v6192 = vadd.s32 %v6191, %v6181
        %v6193 = vadd.s32 %v6192, %v6183
        %v6194 = vshrl.u32 %v6193, 4
        %v6195 = vmul.u32 %v6194, 18
        %v6196 = vsub.s32 %v6172, %v6195
        %v6197 = vsub.s32 0, %v6196
        %v6198 = vsel %vm6170, %v6197, %v6196
        %vm6199 = vcmp.lt.s32.totalorder %v5239, 0
        %v6200 = vsub.s32 0, %v5239
        %v6201 = vsel %vm6199, %v6200, %v5239
        %v6202 = vand.u32 %v6201, 65535
        %v6203 = vshrl.u32 %v6201, 16
        %v6205 = vmul.u32 %v6202, 14564
        %v6206 = vmul.u32 %v6202, 58254
        %v6207 = vmul.u32 %v6203, 14564
        %v6208 = vmul.u32 %v6203, 58254
        %v6209 = vshll.u32 %v6206, 16
        %v6210 = vshrl.u32 %v6206, 16
        %v6211 = vshll.u32 %v6207, 16
        %v6212 = vshrl.u32 %v6207, 16
        %vm6213 = vc.u32 %v6205, %v6209
        %v6214 = vsel %vm6213, 1, 0
        %v6215 = vadd.s32 %v6205, %v6209
        %v6216 = vadd.s32 %v6208, %v6214
        %vm6217 = vc.u32 %v6215, %v6211
        %v6218 = vsel %vm6217, 1, 0
        %v6219 = vadd.s32 %v6215, %v6211
        %v6220 = vadd.s32 %v6216, %v6218
        %v6221 = vadd.s32 %v6220, %v6210
        %v6222 = vadd.s32 %v6221, %v6212
        %v6223 = vshrl.u32 %v6222, 4
        %v6224 = vmul.u32 %v6223, 18
        %v6225 = vsub.s32 %v6201, %v6224
        %v6226 = vsub.s32 0, %v6225
        %v6227 = vsel %vm6199, %v6226, %v6225
        %vm6228 = vcmp.lt.s32.totalorder %v5240, 0
        %v6229 = vsub.s32 0, %v5240
        %v6230 = vsel %vm6228, %v6229, %v5240
        %v6231 = vand.u32 %v6230, 65535
        %v6232 = vshrl.u32 %v6230, 16
        %v6234 = vmul.u32 %v6231, 14564
        %v6235 = vmul.u32 %v6231, 58254
        %v6236 = vmul.u32 %v6232, 14564
        %v6237 = vmul.u32 %v6232, 58254
        %v6238 = vshll.u32 %v6235, 16
        %v6239 = vshrl.u32 %v6235, 16
        %v6240 = vshll.u32 %v6236, 16
        %v6241 = vshrl.u32 %v6236, 16
        %vm6242 = vc.u32 %v6234, %v6238
        %v6243 = vsel %vm6242, 1, 0
        %v6244 = vadd.s32 %v6234, %v6238
        %v6245 = vadd.s32 %v6237, %v6243
        %vm6246 = vc.u32 %v6244, %v6240
        %v6247 = vsel %vm6246, 1, 0
        %v6248 = vadd.s32 %v6244, %v6240
        %v6249 = vadd.s32 %v6245, %v6247
        %v6250 = vadd.s32 %v6249, %v6239
        %v6251 = vadd.s32 %v6250, %v6241
        %v6252 = vshrl.u32 %v6251, 4
        %v6253 = vmul.u32 %v6252, 18
        %v6254 = vsub.s32 %v6230, %v6253
        %v6255 = vsub.s32 0, %v6254
        %v6256 = vsel %vm6228, %v6255, %v6254
        %vm6257 = vcmp.lt.s32.totalorder %v5241, 0
        %v6258 = vsub.s32 0, %v5241
        %v6259 = vsel %vm6257, %v6258, %v5241
        %v6260 = vand.u32 %v6259, 65535
        %v6261 = vshrl.u32 %v6259, 16
        %v6263 = vmul.u32 %v6260, 14564
        %v6264 = vmul.u32 %v6260, 58254
        %v6265 = vmul.u32 %v6261, 14564
        %v6266 = vmul.u32 %v6261, 58254
        %v6267 = vshll.u32 %v6264, 16
        %v6268 = vshrl.u32 %v6264, 16
        %v6269 = vshll.u32 %v6265, 16
        %v6270 = vshrl.u32 %v6265, 16
        %vm6271 = vc.u32 %v6263, %v6267
        %v6272 = vsel %vm6271, 1, 0
        %v6273 = vadd.s32 %v6263, %v6267
        %v6274 = vadd.s32 %v6266, %v6272
        %vm6275 = vc.u32 %v6273, %v6269
        %v6276 = vsel %vm6275, 1, 0
        %v6277 = vadd.s32 %v6273, %v6269
        %v6278 = vadd.s32 %v6274, %v6276
        %v6279 = vadd.s32 %v6278, %v6268
        %v6280 = vadd.s32 %v6279, %v6270
        %v6281 = vshrl.u32 %v6280, 4
        %v6282 = vmul.u32 %v6281, 18
        %v6283 = vsub.s32 %v6259, %v6282
        %v6284 = vsub.s32 0, %v6283
        %v6285 = vsel %vm6257, %v6284, %v6283
        %vm6286 = vcmp.ne.s32.totalorder %v5270, 0
        %vm6287 = vcmp.ne.s32.totalorder %v5299, 0
        %vm6288 = vcmp.ne.s32.totalorder %v5328, 0
        %vm6289 = vcmp.ne.s32.totalorder %v5357, 0
        %vm6290 = vcmp.ne.s32.totalorder %v5386, 0
        %vm6291 = vcmp.ne.s32.totalorder %v5415, 0
        %vm6292 = vcmp.ne.s32.totalorder %v5444, 0
        %vm6293 = vcmp.ne.s32.totalorder %v5473, 0
        %vm6294 = vcmp.ne.s32.totalorder %v5502, 0
        %vm6295 = vcmp.ne.s32.totalorder %v5531, 0
        %vm6296 = vcmp.ne.s32.totalorder %v5560, 0
        %vm6297 = vcmp.ne.s32.totalorder %v5589, 0
        %vm6298 = vcmp.ne.s32.totalorder %v5618, 0
        %vm6299 = vcmp.ne.s32.totalorder %v5647, 0
        %vm6300 = vcmp.ne.s32.totalorder %v5676, 0
        %vm6301 = vcmp.ne.s32.totalorder %v5705, 0
        %vm6302 = vcmp.ne.s32.totalorder %v5734, 0
        %vm6303 = vcmp.ne.s32.totalorder %v5763, 0
        %vm6304 = vcmp.ne.s32.totalorder %v5792, 0
        %vm6305 = vcmp.ne.s32.totalorder %v5821, 0
        %vm6306 = vcmp.ne.s32.totalorder %v5850, 0
        %vm6307 = vcmp.ne.s32.totalorder %v5879, 0
        %vm6308 = vcmp.ne.s32.totalorder %v5908, 0
        %vm6309 = vcmp.ne.s32.totalorder %v5937, 0
        %vm6310 = vcmp.ne.s32.totalorder %v5966, 0
        %vm6311 = vcmp.ne.s32.totalorder %v5995, 0
        %vm6312 = vcmp.ne.s32.totalorder %v6024, 0
        %vm6313 = vcmp.ne.s32.totalorder %v6053, 0
        %vm6314 = vcmp.ne.s32.totalorder %v6082, 0
        %vm6315 = vcmp.ne.s32.totalorder %v6111, 0
        %vm6316 = vcmp.ne.s32.totalorder %v6140, 0
        %vm6317 = vcmp.ne.s32.totalorder %v6169, 0
        %vm6318 = vcmp.ne.s32.totalorder %v6198, 0
        %vm6319 = vcmp.ne.s32.totalorder %v6227, 0
        %vm6320 = vcmp.ne.s32.totalorder %v6256, 0
        %vm6321 = vcmp.ne.s32.totalorder %v6285, 0
        %vm6322 = vcmp.lt.s32.totalorder %v5270, 0
        %vm6323 = vcmp.lt.s32.totalorder %v5299, 0
        %vm6324 = vcmp.lt.s32.totalorder %v5328, 0
        %vm6325 = vcmp.lt.s32.totalorder %v5357, 0
        %vm6326 = vcmp.lt.s32.totalorder %v5386, 0
        %vm6327 = vcmp.lt.s32.totalorder %v5415, 0
        %vm6328 = vcmp.lt.s32.totalorder %v5444, 0
        %vm6329 = vcmp.lt.s32.totalorder %v5473, 0
        %vm6330 = vcmp.lt.s32.totalorder %v5502, 0
        %vm6331 = vcmp.lt.s32.totalorder %v5531, 0
        %vm6332 = vcmp.lt.s32.totalorder %v5560, 0
        %vm6333 = vcmp.lt.s32.totalorder %v5589, 0
        %vm6334 = vcmp.lt.s32.totalorder %v5618, 0
        %vm6335 = vcmp.lt.s32.totalorder %v5647, 0
        %vm6336 = vcmp.lt.s32.totalorder %v5676, 0
        %vm6337 = vcmp.lt.s32.totalorder %v5705, 0
        %vm6338 = vcmp.lt.s32.totalorder %v5734, 0
        %vm6339 = vcmp.lt.s32.totalorder %v5763, 0
        %vm6340 = vcmp.lt.s32.totalorder %v5792, 0
        %vm6341 = vcmp.lt.s32.totalorder %v5821, 0
        %vm6342 = vcmp.lt.s32.totalorder %v5850, 0
        %vm6343 = vcmp.lt.s32.totalorder %v5879, 0
        %vm6344 = vcmp.lt.s32.totalorder %v5908, 0
        %vm6345 = vcmp.lt.s32.totalorder %v5937, 0
        %vm6346 = vcmp.lt.s32.totalorder %v5966, 0
        %vm6347 = vcmp.lt.s32.totalorder %v5995, 0
        %vm6348 = vcmp.lt.s32.totalorder %v6024, 0
        %vm6349 = vcmp.lt.s32.totalorder %v6053, 0
        %vm6350 = vcmp.lt.s32.totalorder %v6082, 0
        %vm6351 = vcmp.lt.s32.totalorder %v6111, 0
        %vm6352 = vcmp.lt.s32.totalorder %v6140, 0
        %vm6353 = vcmp.lt.s32.totalorder %v6169, 0
        %vm6354 = vcmp.lt.s32.totalorder %v6198, 0
        %vm6355 = vcmp.lt.s32.totalorder %v6227, 0
        %vm6356 = vcmp.lt.s32.totalorder %v6256, 0
        %vm6357 = vcmp.lt.s32.totalorder %v6285, 0
        %vm6358 = vmand %vm6322, %vm6286
        %vm6359 = vmand %vm6323, %vm6287
        %vm6360 = vmand %vm6324, %vm6288
        %vm6361 = vmand %vm6325, %vm6289
        %vm6362 = vmand %vm6326, %vm6290
        %vm6363 = vmand %vm6327, %vm6291
        %vm6364 = vmand %vm6328, %vm6292
        %vm6365 = vmand %vm6329, %vm6293
        %vm6366 = vmand %vm6330, %vm6294
        %vm6367 = vmand %vm6331, %vm6295
        %vm6368 = vmand %vm6332, %vm6296
        %vm6369 = vmand %vm6333, %vm6297
        %vm6370 = vmand %vm6334, %vm6298
        %vm6371 = vmand %vm6335, %vm6299
        %vm6372 = vmand %vm6336, %vm6300
        %vm6373 = vmand %vm6337, %vm6301
        %vm6374 = vmand %vm6338, %vm6302
        %vm6375 = vmand %vm6339, %vm6303
        %vm6376 = vmand %vm6340, %vm6304
        %vm6377 = vmand %vm6341, %vm6305
        %vm6378 = vmand %vm6342, %vm6306
        %vm6379 = vmand %vm6343, %vm6307
        %vm6380 = vmand %vm6344, %vm6308
        %vm6381 = vmand %vm6345, %vm6309
        %vm6382 = vmand %vm6346, %vm6310
        %vm6383 = vmand %vm6347, %vm6311
        %vm6384 = vmand %vm6348, %vm6312
        %vm6385 = vmand %vm6349, %vm6313
        %vm6386 = vmand %vm6350, %vm6314
        %vm6387 = vmand %vm6351, %vm6315
        %vm6388 = vmand %vm6352, %vm6316
        %vm6389 = vmand %vm6353, %vm6317
        %vm6390 = vmand %vm6354, %vm6318
        %vm6391 = vmand %vm6355, %vm6319
        %vm6392 = vmand %vm6356, %vm6320
        %vm6393 = vmand %vm6357, %vm6321
        %v6394 = vadd.s32 %v5270, 18
        %v6395 = vadd.s32 %v5299, 18
        %v6396 = vadd.s32 %v5328, 18
        %v6397 = vadd.s32 %v5357, 18
        %v6398 = vadd.s32 %v5386, 18
        %v6399 = vadd.s32 %v5415, 18
        %v6400 = vadd.s32 %v5444, 18
        %v6401 = vadd.s32 %v5473, 18
        %v6402 = vadd.s32 %v5502, 18
        %v6403 = vadd.s32 %v5531, 18
        %v6404 = vadd.s32 %v5560, 18
        %v6405 = vadd.s32 %v5589, 18
        %v6406 = vadd.s32 %v5618, 18
        %v6407 = vadd.s32 %v5647, 18
        %v6408 = vadd.s32 %v5676, 18
        %v6409 = vadd.s32 %v5705, 18
        %v6410 = vadd.s32 %v5734, 18
        %v6411 = vadd.s32 %v5763, 18
        %v6412 = vadd.s32 %v5792, 18
        %v6413 = vadd.s32 %v5821, 18
        %v6414 = vadd.s32 %v5850, 18
        %v6415 = vadd.s32 %v5879, 18
        %v6416 = vadd.s32 %v5908, 18
        %v6417 = vadd.s32 %v5937, 18
        %v6418 = vadd.s32 %v5966, 18
        %v6419 = vadd.s32 %v5995, 18
        %v6420 = vadd.s32 %v6024, 18
        %v6421 = vadd.s32 %v6053, 18
        %v6422 = vadd.s32 %v6082, 18
        %v6423 = vadd.s32 %v6111, 18
        %v6424 = vadd.s32 %v6140, 18
        %v6425 = vadd.s32 %v6169, 18
        %v6426 = vadd.s32 %v6198, 18
        %v6427 = vadd.s32 %v6227, 18
        %v6428 = vadd.s32 %v6256, 18
        %v6429 = vadd.s32 %v6285, 18
        %v6430 = vsel %vm6358, %v6394, %v5270
        %v6431 = vsel %vm6359, %v6395, %v5299
        %v6432 = vsel %vm6360, %v6396, %v5328
        %v6433 = vsel %vm6361, %v6397, %v5357
        %v6434 = vsel %vm6362, %v6398, %v5386
        %v6435 = vsel %vm6363, %v6399, %v5415
        %v6436 = vsel %vm6364, %v6400, %v5444
        %v6437 = vsel %vm6365, %v6401, %v5473
        %v6438 = vsel %vm6366, %v6402, %v5502
        %v6439 = vsel %vm6367, %v6403, %v5531
        %v6440 = vsel %vm6368, %v6404, %v5560
        %v6441 = vsel %vm6369, %v6405, %v5589
        %v6442 = vsel %vm6370, %v6406, %v5618
        %v6443 = vsel %vm6371, %v6407, %v5647
        %v6444 = vsel %vm6372, %v6408, %v5676
        %v6445 = vsel %vm6373, %v6409, %v5705
        %v6446 = vsel %vm6374, %v6410, %v5734
        %v6447 = vsel %vm6375, %v6411, %v5763
        %v6448 = vsel %vm6376, %v6412, %v5792
        %v6449 = vsel %vm6377, %v6413, %v5821
        %v6450 = vsel %vm6378, %v6414, %v5850
        %v6451 = vsel %vm6379, %v6415, %v5879
        %v6452 = vsel %vm6380, %v6416, %v5908
        %v6453 = vsel %vm6381, %v6417, %v5937
        %v6454 = vsel %vm6382, %v6418, %v5966
        %v6455 = vsel %vm6383, %v6419, %v5995
        %v6456 = vsel %vm6384, %v6420, %v6024
        %v6457 = vsel %vm6385, %v6421, %v6053
        %v6458 = vsel %vm6386, %v6422, %v6082
        %v6459 = vsel %vm6387, %v6423, %v6111
        %v6460 = vsel %vm6388, %v6424, %v6140
        %v6461 = vsel %vm6389, %v6425, %v6169
        %v6462 = vsel %vm6390, %v6426, %v6198
        %v6463 = vsel %vm6391, %v6427, %v6227
        %v6464 = vsel %vm6392, %v6428, %v6256
        %v6465 = vsel %vm6393, %v6429, %v6285
        %vm6466 = vcmp.lt.s32.totalorder %v6430, 16
        %vm6467 = vcmp.lt.s32.totalorder %v6431, 16
        %vm6468 = vcmp.lt.s32.totalorder %v6432, 16
        %vm6469 = vcmp.lt.s32.totalorder %v6433, 16
        %vm6470 = vcmp.lt.s32.totalorder %v6434, 16
        %vm6471 = vcmp.lt.s32.totalorder %v6435, 16
        %vm6472 = vcmp.lt.s32.totalorder %v6436, 16
        %vm6473 = vcmp.lt.s32.totalorder %v6437, 16
        %vm6474 = vcmp.lt.s32.totalorder %v6438, 16
        %vm6475 = vcmp.lt.s32.totalorder %v6439, 16
        %vm6476 = vcmp.lt.s32.totalorder %v6440, 16
        %vm6477 = vcmp.lt.s32.totalorder %v6441, 16
        %vm6478 = vcmp.lt.s32.totalorder %v6442, 16
        %vm6479 = vcmp.lt.s32.totalorder %v6443, 16
        %vm6480 = vcmp.lt.s32.totalorder %v6444, 16
        %vm6481 = vcmp.lt.s32.totalorder %v6445, 16
        %vm6482 = vcmp.lt.s32.totalorder %v6446, 16
        %vm6483 = vcmp.lt.s32.totalorder %v6447, 16
        %vm6484 = vcmp.lt.s32.totalorder %v6448, 16
        %vm6485 = vcmp.lt.s32.totalorder %v6449, 16
        %vm6486 = vcmp.lt.s32.totalorder %v6450, 16
        %vm6487 = vcmp.lt.s32.totalorder %v6451, 16
        %vm6488 = vcmp.lt.s32.totalorder %v6452, 16
        %vm6489 = vcmp.lt.s32.totalorder %v6453, 16
        %vm6490 = vcmp.lt.s32.totalorder %v6454, 16
        %vm6491 = vcmp.lt.s32.totalorder %v6455, 16
        %vm6492 = vcmp.lt.s32.totalorder %v6456, 16
        %vm6493 = vcmp.lt.s32.totalorder %v6457, 16
        %vm6494 = vcmp.lt.s32.totalorder %v6458, 16
        %vm6495 = vcmp.lt.s32.totalorder %v6459, 16
        %vm6496 = vcmp.lt.s32.totalorder %v6460, 16
        %vm6497 = vcmp.lt.s32.totalorder %v6461, 16
        %vm6498 = vcmp.lt.s32.totalorder %v6462, 16
        %vm6499 = vcmp.lt.s32.totalorder %v6463, 16
        %vm6500 = vcmp.lt.s32.totalorder %v6464, 16
        %vm6501 = vcmp.lt.s32.totalorder %v6465, 16
        %v6502 = vsel %vm6466, 1, 0
        %v6503 = vsel %vm6467, 1, 0
        %v6504 = vsel %vm6468, 1, 0
        %v6505 = vsel %vm6469, 1, 0
        %v6506 = vsel %vm6470, 1, 0
        %v6507 = vsel %vm6471, 1, 0
        %v6508 = vsel %vm6472, 1, 0
        %v6509 = vsel %vm6473, 1, 0
        %v6510 = vsel %vm6474, 1, 0
        %v6511 = vsel %vm6475, 1, 0
        %v6512 = vsel %vm6476, 1, 0
        %v6513 = vsel %vm6477, 1, 0
        %v6514 = vsel %vm6478, 1, 0
        %v6515 = vsel %vm6479, 1, 0
        %v6516 = vsel %vm6480, 1, 0
        %v6517 = vsel %vm6481, 1, 0
        %v6518 = vsel %vm6482, 1, 0
        %v6519 = vsel %vm6483, 1, 0
        %v6520 = vsel %vm6484, 1, 0
        %v6521 = vsel %vm6485, 1, 0
        %v6522 = vsel %vm6486, 1, 0
        %v6523 = vsel %vm6487, 1, 0
        %v6524 = vsel %vm6488, 1, 0
        %v6525 = vsel %vm6489, 1, 0
        %v6526 = vsel %vm6490, 1, 0
        %v6527 = vsel %vm6491, 1, 0
        %v6528 = vsel %vm6492, 1, 0
        %v6529 = vsel %vm6493, 1, 0
        %v6530 = vsel %vm6494, 1, 0
        %v6531 = vsel %vm6495, 1, 0
        %v6532 = vsel %vm6496, 1, 0
        %v6533 = vsel %vm6497, 1, 0
        %v6534 = vsel %vm6498, 1, 0
        %v6535 = vsel %vm6499, 1, 0
        %v6536 = vsel %vm6500, 1, 0
        %v6537 = vsel %vm6501, 1, 0
        %v6538 = vcvt.s32.f32 %v6502
        %v6539 = vcvt.s32.f32 %v6503
        %v6540 = vcvt.s32.f32 %v6504
        %v6541 = vcvt.s32.f32 %v6505
        %v6542 = vcvt.s32.f32 %v6506
        %v6543 = vcvt.s32.f32 %v6507
        %v6544 = vcvt.s32.f32 %v6508
        %v6545 = vcvt.s32.f32 %v6509
        %v6546 = vcvt.s32.f32 %v6510
        %v6547 = vcvt.s32.f32 %v6511
        %v6548 = vcvt.s32.f32 %v6512
        %v6549 = vcvt.s32.f32 %v6513
        %v6550 = vcvt.s32.f32 %v6514
        %v6551 = vcvt.s32.f32 %v6515
        %v6552 = vcvt.s32.f32 %v6516
        %v6553 = vcvt.s32.f32 %v6517
        %v6554 = vcvt.s32.f32 %v6518
        %v6555 = vcvt.s32.f32 %v6519
        %v6556 = vcvt.s32.f32 %v6520
        %v6557 = vcvt.s32.f32 %v6521
        %v6558 = vcvt.s32.f32 %v6522
        %v6559 = vcvt.s32.f32 %v6523
        %v6560 = vcvt.s32.f32 %v6524
        %v6561 = vcvt.s32.f32 %v6525
        %v6562 = vcvt.s32.f32 %v6526
        %v6563 = vcvt.s32.f32 %v6527
        %v6564 = vcvt.s32.f32 %v6528
        %v6565 = vcvt.s32.f32 %v6529
        %v6566 = vcvt.s32.f32 %v6530
        %v6567 = vcvt.s32.f32 %v6531
        %v6568 = vcvt.s32.f32 %v6532
        %v6569 = vcvt.s32.f32 %v6533
        %v6570 = vcvt.s32.f32 %v6534
        %v6571 = vcvt.s32.f32 %v6535
        %v6572 = vcvt.s32.f32 %v6536
        %v6573 = vcvt.s32.f32 %v6537
        %v6574 = vmul.f32 %v5133, %v6538
        %v6575 = vmul.f32 %v5134, %v6538
        %v6576 = vmul.f32 %v5135, %v6539
        %v6577 = vmul.f32 %v5136, %v6539
        %v6578 = vmul.f32 %v5137, %v6540
        %v6579 = vmul.f32 %v5138, %v6540
        %v6580 = vmul.f32 %v5139, %v6541
        %v6581 = vmul.f32 %v5140, %v6541
        %v6582 = vmul.f32 %v5141, %v6542
        %v6583 = vmul.f32 %v5142, %v6542
        %v6584 = vmul.f32 %v5143, %v6543
        %v6585 = vmul.f32 %v5144, %v6543
        %v6586 = vmul.f32 %v5145, %v6544
        %v6587 = vmul.f32 %v5146, %v6544
        %v6588 = vmul.f32 %v5147, %v6545
        %v6589 = vmul.f32 %v5148, %v6545
        %v6590 = vmul.f32 %v5149, %v6546
        %v6591 = vmul.f32 %v5150, %v6546
        %v6592 = vmul.f32 %v5151, %v6547
        %v6593 = vmul.f32 %v5152, %v6547
        %v6594 = vmul.f32 %v5153, %v6548
        %v6595 = vmul.f32 %v5154, %v6548
        %v6596 = vmul.f32 %v5155, %v6549
        %v6597 = vmul.f32 %v5156, %v6549
        %v6598 = vmul.f32 %v5157, %v6550
        %v6599 = vmul.f32 %v5158, %v6550
        %v6600 = vmul.f32 %v5159, %v6551
        %v6601 = vmul.f32 %v5160, %v6551
        %v6602 = vmul.f32 %v5161, %v6552
        %v6603 = vmul.f32 %v5162, %v6552
        %v6604 = vmul.f32 %v5163, %v6553
        %v6605 = vmul.f32 %v5164, %v6553
        %v6606 = vmul.f32 %v5165, %v6554
        %v6607 = vmul.f32 %v5166, %v6554
        %v6608 = vmul.f32 %v5167, %v6555
        %v6609 = vmul.f32 %v5168, %v6555
        %v6610 = vmul.f32 %v5169, %v6556
        %v6611 = vmul.f32 %v5170, %v6556
        %v6612 = vmul.f32 %v5171, %v6557
        %v6613 = vmul.f32 %v5172, %v6557
        %v6614 = vmul.f32 %v5173, %v6558
        %v6615 = vmul.f32 %v5174, %v6558
        %v6616 = vmul.f32 %v5175, %v6559
        %v6617 = vmul.f32 %v5176, %v6559
        %v6618 = vmul.f32 %v5177, %v6560
        %v6619 = vmul.f32 %v5178, %v6560
        %v6620 = vmul.f32 %v5179, %v6561
        %v6621 = vmul.f32 %v5180, %v6561
        %v6622 = vmul.f32 %v5181, %v6562
        %v6623 = vmul.f32 %v5182, %v6562
        %v6624 = vmul.f32 %v5183, %v6563
        %v6625 = vmul.f32 %v5184, %v6563
        %v6626 = vmul.f32 %v5185, %v6564
        %v6627 = vmul.f32 %v5186, %v6564
        %v6628 = vmul.f32 %v5187, %v6565
        %v6629 = vmul.f32 %v5188, %v6565
        %v6630 = vmul.f32 %v5189, %v6566
        %v6631 = vmul.f32 %v5190, %v6566
        %v6632 = vmul.f32 %v5191, %v6567
        %v6633 = vmul.f32 %v5192, %v6567
        %v6634 = vmul.f32 %v5193, %v6568
        %v6635 = vmul.f32 %v5194, %v6568
        %v6636 = vmul.f32 %v5195, %v6569
        %v6637 = vmul.f32 %v5196, %v6569
        %v6638 = vmul.f32 %v5197, %v6570
        %v6639 = vmul.f32 %v5198, %v6570
        %v6640 = vmul.f32 %v5199, %v6571
        %v6641 = vmul.f32 %v5200, %v6571
        %v6642 = vmul.f32 %v5201, %v6572
        %v6643 = vmul.f32 %v5202, %v6572
        %v6644 = vmul.f32 %v5203, %v6573
        %v6645 = vmul.f32 %v5204, %v6573
        %v6646 = vadd.f32 %v6574, %v6576
        %v6647 = vadd.f32 %v6646, %v6578
        %v6648 = vadd.f32 %v6647, %v6580
        %v6649 = vadd.f32 %v6648, %v6582
        %v6650 = vadd.f32 %v6649, %v6584
        %v6651 = vadd.f32 %v6650, %v6586
        %v6652 = vadd.f32 %v6651, %v6588
        %v6653 = vadd.f32 %v6652, %v6590
        %v6654 = vadd.f32 %v6653, %v6592
        %v6655 = vadd.f32 %v6654, %v6594
        %v6656 = vadd.f32 %v6655, %v6596
        %v6657 = vadd.f32 %v6656, %v6598
        %v6658 = vadd.f32 %v6657, %v6600
        %v6659 = vadd.f32 %v6658, %v6602
        %v6660 = vadd.f32 %v6659, %v6604
        %v6661 = vadd.f32 %v6660, %v6606
        %v6662 = vadd.f32 %v6661, %v6608
        %v6663 = vadd.f32 %v6662, %v6610
        %v6664 = vadd.f32 %v6663, %v6612
        %v6665 = vadd.f32 %v6664, %v6614
        %v6666 = vadd.f32 %v6665, %v6616
        %v6667 = vadd.f32 %v6666, %v6618
        %v6668 = vadd.f32 %v6667, %v6620
        %v6669 = vadd.f32 %v6668, %v6622
        %v6670 = vadd.f32 %v6669, %v6624
        %v6671 = vadd.f32 %v6670, %v6626
        %v6672 = vadd.f32 %v6671, %v6628
        %v6673 = vadd.f32 %v6672, %v6630
        %v6674 = vadd.f32 %v6673, %v6632
        %v6675 = vadd.f32 %v6674, %v6634
        %v6676 = vadd.f32 %v6675, %v6636
        %v6677 = vadd.f32 %v6676, %v6638
        %v6678 = vadd.f32 %v6677, %v6640
        %v6679 = vadd.f32 %v6678, %v6642
        %v6680 = vadd.f32 %v6679, %v6644
        %v6681 = vrot.slane %v6680, 4
        %v6682 = vadd.f32 %v6680, %v6681
        %v6683 = vrot.slane %v6682, 2
        %v6684 = vadd.f32 %v6682, %v6683
        %v6685 = vrot.slane %v6684, 1
        %v6686 = vadd.f32 %v6684, %v6685
        %v6687 = vadd.f32 %v6575, %v6577
        %v6688 = vadd.f32 %v6687, %v6579
        %v6689 = vadd.f32 %v6688, %v6581
        %v6690 = vadd.f32 %v6689, %v6583
        %v6691 = vadd.f32 %v6690, %v6585
        %v6692 = vadd.f32 %v6691, %v6587
        %v6693 = vadd.f32 %v6692, %v6589
        %v6694 = vadd.f32 %v6693, %v6591
        %v6695 = vadd.f32 %v6694, %v6593
        %v6696 = vadd.f32 %v6695, %v6595
        %v6697 = vadd.f32 %v6696, %v6597
        %v6698 = vadd.f32 %v6697, %v6599
        %v6699 = vadd.f32 %v6698, %v6601
        %v6700 = vadd.f32 %v6699, %v6603
        %v6701 = vadd.f32 %v6700, %v6605
        %v6702 = vadd.f32 %v6701, %v6607
        %v6703 = vadd.f32 %v6702, %v6609
        %v6704 = vadd.f32 %v6703, %v6611
        %v6705 = vadd.f32 %v6704, %v6613
        %v6706 = vadd.f32 %v6705, %v6615
        %v6707 = vadd.f32 %v6706, %v6617
        %v6708 = vadd.f32 %v6707, %v6619
        %v6709 = vadd.f32 %v6708, %v6621
        %v6710 = vadd.f32 %v6709, %v6623
        %v6711 = vadd.f32 %v6710, %v6625
        %v6712 = vadd.f32 %v6711, %v6627
        %v6713 = vadd.f32 %v6712, %v6629
        %v6714 = vadd.f32 %v6713, %v6631
        %v6715 = vadd.f32 %v6714, %v6633
        %v6716 = vadd.f32 %v6715, %v6635
        %v6717 = vadd.f32 %v6716, %v6637
        %v6718 = vadd.f32 %v6717, %v6639
        %v6719 = vadd.f32 %v6718, %v6641
        %v6720 = vadd.f32 %v6719, %v6643
        %v6721 = vadd.f32 %v6720, %v6645
        %v6722 = vrot.slane %v6721, 4
        %v6723 = vadd.f32 %v6721, %v6722
        %v6724 = vrot.slane %v6723, 2
        %v6725 = vadd.f32 %v6723, %v6724
        %v6726 = vrot.slane %v6725, 1
        %v6727 = vadd.f32 %v6725, %v6726
        %v6728 = vmul.f32 %v6686, 0.00390625
        %v6729 = vmul.f32 %v6727, 0.00390625
        %v6730 = vld [vmem:[#allocation2] sm:$0xf]
        %v6731 = vpack.c.bf16 %v6728, %v6728
        %v6732 = vpack.c.bf16 %v6729, %v6729
        %v6733 = vld [vmem:[%s427] sm:$0xff]
        %v6734 = vld [vmem:[%s427 + $0x8] sm:$0xff]
        %v6735 = vld [vmem:[%s427 + $0x10] sm:$0xff]
        %v6736 = vld [vmem:[%s427 + $0x18] sm:$0xff]
        %v6737 = vld [vmem:[%s427 + $0x20] sm:$0xff]
        %v6738 = vld [vmem:[%s427 + $0x28] sm:$0xff]
        %v6739 = vld [vmem:[%s427 + $0x30] sm:$0xff]
        %v6740 = vld [vmem:[%s427 + $0x38] sm:$0xff]
        %v6741 = vld [vmem:[%s427 + $0x40] sm:$0xff]
        %v6742 = vld [vmem:[%s427 + $0x48] sm:$0xff]
        %v6743 = vld [vmem:[%s427 + $0x50] sm:$0xff]
        %v6744 = vld [vmem:[%s427 + $0x58] sm:$0xff]
        %v6745 = vld [vmem:[%s427 + $0x60] sm:$0xff]
        %v6746 = vld [vmem:[%s427 + $0x68] sm:$0xff]
        %v6747 = vld [vmem:[%s427 + $0x70] sm:$0xff]
        %v6748 = vld [vmem:[%s427 + $0x78] sm:$0xff]
        %v6749 = vld [vmem:[%s427 + $0x80] sm:$0xff]
        %v6750 = vld [vmem:[%s427 + $0x88] sm:$0xff]
        %v6751 = vld [vmem:[%s427 + $0x90] sm:$0xff]
        %v6752 = vld [vmem:[%s427 + $0x98] sm:$0xff]
        %v6753 = vld [vmem:[%s427 + $0xa0] sm:$0xff]
        %v6754 = vld [vmem:[%s427 + $0xa8] sm:$0xff]
        %v6755 = vld [vmem:[%s427 + $0xb0] sm:$0xff]
        %v6756 = vld [vmem:[%s427 + $0xb8] sm:$0xff]
        %v6757 = vld [vmem:[%s427 + $0xc0] sm:$0xff]
        %v6758 = vld [vmem:[%s427 + $0xc8] sm:$0xff]
        %v6759 = vld [vmem:[%s427 + $0xd0] sm:$0xff]
        %v6760 = vld [vmem:[%s427 + $0xd8] sm:$0xff]
        %v6761 = vld [vmem:[%s427 + $0xe0] sm:$0xff]
        %v6762 = vld [vmem:[%s427 + $0xe8] sm:$0xff]
        %v6763 = vld [vmem:[%s427 + $0xf0] sm:$0xff]
        %v6764 = vld [vmem:[%s427 + $0xf8] sm:$0xff]
        %v6765 = vld [vmem:[%s427 + $0x100] sm:$0xff]
        %v6766 = vld [vmem:[%s427 + $0x108] sm:$0xff]
        %v6767 = vld [vmem:[%s427 + $0x110] sm:$0xff]
        %v6768 = vld [vmem:[%s427 + $0x118] sm:$0xff]
        %v6769 = vld [vmem:[%s427 + $0x120] sm:$0xff]
        %v6770 = vld [vmem:[%s427 + $0x128] sm:$0xff]
        %v6771 = vld [vmem:[%s427 + $0x130] sm:$0xff]
        %v6772 = vld [vmem:[%s427 + $0x138] sm:$0xff]
        %v6773 = vld [vmem:[%s427 + $0x140] sm:$0xff]
        %v6774 = vld [vmem:[%s427 + $0x148] sm:$0xff]
        %v6775 = vld [vmem:[%s427 + $0x150] sm:$0xff]
        %v6776 = vld [vmem:[%s427 + $0x158] sm:$0xff]
        %v6777 = vld [vmem:[%s427 + $0x160] sm:$0xff]
        %v6778 = vld [vmem:[%s427 + $0x168] sm:$0xff]
        %v6779 = vld [vmem:[%s427 + $0x170] sm:$0xff]
        %v6780 = vld [vmem:[%s427 + $0x178] sm:$0xff]
        %v6781 = vld [vmem:[%s427 + $0x180] sm:$0xff]
        %v6782 = vld [vmem:[%s427 + $0x188] sm:$0xff]
        %v6783 = vld [vmem:[%s427 + $0x190] sm:$0xff]
        %v6784 = vld [vmem:[%s427 + $0x198] sm:$0xff]
        %v6785 = vld [vmem:[%s427 + $0x1a0] sm:$0xff]
        %v6786 = vld [vmem:[%s427 + $0x1a8] sm:$0xff]
        %v6787 = vld [vmem:[%s427 + $0x1b0] sm:$0xff]
        %v6788 = vld [vmem:[%s427 + $0x1b8] sm:$0xff]
        %v6789 = vld [vmem:[%s427 + $0x1c0] sm:$0xff]
        %v6790 = vld [vmem:[%s427 + $0x1c8] sm:$0xff]
        %v6791 = vld [vmem:[%s427 + $0x1d0] sm:$0xff]
        %v6792 = vld [vmem:[%s427 + $0x1d8] sm:$0xff]
        %v6793 = vld [vmem:[%s427 + $0x1e0] sm:$0xff]
        %v6794 = vld [vmem:[%s427 + $0x1e8] sm:$0xff]
        %v6795 = vld [vmem:[%s427 + $0x1f0] sm:$0xff]
        %v6796 = vld [vmem:[%s427 + $0x1f8] sm:$0xff]
        %v6861 = vunpack.c.l.b16 %v6733
        %v6862 = vunpack.c.h.b16 %v6733
        %v6863 = vunpack.c.l.b16 %v6734
        %v6864 = vunpack.c.h.b16 %v6734
        %v6865 = vunpack.c.l.b16 %v6735
        %v6866 = vunpack.c.h.b16 %v6735
        %v6867 = vunpack.c.l.b16 %v6736
        %v6868 = vunpack.c.h.b16 %v6736
        %v6869 = vunpack.c.l.b16 %v6737
        %v6870 = vunpack.c.h.b16 %v6737
        %v6871 = vunpack.c.l.b16 %v6738
        %v6872 = vunpack.c.h.b16 %v6738
        %v6873 = vunpack.c.l.b16 %v6739
        %v6874 = vunpack.c.h.b16 %v6739
        %v6875 = vunpack.c.l.b16 %v6740
        %v6876 = vunpack.c.h.b16 %v6740
        %v6877 = vunpack.c.l.b16 %v6741
        %v6878 = vunpack.c.h.b16 %v6741
        %v6879 = vunpack.c.l.b16 %v6742
        %v6880 = vunpack.c.h.b16 %v6742
        %v6881 = vunpack.c.l.b16 %v6743
        %v6882 = vunpack.c.h.b16 %v6743
        %v6883 = vunpack.c.l.b16 %v6744
        %v6884 = vunpack.c.h.b16 %v6744
        %v6885 = vunpack.c.l.b16 %v6745
        %v6886 = vunpack.c.h.b16 %v6745
        %v6887 = vunpack.c.l.b16 %v6746
        %v6888 = vunpack.c.h.b16 %v6746
        %v6889 = vunpack.c.l.b16 %v6747
        %v6890 = vunpack.c.h.b16 %v6747
        %v6891 = vunpack.c.l.b16 %v6748
        %v6892 = vunpack.c.h.b16 %v6748
        %v6893 = vunpack.c.l.b16 %v6749
        %v6894 = vunpack.c.h.b16 %v6749
        %v6895 = vunpack.c.l.b16 %v6750
        %v6896 = vunpack.c.h.b16 %v6750
        %v6897 = vunpack.c.l.b16 %v6751
        %v6898 = vunpack.c.h.b16 %v6751
        %v6899 = vunpack.c.l.b16 %v6752
        %v6900 = vunpack.c.h.b16 %v6752
        %v6901 = vunpack.c.l.b16 %v6753
        %v6902 = vunpack.c.h.b16 %v6753
        %v6903 = vunpack.c.l.b16 %v6754
        %v6904 = vunpack.c.h.b16 %v6754
        %v6905 = vunpack.c.l.b16 %v6755
        %v6906 = vunpack.c.h.b16 %v6755
        %v6907 = vunpack.c.l.b16 %v6756
        %v6908 = vunpack.c.h.b16 %v6756
        %v6909 = vunpack.c.l.b16 %v6757
        %v6910 = vunpack.c.h.b16 %v6757
        %v6911 = vunpack.c.l.b16 %v6758
        %v6912 = vunpack.c.h.b16 %v6758
        %v6913 = vunpack.c.l.b16 %v6759
        %v6914 = vunpack.c.h.b16 %v6759
        %v6915 = vunpack.c.l.b16 %v6760
        %v6916 = vunpack.c.h.b16 %v6760
        %v6917 = vunpack.c.l.b16 %v6761
        %v6918 = vunpack.c.h.b16 %v6761
        %v6919 = vunpack.c.l.b16 %v6762
        %v6920 = vunpack.c.h.b16 %v6762
        %v6921 = vunpack.c.l.b16 %v6763
        %v6922 = vunpack.c.h.b16 %v6763
        %v6923 = vunpack.c.l.b16 %v6764
        %v6924 = vunpack.c.h.b16 %v6764
        %v6925 = vunpack.c.l.b16 %v6765
        %v6926 = vunpack.c.h.b16 %v6765
        %v6927 = vunpack.c.l.b16 %v6766
        %v6928 = vunpack.c.h.b16 %v6766
        %v6929 = vunpack.c.l.b16 %v6767
        %v6930 = vunpack.c.h.b16 %v6767
        %v6931 = vunpack.c.l.b16 %v6768
        %v6932 = vunpack.c.h.b16 %v6768
        %v6933 = vunpack.c.l.b16 %v6769
        %v6934 = vunpack.c.h.b16 %v6769
        %v6935 = vunpack.c.l.b16 %v6770
        %v6936 = vunpack.c.h.b16 %v6770
        %v6937 = vunpack.c.l.b16 %v6771
        %v6938 = vunpack.c.h.b16 %v6771
        %v6939 = vunpack.c.l.b16 %v6772
        %v6940 = vunpack.c.h.b16 %v6772
        %v6941 = vunpack.c.l.b16 %v6773
        %v6942 = vunpack.c.h.b16 %v6773
        %v6943 = vunpack.c.l.b16 %v6774
        %v6944 = vunpack.c.h.b16 %v6774
        %v6945 = vunpack.c.l.b16 %v6775
        %v6946 = vunpack.c.h.b16 %v6775
        %v6947 = vunpack.c.l.b16 %v6776
        %v6948 = vunpack.c.h.b16 %v6776
        %v6949 = vunpack.c.l.b16 %v6777
        %v6950 = vunpack.c.h.b16 %v6777
        %v6951 = vunpack.c.l.b16 %v6778
        %v6952 = vunpack.c.h.b16 %v6778
        %v6953 = vunpack.c.l.b16 %v6779
        %v6954 = vunpack.c.h.b16 %v6779
        %v6955 = vunpack.c.l.b16 %v6780
        %v6956 = vunpack.c.h.b16 %v6780
        %v6957 = vunpack.c.l.b16 %v6781
        %v6958 = vunpack.c.h.b16 %v6781
        %v6959 = vunpack.c.l.b16 %v6782
        %v6960 = vunpack.c.h.b16 %v6782
        %v6961 = vunpack.c.l.b16 %v6783
        %v6962 = vunpack.c.h.b16 %v6783
        %v6963 = vunpack.c.l.b16 %v6784
        %v6964 = vunpack.c.h.b16 %v6784
        %v6965 = vunpack.c.l.b16 %v6785
        %v6966 = vunpack.c.h.b16 %v6785
        %v6967 = vunpack.c.l.b16 %v6786
        %v6968 = vunpack.c.h.b16 %v6786
        %v6969 = vunpack.c.l.b16 %v6787
        %v6970 = vunpack.c.h.b16 %v6787
        %v6971 = vunpack.c.l.b16 %v6788
        %v6972 = vunpack.c.h.b16 %v6788
        %v6973 = vunpack.c.l.b16 %v6789
        %v6974 = vunpack.c.h.b16 %v6789
        %v6975 = vunpack.c.l.b16 %v6790
        %v6976 = vunpack.c.h.b16 %v6790
        %v6977 = vunpack.c.l.b16 %v6791
        %v6978 = vunpack.c.h.b16 %v6791
        %v6979 = vunpack.c.l.b16 %v6792
        %v6980 = vunpack.c.h.b16 %v6792
        %v6981 = vunpack.c.l.b16 %v6793
        %v6982 = vunpack.c.h.b16 %v6793
        %v6983 = vunpack.c.l.b16 %v6794
        %v6984 = vunpack.c.h.b16 %v6794
        %v6985 = vunpack.c.l.b16 %v6795
        %v6986 = vunpack.c.h.b16 %v6795
        %v6987 = vunpack.c.l.b16 %v6796
        %v6988 = vunpack.c.h.b16 %v6796
        %v6989 = vpack.c.b16 %v6865, %v6861
        %v6990 = vpack.c.b16 %v6866, %v6862
        %v6991 = vpack.c.b16 %v6867, %v6863
        %v6992 = vpack.c.b16 %v6868, %v6864
        %v6993 = vpack.c.b16 %v6873, %v6869
        %v6994 = vpack.c.b16 %v6874, %v6870
        %v6995 = vpack.c.b16 %v6875, %v6871
        %v6996 = vpack.c.b16 %v6876, %v6872
        %v6997 = vpack.c.b16 %v6881, %v6877
        %v6998 = vpack.c.b16 %v6882, %v6878
        %v6999 = vpack.c.b16 %v6883, %v6879
        %v7000 = vpack.c.b16 %v6884, %v6880
        %v7001 = vpack.c.b16 %v6889, %v6885
        %v7002 = vpack.c.b16 %v6890, %v6886
        %v7003 = vpack.c.b16 %v6891, %v6887
        %v7004 = vpack.c.b16 %v6892, %v6888
        %v7005 = vpack.c.b16 %v6897, %v6893
        %v7006 = vpack.c.b16 %v6898, %v6894
        %v7007 = vpack.c.b16 %v6899, %v6895
        %v7008 = vpack.c.b16 %v6900, %v6896
        %v7009 = vpack.c.b16 %v6905, %v6901
        %v7010 = vpack.c.b16 %v6906, %v6902
        %v7011 = vpack.c.b16 %v6907, %v6903
        %v7012 = vpack.c.b16 %v6908, %v6904
        %v7013 = vpack.c.b16 %v6913, %v6909
        %v7014 = vpack.c.b16 %v6914, %v6910
        %v7015 = vpack.c.b16 %v6915, %v6911
        %v7016 = vpack.c.b16 %v6916, %v6912
        %v7017 = vpack.c.b16 %v6921, %v6917
        %v7018 = vpack.c.b16 %v6922, %v6918
        %v7019 = vpack.c.b16 %v6923, %v6919
        %v7020 = vpack.c.b16 %v6924, %v6920
        %v7021 = vpack.c.b16 %v6929, %v6925
        %v7022 = vpack.c.b16 %v6930, %v6926
        %v7023 = vpack.c.b16 %v6931, %v6927
        %v7024 = vpack.c.b16 %v6932, %v6928
        %v7025 = vpack.c.b16 %v6937, %v6933
        %v7026 = vpack.c.b16 %v6938, %v6934
        %v7027 = vpack.c.b16 %v6939, %v6935
        %v7028 = vpack.c.b16 %v6940, %v6936
        %v7029 = vpack.c.b16 %v6945, %v6941
        %v7030 = vpack.c.b16 %v6946, %v6942
        %v7031 = vpack.c.b16 %v6947, %v6943
        %v7032 = vpack.c.b16 %v6948, %v6944
        %v7033 = vpack.c.b16 %v6953, %v6949
        %v7034 = vpack.c.b16 %v6954, %v6950
        %v7035 = vpack.c.b16 %v6955, %v6951
        %v7036 = vpack.c.b16 %v6956, %v6952
        %v7037 = vpack.c.b16 %v6961, %v6957
        %v7038 = vpack.c.b16 %v6962, %v6958
        %v7039 = vpack.c.b16 %v6963, %v6959
        %v7040 = vpack.c.b16 %v6964, %v6960
        %v7041 = vpack.c.b16 %v6969, %v6965
        %v7042 = vpack.c.b16 %v6970, %v6966
        %v7043 = vpack.c.b16 %v6971, %v6967
        %v7044 = vpack.c.b16 %v6972, %v6968
        %v7045 = vpack.c.b16 %v6977, %v6973
        %v7046 = vpack.c.b16 %v6978, %v6974
        %v7047 = vpack.c.b16 %v6979, %v6975
        %v7048 = vpack.c.b16 %v6980, %v6976
        %v7049 = vpack.c.b16 %v6985, %v6981
        %v7050 = vpack.c.b16 %v6986, %v6982
        %v7051 = vpack.c.b16 %v6987, %v6983
        %v7052 = vpack.c.b16 %v6988, %v6984
        %7117 = vmatpush.bf16.msra.mxu0 %v7017
        %7118 = vmatpush.bf16.msra.mxu0 %v7013
        %7119 = vmatpush.bf16.msra.mxu0 %v7009
        %7120 = vmatpush.bf16.msra.mxu0 %v7005
        %7121 = vmatpush.bf16.msra.mxu0 %v7001
        %7122 = vmatpush.bf16.msra.mxu0 %v6997
        %7123 = vmatpush.bf16.msra.mxu0 %v6993
        %7124 = vmatpush.bf16.msra.mxu0 %v6989
        %7125 = vmatmul.bf16.gmra.mxu0 %v6731
        %v7126 = vpop.f32.mrf.mxu0
        %v7127 = vadd.f32 0.0, %v7126
        %v7128 = vpop.f32.mrf.mxu0
        %7129 = vdwg.mxu0
        %7130 = vmatpush.bf16.msra.mxu0 %v7049
        %7131 = vmatpush.bf16.msra.mxu0 %v7045
        %7132 = vmatpush.bf16.msra.mxu0 %v7041
        %7133 = vmatpush.bf16.msra.mxu0 %v7037
        %7134 = vmatpush.bf16.msra.mxu0 %v7033
        %7135 = vmatpush.bf16.msra.mxu0 %v7029
        %7136 = vmatpush.bf16.msra.mxu0 %v7025
        %7137 = vmatpush.bf16.msra.mxu0 %v7021
        %7138 = vmatmul.bf16.gmra.mxu0 %v6732
        %v7139 = vpop.f32.mrf.mxu0
        %v7140 = vadd.f32 %v7127, %v7139
        %v7141 = vpop.f32.mrf.mxu0
        %7142 = vdwg.mxu0
        %7143 = vmatpush.bf16.msra.mxu0 %v7018
        %7144 = vmatpush.bf16.msra.mxu0 %v7014
        %7145 = vmatpush.bf16.msra.mxu0 %v7010
        %7146 = vmatpush.bf16.msra.mxu0 %v7006
        %7147 = vmatpush.bf16.msra.mxu0 %v7002
        %7148 = vmatpush.bf16.msra.mxu0 %v6998
        %7149 = vmatpush.bf16.msra.mxu0 %v6994
        %7150 = vmatpush.bf16.msra.mxu0 %v6990
        %7151 = vmatmul.bf16.gmra.mxu0 %v6731
        %v7152 = vpop.f32.mrf.mxu0
        %v7153 = vadd.f32 0.0, %v7152
        %v7154 = vpop.f32.mrf.mxu0
        %7155 = vdwg.mxu0
        %7156 = vmatpush.bf16.msra.mxu0 %v7050
        %7157 = vmatpush.bf16.msra.mxu0 %v7046
        %7158 = vmatpush.bf16.msra.mxu0 %v7042
        %7159 = vmatpush.bf16.msra.mxu0 %v7038
        %7160 = vmatpush.bf16.msra.mxu0 %v7034
        %7161 = vmatpush.bf16.msra.mxu0 %v7030
        %7162 = vmatpush.bf16.msra.mxu0 %v7026
        %7163 = vmatpush.bf16.msra.mxu0 %v7022
        %7164 = vmatmul.bf16.gmra.mxu0 %v6732
        %v7165 = vpop.f32.mrf.mxu0
        %v7166 = vadd.f32 %v7153, %v7165
        %v7167 = vpop.f32.mrf.mxu0
        %7168 = vdwg.mxu0
        %7169 = vmatpush.bf16.msra.mxu0 %v7019
        %7170 = vmatpush.bf16.msra.mxu0 %v7015
        %7171 = vmatpush.bf16.msra.mxu0 %v7011
        %7172 = vmatpush.bf16.msra.mxu0 %v7007
        %7173 = vmatpush.bf16.msra.mxu0 %v7003
        %7174 = vmatpush.bf16.msra.mxu0 %v6999
        %7175 = vmatpush.bf16.msra.mxu0 %v6995
        %7176 = vmatpush.bf16.msra.mxu0 %v6991
        %7177 = vmatmul.bf16.gmra.mxu0 %v6731
        %v7178 = vpop.f32.mrf.mxu0
        %v7179 = vadd.f32 0.0, %v7178
        %v7180 = vpop.f32.mrf.mxu0
        %7181 = vdwg.mxu0
        %7182 = vmatpush.bf16.msra.mxu0 %v7051
        %7183 = vmatpush.bf16.msra.mxu0 %v7047
        %7184 = vmatpush.bf16.msra.mxu0 %v7043
        %7185 = vmatpush.bf16.msra.mxu0 %v7039
        %7186 = vmatpush.bf16.msra.mxu0 %v7035
        %7187 = vmatpush.bf16.msra.mxu0 %v7031
        %7188 = vmatpush.bf16.msra.mxu0 %v7027
        %7189 = vmatpush.bf16.msra.mxu0 %v7023
        %7190 = vmatmul.bf16.gmra.mxu0 %v6732
        %v7191 = vpop.f32.mrf.mxu0
        %v7192 = vadd.f32 %v7179, %v7191
        %v7193 = vpop.f32.mrf.mxu0
        %7194 = vdwg.mxu0
        %7195 = vmatpush.bf16.msra.mxu0 %v7020
        %7196 = vmatpush.bf16.msra.mxu0 %v7016
        %7197 = vmatpush.bf16.msra.mxu0 %v7012
        %7198 = vmatpush.bf16.msra.mxu0 %v7008
        %7199 = vmatpush.bf16.msra.mxu0 %v7004
        %7200 = vmatpush.bf16.msra.mxu0 %v7000
        %7201 = vmatpush.bf16.msra.mxu0 %v6996
        %7202 = vmatpush.bf16.msra.mxu0 %v6992
        %7203 = vmatmul.bf16.gmra.mxu0 %v6731
        %v7204 = vpop.f32.mrf.mxu0
        %v7205 = vadd.f32 0.0, %v7204
        %v7206 = vpop.f32.mrf.mxu0
        %7207 = vdwg.mxu0
        %7208 = vmatpush.bf16.msra.mxu0 %v7052
        %7209 = vmatpush.bf16.msra.mxu0 %v7048
        %7210 = vmatpush.bf16.msra.mxu0 %v7044
        %7211 = vmatpush.bf16.msra.mxu0 %v7040
        %7212 = vmatpush.bf16.msra.mxu0 %v7036
        %7213 = vmatpush.bf16.msra.mxu0 %v7032
        %7214 = vmatpush.bf16.msra.mxu0 %v7028
        %7215 = vmatpush.bf16.msra.mxu0 %v7024
        %7216 = vmatmul.bf16.gmra.mxu0 %v6732
        %v7217 = vpop.f32.mrf.mxu0
        %v7218 = vadd.f32 %v7205, %v7217
        %v7219 = vpop.f32.mrf.mxu0
        %7220 = vdwg.mxu0
        %v7225 = vrot.slane %v7166, 7
        %v7226 = vrot.slane %v7192, 6
        %v7227 = vrot.slane %v7218, 5
        %vm7228 = vcmask 1040384
        %v7229 = vsel %vm7228, %v7140, %v7225
        %vm7230 = vcmask 1042434
        %v7231 = vsel %vm7230, %v7226, %v7227
        %v7232 = vsel %vm751, %v7229, %v7231
        %v7234 = vadd.f32 %v6730, %v7232
        %v7235 = vlaneseq
        %vm7236 = vcmp.ge.s32.totalorder %v7235, 0
        %vm7237 = vcmp.lt.s32.totalorder %v7235, 512
        %vm7238 = vmand %vm7236, %vm7237
        %7239 = vst.msk [vmem:[#allocation2] sm:$0xf] %vm7238, %v7234
        %p7240 = scmp.eq.s32.totalorder %s26, 4
        // Predicated region
        $region94: #{cnn_classifier_forward.1} parent=84 // pred_check
          %p7241 = pneg %p7240
        $region95: #{cnn_classifier_forward.1} parent=84 // pred_check_branch
          %7243 = sbr.rel (%p7241) target = $region97
        $region96: #{cnn_classifier_forward.1} parent=84 // pred_region
          %v7244 = vld [vmem:[#allocation2] sm:$0xf]
          %v7245 = vld [vmem:[%s4] sm:$0xf]
          %v7246 = vadd.f32 %v7244, %v7245
          %v7247 = vsub.f32 0.0, %v7246
          %v7248 = vmul.f32 %v7247, 1.442695
          %v7249 = vpow.pop %v7248
          %v7250 = vadd.f32 %v7249, 1.0
          %v7251 = vrcp.pop %v7250
          %v7252 = vmul.f32 %v7250, %v7251
          %v7253 = vsub.f32 1.0, %v7252
          %v7254 = vmul.f32 %v7251, %v7253
          %v7255 = vadd.f32 %v7251, %v7254
          %vm7256 = vweird.f32 %v7250
          %vm7257 = vweird.f32 %v7251
          %vm7258 = vmor %vm7256, %vm7257
          %v7259 = vsel %vm7258, %v7251, %v7255
          %v7260 = vand.u32 2147483647, %v7250
          %vm7261 = vcmp.eq.f32.partialorder %v7260, 8.507059e+37
          %v7262 = vand.u32 %v7250, 2147483648
          %v7263 = vor.u32 1.1754944e-38, %v7262
          %v7264 = vsel %vm7261, %v7263, %v7259
          %v7265 = vmul.f32 %v7246, %v7264
          %v7267 = vperm.slane %v7265, 0
          %v7268 = vperm.slane %v7265, 1
          %v7269 = vperm.slane %v7265, 2
          %v7270 = vperm.slane %v7265, 3
          %v7275 = vpack.c.bf16 %v7267, %v7267
          %v7276 = vpack.c.bf16 %v7268, %v7268
          %v7277 = vpack.c.bf16 %v7269, %v7269
          %v7278 = vpack.c.bf16 %v7270, %v7270
          %v7279 = vld [vmem:[%s5] sm:$0xf]
          %v7280 = vld [vmem:[%s5 + $0x4] sm:$0xf]
          %v7281 = vld [vmem:[%s5 + $0x8] sm:$0xf]
          %v7282 = vld [vmem:[%s5 + $0xc] sm:$0xf]
          %v7283 = vld [vmem:[%s5 + $0x10] sm:$0xf]
          %v7284 = vld [vmem:[%s5 + $0x14] sm:$0xf]
          %v7285 = vld [vmem:[%s5 + $0x18] sm:$0xf]
          %v7286 = vld [vmem:[%s5 + $0x1c] sm:$0xf]
          %v7287 = vld [vmem:[%s5 + $0x20] sm:$0xf]
          %v7288 = vld [vmem:[%s5 + $0x24] sm:$0xf]
          %v7289 = vld [vmem:[%s5 + $0x28] sm:$0xf]
          %v7290 = vld [vmem:[%s5 + $0x2c] sm:$0xf]
          %v7291 = vld [vmem:[%s5 + $0x30] sm:$0xf]
          %v7292 = vld [vmem:[%s5 + $0x34] sm:$0xf]
          %v7293 = vld [vmem:[%s5 + $0x38] sm:$0xf]
          %v7294 = vld [vmem:[%s5 + $0x3c] sm:$0xf]
          %v7295 = vld [vmem:[%s5 + $0x40] sm:$0xf]
          %v7296 = vld [vmem:[%s5 + $0x44] sm:$0xf]
          %v7297 = vld [vmem:[%s5 + $0x48] sm:$0xf]
          %v7298 = vld [vmem:[%s5 + $0x4c] sm:$0xf]
          %v7299 = vld [vmem:[%s5 + $0x50] sm:$0xf]
          %v7300 = vld [vmem:[%s5 + $0x54] sm:$0xf]
          %v7301 = vld [vmem:[%s5 + $0x58] sm:$0xf]
          %v7302 = vld [vmem:[%s5 + $0x5c] sm:$0xf]
          %v7303 = vld [vmem:[%s5 + $0x60] sm:$0xf]
          %v7304 = vld [vmem:[%s5 + $0x64] sm:$0xf]
          %v7305 = vld [vmem:[%s5 + $0x68] sm:$0xf]
          %v7306 = vld [vmem:[%s5 + $0x6c] sm:$0xf]
          %v7307 = vld [vmem:[%s5 + $0x70] sm:$0xf]
          %v7308 = vld [vmem:[%s5 + $0x74] sm:$0xf]
          %v7309 = vld [vmem:[%s5 + $0x78] sm:$0xf]
          %v7310 = vld [vmem:[%s5 + $0x7c] sm:$0xf]
          %v7311 = vld [vmem:[%s5 + $0x80] sm:$0xf]
          %v7312 = vld [vmem:[%s5 + $0x84] sm:$0xf]
          %v7313 = vld [vmem:[%s5 + $0x88] sm:$0xf]
          %v7314 = vld [vmem:[%s5 + $0x8c] sm:$0xf]
          %v7315 = vld [vmem:[%s5 + $0x90] sm:$0xf]
          %v7316 = vld [vmem:[%s5 + $0x94] sm:$0xf]
          %v7317 = vld [vmem:[%s5 + $0x98] sm:$0xf]
          %v7318 = vld [vmem:[%s5 + $0x9c] sm:$0xf]
          %v7319 = vld [vmem:[%s5 + $0xa0] sm:$0xf]
          %v7320 = vld [vmem:[%s5 + $0xa4] sm:$0xf]
          %v7321 = vld [vmem:[%s5 + $0xa8] sm:$0xf]
          %v7322 = vld [vmem:[%s5 + $0xac] sm:$0xf]
          %v7323 = vld [vmem:[%s5 + $0xb0] sm:$0xf]
          %v7324 = vld [vmem:[%s5 + $0xb4] sm:$0xf]
          %v7325 = vld [vmem:[%s5 + $0xb8] sm:$0xf]
          %v7326 = vld [vmem:[%s5 + $0xbc] sm:$0xf]
          %v7327 = vld [vmem:[%s5 + $0xc0] sm:$0xf]
          %v7328 = vld [vmem:[%s5 + $0xc4] sm:$0xf]
          %v7329 = vld [vmem:[%s5 + $0xc8] sm:$0xf]
          %v7330 = vld [vmem:[%s5 + $0xcc] sm:$0xf]
          %v7331 = vld [vmem:[%s5 + $0xd0] sm:$0xf]
          %v7332 = vld [vmem:[%s5 + $0xd4] sm:$0xf]
          %v7333 = vld [vmem:[%s5 + $0xd8] sm:$0xf]
          %v7334 = vld [vmem:[%s5 + $0xdc] sm:$0xf]
          %v7335 = vld [vmem:[%s5 + $0xe0] sm:$0xf]
          %v7336 = vld [vmem:[%s5 + $0xe4] sm:$0xf]
          %v7337 = vld [vmem:[%s5 + $0xe8] sm:$0xf]
          %v7338 = vld [vmem:[%s5 + $0xec] sm:$0xf]
          %v7339 = vld [vmem:[%s5 + $0xf0] sm:$0xf]
          %v7340 = vld [vmem:[%s5 + $0xf4] sm:$0xf]
          %v7341 = vld [vmem:[%s5 + $0xf8] sm:$0xf]
          %v7342 = vld [vmem:[%s5 + $0xfc] sm:$0xf]
          %v7343 = vld [vmem:[%s6] sm:$0x1]
          %v7408 = vunpack.c.l.b16 %v7279
          %v7409 = vunpack.c.l.b16 %v7280
          %v7410 = vunpack.c.l.b16 %v7281
          %v7411 = vunpack.c.l.b16 %v7282
          %v7412 = vunpack.c.l.b16 %v7283
          %v7413 = vunpack.c.l.b16 %v7284
          %v7414 = vunpack.c.l.b16 %v7285
          %v7415 = vunpack.c.l.b16 %v7286
          %v7416 = vunpack.c.l.b16 %v7287
          %v7417 = vunpack.c.l.b16 %v7288
          %v7418 = vunpack.c.l.b16 %v7289
          %v7419 = vunpack.c.l.b16 %v7290
          %v7420 = vunpack.c.l.b16 %v7291
          %v7421 = vunpack.c.l.b16 %v7292
          %v7422 = vunpack.c.l.b16 %v7293
          %v7423 = vunpack.c.l.b16 %v7294
          %v7424 = vunpack.c.l.b16 %v7295
          %v7425 = vunpack.c.l.b16 %v7296
          %v7426 = vunpack.c.l.b16 %v7297
          %v7427 = vunpack.c.l.b16 %v7298
          %v7428 = vunpack.c.l.b16 %v7299
          %v7429 = vunpack.c.l.b16 %v7300
          %v7430 = vunpack.c.l.b16 %v7301
          %v7431 = vunpack.c.l.b16 %v7302
          %v7432 = vunpack.c.l.b16 %v7303
          %v7433 = vunpack.c.l.b16 %v7304
          %v7434 = vunpack.c.l.b16 %v7305
          %v7435 = vunpack.c.l.b16 %v7306
          %v7436 = vunpack.c.l.b16 %v7307
          %v7437 = vunpack.c.l.b16 %v7308
          %v7438 = vunpack.c.l.b16 %v7309
          %v7439 = vunpack.c.l.b16 %v7310
          %v7440 = vunpack.c.l.b16 %v7311
          %v7441 = vunpack.c.l.b16 %v7312
          %v7442 = vunpack.c.l.b16 %v7313
          %v7443 = vunpack.c.l.b16 %v7314
          %v7444 = vunpack.c.l.b16 %v7315
          %v7445 = vunpack.c.l.b16 %v7316
          %v7446 = vunpack.c.l.b16 %v7317
          %v7447 = vunpack.c.l.b16 %v7318
          %v7448 = vunpack.c.l.b16 %v7319
          %v7449 = vunpack.c.l.b16 %v7320
          %v7450 = vunpack.c.l.b16 %v7321
          %v7451 = vunpack.c.l.b16 %v7322
          %v7452 = vunpack.c.l.b16 %v7323
          %v7453 = vunpack.c.l.b16 %v7324
          %v7454 = vunpack.c.l.b16 %v7325
          %v7455 = vunpack.c.l.b16 %v7326
          %v7456 = vunpack.c.l.b16 %v7327
          %v7457 = vunpack.c.l.b16 %v7328
          %v7458 = vunpack.c.l.b16 %v7329
          %v7459 = vunpack.c.l.b16 %v7330
          %v7460 = vunpack.c.l.b16 %v7331
          %v7461 = vunpack.c.l.b16 %v7332
          %v7462 = vunpack.c.l.b16 %v7333
          %v7463 = vunpack.c.l.b16 %v7334
          %v7464 = vunpack.c.l.b16 %v7335
          %v7465 = vunpack.c.l.b16 %v7336
          %v7466 = vunpack.c.l.b16 %v7337
          %v7467 = vunpack.c.l.b16 %v7338
          %v7468 = vunpack.c.l.b16 %v7339
          %v7469 = vunpack.c.l.b16 %v7340
          %v7470 = vunpack.c.l.b16 %v7341
          %v7471 = vunpack.c.l.b16 %v7342
          %v7472 = vpack.c.b16 %v7409, %v7408
          %v7473 = vpack.c.b16 %v7411, %v7410
          %v7474 = vpack.c.b16 %v7413, %v7412
          %v7475 = vpack.c.b16 %v7415, %v7414
          %v7476 = vpack.c.b16 %v7417, %v7416
          %v7477 = vpack.c.b16 %v7419, %v7418
          %v7478 = vpack.c.b16 %v7421, %v7420
          %v7479 = vpack.c.b16 %v7423, %v7422
          %v7480 = vpack.c.b16 %v7425, %v7424
          %v7481 = vpack.c.b16 %v7427, %v7426
          %v7482 = vpack.c.b16 %v7429, %v7428
          %v7483 = vpack.c.b16 %v7431, %v7430
          %v7484 = vpack.c.b16 %v7433, %v7432
          %v7485 = vpack.c.b16 %v7435, %v7434
          %v7486 = vpack.c.b16 %v7437, %v7436
          %v7487 = vpack.c.b16 %v7439, %v7438
          %v7488 = vpack.c.b16 %v7441, %v7440
          %v7489 = vpack.c.b16 %v7443, %v7442
          %v7490 = vpack.c.b16 %v7445, %v7444
          %v7491 = vpack.c.b16 %v7447, %v7446
          %v7492 = vpack.c.b16 %v7449, %v7448
          %v7493 = vpack.c.b16 %v7451, %v7450
          %v7494 = vpack.c.b16 %v7453, %v7452
          %v7495 = vpack.c.b16 %v7455, %v7454
          %v7496 = vpack.c.b16 %v7457, %v7456
          %v7497 = vpack.c.b16 %v7459, %v7458
          %v7498 = vpack.c.b16 %v7461, %v7460
          %v7499 = vpack.c.b16 %v7463, %v7462
          %v7500 = vpack.c.b16 %v7465, %v7464
          %v7501 = vpack.c.b16 %v7467, %v7466
          %v7502 = vpack.c.b16 %v7469, %v7468
          %v7503 = vpack.c.b16 %v7471, %v7470
          %7536 = vmatpush.bf16.msra.mxu0 %v7479
          %7537 = vmatpush.bf16.msra.mxu0 %v7478
          %7538 = vmatpush.bf16.msra.mxu0 %v7477
          %7539 = vmatpush.bf16.msra.mxu0 %v7476
          %7540 = vmatpush.bf16.msra.mxu0 %v7475
          %7541 = vmatpush.bf16.msra.mxu0 %v7474
          %7542 = vmatpush.bf16.msra.mxu0 %v7473
          %7543 = vmatpush.bf16.msra.mxu0 %v7472
          %7544 = vmatmul.bf16.gmra.mxu0 %v7275
          %v7545 = vpop.f32.mrf.mxu0
          %v7546 = vadd.f32 %v7343, %v7545
          %v7547 = vpop.f32.mrf.mxu0
          %7548 = vdwg.mxu0
          %7549 = vmatpush.bf16.msra.mxu0 %v7487
          %7550 = vmatpush.bf16.msra.mxu0 %v7486
          %7551 = vmatpush.bf16.msra.mxu0 %v7485
          %7552 = vmatpush.bf16.msra.mxu0 %v7484
          %7553 = vmatpush.bf16.msra.mxu0 %v7483
          %7554 = vmatpush.bf16.msra.mxu0 %v7482
          %7555 = vmatpush.bf16.msra.mxu0 %v7481
          %7556 = vmatpush.bf16.msra.mxu0 %v7480
          %7557 = vmatmul.bf16.gmra.mxu0 %v7276
          %v7558 = vpop.f32.mrf.mxu0
          %v7559 = vadd.f32 %v7546, %v7558
          %v7560 = vpop.f32.mrf.mxu0
          %7561 = vdwg.mxu0
          %7562 = vmatpush.bf16.msra.mxu0 %v7495
          %7563 = vmatpush.bf16.msra.mxu0 %v7494
          %7564 = vmatpush.bf16.msra.mxu0 %v7493
          %7565 = vmatpush.bf16.msra.mxu0 %v7492
          %7566 = vmatpush.bf16.msra.mxu0 %v7491
          %7567 = vmatpush.bf16.msra.mxu0 %v7490
          %7568 = vmatpush.bf16.msra.mxu0 %v7489
          %7569 = vmatpush.bf16.msra.mxu0 %v7488
          %7570 = vmatmul.bf16.gmra.mxu0 %v7277
          %v7571 = vpop.f32.mrf.mxu0
          %v7572 = vadd.f32 %v7559, %v7571
          %v7573 = vpop.f32.mrf.mxu0
          %7574 = vdwg.mxu0
          %7575 = vmatpush.bf16.msra.mxu0 %v7503
          %7576 = vmatpush.bf16.msra.mxu0 %v7502
          %7577 = vmatpush.bf16.msra.mxu0 %v7501
          %7578 = vmatpush.bf16.msra.mxu0 %v7500
          %7579 = vmatpush.bf16.msra.mxu0 %v7499
          %7580 = vmatpush.bf16.msra.mxu0 %v7498
          %7581 = vmatpush.bf16.msra.mxu0 %v7497
          %7582 = vmatpush.bf16.msra.mxu0 %v7496
          %7583 = vmatmul.bf16.gmra.mxu0 %v7278
          %v7584 = vpop.f32.mrf.mxu0
          %v7585 = vadd.f32 %v7572, %v7584
          %v7586 = vpop.f32.mrf.mxu0
          %7587 = vdwg.mxu0
          %7588 = vst [vmem:[%s410] sm:$0x1] %v7585
        $region97: #{cnn_classifier_forward.1} parent=84 // pred_fallthru
          _
        %s7589 = sand.u32 %s208, 1
        %s7590 = scalar_lea.sflag [#allocation5], %s7589
        %s7591 = sand.u32 %s208, 1
        %s7592 = scalar_lea.vmem [#allocation4], %s7591
        // Predicated region
        $region98: #{cnn_classifier_forward.1} parent=84 // pred_check
          %p7593 = pneg %p218
        $region99: #{cnn_classifier_forward.1} parent=84 // pred_check_branch
          %7595 = sbr.rel (%p7593) target = $region101
        $region100: #{cnn_classifier_forward.1} parent=84 // pred_region
          %7597 = vsyncadd %s7590, 0
          %s7598 = scalar_lea.hbm %s7, %s25
          %s7600 = sshll.u32 %s7592, 4
          %s7601 = int_to_ptr.vmem [resolvable:$true] %s7600
          %s7602 = sshll.u32 %s7598, 4
          %s7603 = int_to_ptr.hbm [resolvable:$true] %s7602
          %7605 = dma.vmem_to_hbm [thread:$0]  %s7601, 16, %s7603, %s7590
        $region101: #{cnn_classifier_forward.1} parent=84 // pred_fallthru
          _
      $region85: #{cnn_classifier_forward.1} parent=5 // pred_fallthru
        _
      %p7606 = scmp.le.s32.totalorder 2, %s16
      // Predicated region
      $region102: #{cnn_classifier_forward.1} parent=5 // pred_check
        %p7607 = pneg %p7606
      $region103: #{cnn_classifier_forward.1} parent=5 // pred_check_branch
        %7609 = sbr.rel (%p7607) target = $region105
      $region104: #{cnn_classifier_forward.1} parent=5 // pred_region
        %s7610 = ssub.s32 %s16, 2
        // Predicated region
        $region106: #{cnn_classifier_forward.1} parent=104 // pred_check
          %p7611 = pneg %p224
        $region107: #{cnn_classifier_forward.1} parent=104 // pred_check_branch
          %7613 = sbr.rel (%p7611) target = $region109
        $region108: #{cnn_classifier_forward.1} parent=104 // pred_region
          %s7614 = sand.u32 %s209, 1
          %s7615 = scalar_lea.sflag [#allocation5], %s7614
          %s7616 = sand.u32 %s209, 1
          %s7617 = scalar_lea.vmem [#allocation4], %s7616
          %7619 = dma.done %s7615, 16
        $region109: #{cnn_classifier_forward.1} parent=104 // pred_fallthru
          _
      $region105: #{cnn_classifier_forward.1} parent=5 // pred_fallthru
        _
    $region6: #{cnn_classifier_forward.1} parent=1 // loop_footer
      %s20 = sadd.s32 1, %s16
    $region7: #{cnn_classifier_forward.1} parent=1 // loop_footer_branch
      %15 = sbr.rel target = $region3
    $region8: #{cnn_classifier_forward.1} parent=1 // loop_exit
      _
    %7620 = vsyncpa [#allocation5], 1
    %s7621 = scalar_lea.sflag [#allocation5], 1
    %7622 = vsyncpa %s7621, 1

</llo_original>
